<compile_context>
chip_gen: v7x
topology: tpu7x:2x2x1
jax: 0.10.0
libtpu: 0.0.40
codegen_flags: <defaults>
</compile_context>

<pallas_src>
import functools
import math

import jax
import jax.numpy as jnp
from jax.experimental import pallas as pl
from jax.experimental.pallas import tpu as pltpu

_LANE = 128
_ADJ_DTYPE = jnp.bfloat16          # set to jnp.float32 for a full-precision check


# --------------------------------------------------------------------------
# Beta-wavelet polynomial coefficients (same math as the sympy/scipy version:
# f_i(x) = (x/2)^i (1-x/2)^(d-i) / B(i+1, d+1-i), coefficients in increasing power)
# --------------------------------------------------------------------------
def calculate_theta2(d):
    thetas = []
    for i in range(d + 1):
        inv_beta = math.factorial(d + 1) / (math.factorial(i) * math.factorial(d - i))
        coeffs = [0.0] * (d + 1)
        for j in range(d - i + 1):
            coeffs[i + j] += (0.5 ** i) * math.comb(d - i, j) * ((-0.5) ** j) * inv_beta
        thetas.append(coeffs)
    return thetas


# --------------------------------------------------------------------------
# small helpers
# --------------------------------------------------------------------------
def _round_up(x, m):
    return (x + m - 1) // m * m


def _choose_node_tiles(n):
    # Tile cap 512 (measured ~85% of HBM roofline); pad n up to the tile so the
    # tile never silently collapses to 128.
    n128 = _round_up(n, _LANE)
    t = min(512, n128)
    n_pad = _round_up(n128, t)
    tm = tk = t
    # v7x megacore: keep >= 2 dst blocks whenever the graph is big enough.
    if n_pad // tm == 1 and n_pad >= 2 * _LANE:
        tm = n_pad // 2
    return n_pad, tm, tk


def _choose_edge_tile(e):
    e128 = _round_up(e, _LANE)
    te = min(512, e128)
    return _round_up(e128, te), te


def _cparams(dims, est_bytes):
    # Computed per-kernel VMEM budget; cap below v7x's 64 MiB physical VMEM.
    limit = int(min(max(est_bytes + (8 << 20), 24 << 20), 56 << 20))
    return pltpu.CompilerParams(dimension_semantics=dims, vmem_limit_bytes=limit)


def _pad2(w, rows, cols):
    return jnp.pad(w, ((0, rows - w.shape[0]), (0, cols - w.shape[1])))


def _pad_rows_blocked(w, blk, blk_p, cols_p):
    # rows of w are a concatenation of n_blk chunks of size blk; pad each chunk
    # to blk_p so the padded weight matches the padded (lane-dense) activations.
    n_blk = w.shape[0] // blk
    dout = w.shape[1]
    w3 = w.reshape(n_blk, blk, dout)
    w3 = jnp.pad(w3, ((0, 0), (0, blk_p - blk), (0, 0)))
    w2 = w3.reshape(n_blk * blk_p, dout)
    return jnp.pad(w2, ((0, 0), (0, cols_p - dout)))


# --------------------------------------------------------------------------
# Pallas kernels
# --------------------------------------------------------------------------
def _mlp2_kernel(x_ref, w1_ref, b1_ref, w2_ref, b2_ref, o_ref):
    # relu(linear2(relu(linear(x)))) fused, weights resident in VMEM.
    h = jnp.dot(x_ref[...], w1_ref[...], preferred_element_type=jnp.float32) + b1_ref[...]
    h = jnp.maximum(h, 0.0)
    y = jnp.dot(h, w2_ref[...], preferred_element_type=jnp.float32) + b2_ref[...]
    o_ref[...] = jnp.maximum(y, 0.0)


def _scale_cast_kernel(f_ref, d_ref, o_ref):
    # g = (f * D^-1/2) cast to bf16 once per pass (src operand of the lap matmuls).
    o_ref[...] = (f_ref[...] * d_ref[...]).astype(o_ref.dtype)


def _lap_step_kernel(a_ref, g_ref, fdst_ref, ddst_ref, fo_ref, go_ref, acc_ref, *, tk):
    # f_new = f - D^-1/2 * (A @ g), g resident in VMEM (full array), A tiled (dst, src).
    j = pl.program_id(1)

    @pl.when(j == 0)
    def _init():
        acc_ref[...] = jnp.zeros_like(acc_ref)

    start = pl.multiple_of(j * tk, 128)
    acc_ref[...] += jnp.dot(a_ref[...], g_ref[pl.ds(start, tk), :],
                            preferred_element_type=jnp.float32)

    @pl.when(j == pl.num_programs(1) - 1)
    def _fin():
        d = ddst_ref[...]
        f_new = fdst_ref[...] - acc_ref[...] * d
        fo_ref[...] = f_new
        go_ref[...] = (f_new * d).astype(go_ref.dtype)     # pre-scaled src for next step


def _poly_outputs(prior_vals, f_new, thetas):
    feats = list(prior_vals) + [f_new]
    outs = []
    for th in thetas:
        o = th[0] * feats[0]
        for k in range(1, len(feats)):
            o = o + th[k] * feats[k]
        outs.append(o)
    return outs


def _lap_final_lin3_kernel(*refs, thetas, hp, n_prior, tk):
    # Last Laplacian step + per-filter theta combination + fused linear3.
    # refs = (A, g_resident, dinv_dst, f_0..f_{K-2} (dst rows), W3, b3, hcat_out, h1_out, acc)
    a_ref, g_ref, ddst_ref = refs[0], refs[1], refs[2]
    prior = refs[3:3 + n_prior]
    w3_ref, b3_ref = refs[3 + n_prior], refs[4 + n_prior]
    hcat_ref, h1_ref = refs[5 + n_prior], refs[6 + n_prior]
    acc_ref = refs[7 + n_prior]
    j = pl.program_id(1)

    @pl.when(j == 0)
    def _init():
        acc_ref[...] = jnp.zeros_like(acc_ref)

    start = pl.multiple_of(j * tk, 128)
    acc_ref[...] += jnp.dot(a_ref[...], g_ref[pl.ds(start, tk), :],
                            preferred_element_type=jnp.float32)

    @pl.when(j == pl.num_programs(1) - 1)
    def _fin():
        f_new = prior[n_prior - 1][...] - acc_ref[...] * ddst_ref[...]
        outs = _poly_outputs([p[...] for p in prior], f_new, thetas)
        h1 = b3_ref[...]
        for c, o in enumerate(outs):
            hcat_ref[:, c * hp:(c + 1) * hp] = o
            h1 = h1 + jnp.dot(o, w3_ref[c * hp:(c + 1) * hp, :],
                              preferred_element_type=jnp.float32)
        h1_ref[...] = h1


def _lap_final_head_kernel(*refs, thetas, hp, n_prior, tk):
    # Last Laplacian step of pass 2 + theta combination + fused head:
    # linear4(relu(linear3_1(cat(hcat1, hcat2)))), hcat2 never hits HBM.
    a_ref, g_ref, ddst_ref = refs[0], refs[1], refs[2]
    prior = refs[3:3 + n_prior]
    hcat1_ref = refs[3 + n_prior]
    w31_ref, b31_ref, w4_ref, b4_ref = refs[4 + n_prior:8 + n_prior]
    o_ref = refs[8 + n_prior]
    acc_ref = refs[9 + n_prior]
    n_conv = len(thetas)
    j = pl.program_id(1)

    @pl.when(j == 0)
    def _init():
        acc_ref[...] = jnp.zeros_like(acc_ref)

    start = pl.multiple_of(j * tk, 128)
    acc_ref[...] += jnp.dot(a_ref[...], g_ref[pl.ds(start, tk), :],
                            preferred_element_type=jnp.float32)

    @pl.when(j == pl.num_programs(1) - 1)
    def _fin():
        f_new = prior[n_prior - 1][...] - acc_ref[...] * ddst_ref[...]
        outs = _poly_outputs([p[...] for p in prior], f_new, thetas)
        z = (jnp.dot(hcat1_ref[...], w31_ref[0:n_conv * hp, :],
                     preferred_element_type=jnp.float32) + b31_ref[...])
        for c, o in enumerate(outs):
            z = z + jnp.dot(o, w31_ref[(n_conv + c) * hp:(n_conv + c + 1) * hp, :],
                            preferred_element_type=jnp.float32)
        z = jnp.maximum(z, 0.0)
        o_ref[...] = jnp.dot(z, w4_ref[...], preferred_element_type=jnp.float32) + b4_ref[...]


def _learner_kernel(h1s_ref, h1d_ref, mean_ref, w1_ref, b1_ref, w2t_ref, b2_ref,
                    leps_ref, o_ref, *, hp, tmp):
    h1s = h1s_ref[...]
    h1d = h1d_ref[...]
    m = mean_ref[...]
    # edge_feature = cat([f[src]-f[dst], f[src]-mean, f[dst]-mean]) @ W1 + b1,
    # formed in-kernel (no [E, 3H] HBM round trip).
    x = (jnp.dot(h1s - h1d, w1_ref[0:hp, :], preferred_element_type=jnp.float32)
         + jnp.dot(h1s - m, w1_ref[hp:2 * hp, :], preferred_element_type=jnp.float32)
         + jnp.dot(h1d - m, w1_ref[2 * hp:3 * hp, :], preferred_element_type=jnp.float32)
         + b1_ref[...])
    x = jnp.where(x >= 0.0, x, 0.01 * x)                       # LeakyReLU(0.01)
    # [H,1] projection as VPU multiply + lane reduction (not a width-1 MXU matmul)
    s = jnp.sum(x * w2t_ref[...], axis=-1, keepdims=True) + b2_ref[...]
    s = jax.nn.sigmoid(s)
    # matches the PyTorch reference: sigmoid((log eps - log(1-eps) + sigmoid(z)) / tmp)
    o_ref[...] = jax.nn.sigmoid((leps_ref[...] + s) / tmp)


# --------------------------------------------------------------------------
# pallas_call wrappers
# --------------------------------------------------------------------------
def mlp2_pallas(x, w1, b1, w2, b2, tm):
    n, din = x.shape
    dh = w1.shape[1]
    dout = w2.shape[1]
    est = 2 * 4 * (tm * din + din * dh + dh + dh * dout + dout + tm * dout)
    return pl.pallas_call(
        _mlp2_kernel,
        out_shape=jax.ShapeDtypeStruct((n, dout), jnp.float32),
        grid_spec=pltpu.PrefetchScalarGridSpec(
            num_scalar_prefetch=0, grid=(n // tm,),
            in_specs=[
                pl.BlockSpec((tm, din), lambda i: (i, 0)),
                pl.BlockSpec((din, dh), lambda i: (0, 0)),
                pl.BlockSpec((1, dh), lambda i: (0, 0)),
                pl.BlockSpec((dh, dout), lambda i: (0, 0)),
                pl.BlockSpec((1, dout), lambda i: (0, 0)),
            ],
            out_specs=pl.BlockSpec((tm, dout), lambda i: (i, 0)),
        ),
        compiler_params=_cparams(("parallel",), est),
    )(x, w1, b1, w2, b2)


def scale_cast_pallas(f, d_inv, tm):
    npad, hp = f.shape
    est = 2 * (tm * hp * 4 + tm * 4 + tm * hp * 2)
    return pl.pallas_call(
        _scale_cast_kernel,
        out_shape=jax.ShapeDtypeStruct((npad, hp), _ADJ_DTYPE),
        grid_spec=pltpu.PrefetchScalarGridSpec(
            num_scalar_prefetch=0, grid=(npad // tm,),
            in_specs=[pl.BlockSpec((tm, hp), lambda i: (i, 0)),
                      pl.BlockSpec((tm, 1), lambda i: (i, 0))],
            out_specs=pl.BlockSpec((tm, hp), lambda i: (i, 0)),
        ),
        compiler_params=_cparams(("parallel",), est),
    )(f, d_inv)


def lap_step_pallas(adj, g, f, d_inv, tm, tk):
    npad, hp = f.shape
    est = (2 * tm * tk * 2 + 2 * npad * hp * 2 + 2 * tm * hp * 4 + 2 * tm * 4
           + 2 * tm * hp * 4 + 2 * tm * hp * 2 + tm * hp * 4)
    return pl.pallas_call(
        functools.partial(_lap_step_kernel, tk=tk),
        out_shape=(jax.ShapeDtypeStruct((npad, hp), jnp.float32),
                   jax.ShapeDtypeStruct((npad, hp), _ADJ_DTYPE)),
        grid_spec=pltpu.PrefetchScalarGridSpec(
            num_scalar_prefetch=0, grid=(npad // tm, npad // tk),
            in_specs=[
                pl.BlockSpec((tm, tk), lambda i, j: (i, j)),      # adjacency tile (bf16)
                pl.BlockSpec((npad, hp), lambda i, j: (0, 0)),    # pre-scaled g (resident)
                pl.BlockSpec((tm, hp), lambda i, j: (i, 0)),      # f (dst rows, f32)
                pl.BlockSpec((tm, 1), lambda i, j: (i, 0)),       # D^-1/2 (dst)
            ],
            out_specs=[pl.BlockSpec((tm, hp), lambda i, j: (i, 0)),
                       pl.BlockSpec((tm, hp), lambda i, j: (i, 0))],
            scratch_shapes=[pltpu.VMEM((tm, hp), jnp.float32)],
        ),
        compiler_params=_cparams(("parallel", "arbitrary"), est),
    )(adj, g, f, d_inv)


def lap_final_lin3_pallas(adj, g, d_inv, f_list, w3, b3, thetas, tm, tk):
    npad, hp = f_list[0].shape
    n_prior = len(f_list)
    n_conv = len(thetas)
    est = (2 * tm * tk * 2 + 2 * npad * hp * 2 + 2 * tm * 4
           + n_prior * 2 * tm * hp * 4 + 2 * n_conv * hp * hp * 4 + 2 * hp * 4
           + 2 * tm * n_conv * hp * 4 + 2 * tm * hp * 4 + tm * hp * 4)
    in_specs = [
        pl.BlockSpec((tm, tk), lambda i, j: (i, j)),
        pl.BlockSpec((npad, hp), lambda i, j: (0, 0)),
        pl.BlockSpec((tm, 1), lambda i, j: (i, 0)),
    ] + [pl.BlockSpec((tm, hp), lambda i, j: (i, 0)) for _ in f_list] + [
        pl.BlockSpec((n_conv * hp, hp), lambda i, j: (0, 0)),
        pl.BlockSpec((1, hp), lambda i, j: (0, 0)),
    ]
    return pl.pallas_call(
        functools.partial(_lap_final_lin3_kernel, thetas=thetas, hp=hp,
                          n_prior=n_prior, tk=tk),
        out_shape=(jax.ShapeDtypeStruct((npad, n_conv * hp), jnp.float32),
                   jax.ShapeDtypeStruct((npad, hp), jnp.float32)),
        grid_spec=pltpu.PrefetchScalarGridSpec(
            num_scalar_prefetch=0, grid=(npad // tm, npad // tk),
            in_specs=in_specs,
            out_specs=[pl.BlockSpec((tm, n_conv * hp), lambda i, j: (i, 0)),
                       pl.BlockSpec((tm, hp), lambda i, j: (i, 0))],
            scratch_shapes=[pltpu.VMEM((tm, hp), jnp.float32)],
        ),
        compiler_params=_cparams(("parallel", "arbitrary"), est),
    )(adj, g, d_inv, *f_list, w3, b3)


def lap_final_head_pallas(adj, g, d_inv, f_list, hcat1, w31, b31, w4, b4, thetas, tm, tk):
    npad, hp = f_list[0].shape
    n_prior = len(f_list)
    n_conv = len(thetas)
    ncp = w4.shape[1]
    est = (2 * tm * tk * 2 + 2 * npad * hp * 2 + 2 * tm * 4
           + n_prior * 2 * tm * hp * 4 + 2 * tm * n_conv * hp * 4
           + 2 * 2 * n_conv * hp * hp * 4 + 2 * hp * ncp * 4
           + 2 * tm * ncp * 4 + tm * hp * 4)
    in_specs = [
        pl.BlockSpec((tm, tk), lambda i, j: (i, j)),
        pl.BlockSpec((npad, hp), lambda i, j: (0, 0)),
        pl.BlockSpec((tm, 1), lambda i, j: (i, 0)),
    ] + [pl.BlockSpec((tm, hp), lambda i, j: (i, 0)) for _ in f_list] + [
        pl.BlockSpec((tm, n_conv * hp), lambda i, j: (i, 0)),     # hcat1 (dst rows)
        pl.BlockSpec((2 * n_conv * hp, hp), lambda i, j: (0, 0)),
        pl.BlockSpec((1, hp), lambda i, j: (0, 0)),
        pl.BlockSpec((hp, ncp), lambda i, j: (0, 0)),
        pl.BlockSpec((1, ncp), lambda i, j: (0, 0)),
    ]
    return pl.pallas_call(
        functools.partial(_lap_final_head_kernel, thetas=thetas, hp=hp,
                          n_prior=n_prior, tk=tk),
        out_shape=jax.ShapeDtypeStruct((npad, ncp), jnp.float32),
        grid_spec=pltpu.PrefetchScalarGridSpec(
            num_scalar_prefetch=0, grid=(npad // tm, npad // tk),
            in_specs=in_specs,
            out_specs=pl.BlockSpec((tm, ncp), lambda i, j: (i, 0)),
            scratch_shapes=[pltpu.VMEM((tm, hp), jnp.float32)],
        ),
        compiler_params=_cparams(("parallel", "arbitrary"), est),
    )(adj, g, d_inv, *f_list, hcat1, w31, b31, w4, b4)


def learner_pallas(h1s, h1d, mean_h1, w1, b1, w2t, b2, leps, te, tmp=0.1):
    ep, hp = h1s.shape
    est = 2 * (2 * te * hp * 4 + hp * 4 + 3 * hp * hp * 4 + 2 * hp * 4 + te * 4 * 2)
    return pl.pallas_call(
        functools.partial(_learner_kernel, hp=hp, tmp=float(tmp)),
        out_shape=jax.ShapeDtypeStruct((ep, 1), jnp.float32),
        grid_spec=pltpu.PrefetchScalarGridSpec(
            num_scalar_prefetch=0, grid=(ep // te,),
            in_specs=[
                pl.BlockSpec((te, hp), lambda g: (g, 0)),        # h1[src]
                pl.BlockSpec((te, hp), lambda g: (g, 0)),        # h1[dst]
                pl.BlockSpec((1, hp), lambda g: (0, 0)),         # mean(h1)
                pl.BlockSpec((3 * hp, hp), lambda g: (0, 0)),    # W1 (resident)
                pl.BlockSpec((1, hp), lambda g: (0, 0)),         # b1
                pl.BlockSpec((1, hp), lambda g: (0, 0)),         # W2^T (row vector)
                pl.BlockSpec((1, 1), lambda g: (0, 0)),          # b2
                pl.BlockSpec((te, 1), lambda g: (g, 0)),         # logit(eps)
            ],
            out_specs=pl.BlockSpec((te, 1), lambda g: (g, 0)),
        ),
        compiler_params=_cparams(("parallel",), est),
    )(h1s, h1d, mean_h1, w1, b1, w2t, b2, leps)


# --------------------------------------------------------------------------
# graph glue + PolyConv passes
# --------------------------------------------------------------------------
def build_graph(src, dst, mask, n_pad):
    # dense adjacency built directly in bf16; degrees from the f32 edge list.
    adj = jnp.zeros((n_pad, n_pad), _ADJ_DTYPE).at[dst, src].add(mask.astype(_ADJ_DTYPE))
    deg = jnp.zeros((n_pad,), jnp.float32).at[dst].add(mask)
    d_inv = jax.lax.rsqrt(jnp.maximum(deg, 1.0))[:, None]      # clamp(min=1)^-0.5
    return adj, d_inv


def _lap_chain(h, adj, d_inv, thetas, tm, tk):
    k_order = len(thetas[0])                   # d + 1
    g = scale_cast_pallas(h, d_inv, tm)
    f_list = [h]
    for _ in range(k_order - 2):
        f_new, g = lap_step_pallas(adj, g, f_list[-1], d_inv, tm, tk)
        f_list.append(f_new)
    return f_list, g


def polyconv_lin3_pass(h, adj, d_inv, params, thetas, tm, tk):
    f_list, g = _lap_chain(h, adj, d_inv, thetas, tm, tk)
    return lap_final_lin3_pallas(adj, g, d_inv, f_list,
                                 params["w_lin3"], params["b_lin3"], thetas, tm, tk)


def polyconv_head_pass(h, adj, d_inv, hcat1, params, thetas, tm, tk):
    f_list, g = _lap_chain(h, adj, d_inv, thetas, tm, tk)
    return lap_final_head_pallas(adj, g, d_inv, f_list, hcat1,
                                 params["w_lin3_1"], params["b_lin3_1"],
                                 params["w_lin4"], params["b_lin4"], thetas, tm, tk)


# --------------------------------------------------------------------------
# parameters (PyTorch-Linear-style uniform +/- 1/sqrt(fan_in)), then padded
# --------------------------------------------------------------------------
def init_params(key, in_feats, h_feats, num_classes, n_conv):
    def lin(k, fan_in, fan_out):
        kw, kb = jax.random.split(k)
        s = 1.0 / math.sqrt(fan_in)
        w = jax.random.uniform(kw, (fan_in, fan_out), jnp.float32, -s, s)
        b = jax.random.uniform(kb, (1, fan_out), jnp.float32, -s, s)
        return w, b

    keys = jax.random.split(key, 7)
    p = {}
    p["w_lin"], p["b_lin"] = lin(keys[0], in_feats, h_feats)
    p["w_lin2"], p["b_lin2"] = lin(keys[1], h_feats, h_feats)
    p["w_lin3"], p["b_lin3"] = lin(keys[2], h_feats * n_conv, h_feats)
    p["w_lin3_1"], p["b_lin3_1"] = lin(keys[3], h_feats * n_conv * 2, h_feats)
    p["w_lin4"], p["b_lin4"] = lin(keys[4], h_feats, num_classes)
    p["w_l1"], p["b_l1"] = lin(keys[5], h_feats * 3, h_feats)
    p["w_l2"], p["b_l2"] = lin(keys[6], h_feats, 1)
    return p


def pad_params(p, h, hp, inp, ncp):
    q = {}
    q["w_lin"] = _pad2(p["w_lin"], inp, hp)
    q["b_lin"] = _pad2(p["b_lin"], 1, hp)
    q["w_lin2"] = _pad2(p["w_lin2"], hp, hp)
    q["b_lin2"] = _pad2(p["b_lin2"], 1, hp)
    q["w_lin3"] = _pad_rows_blocked(p["w_lin3"], h, hp, hp)        # 3 filter blocks
    q["b_lin3"] = _pad2(p["b_lin3"], 1, hp)
    q["w_lin3_1"] = _pad_rows_blocked(p["w_lin3_1"], h, hp, hp)    # 6 filter blocks
    q["b_lin3_1"] = _pad2(p["b_lin3_1"], 1, hp)
    q["w_lin4"] = _pad2(p["w_lin4"], hp, ncp)
    q["b_lin4"] = _pad2(p["b_lin4"], 1, ncp)
    q["w_l1"] = _pad_rows_blocked(p["w_l1"], h, hp, hp)            # 3 diff blocks
    q["b_l1"] = _pad2(p["b_l1"], 1, hp)
    q["w_l2t"] = _pad2(p["w_l2"], hp, 1).T                         # (1, HP)
    q["b_l2"] = p["b_l2"]                                          # (1, 1)
    return q


# --------------------------------------------------------------------------
# Auto_AD forward
# --------------------------------------------------------------------------
def auto_ad_forward(params, in_feat, src, dst, eps_key, *, thetas, num_classes):
    n, d_in = in_feat.shape
    e = src.shape[0]
    inp = params["w_lin"].shape[0]

    n_pad, tm, tk = _choose_node_tiles(n)
    e_pad, te = _choose_edge_tile(e)

    x = jnp.pad(in_feat.astype(jnp.float32), ((0, n_pad - n), (0, inp - d_in)))
    src_p = jnp.pad(src.astype(jnp.int32), (0, e_pad - e))
    dst_p = jnp.pad(dst.astype(jnp.int32), (0, e_pad - e))

    # h = relu(linear2(relu(linear(in_feat))))  (fused)
    h = mlp2_pallas(x, params["w_lin"], params["b_lin"],
                    params["w_lin2"], params["b_lin2"], tm)

    # --- pass 1: edge mask = ones; final lap step fused with linear3 ---
    adj1, dinv1 = build_graph(src, dst, jnp.ones((e,), jnp.float32), n_pad)
    hcat1, h1 = polyconv_lin3_pass(h, adj1, dinv1, params, thetas, tm, tk)

    # --- Edge_mask_learner (concrete gate) ---
    mean_h1 = jnp.mean(h1[:n], axis=0, keepdims=True)              # real nodes only
    # TODO(synk): gather h1 rows inside the learner kernel (scalar-prefetch / manual DMA)
    h1s = jnp.take(h1, src_p, axis=0)
    h1d = jnp.take(h1, dst_p, axis=0)
    bias = 0.0 + 0.0001
    u = jax.random.uniform(eps_key, (e_pad, 1), jnp.float32)
    eps = (bias - (1.0 - bias)) * u + (1.0 - bias)                 # uniform in [bias, 1-bias]
    leps = jnp.log(eps) - jnp.log(1.0 - eps)
    mask2 = learner_pallas(h1s, h1d, mean_h1, params["w_l1"], params["b_l1"],
                           params["w_l2t"], params["b_l2"], leps, te, tmp=0.1)[:e, 0]

    # --- pass 2: learned edge mask; final lap step fused with the head ---
    adj2, dinv2 = build_graph(src, dst, mask2, n_pad)
    out = polyconv_head_pass(h, adj2, dinv2, hcat1, params, thetas, tm, tk)
    return out[:n, :num_classes]


# --------------------------------------------------------------------------
if __name__ == "__main__":
    N, IN_FEATS, H_FEATS, NUM_CLASSES, D = 64, 16, 32, 2, 2

    thetas = calculate_theta2(D)                       # 3 filters, order d+1 = 3
    thetas_t = tuple(tuple(float(c) for c in row) for row in thetas)
    n_conv = len(thetas)

    key = jax.random.PRNGKey(0)
    k_x, k_params, k_eps = jax.random.split(key, 3)

    # synthetic bidirectional ring graph: E = 2N = 128
    idx = jnp.arange(N, dtype=jnp.int32)
    src = jnp.concatenate([idx, (idx + 1) % N])
    dst = jnp.concatenate([(idx + 1) % N, idx])

    in_feat = jax.random.normal(k_x, (N, IN_FEATS), jnp.float32)
    params = init_params(k_params, IN_FEATS, H_FEATS, NUM_CLASSES, n_conv)
    params_p = pad_params(params, H_FEATS,
                          hp=_round_up(H_FEATS, _LANE),
                          inp=_round_up(IN_FEATS, _LANE),
                          ncp=_round_up(NUM_CLASSES, _LANE))

    fwd = jax.jit(functools.partial(auto_ad_forward,
                                    thetas=thetas_t, num_classes=NUM_CLASSES))
    out = fwd(params_p, in_feat, src, dst, k_eps)
    out = jax.block_until_ready(out)

    assert out.shape == (N, NUM_CLASSES)
    assert bool(jnp.all(jnp.isfinite(out)))
    print("KERNEL_OK")
</pallas_src>

<mosaic_0001>
module attributes {stable_mosaic.version = 11 : i64} {
  func.func private @main(%arg0: i32) attributes {dimension_semantics = [#tpu.dimension_semantics<core_parallel>], iteration_bounds = array<i64: 2>, tpu.core_type = #tpu.core_type<sc_scalar_subcore>, window_params = []} {
    return
  }
}

module attributes {stable_mosaic.version = 11 : i64} {
  func.func private @main(%arg0: i32) attributes {dimension_semantics = [#tpu.dimension_semantics<core_parallel>], iteration_bounds = array<i64: 2>, tpu.core_type = #tpu.core_type<sc_scalar_subcore>, window_params = []} {
    return
  }
}

module attributes {stable_mosaic.version = 11 : i64} {
  func.func @_mlp2_kernel(%arg0: i32, %arg1: memref<128x128xf32, #tpu.memory_space<vmem>>, %arg2: memref<128x128xf32, #tpu.memory_space<vmem>>, %arg3: memref<1x128xf32, #tpu.memory_space<vmem>>, %arg4: memref<128x128xf32, #tpu.memory_space<vmem>>, %arg5: memref<1x128xf32, #tpu.memory_space<vmem>>, %arg6: memref<128x128xf32, #tpu.memory_space<vmem>>) attributes {dimension_semantics = [#tpu.dimension_semantics<parallel>], iteration_bounds = array<i64: 1>, scalar_prefetch = 0 : i64, scratch_operands = 0 : i64, tpu.core_type = #tpu.core_type<tc>, window_params = [{transform_indices = @transform_0, window_bounds = array<i64: 128, 128>}, {pipeline_mode = #tpu.pipeline_mode<synchronous>, transform_indices = @transform_1, window_bounds = array<i64: 128, 128>}, {pipeline_mode = #tpu.pipeline_mode<synchronous>, transform_indices = @transform_2, window_bounds = array<i64: 1, 128>}, {pipeline_mode = #tpu.pipeline_mode<synchronous>, transform_indices = @transform_3, window_bounds = array<i64: 128, 128>}, {pipeline_mode = #tpu.pipeline_mode<synchronous>, transform_indices = @transform_4, window_bounds = array<i64: 1, 128>}, {transform_indices = @transform_5, window_bounds = array<i64: 128, 128>}]} {
    %c0 = arith.constant 0 : index
    %c0_0 = arith.constant 0 : index
    %0 = vector.load %arg1[%c0, %c0_0] : memref<128x128xf32, #tpu.memory_space<vmem>>, vector<128x128xf32>
    %c0_1 = arith.constant 0 : index
    %c0_2 = arith.constant 0 : index
    %1 = vector.load %arg2[%c0_1, %c0_2] : memref<128x128xf32, #tpu.memory_space<vmem>>, vector<128x128xf32>
    %cst = arith.constant dense<0.000000e+00> : vector<128x128xf32>
    %2 = tpu.matmul %0, %1, %cst {dimension_numbers = #tpu.dot_dimension_numbers<[1], [0], [0], [1], [0, 0, 1, 1], [], []>} : vector<128x128xf32>, vector<128x128xf32>, vector<128x128xf32> -> vector<128x128xf32>
    %c0_3 = arith.constant 0 : index
    %c0_4 = arith.constant 0 : index
    %3 = vector.load %arg3[%c0_3, %c0_4] : memref<1x128xf32, #tpu.memory_space<vmem>>, vector<1x128xf32>
    %4 = vector.broadcast %3 : vector<1x128xf32> to vector<128x128xf32>
    %5 = arith.addf %2, %4 : vector<128x128xf32>
    %cst_5 = arith.constant 0.000000e+00 : f32
    %6 = vector.broadcast %cst_5 : f32 to vector<128x128xf32>
    %7 = arith.maximumf %5, %6 : vector<128x128xf32>
    %c0_6 = arith.constant 0 : index
    %c0_7 = arith.constant 0 : index
    %8 = vector.load %arg4[%c0_6, %c0_7] : memref<128x128xf32, #tpu.memory_space<vmem>>, vector<128x128xf32>
    %cst_8 = arith.constant dense<0.000000e+00> : vector<128x128xf32>
    %9 = tpu.matmul %7, %8, %cst_8 {dimension_numbers = #tpu.dot_dimension_numbers<[1], [0], [0], [1], [0, 0, 1, 1], [], []>} : vector<128x128xf32>, vector<128x128xf32>, vector<128x128xf32> -> vector<128x128xf32>
    %c0_9 = arith.constant 0 : index
    %c0_10 = arith.constant 0 : index
    %10 = vector.load %arg5[%c0_9, %c0_10] : memref<1x128xf32, #tpu.memory_space<vmem>>, vector<1x128xf32>
    %11 = vector.broadcast %10 : vector<1x128xf32> to vector<128x128xf32>
    %12 = arith.addf %9, %11 : vector<128x128xf32>
    %cst_11 = arith.constant 0.000000e+00 : f32
    %13 = vector.broadcast %cst_11 : f32 to vector<128x128xf32>
    %14 = arith.maximumf %12, %13 : vector<128x128xf32>
    %c0_12 = arith.constant 0 : index
    %c0_13 = arith.constant 0 : index
    %15 = vector.load %arg6[%c0_12, %c0_13] : memref<128x128xf32, #tpu.memory_space<vmem>>, vector<128x128xf32>
    tpu.vector_store %arg6[%c0_12, %c0_13], %14 {strides = array<i32>} : memref<128x128xf32, #tpu.memory_space<vmem>>, vector<128x128xf32>,
    return
  }
  func.func @transform_0(%arg0: i32) -> (i32, i32) {
    %c0_i32 = arith.constant 0 : i32
    %c0_i32_0 = arith.constant 0 : i32
    return %arg0, %c0_i32 : i32, i32
  }
  func.func @transform_1(%arg0: i32) -> (i32, i32) {
    %c0_i32 = arith.constant 0 : i32
    %c0_i32_0 = arith.constant 0 : i32
    %c0_i32_1 = arith.constant 0 : i32
    return %c0_i32, %c0_i32_0 : i32, i32
  }
  func.func @transform_2(%arg0: i32) -> (i32, i32) {
    %c0_i32 = arith.constant 0 : i32
    %c0_i32_0 = arith.constant 0 : i32
    %c0_i32_1 = arith.constant 0 : i32
    return %c0_i32, %c0_i32_0 : i32, i32
  }
  func.func @transform_3(%arg0: i32) -> (i32, i32) {
    %c0_i32 = arith.constant 0 : i32
    %c0_i32_0 = arith.constant 0 : i32
    %c0_i32_1 = arith.constant 0 : i32
    return %c0_i32, %c0_i32_0 : i32, i32
  }
  func.func @transform_4(%arg0: i32) -> (i32, i32) {
    %c0_i32 = arith.constant 0 : i32
    %c0_i32_0 = arith.constant 0 : i32
    %c0_i32_1 = arith.constant 0 : i32
    return %c0_i32, %c0_i32_0 : i32, i32
  }
  func.func @transform_5(%arg0: i32) -> (i32, i32) {
    %c0_i32 = arith.constant 0 : i32
    %c0_i32_0 = arith.constant 0 : i32
    return %arg0, %c0_i32 : i32, i32
  }
}

module attributes {stable_mosaic.version = 11 : i64} {
  func.func @_lap_step_kernel(%arg0: i32, %arg1: i32, %arg2: memref<128x128xbf16, #tpu.memory_space<vmem>>, %arg3: memref<128x128xbf16, #tpu.memory_space<vmem>>, %arg4: memref<128x128xf32, #tpu.memory_space<vmem>>, %arg5: memref<128x1xf32, #tpu.memory_space<vmem>>, %arg6: memref<128x128xf32, #tpu.memory_space<vmem>>, %arg7: memref<128x128xbf16, #tpu.memory_space<vmem>>, %arg8: memref<128x128xf32, #tpu.memory_space<vmem>>) attributes {dimension_semantics = [#tpu.dimension_semantics<parallel>, #tpu.dimension_semantics<arbitrary>], iteration_bounds = array<i64: 1, 1>, scalar_prefetch = 0 : i64, scratch_operands = 1 : i64, tpu.core_type = #tpu.core_type<tc>, window_params = [{transform_indices = @transform_0, window_bounds = array<i64: 128, 128>}, {pipeline_mode = #tpu.pipeline_mode<synchronous>, transform_indices = @transform_1, window_bounds = array<i64: 128, 128>}, {transform_indices = @transform_2, window_bounds = array<i64: 128, 128>}, {transform_indices = @transform_3, window_bounds = array<i64: 128, 1>}, {transform_indices = @transform_4, window_bounds = array<i64: 128, 128>}, {transform_indices = @transform_5, window_bounds = array<i64: 128, 128>}]} {
    %c0_i32 = arith.constant 0 : i32
    %0 = arith.cmpi eq, %arg1, %c0_i32 : i32
    %1 = arith.extui %0 : i1 to i32
    %c0_i32_0 = arith.constant 0 : i32
    %2 = arith.cmpi ne, %1, %c0_i32_0 : i32
    scf.if %2 {
      %cst_9 = arith.constant 0.000000e+00 : f32
      %15 = vector.broadcast %cst_9 : f32 to vector<128x128xf32>
      %c0_10 = arith.constant 0 : index
      %c0_11 = arith.constant 0 : index
      %16 = vector.load %arg8[%c0_10, %c0_11] : memref<128x128xf32, #tpu.memory_space<vmem>>, vector<128x128xf32>
      tpu.vector_store %arg8[%c0_10, %c0_11], %15 {strides = array<i32>} : memref<128x128xf32, #tpu.memory_space<vmem>>, vector<128x128xf32>,
    } else {
    }
    %c128_i32 = arith.constant 128 : i32
    %3 = arith.muli %arg1, %c128_i32 : i32
    %4 = tpu.assume_multiple %3, 128 : i32
    %c0 = arith.constant 0 : index
    %c0_1 = arith.constant 0 : index
    %5 = vector.load %arg8[%c0, %c0_1] : memref<128x128xf32, #tpu.memory_space<vmem>>, vector<128x128xf32>
    %c0_2 = arith.constant 0 : index
    %c0_3 = arith.constant 0 : index
    %6 = vector.load %arg2[%c0_2, %c0_3] : memref<128x128xbf16, #tpu.memory_space<vmem>>, vector<128x128xbf16>
    %7 = arith.index_cast %4 : i32 to index
    %c0_4 = arith.constant 0 : index
    %8 = vector.load %arg3[%7, %c0_4] : memref<128x128xbf16, #tpu.memory_space<vmem>>, vector<128x128xbf16>
    %cst = arith.constant dense<0.000000e+00> : vector<128x128xf32>
    %9 = tpu.matmul %6, %8, %cst {dimension_numbers = #tpu.dot_dimension_numbers<[1], [0], [0], [1], [0, 0, 1, 1], [], []>} : vector<128x128xbf16>, vector<128x128xbf16>, vector<128x128xf32> -> vector<128x128xf32>
    %10 = arith.addf %5, %9 : vector<128x128xf32>
    %c0_5 = arith.constant 0 : index
    %c0_6 = arith.constant 0 : index
    %11 = vector.load %arg8[%c0_5, %c0_6] : memref<128x128xf32, #tpu.memory_space<vmem>>, vector<128x128xf32>
    tpu.vector_store %arg8[%c0_5, %c0_6], %10 {strides = array<i32>} : memref<128x128xf32, #tpu.memory_space<vmem>>, vector<128x128xf32>,
    %c0_i32_7 = arith.constant 0 : i32
    %12 = arith.cmpi eq, %arg1, %c0_i32_7 : i32
    %13 = arith.extui %12 : i1 to i32
    %c0_i32_8 = arith.constant 0 : i32
    %14 = arith.cmpi ne, %13, %c0_i32_8 : i32
    scf.if %14 {
      %c0_9 = arith.constant 0 : index
      %c0_10 = arith.constant 0 : index
      %15 = vector.load %arg5[%c0_9, %c0_10] : memref<128x1xf32, #tpu.memory_space<vmem>>, vector<128x1xf32>
      %c0_11 = arith.constant 0 : index
      %c0_12 = arith.constant 0 : index
      %16 = vector.load %arg4[%c0_11, %c0_12] : memref<128x128xf32, #tpu.memory_space<vmem>>, vector<128x128xf32>
      %c0_13 = arith.constant 0 : index
      %c0_14 = arith.constant 0 : index
      %17 = vector.load %arg8[%c0_13, %c0_14] : memref<128x128xf32, #tpu.memory_space<vmem>>, vector<128x128xf32>
      %18 = vector.broadcast %15 : vector<128x1xf32> to vector<128x128xf32>
      %19 = arith.mulf %17, %18 : vector<128x128xf32>
      %20 = arith.subf %16, %19 : vector<128x128xf32>
      %c0_15 = arith.constant 0 : index
      %c0_16 = arith.constant 0 : index
      %21 = vector.load %arg6[%c0_15, %c0_16] : memref<128x128xf32, #tpu.memory_space<vmem>>, vector<128x128xf32>
      tpu.vector_store %arg6[%c0_15, %c0_16], %20 {strides = array<i32>} : memref<128x128xf32, #tpu.memory_space<vmem>>, vector<128x128xf32>,
      %22 = vector.broadcast %15 : vector<128x1xf32> to vector<128x128xf32>
      %23 = arith.mulf %20, %22 : vector<128x128xf32>
      %24 = arith.truncf %23 : vector<128x128xf32> to vector<128x128xbf16>
      %c0_17 = arith.constant 0 : index
      %c0_18 = arith.constant 0 : index
      %25 = vector.load %arg7[%c0_17, %c0_18] : memref<128x128xbf16, #tpu.memory_space<vmem>>, vector<128x128xbf16>
      tpu.vector_store %arg7[%c0_17, %c0_18], %24 {strides = array<i32>} : memref<128x128xbf16, #tpu.memory_space<vmem>>, vector<128x128xbf16>,
    } else {
    }
    return
  }
  func.func @transform_0(%arg0: i32, %arg1: i32) -> (i32, i32) {
    %c0_i32 = arith.constant 0 : i32
    return %arg0, %arg1 : i32, i32
  }
  func.func @transform_1(%arg0: i32, %arg1: i32) -> (i32, i32) {
    %c0_i32 = arith.constant 0 : i32
    %c0_i32_0 = arith.constant 0 : i32
    %c0_i32_1 = arith.constant 0 : i32
    return %c0_i32, %c0_i32_0 : i32, i32
  }
  func.func @transform_2(%arg0: i32, %arg1: i32) -> (i32, i32) {
    %c0_i32 = arith.constant 0 : i32
    %c0_i32_0 = arith.constant 0 : i32
    return %arg0, %c0_i32 : i32, i32
  }
  func.func @transform_3(%arg0: i32, %arg1: i32) -> (i32, i32) {
    %c0_i32 = arith.constant 0 : i32
    %c0_i32_0 = arith.constant 0 : i32
    return %arg0, %c0_i32 : i32, i32
  }
  func.func @transform_4(%arg0: i32, %arg1: i32) -> (i32, i32) {
    %c0_i32 = arith.constant 0 : i32
    %c0_i32_0 = arith.constant 0 : i32
    return %arg0, %c0_i32 : i32, i32
  }
  func.func @transform_5(%arg0: i32, %arg1: i32) -> (i32, i32) {
    %c0_i32 = arith.constant 0 : i32
    %c0_i32_0 = arith.constant 0 : i32
    return %arg0, %c0_i32 : i32, i32
  }
}

module attributes {stable_mosaic.version = 11 : i64} {
  func.func @_scale_cast_kernel(%arg0: i32, %arg1: memref<128x128xf32, #tpu.memory_space<vmem>>, %arg2: memref<128x1xf32, #tpu.memory_space<vmem>>, %arg3: memref<128x128xbf16, #tpu.memory_space<vmem>>) attributes {dimension_semantics = [#tpu.dimension_semantics<parallel>], iteration_bounds = array<i64: 1>, scalar_prefetch = 0 : i64, scratch_operands = 0 : i64, tpu.core_type = #tpu.core_type<tc>, window_params = [{transform_indices = @transform_0, window_bounds = array<i64: 128, 128>}, {transform_indices = @transform_1, window_bounds = array<i64: 128, 1>}, {transform_indices = @transform_2, window_bounds = array<i64: 128, 128>}]} {
    %c0 = arith.constant 0 : index
    %c0_0 = arith.constant 0 : index
    %0 = vector.load %arg1[%c0, %c0_0] : memref<128x128xf32, #tpu.memory_space<vmem>>, vector<128x128xf32>
    %c0_1 = arith.constant 0 : index
    %c0_2 = arith.constant 0 : index
    %1 = vector.load %arg2[%c0_1, %c0_2] : memref<128x1xf32, #tpu.memory_space<vmem>>, vector<128x1xf32>
    %2 = vector.broadcast %1 : vector<128x1xf32> to vector<128x128xf32>
    %3 = arith.mulf %0, %2 : vector<128x128xf32>
    %4 = arith.truncf %3 : vector<128x128xf32> to vector<128x128xbf16>
    %c0_3 = arith.constant 0 : index
    %c0_4 = arith.constant 0 : index
    %5 = vector.load %arg3[%c0_3, %c0_4] : memref<128x128xbf16, #tpu.memory_space<vmem>>, vector<128x128xbf16>
    tpu.vector_store %arg3[%c0_3, %c0_4], %4 {strides = array<i32>} : memref<128x128xbf16, #tpu.memory_space<vmem>>, vector<128x128xbf16>,
    return
  }
  func.func @transform_0(%arg0: i32) -> (i32, i32) {
    %c0_i32 = arith.constant 0 : i32
    %c0_i32_0 = arith.constant 0 : i32
    return %arg0, %c0_i32 : i32, i32
  }
  func.func @transform_1(%arg0: i32) -> (i32, i32) {
    %c0_i32 = arith.constant 0 : i32
    %c0_i32_0 = arith.constant 0 : i32
    return %arg0, %c0_i32 : i32, i32
  }
  func.func @transform_2(%arg0: i32) -> (i32, i32) {
    %c0_i32 = arith.constant 0 : i32
    %c0_i32_0 = arith.constant 0 : i32
    return %arg0, %c0_i32 : i32, i32
  }
}

module attributes {stable_mosaic.version = 11 : i64} {
  func.func @_lap_final_lin3_kernel(%arg0: i32, %arg1: i32, %arg2: memref<128x128xbf16, #tpu.memory_space<vmem>>, %arg3: memref<128x128xbf16, #tpu.memory_space<vmem>>, %arg4: memref<128x1xf32, #tpu.memory_space<vmem>>, %arg5: memref<128x128xf32, #tpu.memory_space<vmem>>, %arg6: memref<128x128xf32, #tpu.memory_space<vmem>>, %arg7: memref<384x128xf32, #tpu.memory_space<vmem>>, %arg8: memref<1x128xf32, #tpu.memory_space<vmem>>, %arg9: memref<128x384xf32, #tpu.memory_space<vmem>>, %arg10: memref<128x128xf32, #tpu.memory_space<vmem>>, %arg11: memref<128x128xf32, #tpu.memory_space<vmem>>) attributes {dimension_semantics = [#tpu.dimension_semantics<parallel>, #tpu.dimension_semantics<arbitrary>], iteration_bounds = array<i64: 1, 1>, scalar_prefetch = 0 : i64, scratch_operands = 1 : i64, tpu.core_type = #tpu.core_type<tc>, window_params = [{transform_indices = @transform_0, window_bounds = array<i64: 128, 128>}, {pipeline_mode = #tpu.pipeline_mode<synchronous>, transform_indices = @transform_1, window_bounds = array<i64: 128, 128>}, {transform_indices = @transform_2, window_bounds = array<i64: 128, 1>}, {transform_indices = @transform_3, window_bounds = array<i64: 128, 128>}, {transform_indices = @transform_4, window_bounds = array<i64: 128, 128>}, {pipeline_mode = #tpu.pipeline_mode<synchronous>, transform_indices = @transform_5, window_bounds = array<i64: 384, 128>}, {pipeline_mode = #tpu.pipeline_mode<synchronous>, transform_indices = @transform_6, window_bounds = array<i64: 1, 128>}, {transform_indices = @transform_7, window_bounds = array<i64: 128, 384>}, {transform_indices = @transform_8, window_bounds = array<i64: 128, 128>}]} {
    %c0_i32 = arith.constant 0 : i32
    %0 = arith.cmpi eq, %arg1, %c0_i32 : i32
    %1 = arith.extui %0 : i1 to i32
    %c0_i32_0 = arith.constant 0 : i32
    %2 = arith.cmpi ne, %1, %c0_i32_0 : i32
    scf.if %2 {
      %cst_9 = arith.constant 0.000000e+00 : f32
      %15 = vector.broadcast %cst_9 : f32 to vector<128x128xf32>
      %c0_10 = arith.constant 0 : index
      %c0_11 = arith.constant 0 : index
      %16 = vector.load %arg11[%c0_10, %c0_11] : memref<128x128xf32, #tpu.memory_space<vmem>>, vector<128x128xf32>
      tpu.vector_store %arg11[%c0_10, %c0_11], %15 {strides = array<i32>} : memref<128x128xf32, #tpu.memory_space<vmem>>, vector<128x128xf32>,
    } else {
    }
    %c128_i32 = arith.constant 128 : i32
    %3 = arith.muli %arg1, %c128_i32 : i32
    %4 = tpu.assume_multiple %3, 128 : i32
    %c0 = arith.constant 0 : index
    %c0_1 = arith.constant 0 : index
    %5 = vector.load %arg11[%c0, %c0_1] : memref<128x128xf32, #tpu.memory_space<vmem>>, vector<128x128xf32>
    %c0_2 = arith.constant 0 : index
    %c0_3 = arith.constant 0 : index
    %6 = vector.load %arg2[%c0_2, %c0_3] : memref<128x128xbf16, #tpu.memory_space<vmem>>, vector<128x128xbf16>
    %7 = arith.index_cast %4 : i32 to index
    %c0_4 = arith.constant 0 : index
    %8 = vector.load %arg3[%7, %c0_4] : memref<128x128xbf16, #tpu.memory_space<vmem>>, vector<128x128xbf16>
    %cst = arith.constant dense<0.000000e+00> : vector<128x128xf32>
    %9 = tpu.matmul %6, %8, %cst {dimension_numbers = #tpu.dot_dimension_numbers<[1], [0], [0], [1], [0, 0, 1, 1], [], []>} : vector<128x128xbf16>, vector<128x128xbf16>, vector<128x128xf32> -> vector<128x128xf32>
    %10 = arith.addf %5, %9 : vector<128x128xf32>
    %c0_5 = arith.constant 0 : index
    %c0_6 = arith.constant 0 : index
    %11 = vector.load %arg11[%c0_5, %c0_6] : memref<128x128xf32, #tpu.memory_space<vmem>>, vector<128x128xf32>
    tpu.vector_store %arg11[%c0_5, %c0_6], %10 {strides = array<i32>} : memref<128x128xf32, #tpu.memory_space<vmem>>, vector<128x128xf32>,
    %c0_i32_7 = arith.constant 0 : i32
    %12 = arith.cmpi eq, %arg1, %c0_i32_7 : i32
    %13 = arith.extui %12 : i1 to i32
    %c0_i32_8 = arith.constant 0 : i32
    %14 = arith.cmpi ne, %13, %c0_i32_8 : i32
    scf.if %14 {
      %c0_9 = arith.constant 0 : index
      %c0_10 = arith.constant 0 : index
      %15 = vector.load %arg6[%c0_9, %c0_10] : memref<128x128xf32, #tpu.memory_space<vmem>>, vector<128x128xf32>
      %c0_11 = arith.constant 0 : index
      %c0_12 = arith.constant 0 : index
      %16 = vector.load %arg11[%c0_11, %c0_12] : memref<128x128xf32, #tpu.memory_space<vmem>>, vector<128x128xf32>
      %c0_13 = arith.constant 0 : index
      %c0_14 = arith.constant 0 : index
      %17 = vector.load %arg4[%c0_13, %c0_14] : memref<128x1xf32, #tpu.memory_space<vmem>>, vector<128x1xf32>
      %18 = vector.broadcast %17 : vector<128x1xf32> to vector<128x128xf32>
      %19 = arith.mulf %16, %18 : vector<128x128xf32>
      %20 = arith.subf %15, %19 : vector<128x128xf32>
      %c0_15 = arith.constant 0 : index
      %c0_16 = arith.constant 0 : index
      %21 = vector.load %arg5[%c0_15, %c0_16] : memref<128x128xf32, #tpu.memory_space<vmem>>, vector<128x128xf32>
      %c0_17 = arith.constant 0 : index
      %c0_18 = arith.constant 0 : index
      %22 = vector.load %arg6[%c0_17, %c0_18] : memref<128x128xf32, #tpu.memory_space<vmem>>, vector<128x128xf32>
      %cst_19 = arith.constant 3.000000e+00 : f32
      %23 = vector.broadcast %cst_19 : f32 to vector<128x128xf32>
      %24 = arith.mulf %23, %21 : vector<128x128xf32>
      %cst_20 = arith.constant -3.000000e+00 : f32
      %25 = vector.broadcast %cst_20 : f32 to vector<128x128xf32>
      %26 = arith.mulf %25, %22 : vector<128x128xf32>
      %27 = arith.addf %24, %26 : vector<128x128xf32>
      %cst_21 = arith.constant 7.500000e-01 : f32
      %28 = vector.broadcast %cst_21 : f32 to vector<128x128xf32>
      %29 = arith.mulf %28, %20 : vector<128x128xf32>
      %30 = arith.addf %27, %29 : vector<128x128xf32>
      %cst_22 = arith.constant 0.000000e+00 : f32
      %31 = vector.broadcast %cst_22 : f32 to vector<128x128xf32>
      %32 = arith.mulf %31, %21 : vector<128x128xf32>
      %cst_23 = arith.constant 3.000000e+00 : f32
      %33 = vector.broadcast %cst_23 : f32 to vector<128x128xf32>
      %34 = arith.mulf %33, %22 : vector<128x128xf32>
      %35 = arith.addf %32, %34 : vector<128x128xf32>
      %cst_24 = arith.constant -1.500000e+00 : f32
      %36 = vector.broadcast %cst_24 : f32 to vector<128x128xf32>
      %37 = arith.mulf %36, %20 : vector<128x128xf32>
      %38 = arith.addf %35, %37 : vector<128x128xf32>
      %cst_25 = arith.constant 0.000000e+00 : f32
      %39 = vector.broadcast %cst_25 : f32 to vector<128x128xf32>
      %40 = arith.mulf %39, %21 : vector<128x128xf32>
      %cst_26 = arith.constant 0.000000e+00 : f32
      %41 = vector.broadcast %cst_26 : f32 to vector<128x128xf32>
      %42 = arith.mulf %41, %22 : vector<128x128xf32>
      %43 = arith.addf %40, %42 : vector<128x128xf32>
      %cst_27 = arith.constant 7.500000e-01 : f32
      %44 = vector.broadcast %cst_27 : f32 to vector<128x128xf32>
      %45 = arith.mulf %44, %20 : vector<128x128xf32>
      %46 = arith.addf %43, %45 : vector<128x128xf32>
      %c0_28 = arith.constant 0 : index
      %c0_29 = arith.constant 0 : index
      %47 = vector.load %arg8[%c0_28, %c0_29] : memref<1x128xf32, #tpu.memory_space<vmem>>, vector<1x128xf32>
      %c0_30 = arith.constant 0 : index
      %c0_31 = arith.constant 0 : index
      %48 = vector.load %arg9[%c0_30, %c0_31] : memref<128x384xf32, #tpu.memory_space<vmem>>, vector<128x128xf32>
      tpu.vector_store %arg9[%c0_30, %c0_31], %30 {strides = array<i32>} : memref<128x384xf32, #tpu.memory_space<vmem>>, vector<128x128xf32>,
      %c0_32 = arith.constant 0 : index
      %c0_33 = arith.constant 0 : index
      %49 = vector.load %arg7[%c0_32, %c0_33] : memref<384x128xf32, #tpu.memory_space<vmem>>, vector<128x128xf32>
      %cst_34 = arith.constant dense<0.000000e+00> : vector<128x128xf32>
      %50 = tpu.matmul %30, %49, %cst_34 {dimension_numbers = #tpu.dot_dimension_numbers<[1], [0], [0], [1], [0, 0, 1, 1], [], []>} : vector<128x128xf32>, vector<128x128xf32>, vector<128x128xf32> -> vector<128x128xf32>
      %51 = vector.broadcast %47 : vector<1x128xf32> to vector<128x128xf32>
      %52 = arith.addf %51, %50 : vector<128x128xf32>
      %c0_35 = arith.constant 0 : index
      %c128 = arith.constant 128 : index
      %53 = vector.load %arg9[%c0_35, %c128] : memref<128x384xf32, #tpu.memory_space<vmem>>, vector<128x128xf32>
      tpu.vector_store %arg9[%c0_35, %c128], %38 {strides = array<i32>} : memref<128x384xf32, #tpu.memory_space<vmem>>, vector<128x128xf32>,
      %c128_36 = arith.constant 128 : index
      %c0_37 = arith.constant 0 : index
      %54 = vector.load %arg7[%c128_36, %c0_37] : memref<384x128xf32, #tpu.memory_space<vmem>>, vector<128x128xf32>
      %cst_38 = arith.constant dense<0.000000e+00> : vector<128x128xf32>
      %55 = tpu.matmul %38, %54, %cst_38 {dimension_numbers = #tpu.dot_dimension_numbers<[1], [0], [0], [1], [0, 0, 1, 1], [], []>} : vector<128x128xf32>, vector<128x128xf32>, vector<128x128xf32> -> vector<128x128xf32>
      %56 = arith.addf %52, %55 : vector<128x128xf32>
      %c0_39 = arith.constant 0 : index
      %c256 = arith.constant 256 : index
      %57 = vector.load %arg9[%c0_39, %c256] : memref<128x384xf32, #tpu.memory_space<vmem>>, vector<128x128xf32>
      tpu.vector_store %arg9[%c0_39, %c256], %46 {strides = array<i32>} : memref<128x384xf32, #tpu.memory_space<vmem>>, vector<128x128xf32>,
      %c256_40 = arith.constant 256 : index
      %c0_41 = arith.constant 0 : index
      %58 = vector.load %arg7[%c256_40, %c0_41] : memref<384x128xf32, #tpu.memory_space<vmem>>, vector<128x128xf32>
      %cst_42 = arith.constant dense<0.000000e+00> : vector<128x128xf32>
      %59 = tpu.matmul %46, %58, %cst_42 {dimension_numbers = #tpu.dot_dimension_numbers<[1], [0], [0], [1], [0, 0, 1, 1], [], []>} : vector<128x128xf32>, vector<128x128xf32>, vector<128x128xf32> -> vector<128x128xf32>
      %60 = arith.addf %56, %59 : vector<128x128xf32>
      %c0_43 = arith.constant 0 : index
      %c0_44 = arith.constant 0 : index
      %61 = vector.load %arg10[%c0_43, %c0_44] : memref<128x128xf32, #tpu.memory_space<vmem>>, vector<128x128xf32>
      tpu.vector_store %arg10[%c0_43, %c0_44], %60 {strides = array<i32>} : memref<128x128xf32, #tpu.memory_space<vmem>>, vector<128x128xf32>,
    } else {
    }
    return
  }
  func.func @transform_0(%arg0: i32, %arg1: i32) -> (i32, i32) {
    %c0_i32 = arith.constant 0 : i32
    return %arg0, %arg1 : i32, i32
  }
  func.func @transform_1(%arg0: i32, %arg1: i32) -> (i32, i32) {
    %c0_i32 = arith.constant 0 : i32
    %c0_i32_0 = arith.constant 0 : i32
    %c0_i32_1 = arith.constant 0 : i32
    return %c0_i32, %c0_i32_0 : i32, i32
  }
  func.func @transform_2(%arg0: i32, %arg1: i32) -> (i32, i32) {
    %c0_i32 = arith.constant 0 : i32
    %c0_i32_0 = arith.constant 0 : i32
    return %arg0, %c0_i32 : i32, i32
  }
  func.func @transform_3(%arg0: i32, %arg1: i32) -> (i32, i32) {
    %c0_i32 = arith.constant 0 : i32
    %c0_i32_0 = arith.constant 0 : i32
    return %arg0, %c0_i32 : i32, i32
  }
  func.func @transform_4(%arg0: i32, %arg1: i32) -> (i32, i32) {
    %c0_i32 = arith.constant 0 : i32
    %c0_i32_0 = arith.constant 0 : i32
    return %arg0, %c0_i32 : i32, i32
  }
  func.func @transform_5(%arg0: i32, %arg1: i32) -> (i32, i32) {
    %c0_i32 = arith.constant 0 : i32
    %c0_i32_0 = arith.constant 0 : i32
    %c0_i32_1 = arith.constant 0 : i32
    return %c0_i32, %c0_i32_0 : i32, i32
  }
  func.func @transform_6(%arg0: i32, %arg1: i32) -> (i32, i32) {
    %c0_i32 = arith.constant 0 : i32
    %c0_i32_0 = arith.constant 0 : i32
    %c0_i32_1 = arith.constant 0 : i32
    return %c0_i32, %c0_i32_0 : i32, i32
  }
  func.func @transform_7(%arg0: i32, %arg1: i32) -> (i32, i32) {
    %c0_i32 = arith.constant 0 : i32
    %c0_i32_0 = arith.constant 0 : i32
    return %arg0, %c0_i32 : i32, i32
  }
  func.func @transform_8(%arg0: i32, %arg1: i32) -> (i32, i32) {
    %c0_i32 = arith.constant 0 : i32
    %c0_i32_0 = arith.constant 0 : i32
    return %arg0, %c0_i32 : i32, i32
  }
}

module attributes {stable_mosaic.version = 11 : i64} {
  func.func @_learner_kernel(%arg0: i32, %arg1: memref<128x128xf32, #tpu.memory_space<vmem>>, %arg2: memref<128x128xf32, #tpu.memory_space<vmem>>, %arg3: memref<1x128xf32, #tpu.memory_space<vmem>>, %arg4: memref<384x128xf32, #tpu.memory_space<vmem>>, %arg5: memref<1x128xf32, #tpu.memory_space<vmem>>, %arg6: memref<1x128xf32, #tpu.memory_space<vmem>>, %arg7: memref<1x1xf32, #tpu.memory_space<vmem>>, %arg8: memref<128x1xf32, #tpu.memory_space<vmem>>, %arg9: memref<128x1xf32, #tpu.memory_space<vmem>>) attributes {dimension_semantics = [#tpu.dimension_semantics<parallel>], iteration_bounds = array<i64: 1>, scalar_prefetch = 0 : i64, scratch_operands = 0 : i64, tpu.core_type = #tpu.core_type<tc>, window_params = [{transform_indices = @transform_0, window_bounds = array<i64: 128, 128>}, {transform_indices = @transform_1, window_bounds = array<i64: 128, 128>}, {pipeline_mode = #tpu.pipeline_mode<synchronous>, transform_indices = @transform_2, window_bounds = array<i64: 1, 128>}, {pipeline_mode = #tpu.pipeline_mode<synchronous>, transform_indices = @transform_3, window_bounds = array<i64: 384, 128>}, {pipeline_mode = #tpu.pipeline_mode<synchronous>, transform_indices = @transform_4, window_bounds = array<i64: 1, 128>}, {pipeline_mode = #tpu.pipeline_mode<synchronous>, transform_indices = @transform_5, window_bounds = array<i64: 1, 128>}, {pipeline_mode = #tpu.pipeline_mode<synchronous>, transform_indices = @transform_6, window_bounds = array<i64: 1, 1>}, {transform_indices = @transform_7, window_bounds = array<i64: 128, 1>}, {transform_indices = @transform_8, window_bounds = array<i64: 128, 1>}]} {
    %c0 = arith.constant 0 : index
    %c0_0 = arith.constant 0 : index
    %0 = vector.load %arg1[%c0, %c0_0] : memref<128x128xf32, #tpu.memory_space<vmem>>, vector<128x128xf32>
    %c0_1 = arith.constant 0 : index
    %c0_2 = arith.constant 0 : index
    %1 = vector.load %arg2[%c0_1, %c0_2] : memref<128x128xf32, #tpu.memory_space<vmem>>, vector<128x128xf32>
    %c0_3 = arith.constant 0 : index
    %c0_4 = arith.constant 0 : index
    %2 = vector.load %arg3[%c0_3, %c0_4] : memref<1x128xf32, #tpu.memory_space<vmem>>, vector<1x128xf32>
    %3 = arith.subf %0, %1 : vector<128x128xf32>
    %c0_5 = arith.constant 0 : index
    %c0_6 = arith.constant 0 : index
    %4 = vector.load %arg4[%c0_5, %c0_6] : memref<384x128xf32, #tpu.memory_space<vmem>>, vector<128x128xf32>
    %cst = arith.constant dense<0.000000e+00> : vector<128x128xf32>
    %5 = tpu.matmul %3, %4, %cst {dimension_numbers = #tpu.dot_dimension_numbers<[1], [0], [0], [1], [0, 0, 1, 1], [], []>} : vector<128x128xf32>, vector<128x128xf32>, vector<128x128xf32> -> vector<128x128xf32>
    %6 = vector.broadcast %2 : vector<1x128xf32> to vector<128x128xf32>
    %7 = arith.subf %0, %6 : vector<128x128xf32>
    %c128 = arith.constant 128 : index
    %c0_7 = arith.constant 0 : index
    %8 = vector.load %arg4[%c128, %c0_7] : memref<384x128xf32, #tpu.memory_space<vmem>>, vector<128x128xf32>
    %cst_8 = arith.constant dense<0.000000e+00> : vector<128x128xf32>
    %9 = tpu.matmul %7, %8, %cst_8 {dimension_numbers = #tpu.dot_dimension_numbers<[1], [0], [0], [1], [0, 0, 1, 1], [], []>} : vector<128x128xf32>, vector<128x128xf32>, vector<128x128xf32> -> vector<128x128xf32>
    %10 = arith.addf %5, %9 : vector<128x128xf32>
    %11 = vector.broadcast %2 : vector<1x128xf32> to vector<128x128xf32>
    %12 = arith.subf %1, %11 : vector<128x128xf32>
    %c256 = arith.constant 256 : index
    %c0_9 = arith.constant 0 : index
    %13 = vector.load %arg4[%c256, %c0_9] : memref<384x128xf32, #tpu.memory_space<vmem>>, vector<128x128xf32>
    %cst_10 = arith.constant dense<0.000000e+00> : vector<128x128xf32>
    %14 = tpu.matmul %12, %13, %cst_10 {dimension_numbers = #tpu.dot_dimension_numbers<[1], [0], [0], [1], [0, 0, 1, 1], [], []>} : vector<128x128xf32>, vector<128x128xf32>, vector<128x128xf32> -> vector<128x128xf32>
    %15 = arith.addf %10, %14 : vector<128x128xf32>
    %c0_11 = arith.constant 0 : index
    %c0_12 = arith.constant 0 : index
    %16 = vector.load %arg5[%c0_11, %c0_12] : memref<1x128xf32, #tpu.memory_space<vmem>>, vector<1x128xf32>
    %17 = vector.broadcast %16 : vector<1x128xf32> to vector<128x128xf32>
    %18 = arith.addf %15, %17 : vector<128x128xf32>
    %cst_13 = arith.constant 0.000000e+00 : f32
    %19 = vector.broadcast %cst_13 : f32 to vector<128x128xf32>
    %20 = arith.cmpf oge, %18, %19 : vector<128x128xf32>
    %cst_14 = arith.constant 0.00999999977 : f32
    %21 = vector.broadcast %cst_14 : f32 to vector<128x128xf32>
    %22 = arith.mulf %21, %18 : vector<128x128xf32>
    %23 = arith.select %20, %18, %22 : vector<128x128xi1>, vector<128x128xf32>
    %c0_15 = arith.constant 0 : index
    %c0_16 = arith.constant 0 : index
    %24 = vector.load %arg6[%c0_15, %c0_16] : memref<1x128xf32, #tpu.memory_space<vmem>>, vector<1x128xf32>
    %25 = vector.broadcast %24 : vector<1x128xf32> to vector<128x128xf32>
    %26 = arith.mulf %23, %25 : vector<128x128xf32>
    %cst_17 = arith.constant dense<0.000000e+00> : vector<128xf32>
    %27 = vector.multi_reduction <add>, %26, %cst_17 [1] : vector<128x128xf32> to vector<128xf32>
    %28 = vector.shape_cast %27 : vector<128xf32> to vector<128x1xf32>
    %c0_18 = arith.constant 0 : index
    %c0_19 = arith.constant 0 : index
    %29 = vector.load %arg7[%c0_18, %c0_19] : memref<1x1xf32, #tpu.memory_space<vmem>>, vector<1x1xf32>
    %30 = vector.broadcast %29 : vector<1x1xf32> to vector<128x1xf32>
    %31 = arith.addf %28, %30 : vector<128x1xf32>
    %32 = arith.negf %31 : vector<128x1xf32>
    %33 = math.exp %32 : vector<128x1xf32>
    %cst_20 = arith.constant 1.000000e+00 : f32
    %34 = vector.broadcast %cst_20 : f32 to vector<128x1xf32>
    %35 = arith.addf %34, %33 : vector<128x1xf32>
    %36 = arith.divf %34, %35 : vector<128x1xf32>
    %c0_21 = arith.constant 0 : index
    %c0_22 = arith.constant 0 : index
    %37 = vector.load %arg8[%c0_21, %c0_22] : memref<128x1xf32, #tpu.memory_space<vmem>>, vector<128x1xf32>
    %38 = arith.addf %37, %36 : vector<128x1xf32>
    %cst_23 = arith.constant 1.000000e-01 : f32
    %39 = vector.broadcast %cst_23 : f32 to vector<128x1xf32>
    %40 = arith.divf %38, %39 : vector<128x1xf32>
    %41 = arith.negf %40 : vector<128x1xf32>
    %42 = math.exp %41 : vector<128x1xf32>
    %cst_24 = arith.constant 1.000000e+00 : f32
    %43 = vector.broadcast %cst_24 : f32 to vector<128x1xf32>
    %44 = arith.addf %43, %42 : vector<128x1xf32>
    %45 = arith.divf %43, %44 : vector<128x1xf32>
    %c0_25 = arith.constant 0 : index
    %c0_26 = arith.constant 0 : index
    %46 = vector.load %arg9[%c0_25, %c0_26] : memref<128x1xf32, #tpu.memory_space<vmem>>, vector<128x1xf32>
    tpu.vector_store %arg9[%c0_25, %c0_26], %45 {strides = array<i32>} : memref<128x1xf32, #tpu.memory_space<vmem>>, vector<128x1xf32>,
    return
  }
  func.func @transform_0(%arg0: i32) -> (i32, i32) {
    %c0_i32 = arith.constant 0 : i32
    %c0_i32_0 = arith.constant 0 : i32
    return %arg0, %c0_i32 : i32, i32
  }
  func.func @transform_1(%arg0: i32) -> (i32, i32) {
    %c0_i32 = arith.constant 0 : i32
    %c0_i32_0 = arith.constant 0 : i32
    return %arg0, %c0_i32 : i32, i32
  }
  func.func @transform_2(%arg0: i32) -> (i32, i32) {
    %c0_i32 = arith.constant 0 : i32
    %c0_i32_0 = arith.constant 0 : i32
    %c0_i32_1 = arith.constant 0 : i32
    return %c0_i32, %c0_i32_0 : i32, i32
  }
  func.func @transform_3(%arg0: i32) -> (i32, i32) {
    %c0_i32 = arith.constant 0 : i32
    %c0_i32_0 = arith.constant 0 : i32
    %c0_i32_1 = arith.constant 0 : i32
    return %c0_i32, %c0_i32_0 : i32, i32
  }
  func.func @transform_4(%arg0: i32) -> (i32, i32) {
    %c0_i32 = arith.constant 0 : i32
    %c0_i32_0 = arith.constant 0 : i32
    %c0_i32_1 = arith.constant 0 : i32
    return %c0_i32, %c0_i32_0 : i32, i32
  }
  func.func @transform_5(%arg0: i32) -> (i32, i32) {
    %c0_i32 = arith.constant 0 : i32
    %c0_i32_0 = arith.constant 0 : i32
    %c0_i32_1 = arith.constant 0 : i32
    return %c0_i32, %c0_i32_0 : i32, i32
  }
  func.func @transform_6(%arg0: i32) -> (i32, i32) {
    %c0_i32 = arith.constant 0 : i32
    %c0_i32_0 = arith.constant 0 : i32
    %c0_i32_1 = arith.constant 0 : i32
    return %c0_i32, %c0_i32_0 : i32, i32
  }
  func.func @transform_7(%arg0: i32) -> (i32, i32) {
    %c0_i32 = arith.constant 0 : i32
    %c0_i32_0 = arith.constant 0 : i32
    return %arg0, %c0_i32 : i32, i32
  }
  func.func @transform_8(%arg0: i32) -> (i32, i32) {
    %c0_i32 = arith.constant 0 : i32
    %c0_i32_0 = arith.constant 0 : i32
    return %arg0, %c0_i32 : i32, i32
  }
}

module attributes {stable_mosaic.version = 11 : i64} {
  func.func @_lap_final_head_kernel(%arg0: i32, %arg1: i32, %arg2: memref<128x128xbf16, #tpu.memory_space<vmem>>, %arg3: memref<128x128xbf16, #tpu.memory_space<vmem>>, %arg4: memref<128x1xf32, #tpu.memory_space<vmem>>, %arg5: memref<128x128xf32, #tpu.memory_space<vmem>>, %arg6: memref<128x128xf32, #tpu.memory_space<vmem>>, %arg7: memref<128x384xf32, #tpu.memory_space<vmem>>, %arg8: memref<768x128xf32, #tpu.memory_space<vmem>>, %arg9: memref<1x128xf32, #tpu.memory_space<vmem>>, %arg10: memref<128x128xf32, #tpu.memory_space<vmem>>, %arg11: memref<1x128xf32, #tpu.memory_space<vmem>>, %arg12: memref<128x128xf32, #tpu.memory_space<vmem>>, %arg13: memref<128x128xf32, #tpu.memory_space<vmem>>) attributes {dimension_semantics = [#tpu.dimension_semantics<parallel>, #tpu.dimension_semantics<arbitrary>], iteration_bounds = array<i64: 1, 1>, scalar_prefetch = 0 : i64, scratch_operands = 1 : i64, tpu.core_type = #tpu.core_type<tc>, window_params = [{transform_indices = @transform_0, window_bounds = array<i64: 128, 128>}, {pipeline_mode = #tpu.pipeline_mode<synchronous>, transform_indices = @transform_1, window_bounds = array<i64: 128, 128>}, {transform_indices = @transform_2, window_bounds = array<i64: 128, 1>}, {transform_indices = @transform_3, window_bounds = array<i64: 128, 128>}, {transform_indices = @transform_4, window_bounds = array<i64: 128, 128>}, {transform_indices = @transform_5, window_bounds = array<i64: 128, 384>}, {pipeline_mode = #tpu.pipeline_mode<synchronous>, transform_indices = @transform_6, window_bounds = array<i64: 768, 128>}, {pipeline_mode = #tpu.pipeline_mode<synchronous>, transform_indices = @transform_7, window_bounds = array<i64: 1, 128>}, {pipeline_mode = #tpu.pipeline_mode<synchronous>, transform_indices = @transform_8, window_bounds = array<i64: 128, 128>}, {pipeline_mode = #tpu.pipeline_mode<synchronous>, transform_indices = @transform_9, window_bounds = array<i64: 1, 128>}, {transform_indices = @transform_10, window_bounds = array<i64: 128, 128>}]} {
    %c0_i32 = arith.constant 0 : i32
    %0 = arith.cmpi eq, %arg1, %c0_i32 : i32
    %1 = arith.extui %0 : i1 to i32
    %c0_i32_0 = arith.constant 0 : i32
    %2 = arith.cmpi ne, %1, %c0_i32_0 : i32
    scf.if %2 {
      %cst_9 = arith.constant 0.000000e+00 : f32
      %15 = vector.broadcast %cst_9 : f32 to vector<128x128xf32>
      %c0_10 = arith.constant 0 : index
      %c0_11 = arith.constant 0 : index
      %16 = vector.load %arg13[%c0_10, %c0_11] : memref<128x128xf32, #tpu.memory_space<vmem>>, vector<128x128xf32>
      tpu.vector_store %arg13[%c0_10, %c0_11], %15 {strides = array<i32>} : memref<128x128xf32, #tpu.memory_space<vmem>>, vector<128x128xf32>,
    } else {
    }
    %c128_i32 = arith.constant 128 : i32
    %3 = arith.muli %arg1, %c128_i32 : i32
    %4 = tpu.assume_multiple %3, 128 : i32
    %c0 = arith.constant 0 : index
    %c0_1 = arith.constant 0 : index
    %5 = vector.load %arg13[%c0, %c0_1] : memref<128x128xf32, #tpu.memory_space<vmem>>, vector<128x128xf32>
    %c0_2 = arith.constant 0 : index
    %c0_3 = arith.constant 0 : index
    %6 = vector.load %arg2[%c0_2, %c0_3] : memref<128x128xbf16, #tpu.memory_space<vmem>>, vector<128x128xbf16>
    %7 = arith.index_cast %4 : i32 to index
    %c0_4 = arith.constant 0 : index
    %8 = vector.load %arg3[%7, %c0_4] : memref<128x128xbf16, #tpu.memory_space<vmem>>, vector<128x128xbf16>
    %cst = arith.constant dense<0.000000e+00> : vector<128x128xf32>
    %9 = tpu.matmul %6, %8, %cst {dimension_numbers = #tpu.dot_dimension_numbers<[1], [0], [0], [1], [0, 0, 1, 1], [], []>} : vector<128x128xbf16>, vector<128x128xbf16>, vector<128x128xf32> -> vector<128x128xf32>
    %10 = arith.addf %5, %9 : vector<128x128xf32>
    %c0_5 = arith.constant 0 : index
    %c0_6 = arith.constant 0 : index
    %11 = vector.load %arg13[%c0_5, %c0_6] : memref<128x128xf32, #tpu.memory_space<vmem>>, vector<128x128xf32>
    tpu.vector_store %arg13[%c0_5, %c0_6], %10 {strides = array<i32>} : memref<128x128xf32, #tpu.memory_space<vmem>>, vector<128x128xf32>,
    %c0_i32_7 = arith.constant 0 : i32
    %12 = arith.cmpi eq, %arg1, %c0_i32_7 : i32
    %13 = arith.extui %12 : i1 to i32
    %c0_i32_8 = arith.constant 0 : i32
    %14 = arith.cmpi ne, %13, %c0_i32_8 : i32
    scf.if %14 {
      %c0_9 = arith.constant 0 : index
      %c0_10 = arith.constant 0 : index
      %15 = vector.load %arg6[%c0_9, %c0_10] : memref<128x128xf32, #tpu.memory_space<vmem>>, vector<128x128xf32>
      %c0_11 = arith.constant 0 : index
      %c0_12 = arith.constant 0 : index
      %16 = vector.load %arg13[%c0_11, %c0_12] : memref<128x128xf32, #tpu.memory_space<vmem>>, vector<128x128xf32>
      %c0_13 = arith.constant 0 : index
      %c0_14 = arith.constant 0 : index
      %17 = vector.load %arg4[%c0_13, %c0_14] : memref<128x1xf32, #tpu.memory_space<vmem>>, vector<128x1xf32>
      %18 = vector.broadcast %17 : vector<128x1xf32> to vector<128x128xf32>
      %19 = arith.mulf %16, %18 : vector<128x128xf32>
      %20 = arith.subf %15, %19 : vector<128x128xf32>
      %c0_15 = arith.constant 0 : index
      %c0_16 = arith.constant 0 : index
      %21 = vector.load %arg5[%c0_15, %c0_16] : memref<128x128xf32, #tpu.memory_space<vmem>>, vector<128x128xf32>
      %c0_17 = arith.constant 0 : index
      %c0_18 = arith.constant 0 : index
      %22 = vector.load %arg6[%c0_17, %c0_18] : memref<128x128xf32, #tpu.memory_space<vmem>>, vector<128x128xf32>
      %cst_19 = arith.constant 3.000000e+00 : f32
      %23 = vector.broadcast %cst_19 : f32 to vector<128x128xf32>
      %24 = arith.mulf %23, %21 : vector<128x128xf32>
      %cst_20 = arith.constant -3.000000e+00 : f32
      %25 = vector.broadcast %cst_20 : f32 to vector<128x128xf32>
      %26 = arith.mulf %25, %22 : vector<128x128xf32>
      %27 = arith.addf %24, %26 : vector<128x128xf32>
      %cst_21 = arith.constant 7.500000e-01 : f32
      %28 = vector.broadcast %cst_21 : f32 to vector<128x128xf32>
      %29 = arith.mulf %28, %20 : vector<128x128xf32>
      %30 = arith.addf %27, %29 : vector<128x128xf32>
      %cst_22 = arith.constant 0.000000e+00 : f32
      %31 = vector.broadcast %cst_22 : f32 to vector<128x128xf32>
      %32 = arith.mulf %31, %21 : vector<128x128xf32>
      %cst_23 = arith.constant 3.000000e+00 : f32
      %33 = vector.broadcast %cst_23 : f32 to vector<128x128xf32>
      %34 = arith.mulf %33, %22 : vector<128x128xf32>
      %35 = arith.addf %32, %34 : vector<128x128xf32>
      %cst_24 = arith.constant -1.500000e+00 : f32
      %36 = vector.broadcast %cst_24 : f32 to vector<128x128xf32>
      %37 = arith.mulf %36, %20 : vector<128x128xf32>
      %38 = arith.addf %35, %37 : vector<128x128xf32>
      %cst_25 = arith.constant 0.000000e+00 : f32
      %39 = vector.broadcast %cst_25 : f32 to vector<128x128xf32>
      %40 = arith.mulf %39, %21 : vector<128x128xf32>
      %cst_26 = arith.constant 0.000000e+00 : f32
      %41 = vector.broadcast %cst_26 : f32 to vector<128x128xf32>
      %42 = arith.mulf %41, %22 : vector<128x128xf32>
      %43 = arith.addf %40, %42 : vector<128x128xf32>
      %cst_27 = arith.constant 7.500000e-01 : f32
      %44 = vector.broadcast %cst_27 : f32 to vector<128x128xf32>
      %45 = arith.mulf %44, %20 : vector<128x128xf32>
      %46 = arith.addf %43, %45 : vector<128x128xf32>
      %c0_28 = arith.constant 0 : index
      %c0_29 = arith.constant 0 : index
      %47 = vector.load %arg7[%c0_28, %c0_29] : memref<128x384xf32, #tpu.memory_space<vmem>>, vector<128x384xf32>
      %c0_30 = arith.constant 0 : index
      %c0_31 = arith.constant 0 : index
      %48 = vector.load %arg8[%c0_30, %c0_31] : memref<768x128xf32, #tpu.memory_space<vmem>>, vector<384x128xf32>
      %cst_32 = arith.constant dense<0.000000e+00> : vector<128x128xf32>
      %49 = tpu.matmul %47, %48, %cst_32 {dimension_numbers = #tpu.dot_dimension_numbers<[1], [0], [0], [1], [0, 0, 1, 1], [], []>} : vector<128x384xf32>, vector<384x128xf32>, vector<128x128xf32> -> vector<128x128xf32>
      %c0_33 = arith.constant 0 : index
      %c0_34 = arith.constant 0 : index
      %50 = vector.load %arg9[%c0_33, %c0_34] : memref<1x128xf32, #tpu.memory_space<vmem>>, vector<1x128xf32>
      %51 = vector.broadcast %50 : vector<1x128xf32> to vector<128x128xf32>
      %52 = arith.addf %49, %51 : vector<128x128xf32>
      %c384 = arith.constant 384 : index
      %c0_35 = arith.constant 0 : index
      %53 = vector.load %arg8[%c384, %c0_35] : memref<768x128xf32, #tpu.memory_space<vmem>>, vector<128x128xf32>
      %cst_36 = arith.constant dense<0.000000e+00> : vector<128x128xf32>
      %54 = tpu.matmul %30, %53, %cst_36 {dimension_numbers = #tpu.dot_dimension_numbers<[1], [0], [0], [1], [0, 0, 1, 1], [], []>} : vector<128x128xf32>, vector<128x128xf32>, vector<128x128xf32> -> vector<128x128xf32>
      %55 = arith.addf %52, %54 : vector<128x128xf32>
      %c512 = arith.constant 512 : index
      %c0_37 = arith.constant 0 : index
      %56 = vector.load %arg8[%c512, %c0_37] : memref<768x128xf32, #tpu.memory_space<vmem>>, vector<128x128xf32>
      %cst_38 = arith.constant dense<0.000000e+00> : vector<128x128xf32>
      %57 = tpu.matmul %38, %56, %cst_38 {dimension_numbers = #tpu.dot_dimension_numbers<[1], [0], [0], [1], [0, 0, 1, 1], [], []>} : vector<128x128xf32>, vector<128x128xf32>, vector<128x128xf32> -> vector<128x128xf32>
      %58 = arith.addf %55, %57 : vector<128x128xf32>
      %c640 = arith.constant 640 : index
      %c0_39 = arith.constant 0 : index
      %59 = vector.load %arg8[%c640, %c0_39] : memref<768x128xf32, #tpu.memory_space<vmem>>, vector<128x128xf32>
      %cst_40 = arith.constant dense<0.000000e+00> : vector<128x128xf32>
      %60 = tpu.matmul %46, %59, %cst_40 {dimension_numbers = #tpu.dot_dimension_numbers<[1], [0], [0], [1], [0, 0, 1, 1], [], []>} : vector<128x128xf32>, vector<128x128xf32>, vector<128x128xf32> -> vector<128x128xf32>
      %61 = arith.addf %58, %60 : vector<128x128xf32>
      %cst_41 = arith.constant 0.000000e+00 : f32
      %62 = vector.broadcast %cst_41 : f32 to vector<128x128xf32>
      %63 = arith.maximumf %61, %62 : vector<128x128xf32>
      %c0_42 = arith.constant 0 : index
      %c0_43 = arith.constant 0 : index
      %64 = vector.load %arg10[%c0_42, %c0_43] : memref<128x128xf32, #tpu.memory_space<vmem>>, vector<128x128xf32>
      %cst_44 = arith.constant dense<0.000000e+00> : vector<128x128xf32>
      %65 = tpu.matmul %63, %64, %cst_44 {dimension_numbers = #tpu.dot_dimension_numbers<[1], [0], [0], [1], [0, 0, 1, 1], [], []>} : vector<128x128xf32>, vector<128x128xf32>, vector<128x128xf32> -> vector<128x128xf32>
      %c0_45 = arith.constant 0 : index
      %c0_46 = arith.constant 0 : index
      %66 = vector.load %arg11[%c0_45, %c0_46] : memref<1x128xf32, #tpu.memory_space<vmem>>, vector<1x128xf32>
      %67 = vector.broadcast %66 : vector<1x128xf32> to vector<128x128xf32>
      %68 = arith.addf %65, %67 : vector<128x128xf32>
      %c0_47 = arith.constant 0 : index
      %c0_48 = arith.constant 0 : index
      %69 = vector.load %arg12[%c0_47, %c0_48] : memref<128x128xf32, #tpu.memory_space<vmem>>, vector<128x128xf32>
      tpu.vector_store %arg12[%c0_47, %c0_48], %68 {strides = array<i32>} : memref<128x128xf32, #tpu.memory_space<vmem>>, vector<128x128xf32>,
    } else {
    }
    return
  }
  func.func @transform_0(%arg0: i32, %arg1: i32) -> (i32, i32) {
    %c0_i32 = arith.constant 0 : i32
    return %arg0, %arg1 : i32, i32
  }
  func.func @transform_1(%arg0: i32, %arg1: i32) -> (i32, i32) {
    %c0_i32 = arith.constant 0 : i32
    %c0_i32_0 = arith.constant 0 : i32
    %c0_i32_1 = arith.constant 0 : i32
    return %c0_i32, %c0_i32_0 : i32, i32
  }
  func.func @transform_2(%arg0: i32, %arg1: i32) -> (i32, i32) {
    %c0_i32 = arith.constant 0 : i32
    %c0_i32_0 = arith.constant 0 : i32
    return %arg0, %c0_i32 : i32, i32
  }
  func.func @transform_3(%arg0: i32, %arg1: i32) -> (i32, i32) {
    %c0_i32 = arith.constant 0 : i32
    %c0_i32_0 = arith.constant 0 : i32
    return %arg0, %c0_i32 : i32, i32
  }
  func.func @transform_4(%arg0: i32, %arg1: i32) -> (i32, i32) {
    %c0_i32 = arith.constant 0 : i32
    %c0_i32_0 = arith.constant 0 : i32
    return %arg0, %c0_i32 : i32, i32
  }
  func.func @transform_5(%arg0: i32, %arg1: i32) -> (i32, i32) {
    %c0_i32 = arith.constant 0 : i32
    %c0_i32_0 = arith.constant 0 : i32
    return %arg0, %c0_i32 : i32, i32
  }
  func.func @transform_6(%arg0: i32, %arg1: i32) -> (i32, i32) {
    %c0_i32 = arith.constant 0 : i32
    %c0_i32_0 = arith.constant 0 : i32
    %c0_i32_1 = arith.constant 0 : i32
    return %c0_i32, %c0_i32_0 : i32, i32
  }
  func.func @transform_7(%arg0: i32, %arg1: i32) -> (i32, i32) {
    %c0_i32 = arith.constant 0 : i32
    %c0_i32_0 = arith.constant 0 : i32
    %c0_i32_1 = arith.constant 0 : i32
    return %c0_i32, %c0_i32_0 : i32, i32
  }
  func.func @transform_8(%arg0: i32, %arg1: i32) -> (i32, i32) {
    %c0_i32 = arith.constant 0 : i32
    %c0_i32_0 = arith.constant 0 : i32
    %c0_i32_1 = arith.constant 0 : i32
    return %c0_i32, %c0_i32_0 : i32, i32
  }
  func.func @transform_9(%arg0: i32, %arg1: i32) -> (i32, i32) {
    %c0_i32 = arith.constant 0 : i32
    %c0_i32_0 = arith.constant 0 : i32
    %c0_i32_1 = arith.constant 0 : i32
    return %c0_i32, %c0_i32_0 : i32, i32
  }
  func.func @transform_10(%arg0: i32, %arg1: i32) -> (i32, i32) {
    %c0_i32 = arith.constant 0 : i32
    %c0_i32_0 = arith.constant 0 : i32
    return %arg0, %c0_i32 : i32, i32
  }
}

</mosaic_0001>

<llo_original>
// kernel: auto_ad_forward.10
$region0: #{auto_ad_forward.10}
  #allocation0 [shape = 'u32[]', space=smem, size = 0x4, offset = 0x4, fixed_abs, tag = 'smem constant byte address 0x4 - core index']
  #allocation1 [shape = 'u32[144,128]{1,0:T(1,128)}', space=vmem, size = 0x12000, scoped, tag = 'internal scratch']
  #allocation2 [shape = 'f32[128,128]{1,0:T(8,128)}', space=vmem, size = 0x10000, scoped, tag = 'scratch operand']
  %s0 = inlined_call_operand.vmem [shape: bf16[128,128], index: 0, kind: input, shape index: {}]
  %s1 = inlined_call_operand.vmem [shape: bf16[128,128], index: 1, kind: input, shape index: {}]
  %s2 = inlined_call_operand.vmem [shape: f32[128,128], index: 2, kind: input, shape index: {}]
  %s3 = inlined_call_operand.vmem [shape: f32[128,1], index: 3, kind: input, shape index: {}]
  %s4 = inlined_call_operand.vmem [shape: f32[128,128], index: 4, kind: output, shape index: {0}]
  %s5 = inlined_call_operand.vmem [shape: bf16[128,128], index: 5, kind: output, shape index: {1}]
  %6 = xla_tuple %s4, %s5
  %s7 = sld [smem:[#allocation0]]
  $region42: #{auto_ad_forward.10} parent=0
    _
  %s9 = ssub.s32 1, %s7
  %s10 = scalar_select 0, %s9, %s7
  // Predicated region
  $region2: #{auto_ad_forward.10} parent=0 // pred_check
    _
  $region3: #{auto_ad_forward.10} parent=0 // pred_check_branch
    %12 = sbr.rel (0) target = $region5
  $region4: #{auto_ad_forward.10} parent=0 // pred_region
    _
  $region5: #{auto_ad_forward.10} parent=0 // pred_fallthru
    _
  // Predicated region
  $region6: #{auto_ad_forward.10} parent=0 // pred_check
    _
  $region7: #{auto_ad_forward.10} parent=0 // pred_check_branch
    %14 = sbr.rel (0) target = $region9
  $region8: #{auto_ad_forward.10} parent=0 // pred_region
    _
  $region9: #{auto_ad_forward.10} parent=0 // pred_fallthru
    _
  // Predicated region
  $region10: #{auto_ad_forward.10} parent=0 // pred_check
    _
  $region11: #{auto_ad_forward.10} parent=0 // pred_check_branch
    %16 = sbr.rel (0) target = $region13
  $region12: #{auto_ad_forward.10} parent=0 // pred_region
    _
  $region13: #{auto_ad_forward.10} parent=0 // pred_fallthru
    _
  // Predicated region
  $region14: #{auto_ad_forward.10} parent=0 // pred_check
    _
  $region15: #{auto_ad_forward.10} parent=0 // pred_check_branch
    %18 = sbr.rel (0) target = $region17
  $region16: #{auto_ad_forward.10} parent=0 // pred_region
    _
  $region17: #{auto_ad_forward.10} parent=0 // pred_fallthru
    _
  %p20 = scmp.eq.s32.totalorder 0, 0
  // Predicated region
  $region18: #{auto_ad_forward.10} parent=0 // pred_check
    %p21 = pneg %p20
  $region19: #{auto_ad_forward.10} parent=0 // pred_check_branch
    %23 = sbr.rel (%p21) target = $region21
  $region20: #{auto_ad_forward.10} parent=0 // pred_region
    %24 = vst [vmem:[#allocation2] sm:$0xff] 0.0
    %25 = vst [vmem:[#allocation2 + $0x8] sm:$0xff] 0.0
    %26 = vst [vmem:[#allocation2 + $0x10] sm:$0xff] 0.0
    %27 = vst [vmem:[#allocation2 + $0x18] sm:$0xff] 0.0
    %28 = vst [vmem:[#allocation2 + $0x20] sm:$0xff] 0.0
    %29 = vst [vmem:[#allocation2 + $0x28] sm:$0xff] 0.0
    %30 = vst [vmem:[#allocation2 + $0x30] sm:$0xff] 0.0
    %31 = vst [vmem:[#allocation2 + $0x38] sm:$0xff] 0.0
    %32 = vst [vmem:[#allocation2 + $0x40] sm:$0xff] 0.0
    %33 = vst [vmem:[#allocation2 + $0x48] sm:$0xff] 0.0
    %34 = vst [vmem:[#allocation2 + $0x50] sm:$0xff] 0.0
    %35 = vst [vmem:[#allocation2 + $0x58] sm:$0xff] 0.0
    %36 = vst [vmem:[#allocation2 + $0x60] sm:$0xff] 0.0
    %37 = vst [vmem:[#allocation2 + $0x68] sm:$0xff] 0.0
    %38 = vst [vmem:[#allocation2 + $0x70] sm:$0xff] 0.0
    %39 = vst [vmem:[#allocation2 + $0x78] sm:$0xff] 0.0
  $region21: #{auto_ad_forward.10} parent=0 // pred_fallthru
    _
  %s40 = smul.u32 0, 128
  %v41 = vld [vmem:[#allocation2] sm:$0xff]
  %v42 = vld [vmem:[#allocation2 + $0x8] sm:$0xff]
  %v43 = vld [vmem:[#allocation2 + $0x10] sm:$0xff]
  %v44 = vld [vmem:[#allocation2 + $0x18] sm:$0xff]
  %v45 = vld [vmem:[#allocation2 + $0x20] sm:$0xff]
  %v46 = vld [vmem:[#allocation2 + $0x28] sm:$0xff]
  %v47 = vld [vmem:[#allocation2 + $0x30] sm:$0xff]
  %v48 = vld [vmem:[#allocation2 + $0x38] sm:$0xff]
  %v49 = vld [vmem:[#allocation2 + $0x40] sm:$0xff]
  %v50 = vld [vmem:[#allocation2 + $0x48] sm:$0xff]
  %v51 = vld [vmem:[#allocation2 + $0x50] sm:$0xff]
  %v52 = vld [vmem:[#allocation2 + $0x58] sm:$0xff]
  %v53 = vld [vmem:[#allocation2 + $0x60] sm:$0xff]
  %v54 = vld [vmem:[#allocation2 + $0x68] sm:$0xff]
  %v55 = vld [vmem:[#allocation2 + $0x70] sm:$0xff]
  %v56 = vld [vmem:[#allocation2 + $0x78] sm:$0xff]
  %v57 = vld [vmem:[%s0] sm:$0xf]
  %v58 = vld [vmem:[%s0 + $0x4] sm:$0xf]
  %v59 = vld [vmem:[%s0 + $0x8] sm:$0xf]
  %v60 = vld [vmem:[%s0 + $0xc] sm:$0xf]
  %v61 = vld [vmem:[%s0 + $0x10] sm:$0xf]
  %v62 = vld [vmem:[%s0 + $0x14] sm:$0xf]
  %v63 = vld [vmem:[%s0 + $0x18] sm:$0xf]
  %v64 = vld [vmem:[%s0 + $0x1c] sm:$0xf]
  %v65 = vld [vmem:[%s0 + $0x20] sm:$0xf]
  %v66 = vld [vmem:[%s0 + $0x24] sm:$0xf]
  %v67 = vld [vmem:[%s0 + $0x28] sm:$0xf]
  %v68 = vld [vmem:[%s0 + $0x2c] sm:$0xf]
  %v69 = vld [vmem:[%s0 + $0x30] sm:$0xf]
  %v70 = vld [vmem:[%s0 + $0x34] sm:$0xf]
  %v71 = vld [vmem:[%s0 + $0x38] sm:$0xf]
  %v72 = vld [vmem:[%s0 + $0x3c] sm:$0xf]
  %s73 = sshra.s32 %s40, 3
  %s74 = sand.u32 %s40, 7
  %s75 = smul.addr %s73, 4
  %s76 = scalar_lea.vmem %s1, %s75
  %v77 = vld [vmem:[%s76] sm:$0xf]
  %v78 = vld [vmem:[%s76 + $0x4] sm:$0xf]
  %v79 = vld [vmem:[%s76 + $0x8] sm:$0xf]
  %v80 = vld [vmem:[%s76 + $0xc] sm:$0xf]
  %v81 = vld [vmem:[%s76 + $0x10] sm:$0xf]
  %v82 = vld [vmem:[%s76 + $0x14] sm:$0xf]
  %v83 = vld [vmem:[%s76 + $0x18] sm:$0xf]
  %v84 = vld [vmem:[%s76 + $0x1c] sm:$0xf]
  %v85 = vld [vmem:[%s76 + $0x20] sm:$0xf]
  %v86 = vld [vmem:[%s76 + $0x24] sm:$0xf]
  %v87 = vld [vmem:[%s76 + $0x28] sm:$0xf]
  %v88 = vld [vmem:[%s76 + $0x2c] sm:$0xf]
  %v89 = vld [vmem:[%s76 + $0x30] sm:$0xf]
  %v90 = vld [vmem:[%s76 + $0x34] sm:$0xf]
  %v91 = vld [vmem:[%s76 + $0x38] sm:$0xf]
  %v92 = vld [vmem:[%s76 + $0x3c] sm:$0xf]
  %v109 = vunpack.c.l.b16 %v57
  %v110 = vunpack.c.l.b16 %v58
  %v111 = vunpack.c.l.b16 %v59
  %v112 = vunpack.c.l.b16 %v60
  %v113 = vunpack.c.l.b16 %v61
  %v114 = vunpack.c.l.b16 %v62
  %v115 = vunpack.c.l.b16 %v63
  %v116 = vunpack.c.l.b16 %v64
  %v117 = vunpack.c.l.b16 %v65
  %v118 = vunpack.c.l.b16 %v66
  %v119 = vunpack.c.l.b16 %v67
  %v120 = vunpack.c.l.b16 %v68
  %v121 = vunpack.c.l.b16 %v69
  %v122 = vunpack.c.l.b16 %v70
  %v123 = vunpack.c.l.b16 %v71
  %v124 = vunpack.c.l.b16 %v72
  %v125 = vpack.c.b16 %v110, %v109
  %v126 = vpack.c.b16 %v112, %v111
  %v127 = vpack.c.b16 %v114, %v113
  %v128 = vpack.c.b16 %v116, %v115
  %v129 = vpack.c.b16 %v118, %v117
  %v130 = vpack.c.b16 %v120, %v119
  %v131 = vpack.c.b16 %v122, %v121
  %v132 = vpack.c.b16 %v124, %v123
  %v157 = vunpack.c.l.b16 %v77
  %v158 = vunpack.c.l.b16 %v78
  %v159 = vunpack.c.l.b16 %v79
  %v160 = vunpack.c.l.b16 %v80
  %v161 = vunpack.c.l.b16 %v81
  %v162 = vunpack.c.l.b16 %v82
  %v163 = vunpack.c.l.b16 %v83
  %v164 = vunpack.c.l.b16 %v84
  %v165 = vunpack.c.l.b16 %v85
  %v166 = vunpack.c.l.b16 %v86
  %v167 = vunpack.c.l.b16 %v87
  %v168 = vunpack.c.l.b16 %v88
  %v169 = vunpack.c.l.b16 %v89
  %v170 = vunpack.c.l.b16 %v90
  %v171 = vunpack.c.l.b16 %v91
  %v172 = vunpack.c.l.b16 %v92
  %v173 = vpack.c.b16 %v158, %v157
  %v174 = vpack.c.b16 %v160, %v159
  %v175 = vpack.c.b16 %v162, %v161
  %v176 = vpack.c.b16 %v164, %v163
  %v177 = vpack.c.b16 %v166, %v165
  %v178 = vpack.c.b16 %v168, %v167
  %v179 = vpack.c.b16 %v170, %v169
  %v180 = vpack.c.b16 %v172, %v171
  %189 = vmatprep.subr.bf16.mxu0 0
  %190 = vmatpush1.bf16.msra.mxu0 %v173
  %191 = vmatprep.subr.bf16.mxu0 0
  %192 = vmatpush1.bf16.msra.mxu0 %v174
  %193 = vmatprep.subr.bf16.mxu0 0
  %194 = vmatpush1.bf16.msra.mxu0 %v175
  %195 = vmatprep.subr.bf16.mxu0 0
  %196 = vmatpush1.bf16.msra.mxu0 %v176
  %197 = vmatprep.subr.bf16.mxu0 0
  %198 = vmatpush1.bf16.msra.mxu0 %v177
  %199 = vmatprep.subr.bf16.mxu0 0
  %200 = vmatpush1.bf16.msra.mxu0 %v178
  %201 = vmatprep.subr.bf16.mxu0 0
  %202 = vmatpush1.bf16.msra.mxu0 %v179
  %203 = vmatprep.subr.bf16.mxu0 0
  %204 = vmatpush1.bf16.msra.mxu0 %v180
  %205 = vmatprep.subr.bf16.mxu0 0
  %206 = vmatpush1.bf16.msra.mxu0 0
  %207 = vmatprep.subr.bf16.mxu0 0
  %208 = vmatpush1.bf16.msra.mxu0 0
  %209 = vmatprep.subr.bf16.mxu0 0
  %210 = vmatpush1.bf16.msra.mxu0 0
  %211 = vmatprep.subr.bf16.mxu0 0
  %212 = vmatpush1.bf16.msra.mxu0 0
  %213 = vmatprep.subr.bf16.mxu0 0
  %214 = vmatpush1.bf16.msra.mxu0 0
  %215 = vmatprep.subr.bf16.mxu0 0
  %216 = vmatpush1.bf16.msra.mxu0 0
  %217 = vmatprep.subr.bf16.mxu0 0
  %218 = vmatpush1.bf16.msra.mxu0 0
  %219 = vmatprep.subr.bf16.mxu0 0
  %220 = vmatpush1.bf16.msra.mxu0 0
  %221 = vmatprep.mubr.bf16.mxu0 0
  %222 = vmatmul.mubr.bf16.gmra.mrb[0].mxu0 %v125
  %v223 = vpop.f32.mrb[0].mxu0
  %v224 = vadd.f32 0.0, %v223
  %v225 = vpop.f32.mrb[0].mxu0
  %v226 = vpop.f32.mrb[0].mxu0
  %v227 = vadd.f32 0.0, %v226
  %v228 = vpop.f32.mrb[0].mxu0
  %229 = vmatprep.mubr.bf16.mxu0 0
  %230 = vmatmul.mubr.bf16.gmra.mrb[0].mxu0 %v126
  %v231 = vpop.f32.mrb[0].mxu0
  %v232 = vadd.f32 0.0, %v231
  %v233 = vpop.f32.mrb[0].mxu0
  %v234 = vpop.f32.mrb[0].mxu0
  %v235 = vadd.f32 0.0, %v234
  %v236 = vpop.f32.mrb[0].mxu0
  %237 = vmatprep.mubr.bf16.mxu0 0
  %238 = vmatmul.mubr.bf16.gmra.mrb[0].mxu0 %v127
  %v239 = vpop.f32.mrb[0].mxu0
  %v240 = vadd.f32 0.0, %v239
  %v241 = vpop.f32.mrb[0].mxu0
  %v242 = vpop.f32.mrb[0].mxu0
  %v243 = vadd.f32 0.0, %v242
  %v244 = vpop.f32.mrb[0].mxu0
  %245 = vmatprep.mubr.bf16.mxu0 0
  %246 = vmatmul.mubr.bf16.gmra.mrb[0].mxu0 %v128
  %v247 = vpop.f32.mrb[0].mxu0
  %v248 = vadd.f32 0.0, %v247
  %v249 = vpop.f32.mrb[0].mxu0
  %v250 = vpop.f32.mrb[0].mxu0
  %v251 = vadd.f32 0.0, %v250
  %v252 = vpop.f32.mrb[0].mxu0
  %253 = vmatprep.mubr.bf16.mxu0 0
  %254 = vmatmul.mubr.bf16.gmra.mrb[0].mxu0 %v129
  %v255 = vpop.f32.mrb[0].mxu0
  %v256 = vadd.f32 0.0, %v255
  %v257 = vpop.f32.mrb[0].mxu0
  %v258 = vpop.f32.mrb[0].mxu0
  %v259 = vadd.f32 0.0, %v258
  %v260 = vpop.f32.mrb[0].mxu0
  %261 = vmatprep.mubr.bf16.mxu0 0
  %262 = vmatmul.mubr.bf16.gmra.mrb[0].mxu0 %v130
  %v263 = vpop.f32.mrb[0].mxu0
  %v264 = vadd.f32 0.0, %v263
  %v265 = vpop.f32.mrb[0].mxu0
  %v266 = vpop.f32.mrb[0].mxu0
  %v267 = vadd.f32 0.0, %v266
  %v268 = vpop.f32.mrb[0].mxu0
  %269 = vmatprep.mubr.bf16.mxu0 0
  %270 = vmatmul.mubr.bf16.gmra.mrb[0].mxu0 %v131
  %v271 = vpop.f32.mrb[0].mxu0
  %v272 = vadd.f32 0.0, %v271
  %v273 = vpop.f32.mrb[0].mxu0
  %v274 = vpop.f32.mrb[0].mxu0
  %v275 = vadd.f32 0.0, %v274
  %v276 = vpop.f32.mrb[0].mxu0
  %277 = vmatprep.mubr.bf16.mxu0 0
  %278 = vmatmul.mubr.bf16.gmra.mrb[0].mxu0 %v132
  %v279 = vpop.f32.mrb[0].mxu0
  %v280 = vadd.f32 0.0, %v279
  %v281 = vpop.f32.mrb[0].mxu0
  %v282 = vpop.f32.mrb[0].mxu0
  %v283 = vadd.f32 0.0, %v282
  %v284 = vpop.f32.mrb[0].mxu0
  %285 = vdwg.mxu0
  %v286 = vadd.f32 %v41, %v224
  %v287 = vadd.f32 %v42, %v227
  %v288 = vadd.f32 %v43, %v232
  %v289 = vadd.f32 %v44, %v235
  %v290 = vadd.f32 %v45, %v240
  %v291 = vadd.f32 %v46, %v243
  %v292 = vadd.f32 %v47, %v248
  %v293 = vadd.f32 %v48, %v251
  %v294 = vadd.f32 %v49, %v256
  %v295 = vadd.f32 %v50, %v259
  %v296 = vadd.f32 %v51, %v264
  %v297 = vadd.f32 %v52, %v267
  %v298 = vadd.f32 %v53, %v272
  %v299 = vadd.f32 %v54, %v275
  %v300 = vadd.f32 %v55, %v280
  %v301 = vadd.f32 %v56, %v283
  %302 = vst [vmem:[#allocation2] sm:$0xff] %v286
  %303 = vst [vmem:[#allocation2 + $0x8] sm:$0xff] %v287
  %304 = vst [vmem:[#allocation2 + $0x10] sm:$0xff] %v288
  %305 = vst [vmem:[#allocation2 + $0x18] sm:$0xff] %v289
  %306 = vst [vmem:[#allocation2 + $0x20] sm:$0xff] %v290
  %307 = vst [vmem:[#allocation2 + $0x28] sm:$0xff] %v291
  %308 = vst [vmem:[#allocation2 + $0x30] sm:$0xff] %v292
  %309 = vst [vmem:[#allocation2 + $0x38] sm:$0xff] %v293
  %310 = vst [vmem:[#allocation2 + $0x40] sm:$0xff] %v294
  %311 = vst [vmem:[#allocation2 + $0x48] sm:$0xff] %v295
  %312 = vst [vmem:[#allocation2 + $0x50] sm:$0xff] %v296
  %313 = vst [vmem:[#allocation2 + $0x58] sm:$0xff] %v297
  %314 = vst [vmem:[#allocation2 + $0x60] sm:$0xff] %v298
  %315 = vst [vmem:[#allocation2 + $0x68] sm:$0xff] %v299
  %316 = vst [vmem:[#allocation2 + $0x70] sm:$0xff] %v300
  %317 = vst [vmem:[#allocation2 + $0x78] sm:$0xff] %v301
  // Predicated region
  $region22: #{auto_ad_forward.10} parent=0 // pred_check
    %p318 = pneg %p20
  $region23: #{auto_ad_forward.10} parent=0 // pred_check_branch
    %320 = sbr.rel (%p318) target = $region25
  $region24: #{auto_ad_forward.10} parent=0 // pred_region
    %v321 = vld [vmem:[%s3] sm:$0xff]
    %v322 = vld [vmem:[%s3 + $0x8] sm:$0xff]
    %v323 = vld [vmem:[%s3 + $0x10] sm:$0xff]
    %v324 = vld [vmem:[%s3 + $0x18] sm:$0xff]
    %v325 = vld [vmem:[%s3 + $0x20] sm:$0xff]
    %v326 = vld [vmem:[%s3 + $0x28] sm:$0xff]
    %v327 = vld [vmem:[%s3 + $0x30] sm:$0xff]
    %v328 = vld [vmem:[%s3 + $0x38] sm:$0xff]
    %v329 = vld [vmem:[%s3 + $0x40] sm:$0xff]
    %v330 = vld [vmem:[%s3 + $0x48] sm:$0xff]
    %v331 = vld [vmem:[%s3 + $0x50] sm:$0xff]
    %v332 = vld [vmem:[%s3 + $0x58] sm:$0xff]
    %v333 = vld [vmem:[%s3 + $0x60] sm:$0xff]
    %v334 = vld [vmem:[%s3 + $0x68] sm:$0xff]
    %v335 = vld [vmem:[%s3 + $0x70] sm:$0xff]
    %v336 = vld [vmem:[%s3 + $0x78] sm:$0xff]
    %v337 = vld [vmem:[%s2] sm:$0xff]
    %v338 = vld [vmem:[%s2 + $0x8] sm:$0xff]
    %v339 = vld [vmem:[%s2 + $0x10] sm:$0xff]
    %v340 = vld [vmem:[%s2 + $0x18] sm:$0xff]
    %v341 = vld [vmem:[%s2 + $0x20] sm:$0xff]
    %v342 = vld [vmem:[%s2 + $0x28] sm:$0xff]
    %v343 = vld [vmem:[%s2 + $0x30] sm:$0xff]
    %v344 = vld [vmem:[%s2 + $0x38] sm:$0xff]
    %v345 = vld [vmem:[%s2 + $0x40] sm:$0xff]
    %v346 = vld [vmem:[%s2 + $0x48] sm:$0xff]
    %v347 = vld [vmem:[%s2 + $0x50] sm:$0xff]
    %v348 = vld [vmem:[%s2 + $0x58] sm:$0xff]
    %v349 = vld [vmem:[%s2 + $0x60] sm:$0xff]
    %v350 = vld [vmem:[%s2 + $0x68] sm:$0xff]
    %v351 = vld [vmem:[%s2 + $0x70] sm:$0xff]
    %v352 = vld [vmem:[%s2 + $0x78] sm:$0xff]
    %v353 = vld [vmem:[#allocation2] sm:$0xff]
    %v354 = vld [vmem:[#allocation2 + $0x8] sm:$0xff]
    %v355 = vld [vmem:[#allocation2 + $0x10] sm:$0xff]
    %v356 = vld [vmem:[#allocation2 + $0x18] sm:$0xff]
    %v357 = vld [vmem:[#allocation2 + $0x20] sm:$0xff]
    %v358 = vld [vmem:[#allocation2 + $0x28] sm:$0xff]
    %v359 = vld [vmem:[#allocation2 + $0x30] sm:$0xff]
    %v360 = vld [vmem:[#allocation2 + $0x38] sm:$0xff]
    %v361 = vld [vmem:[#allocation2 + $0x40] sm:$0xff]
    %v362 = vld [vmem:[#allocation2 + $0x48] sm:$0xff]
    %v363 = vld [vmem:[#allocation2 + $0x50] sm:$0xff]
    %v364 = vld [vmem:[#allocation2 + $0x58] sm:$0xff]
    %v365 = vld [vmem:[#allocation2 + $0x60] sm:$0xff]
    %v366 = vld [vmem:[#allocation2 + $0x68] sm:$0xff]
    %v367 = vld [vmem:[#allocation2 + $0x70] sm:$0xff]
    %v368 = vld [vmem:[#allocation2 + $0x78] sm:$0xff]
    %370 = vset.pattern.permute.xlu0 0
    %371 = vperm.xlu0 %370, %v321
    %v372 = vpop.permute.xlu0 %371
    %375 = vset.pattern.permute.xlu0 0
    %376 = vperm.xlu0 %375, %v322
    %v377 = vpop.permute.xlu0 %376
    %380 = vset.pattern.permute.xlu0 0
    %381 = vperm.xlu0 %380, %v323
    %v382 = vpop.permute.xlu0 %381
    %385 = vset.pattern.permute.xlu0 0
    %386 = vperm.xlu0 %385, %v324
    %v387 = vpop.permute.xlu0 %386
    %390 = vset.pattern.permute.xlu0 0
    %391 = vperm.xlu0 %390, %v325
    %v392 = vpop.permute.xlu0 %391
    %395 = vset.pattern.permute.xlu0 0
    %396 = vperm.xlu0 %395, %v326
    %v397 = vpop.permute.xlu0 %396
    %400 = vset.pattern.permute.xlu0 0
    %401 = vperm.xlu0 %400, %v327
    %v402 = vpop.permute.xlu0 %401
    %405 = vset.pattern.permute.xlu0 0
    %406 = vperm.xlu0 %405, %v328
    %v407 = vpop.permute.xlu0 %406
    %410 = vset.pattern.permute.xlu0 0
    %411 = vperm.xlu0 %410, %v329
    %v412 = vpop.permute.xlu0 %411
    %415 = vset.pattern.permute.xlu0 0
    %416 = vperm.xlu0 %415, %v330
    %v417 = vpop.permute.xlu0 %416
    %420 = vset.pattern.permute.xlu0 0
    %421 = vperm.xlu0 %420, %v331
    %v422 = vpop.permute.xlu0 %421
    %425 = vset.pattern.permute.xlu0 0
    %426 = vperm.xlu0 %425, %v332
    %v427 = vpop.permute.xlu0 %426
    %430 = vset.pattern.permute.xlu0 0
    %431 = vperm.xlu0 %430, %v333
    %v432 = vpop.permute.xlu0 %431
    %435 = vset.pattern.permute.xlu0 0
    %436 = vperm.xlu0 %435, %v334
    %v437 = vpop.permute.xlu0 %436
    %440 = vset.pattern.permute.xlu0 0
    %441 = vperm.xlu0 %440, %v335
    %v442 = vpop.permute.xlu0 %441
    %445 = vset.pattern.permute.xlu0 0
    %446 = vperm.xlu0 %445, %v336
    %v447 = vpop.permute.xlu0 %446
    %v449 = vmul.f32 %v353, %v372
    %v450 = vmul.f32 %v354, %v377
    %v451 = vmul.f32 %v355, %v382
    %v452 = vmul.f32 %v356, %v387
    %v453 = vmul.f32 %v357, %v392
    %v454 = vmul.f32 %v358, %v397
    %v455 = vmul.f32 %v359, %v402
    %v456 = vmul.f32 %v360, %v407
    %v457 = vmul.f32 %v361, %v412
    %v458 = vmul.f32 %v362, %v417
    %v459 = vmul.f32 %v363, %v422
    %v460 = vmul.f32 %v364, %v427
    %v461 = vmul.f32 %v365, %v432
    %v462 = vmul.f32 %v366, %v437
    %v463 = vmul.f32 %v367, %v442
    %v464 = vmul.f32 %v368, %v447
    %v465 = vsub.f32 %v337, %v449
    %v466 = vsub.f32 %v338, %v450
    %v467 = vsub.f32 %v339, %v451
    %v468 = vsub.f32 %v340, %v452
    %v469 = vsub.f32 %v341, %v453
    %v470 = vsub.f32 %v342, %v454
    %v471 = vsub.f32 %v343, %v455
    %v472 = vsub.f32 %v344, %v456
    %v473 = vsub.f32 %v345, %v457
    %v474 = vsub.f32 %v346, %v458
    %v475 = vsub.f32 %v347, %v459
    %v476 = vsub.f32 %v348, %v460
    %v477 = vsub.f32 %v349, %v461
    %v478 = vsub.f32 %v350, %v462
    %v479 = vsub.f32 %v351, %v463
    %v480 = vsub.f32 %v352, %v464
    %481 = vst [vmem:[%s4] sm:$0xff] %v465
    %482 = vst [vmem:[%s4 + $0x8] sm:$0xff] %v466
    %483 = vst [vmem:[%s4 + $0x10] sm:$0xff] %v467
    %484 = vst [vmem:[%s4 + $0x18] sm:$0xff] %v468
    %485 = vst [vmem:[%s4 + $0x20] sm:$0xff] %v469
    %486 = vst [vmem:[%s4 + $0x28] sm:$0xff] %v470
    %487 = vst [vmem:[%s4 + $0x30] sm:$0xff] %v471
    %488 = vst [vmem:[%s4 + $0x38] sm:$0xff] %v472
    %489 = vst [vmem:[%s4 + $0x40] sm:$0xff] %v473
    %490 = vst [vmem:[%s4 + $0x48] sm:$0xff] %v474
    %491 = vst [vmem:[%s4 + $0x50] sm:$0xff] %v475
    %492 = vst [vmem:[%s4 + $0x58] sm:$0xff] %v476
    %493 = vst [vmem:[%s4 + $0x60] sm:$0xff] %v477
    %494 = vst [vmem:[%s4 + $0x68] sm:$0xff] %v478
    %495 = vst [vmem:[%s4 + $0x70] sm:$0xff] %v479
    %496 = vst [vmem:[%s4 + $0x78] sm:$0xff] %v480
    %v497 = vmul.f32 %v465, %v372
    %v498 = vmul.f32 %v466, %v377
    %v499 = vmul.f32 %v467, %v382
    %v500 = vmul.f32 %v468, %v387
    %v501 = vmul.f32 %v469, %v392
    %v502 = vmul.f32 %v470, %v397
    %v503 = vmul.f32 %v471, %v402
    %v504 = vmul.f32 %v472, %v407
    %v505 = vmul.f32 %v473, %v412
    %v506 = vmul.f32 %v474, %v417
    %v507 = vmul.f32 %v475, %v422
    %v508 = vmul.f32 %v476, %v427
    %v509 = vmul.f32 %v477, %v432
    %v510 = vmul.f32 %v478, %v437
    %v511 = vmul.f32 %v479, %v442
    %v512 = vmul.f32 %v480, %v447
    %v513 = vpack.c.bf16 %v498, %v497
    %v514 = vpack.c.bf16 %v500, %v499
    %v515 = vpack.c.bf16 %v502, %v501
    %v516 = vpack.c.bf16 %v504, %v503
    %v517 = vpack.c.bf16 %v506, %v505
    %v518 = vpack.c.bf16 %v508, %v507
    %v519 = vpack.c.bf16 %v510, %v509
    %v520 = vpack.c.bf16 %v512, %v511
    %v529 = vunpack.c.l.b16 %v513
    %v530 = vunpack.c.h.b16 %v513
    %v531 = vunpack.c.l.b16 %v514
    %v532 = vunpack.c.h.b16 %v514
    %v533 = vunpack.c.l.b16 %v515
    %v534 = vunpack.c.h.b16 %v515
    %v535 = vunpack.c.l.b16 %v516
    %v536 = vunpack.c.h.b16 %v516
    %v537 = vunpack.c.l.b16 %v517
    %v538 = vunpack.c.h.b16 %v517
    %v539 = vunpack.c.l.b16 %v518
    %v540 = vunpack.c.h.b16 %v518
    %v541 = vunpack.c.l.b16 %v519
    %v542 = vunpack.c.h.b16 %v519
    %v543 = vunpack.c.l.b16 %v520
    %v544 = vunpack.c.h.b16 %v520
    %v545 = vpack.c.b16 %v529, %v529
    %v546 = vpack.c.b16 %v530, %v530
    %v547 = vpack.c.b16 %v531, %v531
    %v548 = vpack.c.b16 %v532, %v532
    %v549 = vpack.c.b16 %v533, %v533
    %v550 = vpack.c.b16 %v534, %v534
    %v551 = vpack.c.b16 %v535, %v535
    %v552 = vpack.c.b16 %v536, %v536
    %v553 = vpack.c.b16 %v537, %v537
    %v554 = vpack.c.b16 %v538, %v538
    %v555 = vpack.c.b16 %v539, %v539
    %v556 = vpack.c.b16 %v540, %v540
    %v557 = vpack.c.b16 %v541, %v541
    %v558 = vpack.c.b16 %v542, %v542
    %v559 = vpack.c.b16 %v543, %v543
    %v560 = vpack.c.b16 %v544, %v544
    %577 = vst [vmem:[%s5] sm:$0xf] %v545
    %578 = vst [vmem:[%s5 + $0x4] sm:$0xf] %v546
    %579 = vst [vmem:[%s5 + $0x8] sm:$0xf] %v547
    %580 = vst [vmem:[%s5 + $0xc] sm:$0xf] %v548
    %581 = vst [vmem:[%s5 + $0x10] sm:$0xf] %v549
    %582 = vst [vmem:[%s5 + $0x14] sm:$0xf] %v550
    %583 = vst [vmem:[%s5 + $0x18] sm:$0xf] %v551
    %584 = vst [vmem:[%s5 + $0x1c] sm:$0xf] %v552
    %585 = vst [vmem:[%s5 + $0x20] sm:$0xf] %v553
    %586 = vst [vmem:[%s5 + $0x24] sm:$0xf] %v554
    %587 = vst [vmem:[%s5 + $0x28] sm:$0xf] %v555
    %588 = vst [vmem:[%s5 + $0x2c] sm:$0xf] %v556
    %589 = vst [vmem:[%s5 + $0x30] sm:$0xf] %v557
    %590 = vst [vmem:[%s5 + $0x34] sm:$0xf] %v558
    %591 = vst [vmem:[%s5 + $0x38] sm:$0xf] %v559
    %592 = vst [vmem:[%s5 + $0x3c] sm:$0xf] %v560
  $region25: #{auto_ad_forward.10} parent=0 // pred_fallthru
    _
  // Predicated region
  $region26: #{auto_ad_forward.10} parent=0 // pred_check
    _
  $region27: #{auto_ad_forward.10} parent=0 // pred_check_branch
    %594 = sbr.rel (0) target = $region29
  $region28: #{auto_ad_forward.10} parent=0 // pred_region
    _
  $region29: #{auto_ad_forward.10} parent=0 // pred_fallthru
    _
  // Predicated region
  $region30: #{auto_ad_forward.10} parent=0 // pred_check
    _
  $region31: #{auto_ad_forward.10} parent=0 // pred_check_branch
    %596 = sbr.rel (0) target = $region33
  $region32: #{auto_ad_forward.10} parent=0 // pred_region
    _
  $region33: #{auto_ad_forward.10} parent=0 // pred_fallthru
    _
  // Predicated region
  $region34: #{auto_ad_forward.10} parent=0 // pred_check
    _
  $region35: #{auto_ad_forward.10} parent=0 // pred_check_branch
    %598 = sbr.rel (0) target = $region37
  $region36: #{auto_ad_forward.10} parent=0 // pred_region
    _
  $region37: #{auto_ad_forward.10} parent=0 // pred_fallthru
    _
  // Predicated region
  $region38: #{auto_ad_forward.10} parent=0 // pred_check
    _
  $region39: #{auto_ad_forward.10} parent=0 // pred_check_branch
    %600 = sbr.rel (0) target = $region41
  $region40: #{auto_ad_forward.10} parent=0 // pred_region
    _
  $region41: #{auto_ad_forward.10} parent=0 // pred_fallthru
    _

// kernel: auto_ad_forward.9
$region0: #{auto_ad_forward.9}
  #allocation0 [shape = 'u32[]', space=smem, size = 0x4, offset = 0x4, fixed_abs, tag = 'smem constant byte address 0x4 - core index']
  #allocation1 [shape = 'u32[144,128]{1,0:T(1,128)}', space=vmem, size = 0x12000, scoped, tag = 'internal scratch']
  %s0 = inlined_call_operand.vmem [shape: f32[128,128], index: 0, kind: input, shape index: {}]
  %s1 = inlined_call_operand.vmem [shape: f32[128,1], index: 1, kind: input, shape index: {}]
  %s2 = inlined_call_operand.vmem [shape: bf16[128,128], index: 2, kind: output, shape index: {}]
  %s3 = sld [smem:[#allocation0]]
  $region18: #{auto_ad_forward.9} parent=0
    _
  %s5 = ssub.s32 1, %s3
  %s6 = scalar_select 0, %s5, %s3
  // Predicated region
  $region2: #{auto_ad_forward.9} parent=0 // pred_check
    _
  $region3: #{auto_ad_forward.9} parent=0 // pred_check_branch
    %8 = sbr.rel (0) target = $region5
  $region4: #{auto_ad_forward.9} parent=0 // pred_region
    _
  $region5: #{auto_ad_forward.9} parent=0 // pred_fallthru
    _
  // Predicated region
  $region6: #{auto_ad_forward.9} parent=0 // pred_check
    _
  $region7: #{auto_ad_forward.9} parent=0 // pred_check_branch
    %10 = sbr.rel (0) target = $region9
  $region8: #{auto_ad_forward.9} parent=0 // pred_region
    _
  $region9: #{auto_ad_forward.9} parent=0 // pred_fallthru
    _
  %v11 = vld [vmem:[%s0] sm:$0xff]
  %v12 = vld [vmem:[%s0 + $0x8] sm:$0xff]
  %v13 = vld [vmem:[%s0 + $0x10] sm:$0xff]
  %v14 = vld [vmem:[%s0 + $0x18] sm:$0xff]
  %v15 = vld [vmem:[%s0 + $0x20] sm:$0xff]
  %v16 = vld [vmem:[%s0 + $0x28] sm:$0xff]
  %v17 = vld [vmem:[%s0 + $0x30] sm:$0xff]
  %v18 = vld [vmem:[%s0 + $0x38] sm:$0xff]
  %v19 = vld [vmem:[%s0 + $0x40] sm:$0xff]
  %v20 = vld [vmem:[%s0 + $0x48] sm:$0xff]
  %v21 = vld [vmem:[%s0 + $0x50] sm:$0xff]
  %v22 = vld [vmem:[%s0 + $0x58] sm:$0xff]
  %v23 = vld [vmem:[%s0 + $0x60] sm:$0xff]
  %v24 = vld [vmem:[%s0 + $0x68] sm:$0xff]
  %v25 = vld [vmem:[%s0 + $0x70] sm:$0xff]
  %v26 = vld [vmem:[%s0 + $0x78] sm:$0xff]
  %v27 = vld [vmem:[%s1] sm:$0xff]
  %v28 = vld [vmem:[%s1 + $0x8] sm:$0xff]
  %v29 = vld [vmem:[%s1 + $0x10] sm:$0xff]
  %v30 = vld [vmem:[%s1 + $0x18] sm:$0xff]
  %v31 = vld [vmem:[%s1 + $0x20] sm:$0xff]
  %v32 = vld [vmem:[%s1 + $0x28] sm:$0xff]
  %v33 = vld [vmem:[%s1 + $0x30] sm:$0xff]
  %v34 = vld [vmem:[%s1 + $0x38] sm:$0xff]
  %v35 = vld [vmem:[%s1 + $0x40] sm:$0xff]
  %v36 = vld [vmem:[%s1 + $0x48] sm:$0xff]
  %v37 = vld [vmem:[%s1 + $0x50] sm:$0xff]
  %v38 = vld [vmem:[%s1 + $0x58] sm:$0xff]
  %v39 = vld [vmem:[%s1 + $0x60] sm:$0xff]
  %v40 = vld [vmem:[%s1 + $0x68] sm:$0xff]
  %v41 = vld [vmem:[%s1 + $0x70] sm:$0xff]
  %v42 = vld [vmem:[%s1 + $0x78] sm:$0xff]
  %44 = vset.pattern.permute.xlu0 0
  %45 = vperm.xlu0 %44, %v27
  %v46 = vpop.permute.xlu0 %45
  %49 = vset.pattern.permute.xlu0 0
  %50 = vperm.xlu0 %49, %v28
  %v51 = vpop.permute.xlu0 %50
  %54 = vset.pattern.permute.xlu0 0
  %55 = vperm.xlu0 %54, %v29
  %v56 = vpop.permute.xlu0 %55
  %59 = vset.pattern.permute.xlu0 0
  %60 = vperm.xlu0 %59, %v30
  %v61 = vpop.permute.xlu0 %60
  %64 = vset.pattern.permute.xlu0 0
  %65 = vperm.xlu0 %64, %v31
  %v66 = vpop.permute.xlu0 %65
  %69 = vset.pattern.permute.xlu0 0
  %70 = vperm.xlu0 %69, %v32
  %v71 = vpop.permute.xlu0 %70
  %74 = vset.pattern.permute.xlu0 0
  %75 = vperm.xlu0 %74, %v33
  %v76 = vpop.permute.xlu0 %75
  %79 = vset.pattern.permute.xlu0 0
  %80 = vperm.xlu0 %79, %v34
  %v81 = vpop.permute.xlu0 %80
  %84 = vset.pattern.permute.xlu0 0
  %85 = vperm.xlu0 %84, %v35
  %v86 = vpop.permute.xlu0 %85
  %89 = vset.pattern.permute.xlu0 0
  %90 = vperm.xlu0 %89, %v36
  %v91 = vpop.permute.xlu0 %90
  %94 = vset.pattern.permute.xlu0 0
  %95 = vperm.xlu0 %94, %v37
  %v96 = vpop.permute.xlu0 %95
  %99 = vset.pattern.permute.xlu0 0
  %100 = vperm.xlu0 %99, %v38
  %v101 = vpop.permute.xlu0 %100
  %104 = vset.pattern.permute.xlu0 0
  %105 = vperm.xlu0 %104, %v39
  %v106 = vpop.permute.xlu0 %105
  %109 = vset.pattern.permute.xlu0 0
  %110 = vperm.xlu0 %109, %v40
  %v111 = vpop.permute.xlu0 %110
  %114 = vset.pattern.permute.xlu0 0
  %115 = vperm.xlu0 %114, %v41
  %v116 = vpop.permute.xlu0 %115
  %119 = vset.pattern.permute.xlu0 0
  %120 = vperm.xlu0 %119, %v42
  %v121 = vpop.permute.xlu0 %120
  %v123 = vmul.f32 %v11, %v46
  %v124 = vmul.f32 %v12, %v51
  %v125 = vmul.f32 %v13, %v56
  %v126 = vmul.f32 %v14, %v61
  %v127 = vmul.f32 %v15, %v66
  %v128 = vmul.f32 %v16, %v71
  %v129 = vmul.f32 %v17, %v76
  %v130 = vmul.f32 %v18, %v81
  %v131 = vmul.f32 %v19, %v86
  %v132 = vmul.f32 %v20, %v91
  %v133 = vmul.f32 %v21, %v96
  %v134 = vmul.f32 %v22, %v101
  %v135 = vmul.f32 %v23, %v106
  %v136 = vmul.f32 %v24, %v111
  %v137 = vmul.f32 %v25, %v116
  %v138 = vmul.f32 %v26, %v121
  %v139 = vpack.c.bf16 %v124, %v123
  %v140 = vpack.c.bf16 %v126, %v125
  %v141 = vpack.c.bf16 %v128, %v127
  %v142 = vpack.c.bf16 %v130, %v129
  %v143 = vpack.c.bf16 %v132, %v131
  %v144 = vpack.c.bf16 %v134, %v133
  %v145 = vpack.c.bf16 %v136, %v135
  %v146 = vpack.c.bf16 %v138, %v137
  %v155 = vunpack.c.l.b16 %v139
  %v156 = vunpack.c.h.b16 %v139
  %v157 = vunpack.c.l.b16 %v140
  %v158 = vunpack.c.h.b16 %v140
  %v159 = vunpack.c.l.b16 %v141
  %v160 = vunpack.c.h.b16 %v141
  %v161 = vunpack.c.l.b16 %v142
  %v162 = vunpack.c.h.b16 %v142
  %v163 = vunpack.c.l.b16 %v143
  %v164 = vunpack.c.h.b16 %v143
  %v165 = vunpack.c.l.b16 %v144
  %v166 = vunpack.c.h.b16 %v144
  %v167 = vunpack.c.l.b16 %v145
  %v168 = vunpack.c.h.b16 %v145
  %v169 = vunpack.c.l.b16 %v146
  %v170 = vunpack.c.h.b16 %v146
  %v171 = vpack.c.b16 %v155, %v155
  %v172 = vpack.c.b16 %v156, %v156
  %v173 = vpack.c.b16 %v157, %v157
  %v174 = vpack.c.b16 %v158, %v158
  %v175 = vpack.c.b16 %v159, %v159
  %v176 = vpack.c.b16 %v160, %v160
  %v177 = vpack.c.b16 %v161, %v161
  %v178 = vpack.c.b16 %v162, %v162
  %v179 = vpack.c.b16 %v163, %v163
  %v180 = vpack.c.b16 %v164, %v164
  %v181 = vpack.c.b16 %v165, %v165
  %v182 = vpack.c.b16 %v166, %v166
  %v183 = vpack.c.b16 %v167, %v167
  %v184 = vpack.c.b16 %v168, %v168
  %v185 = vpack.c.b16 %v169, %v169
  %v186 = vpack.c.b16 %v170, %v170
  %203 = vst [vmem:[%s2] sm:$0xf] %v171
  %204 = vst [vmem:[%s2 + $0x4] sm:$0xf] %v172
  %205 = vst [vmem:[%s2 + $0x8] sm:$0xf] %v173
  %206 = vst [vmem:[%s2 + $0xc] sm:$0xf] %v174
  %207 = vst [vmem:[%s2 + $0x10] sm:$0xf] %v175
  %208 = vst [vmem:[%s2 + $0x14] sm:$0xf] %v176
  %209 = vst [vmem:[%s2 + $0x18] sm:$0xf] %v177
  %210 = vst [vmem:[%s2 + $0x1c] sm:$0xf] %v178
  %211 = vst [vmem:[%s2 + $0x20] sm:$0xf] %v179
  %212 = vst [vmem:[%s2 + $0x24] sm:$0xf] %v180
  %213 = vst [vmem:[%s2 + $0x28] sm:$0xf] %v181
  %214 = vst [vmem:[%s2 + $0x2c] sm:$0xf] %v182
  %215 = vst [vmem:[%s2 + $0x30] sm:$0xf] %v183
  %216 = vst [vmem:[%s2 + $0x34] sm:$0xf] %v184
  %217 = vst [vmem:[%s2 + $0x38] sm:$0xf] %v185
  %218 = vst [vmem:[%s2 + $0x3c] sm:$0xf] %v186
  // Predicated region
  $region10: #{auto_ad_forward.9} parent=0 // pred_check
    _
  $region11: #{auto_ad_forward.9} parent=0 // pred_check_branch
    %220 = sbr.rel (0) target = $region13
  $region12: #{auto_ad_forward.9} parent=0 // pred_region
    _
  $region13: #{auto_ad_forward.9} parent=0 // pred_fallthru
    _
  // Predicated region
  $region14: #{auto_ad_forward.9} parent=0 // pred_check
    _
  $region15: #{auto_ad_forward.9} parent=0 // pred_check_branch
    %222 = sbr.rel (0) target = $region17
  $region16: #{auto_ad_forward.9} parent=0 // pred_region
    _
  $region17: #{auto_ad_forward.9} parent=0 // pred_fallthru
    _

// kernel: auto_ad_forward.8
$region0: #{auto_ad_forward.8}
  #allocation0 [shape = 'u32[]', space=smem, size = 0x4, offset = 0x4, fixed_abs, tag = 'smem constant byte address 0x4 - core index']
  #allocation1 [shape = 'u32[144,128]{1,0:T(1,128)}', space=vmem, size = 0x12000, scoped, tag = 'internal scratch']
  %s0 = inlined_call_operand.vmem [shape: f32[128,128], index: 0, kind: input, shape index: {}]
  %s1 = inlined_call_operand.vmem [shape: f32[128,128], index: 1, kind: input, shape index: {}]
  %s2 = inlined_call_operand.vmem [shape: f32[1,128], index: 2, kind: input, shape index: {}]
  %s3 = inlined_call_operand.vmem [shape: f32[128,128], index: 3, kind: input, shape index: {}]
  %s4 = inlined_call_operand.vmem [shape: f32[1,128], index: 4, kind: input, shape index: {}]
  %s5 = inlined_call_operand.vmem [shape: f32[128,128], index: 5, kind: output, shape index: {}]
  %s6 = sld [smem:[#allocation0]]
  $region30: #{auto_ad_forward.8} parent=0
    _
  %s8 = ssub.s32 1, %s6
  %s9 = scalar_select 0, %s8, %s6
  // Predicated region
  $region2: #{auto_ad_forward.8} parent=0 // pred_check
    _
  $region3: #{auto_ad_forward.8} parent=0 // pred_check_branch
    %11 = sbr.rel (0) target = $region5
  $region4: #{auto_ad_forward.8} parent=0 // pred_region
    _
  $region5: #{auto_ad_forward.8} parent=0 // pred_fallthru
    _
  // Predicated region
  $region6: #{auto_ad_forward.8} parent=0 // pred_check
    _
  $region7: #{auto_ad_forward.8} parent=0 // pred_check_branch
    %13 = sbr.rel (0) target = $region9
  $region8: #{auto_ad_forward.8} parent=0 // pred_region
    _
  $region9: #{auto_ad_forward.8} parent=0 // pred_fallthru
    _
  // Predicated region
  $region10: #{auto_ad_forward.8} parent=0 // pred_check
    _
  $region11: #{auto_ad_forward.8} parent=0 // pred_check_branch
    %15 = sbr.rel (0) target = $region13
  $region12: #{auto_ad_forward.8} parent=0 // pred_region
    _
  $region13: #{auto_ad_forward.8} parent=0 // pred_fallthru
    _
  // Predicated region
  $region14: #{auto_ad_forward.8} parent=0 // pred_check
    _
  $region15: #{auto_ad_forward.8} parent=0 // pred_check_branch
    %17 = sbr.rel (0) target = $region17
  $region16: #{auto_ad_forward.8} parent=0 // pred_region
    _
  $region17: #{auto_ad_forward.8} parent=0 // pred_fallthru
    _
  // Predicated region
  $region18: #{auto_ad_forward.8} parent=0 // pred_check
    _
  $region19: #{auto_ad_forward.8} parent=0 // pred_check_branch
    %19 = sbr.rel (0) target = $region21
  $region20: #{auto_ad_forward.8} parent=0 // pred_region
    _
  $region21: #{auto_ad_forward.8} parent=0 // pred_fallthru
    _
  %v20 = vld [vmem:[%s0] sm:$0xff]
  %v21 = vld [vmem:[%s0 + $0x8] sm:$0xff]
  %v22 = vld [vmem:[%s0 + $0x10] sm:$0xff]
  %v23 = vld [vmem:[%s0 + $0x18] sm:$0xff]
  %v24 = vld [vmem:[%s0 + $0x20] sm:$0xff]
  %v25 = vld [vmem:[%s0 + $0x28] sm:$0xff]
  %v26 = vld [vmem:[%s0 + $0x30] sm:$0xff]
  %v27 = vld [vmem:[%s0 + $0x38] sm:$0xff]
  %v28 = vld [vmem:[%s0 + $0x40] sm:$0xff]
  %v29 = vld [vmem:[%s0 + $0x48] sm:$0xff]
  %v30 = vld [vmem:[%s0 + $0x50] sm:$0xff]
  %v31 = vld [vmem:[%s0 + $0x58] sm:$0xff]
  %v32 = vld [vmem:[%s0 + $0x60] sm:$0xff]
  %v33 = vld [vmem:[%s0 + $0x68] sm:$0xff]
  %v34 = vld [vmem:[%s0 + $0x70] sm:$0xff]
  %v35 = vld [vmem:[%s0 + $0x78] sm:$0xff]
  %v36 = vld [vmem:[%s1] sm:$0xff]
  %v37 = vld [vmem:[%s1 + $0x8] sm:$0xff]
  %v38 = vld [vmem:[%s1 + $0x10] sm:$0xff]
  %v39 = vld [vmem:[%s1 + $0x18] sm:$0xff]
  %v40 = vld [vmem:[%s1 + $0x20] sm:$0xff]
  %v41 = vld [vmem:[%s1 + $0x28] sm:$0xff]
  %v42 = vld [vmem:[%s1 + $0x30] sm:$0xff]
  %v43 = vld [vmem:[%s1 + $0x38] sm:$0xff]
  %v44 = vld [vmem:[%s1 + $0x40] sm:$0xff]
  %v45 = vld [vmem:[%s1 + $0x48] sm:$0xff]
  %v46 = vld [vmem:[%s1 + $0x50] sm:$0xff]
  %v47 = vld [vmem:[%s1 + $0x58] sm:$0xff]
  %v48 = vld [vmem:[%s1 + $0x60] sm:$0xff]
  %v49 = vld [vmem:[%s1 + $0x68] sm:$0xff]
  %v50 = vld [vmem:[%s1 + $0x70] sm:$0xff]
  %v51 = vld [vmem:[%s1 + $0x78] sm:$0xff]
  %v52 = vld [vmem:[%s2] sm:$0x1]
  %v54 = vlaneseq
  %v55 = vshrl.u32 %v54, 7
  %v56 = vsub.s32 0, %v55
  %v57 = vrot.slane %v52, %v56
  %59 = vmatprep.subr.mxu0 0.0
  %60 = vmatpush1.msra.mxu0 %v36
  %61 = vmatprep.subr.mxu0 0.0
  %62 = vmatpush1.msra.mxu0 %v37
  %63 = vmatprep.subr.mxu0 0.0
  %64 = vmatpush1.msra.mxu0 %v38
  %65 = vmatprep.subr.mxu0 0.0
  %66 = vmatpush1.msra.mxu0 %v39
  %67 = vmatprep.subr.mxu0 0.0
  %68 = vmatpush1.msra.mxu0 %v40
  %69 = vmatprep.subr.mxu0 0.0
  %70 = vmatpush1.msra.mxu0 %v41
  %71 = vmatprep.subr.mxu0 0.0
  %72 = vmatpush1.msra.mxu0 %v42
  %73 = vmatprep.subr.mxu0 0.0
  %74 = vmatpush1.msra.mxu0 %v43
  %75 = vmatprep.subr.mxu0 0.0
  %76 = vmatpush1.msra.mxu0 %v44
  %77 = vmatprep.subr.mxu0 0.0
  %78 = vmatpush1.msra.mxu0 %v45
  %79 = vmatprep.subr.mxu0 0.0
  %80 = vmatpush1.msra.mxu0 %v46
  %81 = vmatprep.subr.mxu0 0.0
  %82 = vmatpush1.msra.mxu0 %v47
  %83 = vmatprep.subr.mxu0 0.0
  %84 = vmatpush1.msra.mxu0 %v48
  %85 = vmatprep.subr.mxu0 0.0
  %86 = vmatpush1.msra.mxu0 %v49
  %87 = vmatprep.subr.mxu0 0.0
  %88 = vmatpush1.msra.mxu0 %v50
  %89 = vmatprep.subr.mxu0 0.0
  %90 = vmatpush1.msra.mxu0 %v51
  %91 = vmatprep.subr.mxu0 0.0
  %92 = vmatpush1.msra.mxu0 0.0
  %93 = vmatprep.subr.mxu0 0.0
  %94 = vmatpush1.msra.mxu0 0.0
  %95 = vmatprep.subr.mxu0 0.0
  %96 = vmatpush1.msra.mxu0 0.0
  %97 = vmatprep.subr.mxu0 0.0
  %98 = vmatpush1.msra.mxu0 0.0
  %99 = vmatprep.subr.mxu0 0.0
  %100 = vmatpush1.msra.mxu0 0.0
  %101 = vmatprep.subr.mxu0 0.0
  %102 = vmatpush1.msra.mxu0 0.0
  %103 = vmatprep.subr.mxu0 0.0
  %104 = vmatpush1.msra.mxu0 0.0
  %105 = vmatprep.subr.mxu0 0.0
  %106 = vmatpush1.msra.mxu0 0.0
  %107 = vmatprep.subr.mxu0 0.0
  %108 = vmatpush1.msra.mxu0 0.0
  %109 = vmatprep.subr.mxu0 0.0
  %110 = vmatpush1.msra.mxu0 0.0
  %111 = vmatprep.subr.mxu0 0.0
  %112 = vmatpush1.msra.mxu0 0.0
  %113 = vmatprep.subr.mxu0 0.0
  %114 = vmatpush1.msra.mxu0 0.0
  %115 = vmatprep.subr.mxu0 0.0
  %116 = vmatpush1.msra.mxu0 0.0
  %117 = vmatprep.subr.mxu0 0.0
  %118 = vmatpush1.msra.mxu0 0.0
  %119 = vmatprep.subr.mxu0 0.0
  %120 = vmatpush1.msra.mxu0 0.0
  %121 = vmatprep.subr.mxu0 0.0
  %122 = vmatpush1.msra.mxu0 0.0
  %123 = vmatprep.mubr.f32.mxu0 0.0
  %124 = vmatmul.mubr.f32.gmra.mrb[0].mxu0 %v20
  %v125 = vpop.f32.mrb[0].mxu0
  %v126 = vadd.f32 %v57, %v125
  %v127 = vpop.f32.mrb[0].mxu0
  %128 = vmatprep.mubr.f32.mxu0 0.0
  %129 = vmatmul.mubr.f32.gmra.mrb[0].mxu0 %v21
  %v130 = vpop.f32.mrb[0].mxu0
  %v131 = vadd.f32 %v57, %v130
  %v132 = vpop.f32.mrb[0].mxu0
  %133 = vmatprep.mubr.f32.mxu0 0.0
  %134 = vmatmul.mubr.f32.gmra.mrb[0].mxu0 %v22
  %v135 = vpop.f32.mrb[0].mxu0
  %v136 = vadd.f32 %v57, %v135
  %v137 = vpop.f32.mrb[0].mxu0
  %138 = vmatprep.mubr.f32.mxu0 0.0
  %139 = vmatmul.mubr.f32.gmra.mrb[0].mxu0 %v23
  %v140 = vpop.f32.mrb[0].mxu0
  %v141 = vadd.f32 %v57, %v140
  %v142 = vpop.f32.mrb[0].mxu0
  %143 = vmatprep.mubr.f32.mxu0 0.0
  %144 = vmatmul.mubr.f32.gmra.mrb[0].mxu0 %v24
  %v145 = vpop.f32.mrb[0].mxu0
  %v146 = vadd.f32 %v57, %v145
  %v147 = vpop.f32.mrb[0].mxu0
  %148 = vmatprep.mubr.f32.mxu0 0.0
  %149 = vmatmul.mubr.f32.gmra.mrb[0].mxu0 %v25
  %v150 = vpop.f32.mrb[0].mxu0
  %v151 = vadd.f32 %v57, %v150
  %v152 = vpop.f32.mrb[0].mxu0
  %153 = vmatprep.mubr.f32.mxu0 0.0
  %154 = vmatmul.mubr.f32.gmra.mrb[0].mxu0 %v26
  %v155 = vpop.f32.mrb[0].mxu0
  %v156 = vadd.f32 %v57, %v155
  %v157 = vpop.f32.mrb[0].mxu0
  %158 = vmatprep.mubr.f32.mxu0 0.0
  %159 = vmatmul.mubr.f32.gmra.mrb[0].mxu0 %v27
  %v160 = vpop.f32.mrb[0].mxu0
  %v161 = vadd.f32 %v57, %v160
  %v162 = vpop.f32.mrb[0].mxu0
  %163 = vmatprep.mubr.f32.mxu0 0.0
  %164 = vmatmul.mubr.f32.gmra.mrb[0].mxu0 %v28
  %v165 = vpop.f32.mrb[0].mxu0
  %v166 = vadd.f32 %v57, %v165
  %v167 = vpop.f32.mrb[0].mxu0
  %168 = vmatprep.mubr.f32.mxu0 0.0
  %169 = vmatmul.mubr.f32.gmra.mrb[0].mxu0 %v29
  %v170 = vpop.f32.mrb[0].mxu0
  %v171 = vadd.f32 %v57, %v170
  %v172 = vpop.f32.mrb[0].mxu0
  %173 = vmatprep.mubr.f32.mxu0 0.0
  %174 = vmatmul.mubr.f32.gmra.mrb[0].mxu0 %v30
  %v175 = vpop.f32.mrb[0].mxu0
  %v176 = vadd.f32 %v57, %v175
  %v177 = vpop.f32.mrb[0].mxu0
  %178 = vmatprep.mubr.f32.mxu0 0.0
  %179 = vmatmul.mubr.f32.gmra.mrb[0].mxu0 %v31
  %v180 = vpop.f32.mrb[0].mxu0
  %v181 = vadd.f32 %v57, %v180
  %v182 = vpop.f32.mrb[0].mxu0
  %183 = vmatprep.mubr.f32.mxu0 0.0
  %184 = vmatmul.mubr.f32.gmra.mrb[0].mxu0 %v32
  %v185 = vpop.f32.mrb[0].mxu0
  %v186 = vadd.f32 %v57, %v185
  %v187 = vpop.f32.mrb[0].mxu0
  %188 = vmatprep.mubr.f32.mxu0 0.0
  %189 = vmatmul.mubr.f32.gmra.mrb[0].mxu0 %v33
  %v190 = vpop.f32.mrb[0].mxu0
  %v191 = vadd.f32 %v57, %v190
  %v192 = vpop.f32.mrb[0].mxu0
  %193 = vmatprep.mubr.f32.mxu0 0.0
  %194 = vmatmul.mubr.f32.gmra.mrb[0].mxu0 %v34
  %v195 = vpop.f32.mrb[0].mxu0
  %v196 = vadd.f32 %v57, %v195
  %v197 = vpop.f32.mrb[0].mxu0
  %198 = vmatprep.mubr.f32.mxu0 0.0
  %199 = vmatmul.mubr.f32.gmra.mrb[0].mxu0 %v35
  %v200 = vpop.f32.mrb[0].mxu0
  %v201 = vadd.f32 %v57, %v200
  %v202 = vpop.f32.mrb[0].mxu0
  %203 = vdwg.mxu0
  %v204 = vmax.f32 %v126, 0.0
  %v205 = vmax.f32 %v131, 0.0
  %v206 = vmax.f32 %v136, 0.0
  %v207 = vmax.f32 %v141, 0.0
  %v208 = vmax.f32 %v146, 0.0
  %v209 = vmax.f32 %v151, 0.0
  %v210 = vmax.f32 %v156, 0.0
  %v211 = vmax.f32 %v161, 0.0
  %v212 = vmax.f32 %v166, 0.0
  %v213 = vmax.f32 %v171, 0.0
  %v214 = vmax.f32 %v176, 0.0
  %v215 = vmax.f32 %v181, 0.0
  %v216 = vmax.f32 %v186, 0.0
  %v217 = vmax.f32 %v191, 0.0
  %v218 = vmax.f32 %v196, 0.0
  %v219 = vmax.f32 %v201, 0.0
  %v220 = vld [vmem:[%s3] sm:$0xff]
  %v221 = vld [vmem:[%s3 + $0x8] sm:$0xff]
  %v222 = vld [vmem:[%s3 + $0x10] sm:$0xff]
  %v223 = vld [vmem:[%s3 + $0x18] sm:$0xff]
  %v224 = vld [vmem:[%s3 + $0x20] sm:$0xff]
  %v225 = vld [vmem:[%s3 + $0x28] sm:$0xff]
  %v226 = vld [vmem:[%s3 + $0x30] sm:$0xff]
  %v227 = vld [vmem:[%s3 + $0x38] sm:$0xff]
  %v228 = vld [vmem:[%s3 + $0x40] sm:$0xff]
  %v229 = vld [vmem:[%s3 + $0x48] sm:$0xff]
  %v230 = vld [vmem:[%s3 + $0x50] sm:$0xff]
  %v231 = vld [vmem:[%s3 + $0x58] sm:$0xff]
  %v232 = vld [vmem:[%s3 + $0x60] sm:$0xff]
  %v233 = vld [vmem:[%s3 + $0x68] sm:$0xff]
  %v234 = vld [vmem:[%s3 + $0x70] sm:$0xff]
  %v235 = vld [vmem:[%s3 + $0x78] sm:$0xff]
  %v236 = vld [vmem:[%s4] sm:$0x1]
  %v238 = vlaneseq
  %v239 = vshrl.u32 %v238, 7
  %v240 = vsub.s32 0, %v239
  %v241 = vrot.slane %v236, %v240
  %243 = vmatprep.subr.mxu0 0.0
  %244 = vmatpush1.msra.mxu0 %v220
  %245 = vmatprep.subr.mxu0 0.0
  %246 = vmatpush1.msra.mxu0 %v221
  %247 = vmatprep.subr.mxu0 0.0
  %248 = vmatpush1.msra.mxu0 %v222
  %249 = vmatprep.subr.mxu0 0.0
  %250 = vmatpush1.msra.mxu0 %v223
  %251 = vmatprep.subr.mxu0 0.0
  %252 = vmatpush1.msra.mxu0 %v224
  %253 = vmatprep.subr.mxu0 0.0
  %254 = vmatpush1.msra.mxu0 %v225
  %255 = vmatprep.subr.mxu0 0.0
  %256 = vmatpush1.msra.mxu0 %v226
  %257 = vmatprep.subr.mxu0 0.0
  %258 = vmatpush1.msra.mxu0 %v227
  %259 = vmatprep.subr.mxu0 0.0
  %260 = vmatpush1.msra.mxu0 %v228
  %261 = vmatprep.subr.mxu0 0.0
  %262 = vmatpush1.msra.mxu0 %v229
  %263 = vmatprep.subr.mxu0 0.0
  %264 = vmatpush1.msra.mxu0 %v230
  %265 = vmatprep.subr.mxu0 0.0
  %266 = vmatpush1.msra.mxu0 %v231
  %267 = vmatprep.subr.mxu0 0.0
  %268 = vmatpush1.msra.mxu0 %v232
  %269 = vmatprep.subr.mxu0 0.0
  %270 = vmatpush1.msra.mxu0 %v233
  %271 = vmatprep.subr.mxu0 0.0
  %272 = vmatpush1.msra.mxu0 %v234
  %273 = vmatprep.subr.mxu0 0.0
  %274 = vmatpush1.msra.mxu0 %v235
  %275 = vmatprep.subr.mxu0 0.0
  %276 = vmatpush1.msra.mxu0 0.0
  %277 = vmatprep.subr.mxu0 0.0
  %278 = vmatpush1.msra.mxu0 0.0
  %279 = vmatprep.subr.mxu0 0.0
  %280 = vmatpush1.msra.mxu0 0.0
  %281 = vmatprep.subr.mxu0 0.0
  %282 = vmatpush1.msra.mxu0 0.0
  %283 = vmatprep.subr.mxu0 0.0
  %284 = vmatpush1.msra.mxu0 0.0
  %285 = vmatprep.subr.mxu0 0.0
  %286 = vmatpush1.msra.mxu0 0.0
  %287 = vmatprep.subr.mxu0 0.0
  %288 = vmatpush1.msra.mxu0 0.0
  %289 = vmatprep.subr.mxu0 0.0
  %290 = vmatpush1.msra.mxu0 0.0
  %291 = vmatprep.subr.mxu0 0.0
  %292 = vmatpush1.msra.mxu0 0.0
  %293 = vmatprep.subr.mxu0 0.0
  %294 = vmatpush1.msra.mxu0 0.0
  %295 = vmatprep.subr.mxu0 0.0
  %296 = vmatpush1.msra.mxu0 0.0
  %297 = vmatprep.subr.mxu0 0.0
  %298 = vmatpush1.msra.mxu0 0.0
  %299 = vmatprep.subr.mxu0 0.0
  %300 = vmatpush1.msra.mxu0 0.0
  %301 = vmatprep.subr.mxu0 0.0
  %302 = vmatpush1.msra.mxu0 0.0
  %303 = vmatprep.subr.mxu0 0.0
  %304 = vmatpush1.msra.mxu0 0.0
  %305 = vmatprep.subr.mxu0 0.0
  %306 = vmatpush1.msra.mxu0 0.0
  %307 = vmatprep.mubr.f32.mxu0 0.0
  %308 = vmatmul.mubr.f32.gmra.mrb[0].mxu0 %v204
  %v309 = vpop.f32.mrb[0].mxu0
  %v310 = vadd.f32 %v241, %v309
  %v311 = vpop.f32.mrb[0].mxu0
  %312 = vmatprep.mubr.f32.mxu0 0.0
  %313 = vmatmul.mubr.f32.gmra.mrb[0].mxu0 %v205
  %v314 = vpop.f32.mrb[0].mxu0
  %v315 = vadd.f32 %v241, %v314
  %v316 = vpop.f32.mrb[0].mxu0
  %317 = vmatprep.mubr.f32.mxu0 0.0
  %318 = vmatmul.mubr.f32.gmra.mrb[0].mxu0 %v206
  %v319 = vpop.f32.mrb[0].mxu0
  %v320 = vadd.f32 %v241, %v319
  %v321 = vpop.f32.mrb[0].mxu0
  %322 = vmatprep.mubr.f32.mxu0 0.0
  %323 = vmatmul.mubr.f32.gmra.mrb[0].mxu0 %v207
  %v324 = vpop.f32.mrb[0].mxu0
  %v325 = vadd.f32 %v241, %v324
  %v326 = vpop.f32.mrb[0].mxu0
  %327 = vmatprep.mubr.f32.mxu0 0.0
  %328 = vmatmul.mubr.f32.gmra.mrb[0].mxu0 %v208
  %v329 = vpop.f32.mrb[0].mxu0
  %v330 = vadd.f32 %v241, %v329
  %v331 = vpop.f32.mrb[0].mxu0
  %332 = vmatprep.mubr.f32.mxu0 0.0
  %333 = vmatmul.mubr.f32.gmra.mrb[0].mxu0 %v209
  %v334 = vpop.f32.mrb[0].mxu0
  %v335 = vadd.f32 %v241, %v334
  %v336 = vpop.f32.mrb[0].mxu0
  %337 = vmatprep.mubr.f32.mxu0 0.0
  %338 = vmatmul.mubr.f32.gmra.mrb[0].mxu0 %v210
  %v339 = vpop.f32.mrb[0].mxu0
  %v340 = vadd.f32 %v241, %v339
  %v341 = vpop.f32.mrb[0].mxu0
  %342 = vmatprep.mubr.f32.mxu0 0.0
  %343 = vmatmul.mubr.f32.gmra.mrb[0].mxu0 %v211
  %v344 = vpop.f32.mrb[0].mxu0
  %v345 = vadd.f32 %v241, %v344
  %v346 = vpop.f32.mrb[0].mxu0
  %347 = vmatprep.mubr.f32.mxu0 0.0
  %348 = vmatmul.mubr.f32.gmra.mrb[0].mxu0 %v212
  %v349 = vpop.f32.mrb[0].mxu0
  %v350 = vadd.f32 %v241, %v349
  %v351 = vpop.f32.mrb[0].mxu0
  %352 = vmatprep.mubr.f32.mxu0 0.0
  %353 = vmatmul.mubr.f32.gmra.mrb[0].mxu0 %v213
  %v354 = vpop.f32.mrb[0].mxu0
  %v355 = vadd.f32 %v241, %v354
  %v356 = vpop.f32.mrb[0].mxu0
  %357 = vmatprep.mubr.f32.mxu0 0.0
  %358 = vmatmul.mubr.f32.gmra.mrb[0].mxu0 %v214
  %v359 = vpop.f32.mrb[0].mxu0
  %v360 = vadd.f32 %v241, %v359
  %v361 = vpop.f32.mrb[0].mxu0
  %362 = vmatprep.mubr.f32.mxu0 0.0
  %363 = vmatmul.mubr.f32.gmra.mrb[0].mxu0 %v215
  %v364 = vpop.f32.mrb[0].mxu0
  %v365 = vadd.f32 %v241, %v364
  %v366 = vpop.f32.mrb[0].mxu0
  %367 = vmatprep.mubr.f32.mxu0 0.0
  %368 = vmatmul.mubr.f32.gmra.mrb[0].mxu0 %v216
  %v369 = vpop.f32.mrb[0].mxu0
  %v370 = vadd.f32 %v241, %v369
  %v371 = vpop.f32.mrb[0].mxu0
  %372 = vmatprep.mubr.f32.mxu0 0.0
  %373 = vmatmul.mubr.f32.gmra.mrb[0].mxu0 %v217
  %v374 = vpop.f32.mrb[0].mxu0
  %v375 = vadd.f32 %v241, %v374
  %v376 = vpop.f32.mrb[0].mxu0
  %377 = vmatprep.mubr.f32.mxu0 0.0
  %378 = vmatmul.mubr.f32.gmra.mrb[0].mxu0 %v218
  %v379 = vpop.f32.mrb[0].mxu0
  %v380 = vadd.f32 %v241, %v379
  %v381 = vpop.f32.mrb[0].mxu0
  %382 = vmatprep.mubr.f32.mxu0 0.0
  %383 = vmatmul.mubr.f32.gmra.mrb[0].mxu0 %v219
  %v384 = vpop.f32.mrb[0].mxu0
  %v385 = vadd.f32 %v241, %v384
  %v386 = vpop.f32.mrb[0].mxu0
  %387 = vdwg.mxu0
  %v388 = vmax.f32 %v310, 0.0
  %v389 = vmax.f32 %v315, 0.0
  %v390 = vmax.f32 %v320, 0.0
  %v391 = vmax.f32 %v325, 0.0
  %v392 = vmax.f32 %v330, 0.0
  %v393 = vmax.f32 %v335, 0.0
  %v394 = vmax.f32 %v340, 0.0
  %v395 = vmax.f32 %v345, 0.0
  %v396 = vmax.f32 %v350, 0.0
  %v397 = vmax.f32 %v355, 0.0
  %v398 = vmax.f32 %v360, 0.0
  %v399 = vmax.f32 %v365, 0.0
  %v400 = vmax.f32 %v370, 0.0
  %v401 = vmax.f32 %v375, 0.0
  %v402 = vmax.f32 %v380, 0.0
  %v403 = vmax.f32 %v385, 0.0
  %404 = vst [vmem:[%s5] sm:$0xff] %v388
  %405 = vst [vmem:[%s5 + $0x8] sm:$0xff] %v389
  %406 = vst [vmem:[%s5 + $0x10] sm:$0xff] %v390
  %407 = vst [vmem:[%s5 + $0x18] sm:$0xff] %v391
  %408 = vst [vmem:[%s5 + $0x20] sm:$0xff] %v392
  %409 = vst [vmem:[%s5 + $0x28] sm:$0xff] %v393
  %410 = vst [vmem:[%s5 + $0x30] sm:$0xff] %v394
  %411 = vst [vmem:[%s5 + $0x38] sm:$0xff] %v395
  %412 = vst [vmem:[%s5 + $0x40] sm:$0xff] %v396
  %413 = vst [vmem:[%s5 + $0x48] sm:$0xff] %v397
  %414 = vst [vmem:[%s5 + $0x50] sm:$0xff] %v398
  %415 = vst [vmem:[%s5 + $0x58] sm:$0xff] %v399
  %416 = vst [vmem:[%s5 + $0x60] sm:$0xff] %v400
  %417 = vst [vmem:[%s5 + $0x68] sm:$0xff] %v401
  %418 = vst [vmem:[%s5 + $0x70] sm:$0xff] %v402
  %419 = vst [vmem:[%s5 + $0x78] sm:$0xff] %v403
  // Predicated region
  $region22: #{auto_ad_forward.8} parent=0 // pred_check
    _
  $region23: #{auto_ad_forward.8} parent=0 // pred_check_branch
    %421 = sbr.rel (0) target = $region25
  $region24: #{auto_ad_forward.8} parent=0 // pred_region
    _
  $region25: #{auto_ad_forward.8} parent=0 // pred_fallthru
    _
  // Predicated region
  $region26: #{auto_ad_forward.8} parent=0 // pred_check
    _
  $region27: #{auto_ad_forward.8} parent=0 // pred_check_branch
    %423 = sbr.rel (0) target = $region29
  $region28: #{auto_ad_forward.8} parent=0 // pred_region
    _
  $region29: #{auto_ad_forward.8} parent=0 // pred_fallthru
    _

// kernel: auto_ad_forward.11
$region0: #{auto_ad_forward.11}
  #allocation0 [shape = 'u32[]', space=smem, size = 0x4, offset = 0x4, fixed_abs, tag = 'smem constant byte address 0x4 - core index']
  #allocation1 [shape = 'u32[144,128]{1,0:T(1,128)}', space=vmem, size = 0x12000, scoped, tag = 'internal scratch']
  #allocation2 [shape = 'f32[128,128]{1,0:T(8,128)}', space=vmem, size = 0x10000, scoped, tag = 'scratch operand']
  %s0 = inlined_call_operand.vmem [shape: bf16[128,128], index: 0, kind: input, shape index: {}]
  %s1 = inlined_call_operand.vmem [shape: bf16[128,128], index: 1, kind: input, shape index: {}]
  %s2 = inlined_call_operand.vmem [shape: f32[128,1], index: 2, kind: input, shape index: {}]
  %s3 = inlined_call_operand.vmem [shape: f32[128,128], index: 3, kind: input, shape index: {}]
  %s4 = inlined_call_operand.vmem [shape: f32[128,128], index: 4, kind: input, shape index: {}]
  %s5 = inlined_call_operand.vmem [shape: f32[384,128], index: 5, kind: input, shape index: {}]
  %s6 = inlined_call_operand.vmem [shape: f32[1,128], index: 6, kind: input, shape index: {}]
  %s7 = inlined_call_operand.vmem [shape: f32[128,384], index: 7, kind: output, shape index: {0}]
  %s8 = inlined_call_operand.vmem [shape: f32[128,128], index: 8, kind: output, shape index: {1}]
  %9 = xla_tuple %s7, %s8
  %s10 = sld [smem:[#allocation0]]
  $region54: #{auto_ad_forward.11} parent=0
    _
  %s12 = ssub.s32 1, %s10
  %s13 = scalar_select 0, %s12, %s10
  // Predicated region
  $region2: #{auto_ad_forward.11} parent=0 // pred_check
    _
  $region3: #{auto_ad_forward.11} parent=0 // pred_check_branch
    %15 = sbr.rel (0) target = $region5
  $region4: #{auto_ad_forward.11} parent=0 // pred_region
    _
  $region5: #{auto_ad_forward.11} parent=0 // pred_fallthru
    _
  // Predicated region
  $region6: #{auto_ad_forward.11} parent=0 // pred_check
    _
  $region7: #{auto_ad_forward.11} parent=0 // pred_check_branch
    %17 = sbr.rel (0) target = $region9
  $region8: #{auto_ad_forward.11} parent=0 // pred_region
    _
  $region9: #{auto_ad_forward.11} parent=0 // pred_fallthru
    _
  // Predicated region
  $region10: #{auto_ad_forward.11} parent=0 // pred_check
    _
  $region11: #{auto_ad_forward.11} parent=0 // pred_check_branch
    %19 = sbr.rel (0) target = $region13
  $region12: #{auto_ad_forward.11} parent=0 // pred_region
    _
  $region13: #{auto_ad_forward.11} parent=0 // pred_fallthru
    _
  // Predicated region
  $region14: #{auto_ad_forward.11} parent=0 // pred_check
    _
  $region15: #{auto_ad_forward.11} parent=0 // pred_check_branch
    %21 = sbr.rel (0) target = $region17
  $region16: #{auto_ad_forward.11} parent=0 // pred_region
    _
  $region17: #{auto_ad_forward.11} parent=0 // pred_fallthru
    _
  // Predicated region
  $region18: #{auto_ad_forward.11} parent=0 // pred_check
    _
  $region19: #{auto_ad_forward.11} parent=0 // pred_check_branch
    %23 = sbr.rel (0) target = $region21
  $region20: #{auto_ad_forward.11} parent=0 // pred_region
    _
  $region21: #{auto_ad_forward.11} parent=0 // pred_fallthru
    _
  // Predicated region
  $region22: #{auto_ad_forward.11} parent=0 // pred_check
    _
  $region23: #{auto_ad_forward.11} parent=0 // pred_check_branch
    %25 = sbr.rel (0) target = $region25
  $region24: #{auto_ad_forward.11} parent=0 // pred_region
    _
  $region25: #{auto_ad_forward.11} parent=0 // pred_fallthru
    _
  // Predicated region
  $region26: #{auto_ad_forward.11} parent=0 // pred_check
    _
  $region27: #{auto_ad_forward.11} parent=0 // pred_check_branch
    %27 = sbr.rel (0) target = $region29
  $region28: #{auto_ad_forward.11} parent=0 // pred_region
    _
  $region29: #{auto_ad_forward.11} parent=0 // pred_fallthru
    _
  %p29 = scmp.eq.s32.totalorder 0, 0
  // Predicated region
  $region30: #{auto_ad_forward.11} parent=0 // pred_check
    %p30 = pneg %p29
  $region31: #{auto_ad_forward.11} parent=0 // pred_check_branch
    %32 = sbr.rel (%p30) target = $region33
  $region32: #{auto_ad_forward.11} parent=0 // pred_region
    %33 = vst [vmem:[#allocation2] sm:$0xff] 0.0
    %34 = vst [vmem:[#allocation2 + $0x8] sm:$0xff] 0.0
    %35 = vst [vmem:[#allocation2 + $0x10] sm:$0xff] 0.0
    %36 = vst [vmem:[#allocation2 + $0x18] sm:$0xff] 0.0
    %37 = vst [vmem:[#allocation2 + $0x20] sm:$0xff] 0.0
    %38 = vst [vmem:[#allocation2 + $0x28] sm:$0xff] 0.0
    %39 = vst [vmem:[#allocation2 + $0x30] sm:$0xff] 0.0
    %40 = vst [vmem:[#allocation2 + $0x38] sm:$0xff] 0.0
    %41 = vst [vmem:[#allocation2 + $0x40] sm:$0xff] 0.0
    %42 = vst [vmem:[#allocation2 + $0x48] sm:$0xff] 0.0
    %43 = vst [vmem:[#allocation2 + $0x50] sm:$0xff] 0.0
    %44 = vst [vmem:[#allocation2 + $0x58] sm:$0xff] 0.0
    %45 = vst [vmem:[#allocation2 + $0x60] sm:$0xff] 0.0
    %46 = vst [vmem:[#allocation2 + $0x68] sm:$0xff] 0.0
    %47 = vst [vmem:[#allocation2 + $0x70] sm:$0xff] 0.0
    %48 = vst [vmem:[#allocation2 + $0x78] sm:$0xff] 0.0
  $region33: #{auto_ad_forward.11} parent=0 // pred_fallthru
    _
  %s49 = smul.u32 0, 128
  %v50 = vld [vmem:[#allocation2] sm:$0xff]
  %v51 = vld [vmem:[#allocation2 + $0x8] sm:$0xff]
  %v52 = vld [vmem:[#allocation2 + $0x10] sm:$0xff]
  %v53 = vld [vmem:[#allocation2 + $0x18] sm:$0xff]
  %v54 = vld [vmem:[#allocation2 + $0x20] sm:$0xff]
  %v55 = vld [vmem:[#allocation2 + $0x28] sm:$0xff]
  %v56 = vld [vmem:[#allocation2 + $0x30] sm:$0xff]
  %v57 = vld [vmem:[#allocation2 + $0x38] sm:$0xff]
  %v58 = vld [vmem:[#allocation2 + $0x40] sm:$0xff]
  %v59 = vld [vmem:[#allocation2 + $0x48] sm:$0xff]
  %v60 = vld [vmem:[#allocation2 + $0x50] sm:$0xff]
  %v61 = vld [vmem:[#allocation2 + $0x58] sm:$0xff]
  %v62 = vld [vmem:[#allocation2 + $0x60] sm:$0xff]
  %v63 = vld [vmem:[#allocation2 + $0x68] sm:$0xff]
  %v64 = vld [vmem:[#allocation2 + $0x70] sm:$0xff]
  %v65 = vld [vmem:[#allocation2 + $0x78] sm:$0xff]
  %v66 = vld [vmem:[%s0] sm:$0xf]
  %v67 = vld [vmem:[%s0 + $0x4] sm:$0xf]
  %v68 = vld [vmem:[%s0 + $0x8] sm:$0xf]
  %v69 = vld [vmem:[%s0 + $0xc] sm:$0xf]
  %v70 = vld [vmem:[%s0 + $0x10] sm:$0xf]
  %v71 = vld [vmem:[%s0 + $0x14] sm:$0xf]
  %v72 = vld [vmem:[%s0 + $0x18] sm:$0xf]
  %v73 = vld [vmem:[%s0 + $0x1c] sm:$0xf]
  %v74 = vld [vmem:[%s0 + $0x20] sm:$0xf]
  %v75 = vld [vmem:[%s0 + $0x24] sm:$0xf]
  %v76 = vld [vmem:[%s0 + $0x28] sm:$0xf]
  %v77 = vld [vmem:[%s0 + $0x2c] sm:$0xf]
  %v78 = vld [vmem:[%s0 + $0x30] sm:$0xf]
  %v79 = vld [vmem:[%s0 + $0x34] sm:$0xf]
  %v80 = vld [vmem:[%s0 + $0x38] sm:$0xf]
  %v81 = vld [vmem:[%s0 + $0x3c] sm:$0xf]
  %s82 = sshra.s32 %s49, 3
  %s83 = sand.u32 %s49, 7
  %s84 = smul.addr %s82, 4
  %s85 = scalar_lea.vmem %s1, %s84
  %v86 = vld [vmem:[%s85] sm:$0xf]
  %v87 = vld [vmem:[%s85 + $0x4] sm:$0xf]
  %v88 = vld [vmem:[%s85 + $0x8] sm:$0xf]
  %v89 = vld [vmem:[%s85 + $0xc] sm:$0xf]
  %v90 = vld [vmem:[%s85 + $0x10] sm:$0xf]
  %v91 = vld [vmem:[%s85 + $0x14] sm:$0xf]
  %v92 = vld [vmem:[%s85 + $0x18] sm:$0xf]
  %v93 = vld [vmem:[%s85 + $0x1c] sm:$0xf]
  %v94 = vld [vmem:[%s85 + $0x20] sm:$0xf]
  %v95 = vld [vmem:[%s85 + $0x24] sm:$0xf]
  %v96 = vld [vmem:[%s85 + $0x28] sm:$0xf]
  %v97 = vld [vmem:[%s85 + $0x2c] sm:$0xf]
  %v98 = vld [vmem:[%s85 + $0x30] sm:$0xf]
  %v99 = vld [vmem:[%s85 + $0x34] sm:$0xf]
  %v100 = vld [vmem:[%s85 + $0x38] sm:$0xf]
  %v101 = vld [vmem:[%s85 + $0x3c] sm:$0xf]
  %v118 = vunpack.c.l.b16 %v66
  %v119 = vunpack.c.l.b16 %v67
  %v120 = vunpack.c.l.b16 %v68
  %v121 = vunpack.c.l.b16 %v69
  %v122 = vunpack.c.l.b16 %v70
  %v123 = vunpack.c.l.b16 %v71
  %v124 = vunpack.c.l.b16 %v72
  %v125 = vunpack.c.l.b16 %v73
  %v126 = vunpack.c.l.b16 %v74
  %v127 = vunpack.c.l.b16 %v75
  %v128 = vunpack.c.l.b16 %v76
  %v129 = vunpack.c.l.b16 %v77
  %v130 = vunpack.c.l.b16 %v78
  %v131 = vunpack.c.l.b16 %v79
  %v132 = vunpack.c.l.b16 %v80
  %v133 = vunpack.c.l.b16 %v81
  %v134 = vpack.c.b16 %v119, %v118
  %v135 = vpack.c.b16 %v121, %v120
  %v136 = vpack.c.b16 %v123, %v122
  %v137 = vpack.c.b16 %v125, %v124
  %v138 = vpack.c.b16 %v127, %v126
  %v139 = vpack.c.b16 %v129, %v128
  %v140 = vpack.c.b16 %v131, %v130
  %v141 = vpack.c.b16 %v133, %v132
  %v166 = vunpack.c.l.b16 %v86
  %v167 = vunpack.c.l.b16 %v87
  %v168 = vunpack.c.l.b16 %v88
  %v169 = vunpack.c.l.b16 %v89
  %v170 = vunpack.c.l.b16 %v90
  %v171 = vunpack.c.l.b16 %v91
  %v172 = vunpack.c.l.b16 %v92
  %v173 = vunpack.c.l.b16 %v93
  %v174 = vunpack.c.l.b16 %v94
  %v175 = vunpack.c.l.b16 %v95
  %v176 = vunpack.c.l.b16 %v96
  %v177 = vunpack.c.l.b16 %v97
  %v178 = vunpack.c.l.b16 %v98
  %v179 = vunpack.c.l.b16 %v99
  %v180 = vunpack.c.l.b16 %v100
  %v181 = vunpack.c.l.b16 %v101
  %v182 = vpack.c.b16 %v167, %v166
  %v183 = vpack.c.b16 %v169, %v168
  %v184 = vpack.c.b16 %v171, %v170
  %v185 = vpack.c.b16 %v173, %v172
  %v186 = vpack.c.b16 %v175, %v174
  %v187 = vpack.c.b16 %v177, %v176
  %v188 = vpack.c.b16 %v179, %v178
  %v189 = vpack.c.b16 %v181, %v180
  %198 = vmatprep.subr.bf16.mxu0 0
  %199 = vmatpush1.bf16.msra.mxu0 %v182
  %200 = vmatprep.subr.bf16.mxu0 0
  %201 = vmatpush1.bf16.msra.mxu0 %v183
  %202 = vmatprep.subr.bf16.mxu0 0
  %203 = vmatpush1.bf16.msra.mxu0 %v184
  %204 = vmatprep.subr.bf16.mxu0 0
  %205 = vmatpush1.bf16.msra.mxu0 %v185
  %206 = vmatprep.subr.bf16.mxu0 0
  %207 = vmatpush1.bf16.msra.mxu0 %v186
  %208 = vmatprep.subr.bf16.mxu0 0
  %209 = vmatpush1.bf16.msra.mxu0 %v187
  %210 = vmatprep.subr.bf16.mxu0 0
  %211 = vmatpush1.bf16.msra.mxu0 %v188
  %212 = vmatprep.subr.bf16.mxu0 0
  %213 = vmatpush1.bf16.msra.mxu0 %v189
  %214 = vmatprep.subr.bf16.mxu0 0
  %215 = vmatpush1.bf16.msra.mxu0 0
  %216 = vmatprep.subr.bf16.mxu0 0
  %217 = vmatpush1.bf16.msra.mxu0 0
  %218 = vmatprep.subr.bf16.mxu0 0
  %219 = vmatpush1.bf16.msra.mxu0 0
  %220 = vmatprep.subr.bf16.mxu0 0
  %221 = vmatpush1.bf16.msra.mxu0 0
  %222 = vmatprep.subr.bf16.mxu0 0
  %223 = vmatpush1.bf16.msra.mxu0 0
  %224 = vmatprep.subr.bf16.mxu0 0
  %225 = vmatpush1.bf16.msra.mxu0 0
  %226 = vmatprep.subr.bf16.mxu0 0
  %227 = vmatpush1.bf16.msra.mxu0 0
  %228 = vmatprep.subr.bf16.mxu0 0
  %229 = vmatpush1.bf16.msra.mxu0 0
  %230 = vmatprep.mubr.bf16.mxu0 0
  %231 = vmatmul.mubr.bf16.gmra.mrb[0].mxu0 %v134
  %v232 = vpop.f32.mrb[0].mxu0
  %v233 = vadd.f32 0.0, %v232
  %v234 = vpop.f32.mrb[0].mxu0
  %v235 = vpop.f32.mrb[0].mxu0
  %v236 = vadd.f32 0.0, %v235
  %v237 = vpop.f32.mrb[0].mxu0
  %238 = vmatprep.mubr.bf16.mxu0 0
  %239 = vmatmul.mubr.bf16.gmra.mrb[0].mxu0 %v135
  %v240 = vpop.f32.mrb[0].mxu0
  %v241 = vadd.f32 0.0, %v240
  %v242 = vpop.f32.mrb[0].mxu0
  %v243 = vpop.f32.mrb[0].mxu0
  %v244 = vadd.f32 0.0, %v243
  %v245 = vpop.f32.mrb[0].mxu0
  %246 = vmatprep.mubr.bf16.mxu0 0
  %247 = vmatmul.mubr.bf16.gmra.mrb[0].mxu0 %v136
  %v248 = vpop.f32.mrb[0].mxu0
  %v249 = vadd.f32 0.0, %v248
  %v250 = vpop.f32.mrb[0].mxu0
  %v251 = vpop.f32.mrb[0].mxu0
  %v252 = vadd.f32 0.0, %v251
  %v253 = vpop.f32.mrb[0].mxu0
  %254 = vmatprep.mubr.bf16.mxu0 0
  %255 = vmatmul.mubr.bf16.gmra.mrb[0].mxu0 %v137
  %v256 = vpop.f32.mrb[0].mxu0
  %v257 = vadd.f32 0.0, %v256
  %v258 = vpop.f32.mrb[0].mxu0
  %v259 = vpop.f32.mrb[0].mxu0
  %v260 = vadd.f32 0.0, %v259
  %v261 = vpop.f32.mrb[0].mxu0
  %262 = vmatprep.mubr.bf16.mxu0 0
  %263 = vmatmul.mubr.bf16.gmra.mrb[0].mxu0 %v138
  %v264 = vpop.f32.mrb[0].mxu0
  %v265 = vadd.f32 0.0, %v264
  %v266 = vpop.f32.mrb[0].mxu0
  %v267 = vpop.f32.mrb[0].mxu0
  %v268 = vadd.f32 0.0, %v267
  %v269 = vpop.f32.mrb[0].mxu0
  %270 = vmatprep.mubr.bf16.mxu0 0
  %271 = vmatmul.mubr.bf16.gmra.mrb[0].mxu0 %v139
  %v272 = vpop.f32.mrb[0].mxu0
  %v273 = vadd.f32 0.0, %v272
  %v274 = vpop.f32.mrb[0].mxu0
  %v275 = vpop.f32.mrb[0].mxu0
  %v276 = vadd.f32 0.0, %v275
  %v277 = vpop.f32.mrb[0].mxu0
  %278 = vmatprep.mubr.bf16.mxu0 0
  %279 = vmatmul.mubr.bf16.gmra.mrb[0].mxu0 %v140
  %v280 = vpop.f32.mrb[0].mxu0
  %v281 = vadd.f32 0.0, %v280
  %v282 = vpop.f32.mrb[0].mxu0
  %v283 = vpop.f32.mrb[0].mxu0
  %v284 = vadd.f32 0.0, %v283
  %v285 = vpop.f32.mrb[0].mxu0
  %286 = vmatprep.mubr.bf16.mxu0 0
  %287 = vmatmul.mubr.bf16.gmra.mrb[0].mxu0 %v141
  %v288 = vpop.f32.mrb[0].mxu0
  %v289 = vadd.f32 0.0, %v288
  %v290 = vpop.f32.mrb[0].mxu0
  %v291 = vpop.f32.mrb[0].mxu0
  %v292 = vadd.f32 0.0, %v291
  %v293 = vpop.f32.mrb[0].mxu0
  %294 = vdwg.mxu0
  %v295 = vadd.f32 %v50, %v233
  %v296 = vadd.f32 %v51, %v236
  %v297 = vadd.f32 %v52, %v241
  %v298 = vadd.f32 %v53, %v244
  %v299 = vadd.f32 %v54, %v249
  %v300 = vadd.f32 %v55, %v252
  %v301 = vadd.f32 %v56, %v257
  %v302 = vadd.f32 %v57, %v260
  %v303 = vadd.f32 %v58, %v265
  %v304 = vadd.f32 %v59, %v268
  %v305 = vadd.f32 %v60, %v273
  %v306 = vadd.f32 %v61, %v276
  %v307 = vadd.f32 %v62, %v281
  %v308 = vadd.f32 %v63, %v284
  %v309 = vadd.f32 %v64, %v289
  %v310 = vadd.f32 %v65, %v292
  %311 = vst [vmem:[#allocation2] sm:$0xff] %v295
  %312 = vst [vmem:[#allocation2 + $0x8] sm:$0xff] %v296
  %313 = vst [vmem:[#allocation2 + $0x10] sm:$0xff] %v297
  %314 = vst [vmem:[#allocation2 + $0x18] sm:$0xff] %v298
  %315 = vst [vmem:[#allocation2 + $0x20] sm:$0xff] %v299
  %316 = vst [vmem:[#allocation2 + $0x28] sm:$0xff] %v300
  %317 = vst [vmem:[#allocation2 + $0x30] sm:$0xff] %v301
  %318 = vst [vmem:[#allocation2 + $0x38] sm:$0xff] %v302
  %319 = vst [vmem:[#allocation2 + $0x40] sm:$0xff] %v303
  %320 = vst [vmem:[#allocation2 + $0x48] sm:$0xff] %v304
  %321 = vst [vmem:[#allocation2 + $0x50] sm:$0xff] %v305
  %322 = vst [vmem:[#allocation2 + $0x58] sm:$0xff] %v306
  %323 = vst [vmem:[#allocation2 + $0x60] sm:$0xff] %v307
  %324 = vst [vmem:[#allocation2 + $0x68] sm:$0xff] %v308
  %325 = vst [vmem:[#allocation2 + $0x70] sm:$0xff] %v309
  %326 = vst [vmem:[#allocation2 + $0x78] sm:$0xff] %v310
  // Predicated region
  $region34: #{auto_ad_forward.11} parent=0 // pred_check
    %p327 = pneg %p29
  $region35: #{auto_ad_forward.11} parent=0 // pred_check_branch
    %329 = sbr.rel (%p327) target = $region37
  $region36: #{auto_ad_forward.11} parent=0 // pred_region
    %v330 = vld [vmem:[%s4] sm:$0xff]
    %v331 = vld [vmem:[%s4 + $0x8] sm:$0xff]
    %v332 = vld [vmem:[%s4 + $0x10] sm:$0xff]
    %v333 = vld [vmem:[%s4 + $0x18] sm:$0xff]
    %v334 = vld [vmem:[%s4 + $0x20] sm:$0xff]
    %v335 = vld [vmem:[%s4 + $0x28] sm:$0xff]
    %v336 = vld [vmem:[%s4 + $0x30] sm:$0xff]
    %v337 = vld [vmem:[%s4 + $0x38] sm:$0xff]
    %v338 = vld [vmem:[%s4 + $0x40] sm:$0xff]
    %v339 = vld [vmem:[%s4 + $0x48] sm:$0xff]
    %v340 = vld [vmem:[%s4 + $0x50] sm:$0xff]
    %v341 = vld [vmem:[%s4 + $0x58] sm:$0xff]
    %v342 = vld [vmem:[%s4 + $0x60] sm:$0xff]
    %v343 = vld [vmem:[%s4 + $0x68] sm:$0xff]
    %v344 = vld [vmem:[%s4 + $0x70] sm:$0xff]
    %v345 = vld [vmem:[%s4 + $0x78] sm:$0xff]
    %v346 = vld [vmem:[#allocation2] sm:$0xff]
    %v347 = vld [vmem:[#allocation2 + $0x8] sm:$0xff]
    %v348 = vld [vmem:[#allocation2 + $0x10] sm:$0xff]
    %v349 = vld [vmem:[#allocation2 + $0x18] sm:$0xff]
    %v350 = vld [vmem:[#allocation2 + $0x20] sm:$0xff]
    %v351 = vld [vmem:[#allocation2 + $0x28] sm:$0xff]
    %v352 = vld [vmem:[#allocation2 + $0x30] sm:$0xff]
    %v353 = vld [vmem:[#allocation2 + $0x38] sm:$0xff]
    %v354 = vld [vmem:[#allocation2 + $0x40] sm:$0xff]
    %v355 = vld [vmem:[#allocation2 + $0x48] sm:$0xff]
    %v356 = vld [vmem:[#allocation2 + $0x50] sm:$0xff]
    %v357 = vld [vmem:[#allocation2 + $0x58] sm:$0xff]
    %v358 = vld [vmem:[#allocation2 + $0x60] sm:$0xff]
    %v359 = vld [vmem:[#allocation2 + $0x68] sm:$0xff]
    %v360 = vld [vmem:[#allocation2 + $0x70] sm:$0xff]
    %v361 = vld [vmem:[#allocation2 + $0x78] sm:$0xff]
    %v362 = vld [vmem:[%s2] sm:$0xff]
    %v363 = vld [vmem:[%s2 + $0x8] sm:$0xff]
    %v364 = vld [vmem:[%s2 + $0x10] sm:$0xff]
    %v365 = vld [vmem:[%s2 + $0x18] sm:$0xff]
    %v366 = vld [vmem:[%s2 + $0x20] sm:$0xff]
    %v367 = vld [vmem:[%s2 + $0x28] sm:$0xff]
    %v368 = vld [vmem:[%s2 + $0x30] sm:$0xff]
    %v369 = vld [vmem:[%s2 + $0x38] sm:$0xff]
    %v370 = vld [vmem:[%s2 + $0x40] sm:$0xff]
    %v371 = vld [vmem:[%s2 + $0x48] sm:$0xff]
    %v372 = vld [vmem:[%s2 + $0x50] sm:$0xff]
    %v373 = vld [vmem:[%s2 + $0x58] sm:$0xff]
    %v374 = vld [vmem:[%s2 + $0x60] sm:$0xff]
    %v375 = vld [vmem:[%s2 + $0x68] sm:$0xff]
    %v376 = vld [vmem:[%s2 + $0x70] sm:$0xff]
    %v377 = vld [vmem:[%s2 + $0x78] sm:$0xff]
    %379 = vset.pattern.permute.xlu0 0
    %380 = vperm.xlu0 %379, %v362
    %v381 = vpop.permute.xlu0 %380
    %384 = vset.pattern.permute.xlu0 0
    %385 = vperm.xlu0 %384, %v363
    %v386 = vpop.permute.xlu0 %385
    %389 = vset.pattern.permute.xlu0 0
    %390 = vperm.xlu0 %389, %v364
    %v391 = vpop.permute.xlu0 %390
    %394 = vset.pattern.permute.xlu0 0
    %395 = vperm.xlu0 %394, %v365
    %v396 = vpop.permute.xlu0 %395
    %399 = vset.pattern.permute.xlu0 0
    %400 = vperm.xlu0 %399, %v366
    %v401 = vpop.permute.xlu0 %400
    %404 = vset.pattern.permute.xlu0 0
    %405 = vperm.xlu0 %404, %v367
    %v406 = vpop.permute.xlu0 %405
    %409 = vset.pattern.permute.xlu0 0
    %410 = vperm.xlu0 %409, %v368
    %v411 = vpop.permute.xlu0 %410
    %414 = vset.pattern.permute.xlu0 0
    %415 = vperm.xlu0 %414, %v369
    %v416 = vpop.permute.xlu0 %415
    %419 = vset.pattern.permute.xlu0 0
    %420 = vperm.xlu0 %419, %v370
    %v421 = vpop.permute.xlu0 %420
    %424 = vset.pattern.permute.xlu0 0
    %425 = vperm.xlu0 %424, %v371
    %v426 = vpop.permute.xlu0 %425
    %429 = vset.pattern.permute.xlu0 0
    %430 = vperm.xlu0 %429, %v372
    %v431 = vpop.permute.xlu0 %430
    %434 = vset.pattern.permute.xlu0 0
    %435 = vperm.xlu0 %434, %v373
    %v436 = vpop.permute.xlu0 %435
    %439 = vset.pattern.permute.xlu0 0
    %440 = vperm.xlu0 %439, %v374
    %v441 = vpop.permute.xlu0 %440
    %444 = vset.pattern.permute.xlu0 0
    %445 = vperm.xlu0 %444, %v375
    %v446 = vpop.permute.xlu0 %445
    %449 = vset.pattern.permute.xlu0 0
    %450 = vperm.xlu0 %449, %v376
    %v451 = vpop.permute.xlu0 %450
    %454 = vset.pattern.permute.xlu0 0
    %455 = vperm.xlu0 %454, %v377
    %v456 = vpop.permute.xlu0 %455
    %v458 = vmul.f32 %v346, %v381
    %v459 = vmul.f32 %v347, %v386
    %v460 = vmul.f32 %v348, %v391
    %v461 = vmul.f32 %v349, %v396
    %v462 = vmul.f32 %v350, %v401
    %v463 = vmul.f32 %v351, %v406
    %v464 = vmul.f32 %v352, %v411
    %v465 = vmul.f32 %v353, %v416
    %v466 = vmul.f32 %v354, %v421
    %v467 = vmul.f32 %v355, %v426
    %v468 = vmul.f32 %v356, %v431
    %v469 = vmul.f32 %v357, %v436
    %v470 = vmul.f32 %v358, %v441
    %v471 = vmul.f32 %v359, %v446
    %v472 = vmul.f32 %v360, %v451
    %v473 = vmul.f32 %v361, %v456
    %v474 = vsub.f32 %v330, %v458
    %v475 = vsub.f32 %v331, %v459
    %v476 = vsub.f32 %v332, %v460
    %v477 = vsub.f32 %v333, %v461
    %v478 = vsub.f32 %v334, %v462
    %v479 = vsub.f32 %v335, %v463
    %v480 = vsub.f32 %v336, %v464
    %v481 = vsub.f32 %v337, %v465
    %v482 = vsub.f32 %v338, %v466
    %v483 = vsub.f32 %v339, %v467
    %v484 = vsub.f32 %v340, %v468
    %v485 = vsub.f32 %v341, %v469
    %v486 = vsub.f32 %v342, %v470
    %v487 = vsub.f32 %v343, %v471
    %v488 = vsub.f32 %v344, %v472
    %v489 = vsub.f32 %v345, %v473
    %v490 = vld [vmem:[%s3] sm:$0xff]
    %v491 = vld [vmem:[%s3 + $0x8] sm:$0xff]
    %v492 = vld [vmem:[%s3 + $0x10] sm:$0xff]
    %v493 = vld [vmem:[%s3 + $0x18] sm:$0xff]
    %v494 = vld [vmem:[%s3 + $0x20] sm:$0xff]
    %v495 = vld [vmem:[%s3 + $0x28] sm:$0xff]
    %v496 = vld [vmem:[%s3 + $0x30] sm:$0xff]
    %v497 = vld [vmem:[%s3 + $0x38] sm:$0xff]
    %v498 = vld [vmem:[%s3 + $0x40] sm:$0xff]
    %v499 = vld [vmem:[%s3 + $0x48] sm:$0xff]
    %v500 = vld [vmem:[%s3 + $0x50] sm:$0xff]
    %v501 = vld [vmem:[%s3 + $0x58] sm:$0xff]
    %v502 = vld [vmem:[%s3 + $0x60] sm:$0xff]
    %v503 = vld [vmem:[%s3 + $0x68] sm:$0xff]
    %v504 = vld [vmem:[%s3 + $0x70] sm:$0xff]
    %v505 = vld [vmem:[%s3 + $0x78] sm:$0xff]
    %v506 = vmul.f32 %v490, 3.0
    %v507 = vmul.f32 %v491, 3.0
    %v508 = vmul.f32 %v492, 3.0
    %v509 = vmul.f32 %v493, 3.0
    %v510 = vmul.f32 %v494, 3.0
    %v511 = vmul.f32 %v495, 3.0
    %v512 = vmul.f32 %v496, 3.0
    %v513 = vmul.f32 %v497, 3.0
    %v514 = vmul.f32 %v498, 3.0
    %v515 = vmul.f32 %v499, 3.0
    %v516 = vmul.f32 %v500, 3.0
    %v517 = vmul.f32 %v501, 3.0
    %v518 = vmul.f32 %v502, 3.0
    %v519 = vmul.f32 %v503, 3.0
    %v520 = vmul.f32 %v504, 3.0
    %v521 = vmul.f32 %v505, 3.0
    %v522 = vmul.f32 %v330, -3.0
    %v523 = vmul.f32 %v331, -3.0
    %v524 = vmul.f32 %v332, -3.0
    %v525 = vmul.f32 %v333, -3.0
    %v526 = vmul.f32 %v334, -3.0
    %v527 = vmul.f32 %v335, -3.0
    %v528 = vmul.f32 %v336, -3.0
    %v529 = vmul.f32 %v337, -3.0
    %v530 = vmul.f32 %v338, -3.0
    %v531 = vmul.f32 %v339, -3.0
    %v532 = vmul.f32 %v340, -3.0
    %v533 = vmul.f32 %v341, -3.0
    %v534 = vmul.f32 %v342, -3.0
    %v535 = vmul.f32 %v343, -3.0
    %v536 = vmul.f32 %v344, -3.0
    %v537 = vmul.f32 %v345, -3.0
    %v538 = vadd.f32 %v506, %v522
    %v539 = vadd.f32 %v507, %v523
    %v540 = vadd.f32 %v508, %v524
    %v541 = vadd.f32 %v509, %v525
    %v542 = vadd.f32 %v510, %v526
    %v543 = vadd.f32 %v511, %v527
    %v544 = vadd.f32 %v512, %v528
    %v545 = vadd.f32 %v513, %v529
    %v546 = vadd.f32 %v514, %v530
    %v547 = vadd.f32 %v515, %v531
    %v548 = vadd.f32 %v516, %v532
    %v549 = vadd.f32 %v517, %v533
    %v550 = vadd.f32 %v518, %v534
    %v551 = vadd.f32 %v519, %v535
    %v552 = vadd.f32 %v520, %v536
    %v553 = vadd.f32 %v521, %v537
    %v554 = vmul.f32 %v474, 0.75
    %v555 = vmul.f32 %v475, 0.75
    %v556 = vmul.f32 %v476, 0.75
    %v557 = vmul.f32 %v477, 0.75
    %v558 = vmul.f32 %v478, 0.75
    %v559 = vmul.f32 %v479, 0.75
    %v560 = vmul.f32 %v480, 0.75
    %v561 = vmul.f32 %v481, 0.75
    %v562 = vmul.f32 %v482, 0.75
    %v563 = vmul.f32 %v483, 0.75
    %v564 = vmul.f32 %v484, 0.75
    %v565 = vmul.f32 %v485, 0.75
    %v566 = vmul.f32 %v486, 0.75
    %v567 = vmul.f32 %v487, 0.75
    %v568 = vmul.f32 %v488, 0.75
    %v569 = vmul.f32 %v489, 0.75
    %v570 = vadd.f32 %v538, %v554
    %v571 = vadd.f32 %v539, %v555
    %v572 = vadd.f32 %v540, %v556
    %v573 = vadd.f32 %v541, %v557
    %v574 = vadd.f32 %v542, %v558
    %v575 = vadd.f32 %v543, %v559
    %v576 = vadd.f32 %v544, %v560
    %v577 = vadd.f32 %v545, %v561
    %v578 = vadd.f32 %v546, %v562
    %v579 = vadd.f32 %v547, %v563
    %v580 = vadd.f32 %v548, %v564
    %v581 = vadd.f32 %v549, %v565
    %v582 = vadd.f32 %v550, %v566
    %v583 = vadd.f32 %v551, %v567
    %v584 = vadd.f32 %v552, %v568
    %v585 = vadd.f32 %v553, %v569
    %v586 = vmul.f32 %v490, 0.0
    %v587 = vmul.f32 %v491, 0.0
    %v588 = vmul.f32 %v492, 0.0
    %v589 = vmul.f32 %v493, 0.0
    %v590 = vmul.f32 %v494, 0.0
    %v591 = vmul.f32 %v495, 0.0
    %v592 = vmul.f32 %v496, 0.0
    %v593 = vmul.f32 %v497, 0.0
    %v594 = vmul.f32 %v498, 0.0
    %v595 = vmul.f32 %v499, 0.0
    %v596 = vmul.f32 %v500, 0.0
    %v597 = vmul.f32 %v501, 0.0
    %v598 = vmul.f32 %v502, 0.0
    %v599 = vmul.f32 %v503, 0.0
    %v600 = vmul.f32 %v504, 0.0
    %v601 = vmul.f32 %v505, 0.0
    %v602 = vmul.f32 %v330, 3.0
    %v603 = vmul.f32 %v331, 3.0
    %v604 = vmul.f32 %v332, 3.0
    %v605 = vmul.f32 %v333, 3.0
    %v606 = vmul.f32 %v334, 3.0
    %v607 = vmul.f32 %v335, 3.0
    %v608 = vmul.f32 %v336, 3.0
    %v609 = vmul.f32 %v337, 3.0
    %v610 = vmul.f32 %v338, 3.0
    %v611 = vmul.f32 %v339, 3.0
    %v612 = vmul.f32 %v340, 3.0
    %v613 = vmul.f32 %v341, 3.0
    %v614 = vmul.f32 %v342, 3.0
    %v615 = vmul.f32 %v343, 3.0
    %v616 = vmul.f32 %v344, 3.0
    %v617 = vmul.f32 %v345, 3.0
    %v618 = vadd.f32 %v586, %v602
    %v619 = vadd.f32 %v587, %v603
    %v620 = vadd.f32 %v588, %v604
    %v621 = vadd.f32 %v589, %v605
    %v622 = vadd.f32 %v590, %v606
    %v623 = vadd.f32 %v591, %v607
    %v624 = vadd.f32 %v592, %v608
    %v625 = vadd.f32 %v593, %v609
    %v626 = vadd.f32 %v594, %v610
    %v627 = vadd.f32 %v595, %v611
    %v628 = vadd.f32 %v596, %v612
    %v629 = vadd.f32 %v597, %v613
    %v630 = vadd.f32 %v598, %v614
    %v631 = vadd.f32 %v599, %v615
    %v632 = vadd.f32 %v600, %v616
    %v633 = vadd.f32 %v601, %v617
    %v634 = vmul.f32 %v474, -1.5
    %v635 = vmul.f32 %v475, -1.5
    %v636 = vmul.f32 %v476, -1.5
    %v637 = vmul.f32 %v477, -1.5
    %v638 = vmul.f32 %v478, -1.5
    %v639 = vmul.f32 %v479, -1.5
    %v640 = vmul.f32 %v480, -1.5
    %v641 = vmul.f32 %v481, -1.5
    %v642 = vmul.f32 %v482, -1.5
    %v643 = vmul.f32 %v483, -1.5
    %v644 = vmul.f32 %v484, -1.5
    %v645 = vmul.f32 %v485, -1.5
    %v646 = vmul.f32 %v486, -1.5
    %v647 = vmul.f32 %v487, -1.5
    %v648 = vmul.f32 %v488, -1.5
    %v649 = vmul.f32 %v489, -1.5
    %v650 = vadd.f32 %v618, %v634
    %v651 = vadd.f32 %v619, %v635
    %v652 = vadd.f32 %v620, %v636
    %v653 = vadd.f32 %v621, %v637
    %v654 = vadd.f32 %v622, %v638
    %v655 = vadd.f32 %v623, %v639
    %v656 = vadd.f32 %v624, %v640
    %v657 = vadd.f32 %v625, %v641
    %v658 = vadd.f32 %v626, %v642
    %v659 = vadd.f32 %v627, %v643
    %v660 = vadd.f32 %v628, %v644
    %v661 = vadd.f32 %v629, %v645
    %v662 = vadd.f32 %v630, %v646
    %v663 = vadd.f32 %v631, %v647
    %v664 = vadd.f32 %v632, %v648
    %v665 = vadd.f32 %v633, %v649
    %v666 = vmul.f32 %v330, 0.0
    %v667 = vmul.f32 %v331, 0.0
    %v668 = vmul.f32 %v332, 0.0
    %v669 = vmul.f32 %v333, 0.0
    %v670 = vmul.f32 %v334, 0.0
    %v671 = vmul.f32 %v335, 0.0
    %v672 = vmul.f32 %v336, 0.0
    %v673 = vmul.f32 %v337, 0.0
    %v674 = vmul.f32 %v338, 0.0
    %v675 = vmul.f32 %v339, 0.0
    %v676 = vmul.f32 %v340, 0.0
    %v677 = vmul.f32 %v341, 0.0
    %v678 = vmul.f32 %v342, 0.0
    %v679 = vmul.f32 %v343, 0.0
    %v680 = vmul.f32 %v344, 0.0
    %v681 = vmul.f32 %v345, 0.0
    %v682 = vadd.f32 %v586, %v666
    %v683 = vadd.f32 %v587, %v667
    %v684 = vadd.f32 %v588, %v668
    %v685 = vadd.f32 %v589, %v669
    %v686 = vadd.f32 %v590, %v670
    %v687 = vadd.f32 %v591, %v671
    %v688 = vadd.f32 %v592, %v672
    %v689 = vadd.f32 %v593, %v673
    %v690 = vadd.f32 %v594, %v674
    %v691 = vadd.f32 %v595, %v675
    %v692 = vadd.f32 %v596, %v676
    %v693 = vadd.f32 %v597, %v677
    %v694 = vadd.f32 %v598, %v678
    %v695 = vadd.f32 %v599, %v679
    %v696 = vadd.f32 %v600, %v680
    %v697 = vadd.f32 %v601, %v681
    %v698 = vadd.f32 %v682, %v554
    %v699 = vadd.f32 %v683, %v555
    %v700 = vadd.f32 %v684, %v556
    %v701 = vadd.f32 %v685, %v557
    %v702 = vadd.f32 %v686, %v558
    %v703 = vadd.f32 %v687, %v559
    %v704 = vadd.f32 %v688, %v560
    %v705 = vadd.f32 %v689, %v561
    %v706 = vadd.f32 %v690, %v562
    %v707 = vadd.f32 %v691, %v563
    %v708 = vadd.f32 %v692, %v564
    %v709 = vadd.f32 %v693, %v565
    %v710 = vadd.f32 %v694, %v566
    %v711 = vadd.f32 %v695, %v567
    %v712 = vadd.f32 %v696, %v568
    %v713 = vadd.f32 %v697, %v569
    %v714 = vld [vmem:[%s6] sm:$0x1]
    %715 = vst [vmem:[%s7] sm:$0xff] %v570
    %716 = vst [vmem:[%s7 + $0x18] sm:$0xff] %v571
    %717 = vst [vmem:[%s7 + $0x30] sm:$0xff] %v572
    %718 = vst [vmem:[%s7 + $0x48] sm:$0xff] %v573
    %719 = vst [vmem:[%s7 + $0x60] sm:$0xff] %v574
    %720 = vst [vmem:[%s7 + $0x78] sm:$0xff] %v575
    %721 = vst [vmem:[%s7 + $0x90] sm:$0xff] %v576
    %722 = vst [vmem:[%s7 + $0xa8] sm:$0xff] %v577
    %723 = vst [vmem:[%s7 + $0xc0] sm:$0xff] %v578
    %724 = vst [vmem:[%s7 + $0xd8] sm:$0xff] %v579
    %725 = vst [vmem:[%s7 + $0xf0] sm:$0xff] %v580
    %726 = vst [vmem:[%s7 + $0x108] sm:$0xff] %v581
    %727 = vst [vmem:[%s7 + $0x120] sm:$0xff] %v582
    %728 = vst [vmem:[%s7 + $0x138] sm:$0xff] %v583
    %729 = vst [vmem:[%s7 + $0x150] sm:$0xff] %v584
    %730 = vst [vmem:[%s7 + $0x168] sm:$0xff] %v585
    %v731 = vld [vmem:[%s5] sm:$0xff]
    %v732 = vld [vmem:[%s5 + $0x8] sm:$0xff]
    %v733 = vld [vmem:[%s5 + $0x10] sm:$0xff]
    %v734 = vld [vmem:[%s5 + $0x18] sm:$0xff]
    %v735 = vld [vmem:[%s5 + $0x20] sm:$0xff]
    %v736 = vld [vmem:[%s5 + $0x28] sm:$0xff]
    %v737 = vld [vmem:[%s5 + $0x30] sm:$0xff]
    %v738 = vld [vmem:[%s5 + $0x38] sm:$0xff]
    %v739 = vld [vmem:[%s5 + $0x40] sm:$0xff]
    %v740 = vld [vmem:[%s5 + $0x48] sm:$0xff]
    %v741 = vld [vmem:[%s5 + $0x50] sm:$0xff]
    %v742 = vld [vmem:[%s5 + $0x58] sm:$0xff]
    %v743 = vld [vmem:[%s5 + $0x60] sm:$0xff]
    %v744 = vld [vmem:[%s5 + $0x68] sm:$0xff]
    %v745 = vld [vmem:[%s5 + $0x70] sm:$0xff]
    %v746 = vld [vmem:[%s5 + $0x78] sm:$0xff]
    %747 = vmatprep.subr.mxu0 0.0
    %748 = vmatpush1.msra.mxu0 %v731
    %749 = vmatprep.subr.mxu0 0.0
    %750 = vmatpush1.msra.mxu0 %v732
    %751 = vmatprep.subr.mxu0 0.0
    %752 = vmatpush1.msra.mxu0 %v733
    %753 = vmatprep.subr.mxu0 0.0
    %754 = vmatpush1.msra.mxu0 %v734
    %755 = vmatprep.subr.mxu0 0.0
    %756 = vmatpush1.msra.mxu0 %v735
    %757 = vmatprep.subr.mxu0 0.0
    %758 = vmatpush1.msra.mxu0 %v736
    %759 = vmatprep.subr.mxu0 0.0
    %760 = vmatpush1.msra.mxu0 %v737
    %761 = vmatprep.subr.mxu0 0.0
    %762 = vmatpush1.msra.mxu0 %v738
    %763 = vmatprep.subr.mxu0 0.0
    %764 = vmatpush1.msra.mxu0 %v739
    %765 = vmatprep.subr.mxu0 0.0
    %766 = vmatpush1.msra.mxu0 %v740
    %767 = vmatprep.subr.mxu0 0.0
    %768 = vmatpush1.msra.mxu0 %v741
    %769 = vmatprep.subr.mxu0 0.0
    %770 = vmatpush1.msra.mxu0 %v742
    %771 = vmatprep.subr.mxu0 0.0
    %772 = vmatpush1.msra.mxu0 %v743
    %773 = vmatprep.subr.mxu0 0.0
    %774 = vmatpush1.msra.mxu0 %v744
    %775 = vmatprep.subr.mxu0 0.0
    %776 = vmatpush1.msra.mxu0 %v745
    %777 = vmatprep.subr.mxu0 0.0
    %778 = vmatpush1.msra.mxu0 %v746
    %779 = vmatprep.subr.mxu0 0.0
    %780 = vmatpush1.msra.mxu0 0.0
    %781 = vmatprep.subr.mxu0 0.0
    %782 = vmatpush1.msra.mxu0 0.0
    %783 = vmatprep.subr.mxu0 0.0
    %784 = vmatpush1.msra.mxu0 0.0
    %785 = vmatprep.subr.mxu0 0.0
    %786 = vmatpush1.msra.mxu0 0.0
    %787 = vmatprep.subr.mxu0 0.0
    %788 = vmatpush1.msra.mxu0 0.0
    %789 = vmatprep.subr.mxu0 0.0
    %790 = vmatpush1.msra.mxu0 0.0
    %791 = vmatprep.subr.mxu0 0.0
    %792 = vmatpush1.msra.mxu0 0.0
    %793 = vmatprep.subr.mxu0 0.0
    %794 = vmatpush1.msra.mxu0 0.0
    %795 = vmatprep.subr.mxu0 0.0
    %796 = vmatpush1.msra.mxu0 0.0
    %797 = vmatprep.subr.mxu0 0.0
    %798 = vmatpush1.msra.mxu0 0.0
    %799 = vmatprep.subr.mxu0 0.0
    %800 = vmatpush1.msra.mxu0 0.0
    %801 = vmatprep.subr.mxu0 0.0
    %802 = vmatpush1.msra.mxu0 0.0
    %803 = vmatprep.subr.mxu0 0.0
    %804 = vmatpush1.msra.mxu0 0.0
    %805 = vmatprep.subr.mxu0 0.0
    %806 = vmatpush1.msra.mxu0 0.0
    %807 = vmatprep.subr.mxu0 0.0
    %808 = vmatpush1.msra.mxu0 0.0
    %809 = vmatprep.subr.mxu0 0.0
    %810 = vmatpush1.msra.mxu0 0.0
    %811 = vmatprep.mubr.f32.mxu0 0.0
    %812 = vmatmul.mubr.f32.gmra.mrb[0].mxu0 %v570
    %v813 = vpop.f32.mrb[0].mxu0
    %v814 = vadd.f32 0.0, %v813
    %v815 = vpop.f32.mrb[0].mxu0
    %816 = vmatprep.mubr.f32.mxu0 0.0
    %817 = vmatmul.mubr.f32.gmra.mrb[0].mxu0 %v571
    %v818 = vpop.f32.mrb[0].mxu0
    %v819 = vadd.f32 0.0, %v818
    %v820 = vpop.f32.mrb[0].mxu0
    %821 = vmatprep.mubr.f32.mxu0 0.0
    %822 = vmatmul.mubr.f32.gmra.mrb[0].mxu0 %v572
    %v823 = vpop.f32.mrb[0].mxu0
    %v824 = vadd.f32 0.0, %v823
    %v825 = vpop.f32.mrb[0].mxu0
    %826 = vmatprep.mubr.f32.mxu0 0.0
    %827 = vmatmul.mubr.f32.gmra.mrb[0].mxu0 %v573
    %v828 = vpop.f32.mrb[0].mxu0
    %v829 = vadd.f32 0.0, %v828
    %v830 = vpop.f32.mrb[0].mxu0
    %831 = vmatprep.mubr.f32.mxu0 0.0
    %832 = vmatmul.mubr.f32.gmra.mrb[0].mxu0 %v574
    %v833 = vpop.f32.mrb[0].mxu0
    %v834 = vadd.f32 0.0, %v833
    %v835 = vpop.f32.mrb[0].mxu0
    %836 = vmatprep.mubr.f32.mxu0 0.0
    %837 = vmatmul.mubr.f32.gmra.mrb[0].mxu0 %v575
    %v838 = vpop.f32.mrb[0].mxu0
    %v839 = vadd.f32 0.0, %v838
    %v840 = vpop.f32.mrb[0].mxu0
    %841 = vmatprep.mubr.f32.mxu0 0.0
    %842 = vmatmul.mubr.f32.gmra.mrb[0].mxu0 %v576
    %v843 = vpop.f32.mrb[0].mxu0
    %v844 = vadd.f32 0.0, %v843
    %v845 = vpop.f32.mrb[0].mxu0
    %846 = vmatprep.mubr.f32.mxu0 0.0
    %847 = vmatmul.mubr.f32.gmra.mrb[0].mxu0 %v577
    %v848 = vpop.f32.mrb[0].mxu0
    %v849 = vadd.f32 0.0, %v848
    %v850 = vpop.f32.mrb[0].mxu0
    %851 = vmatprep.mubr.f32.mxu0 0.0
    %852 = vmatmul.mubr.f32.gmra.mrb[0].mxu0 %v578
    %v853 = vpop.f32.mrb[0].mxu0
    %v854 = vadd.f32 0.0, %v853
    %v855 = vpop.f32.mrb[0].mxu0
    %856 = vmatprep.mubr.f32.mxu0 0.0
    %857 = vmatmul.mubr.f32.gmra.mrb[0].mxu0 %v579
    %v858 = vpop.f32.mrb[0].mxu0
    %v859 = vadd.f32 0.0, %v858
    %v860 = vpop.f32.mrb[0].mxu0
    %861 = vmatprep.mubr.f32.mxu0 0.0
    %862 = vmatmul.mubr.f32.gmra.mrb[0].mxu0 %v580
    %v863 = vpop.f32.mrb[0].mxu0
    %v864 = vadd.f32 0.0, %v863
    %v865 = vpop.f32.mrb[0].mxu0
    %866 = vmatprep.mubr.f32.mxu0 0.0
    %867 = vmatmul.mubr.f32.gmra.mrb[0].mxu0 %v581
    %v868 = vpop.f32.mrb[0].mxu0
    %v869 = vadd.f32 0.0, %v868
    %v870 = vpop.f32.mrb[0].mxu0
    %871 = vmatprep.mubr.f32.mxu0 0.0
    %872 = vmatmul.mubr.f32.gmra.mrb[0].mxu0 %v582
    %v873 = vpop.f32.mrb[0].mxu0
    %v874 = vadd.f32 0.0, %v873
    %v875 = vpop.f32.mrb[0].mxu0
    %876 = vmatprep.mubr.f32.mxu0 0.0
    %877 = vmatmul.mubr.f32.gmra.mrb[0].mxu0 %v583
    %v878 = vpop.f32.mrb[0].mxu0
    %v879 = vadd.f32 0.0, %v878
    %v880 = vpop.f32.mrb[0].mxu0
    %881 = vmatprep.mubr.f32.mxu0 0.0
    %882 = vmatmul.mubr.f32.gmra.mrb[0].mxu0 %v584
    %v883 = vpop.f32.mrb[0].mxu0
    %v884 = vadd.f32 0.0, %v883
    %v885 = vpop.f32.mrb[0].mxu0
    %886 = vmatprep.mubr.f32.mxu0 0.0
    %887 = vmatmul.mubr.f32.gmra.mrb[0].mxu0 %v585
    %v888 = vpop.f32.mrb[0].mxu0
    %v889 = vadd.f32 0.0, %v888
    %v890 = vpop.f32.mrb[0].mxu0
    %891 = vdwg.mxu0
    %v893 = vlaneseq
    %v894 = vshrl.u32 %v893, 7
    %v895 = vsub.s32 0, %v894
    %v896 = vrot.slane %v714, %v895
    %v898 = vadd.f32 %v896, %v814
    %v899 = vadd.f32 %v896, %v819
    %v900 = vadd.f32 %v896, %v824
    %v901 = vadd.f32 %v896, %v829
    %v902 = vadd.f32 %v896, %v834
    %v903 = vadd.f32 %v896, %v839
    %v904 = vadd.f32 %v896, %v844
    %v905 = vadd.f32 %v896, %v849
    %v906 = vadd.f32 %v896, %v854
    %v907 = vadd.f32 %v896, %v859
    %v908 = vadd.f32 %v896, %v864
    %v909 = vadd.f32 %v896, %v869
    %v910 = vadd.f32 %v896, %v874
    %v911 = vadd.f32 %v896, %v879
    %v912 = vadd.f32 %v896, %v884
    %v913 = vadd.f32 %v896, %v889
    %914 = vst [vmem:[%s7 + $0x8] sm:$0xff] %v650
    %915 = vst [vmem:[%s7 + $0x20] sm:$0xff] %v651
    %916 = vst [vmem:[%s7 + $0x38] sm:$0xff] %v652
    %917 = vst [vmem:[%s7 + $0x50] sm:$0xff] %v653
    %918 = vst [vmem:[%s7 + $0x68] sm:$0xff] %v654
    %919 = vst [vmem:[%s7 + $0x80] sm:$0xff] %v655
    %920 = vst [vmem:[%s7 + $0x98] sm:$0xff] %v656
    %921 = vst [vmem:[%s7 + $0xb0] sm:$0xff] %v657
    %922 = vst [vmem:[%s7 + $0xc8] sm:$0xff] %v658
    %923 = vst [vmem:[%s7 + $0xe0] sm:$0xff] %v659
    %924 = vst [vmem:[%s7 + $0xf8] sm:$0xff] %v660
    %925 = vst [vmem:[%s7 + $0x110] sm:$0xff] %v661
    %926 = vst [vmem:[%s7 + $0x128] sm:$0xff] %v662
    %927 = vst [vmem:[%s7 + $0x140] sm:$0xff] %v663
    %928 = vst [vmem:[%s7 + $0x158] sm:$0xff] %v664
    %929 = vst [vmem:[%s7 + $0x170] sm:$0xff] %v665
    %v930 = vld [vmem:[%s5 + $0x80] sm:$0xff]
    %v931 = vld [vmem:[%s5 + $0x88] sm:$0xff]
    %v932 = vld [vmem:[%s5 + $0x90] sm:$0xff]
    %v933 = vld [vmem:[%s5 + $0x98] sm:$0xff]
    %v934 = vld [vmem:[%s5 + $0xa0] sm:$0xff]
    %v935 = vld [vmem:[%s5 + $0xa8] sm:$0xff]
    %v936 = vld [vmem:[%s5 + $0xb0] sm:$0xff]
    %v937 = vld [vmem:[%s5 + $0xb8] sm:$0xff]
    %v938 = vld [vmem:[%s5 + $0xc0] sm:$0xff]
    %v939 = vld [vmem:[%s5 + $0xc8] sm:$0xff]
    %v940 = vld [vmem:[%s5 + $0xd0] sm:$0xff]
    %v941 = vld [vmem:[%s5 + $0xd8] sm:$0xff]
    %v942 = vld [vmem:[%s5 + $0xe0] sm:$0xff]
    %v943 = vld [vmem:[%s5 + $0xe8] sm:$0xff]
    %v944 = vld [vmem:[%s5 + $0xf0] sm:$0xff]
    %v945 = vld [vmem:[%s5 + $0xf8] sm:$0xff]
    %946 = vmatprep.subr.mxu0 0.0
    %947 = vmatpush1.msra.mxu0 %v930
    %948 = vmatprep.subr.mxu0 0.0
    %949 = vmatpush1.msra.mxu0 %v931
    %950 = vmatprep.subr.mxu0 0.0
    %951 = vmatpush1.msra.mxu0 %v932
    %952 = vmatprep.subr.mxu0 0.0
    %953 = vmatpush1.msra.mxu0 %v933
    %954 = vmatprep.subr.mxu0 0.0
    %955 = vmatpush1.msra.mxu0 %v934
    %956 = vmatprep.subr.mxu0 0.0
    %957 = vmatpush1.msra.mxu0 %v935
    %958 = vmatprep.subr.mxu0 0.0
    %959 = vmatpush1.msra.mxu0 %v936
    %960 = vmatprep.subr.mxu0 0.0
    %961 = vmatpush1.msra.mxu0 %v937
    %962 = vmatprep.subr.mxu0 0.0
    %963 = vmatpush1.msra.mxu0 %v938
    %964 = vmatprep.subr.mxu0 0.0
    %965 = vmatpush1.msra.mxu0 %v939
    %966 = vmatprep.subr.mxu0 0.0
    %967 = vmatpush1.msra.mxu0 %v940
    %968 = vmatprep.subr.mxu0 0.0
    %969 = vmatpush1.msra.mxu0 %v941
    %970 = vmatprep.subr.mxu0 0.0
    %971 = vmatpush1.msra.mxu0 %v942
    %972 = vmatprep.subr.mxu0 0.0
    %973 = vmatpush1.msra.mxu0 %v943
    %974 = vmatprep.subr.mxu0 0.0
    %975 = vmatpush1.msra.mxu0 %v944
    %976 = vmatprep.subr.mxu0 0.0
    %977 = vmatpush1.msra.mxu0 %v945
    %978 = vmatprep.subr.mxu0 0.0
    %979 = vmatpush1.msra.mxu0 0.0
    %980 = vmatprep.subr.mxu0 0.0
    %981 = vmatpush1.msra.mxu0 0.0
    %982 = vmatprep.subr.mxu0 0.0
    %983 = vmatpush1.msra.mxu0 0.0
    %984 = vmatprep.subr.mxu0 0.0
    %985 = vmatpush1.msra.mxu0 0.0
    %986 = vmatprep.subr.mxu0 0.0
    %987 = vmatpush1.msra.mxu0 0.0
    %988 = vmatprep.subr.mxu0 0.0
    %989 = vmatpush1.msra.mxu0 0.0
    %990 = vmatprep.subr.mxu0 0.0
    %991 = vmatpush1.msra.mxu0 0.0
    %992 = vmatprep.subr.mxu0 0.0
    %993 = vmatpush1.msra.mxu0 0.0
    %994 = vmatprep.subr.mxu0 0.0
    %995 = vmatpush1.msra.mxu0 0.0
    %996 = vmatprep.subr.mxu0 0.0
    %997 = vmatpush1.msra.mxu0 0.0
    %998 = vmatprep.subr.mxu0 0.0
    %999 = vmatpush1.msra.mxu0 0.0
    %1000 = vmatprep.subr.mxu0 0.0
    %1001 = vmatpush1.msra.mxu0 0.0
    %1002 = vmatprep.subr.mxu0 0.0
    %1003 = vmatpush1.msra.mxu0 0.0
    %1004 = vmatprep.subr.mxu0 0.0
    %1005 = vmatpush1.msra.mxu0 0.0
    %1006 = vmatprep.subr.mxu0 0.0
    %1007 = vmatpush1.msra.mxu0 0.0
    %1008 = vmatprep.subr.mxu0 0.0
    %1009 = vmatpush1.msra.mxu0 0.0
    %1010 = vmatprep.mubr.f32.mxu0 0.0
    %1011 = vmatmul.mubr.f32.gmra.mrb[0].mxu0 %v650
    %v1012 = vpop.f32.mrb[0].mxu0
    %v1013 = vadd.f32 0.0, %v1012
    %v1014 = vpop.f32.mrb[0].mxu0
    %1015 = vmatprep.mubr.f32.mxu0 0.0
    %1016 = vmatmul.mubr.f32.gmra.mrb[0].mxu0 %v651
    %v1017 = vpop.f32.mrb[0].mxu0
    %v1018 = vadd.f32 0.0, %v1017
    %v1019 = vpop.f32.mrb[0].mxu0
    %1020 = vmatprep.mubr.f32.mxu0 0.0
    %1021 = vmatmul.mubr.f32.gmra.mrb[0].mxu0 %v652
    %v1022 = vpop.f32.mrb[0].mxu0
    %v1023 = vadd.f32 0.0, %v1022
    %v1024 = vpop.f32.mrb[0].mxu0
    %1025 = vmatprep.mubr.f32.mxu0 0.0
    %1026 = vmatmul.mubr.f32.gmra.mrb[0].mxu0 %v653
    %v1027 = vpop.f32.mrb[0].mxu0
    %v1028 = vadd.f32 0.0, %v1027
    %v1029 = vpop.f32.mrb[0].mxu0
    %1030 = vmatprep.mubr.f32.mxu0 0.0
    %1031 = vmatmul.mubr.f32.gmra.mrb[0].mxu0 %v654
    %v1032 = vpop.f32.mrb[0].mxu0
    %v1033 = vadd.f32 0.0, %v1032
    %v1034 = vpop.f32.mrb[0].mxu0
    %1035 = vmatprep.mubr.f32.mxu0 0.0
    %1036 = vmatmul.mubr.f32.gmra.mrb[0].mxu0 %v655
    %v1037 = vpop.f32.mrb[0].mxu0
    %v1038 = vadd.f32 0.0, %v1037
    %v1039 = vpop.f32.mrb[0].mxu0
    %1040 = vmatprep.mubr.f32.mxu0 0.0
    %1041 = vmatmul.mubr.f32.gmra.mrb[0].mxu0 %v656
    %v1042 = vpop.f32.mrb[0].mxu0
    %v1043 = vadd.f32 0.0, %v1042
    %v1044 = vpop.f32.mrb[0].mxu0
    %1045 = vmatprep.mubr.f32.mxu0 0.0
    %1046 = vmatmul.mubr.f32.gmra.mrb[0].mxu0 %v657
    %v1047 = vpop.f32.mrb[0].mxu0
    %v1048 = vadd.f32 0.0, %v1047
    %v1049 = vpop.f32.mrb[0].mxu0
    %1050 = vmatprep.mubr.f32.mxu0 0.0
    %1051 = vmatmul.mubr.f32.gmra.mrb[0].mxu0 %v658
    %v1052 = vpop.f32.mrb[0].mxu0
    %v1053 = vadd.f32 0.0, %v1052
    %v1054 = vpop.f32.mrb[0].mxu0
    %1055 = vmatprep.mubr.f32.mxu0 0.0
    %1056 = vmatmul.mubr.f32.gmra.mrb[0].mxu0 %v659
    %v1057 = vpop.f32.mrb[0].mxu0
    %v1058 = vadd.f32 0.0, %v1057
    %v1059 = vpop.f32.mrb[0].mxu0
    %1060 = vmatprep.mubr.f32.mxu0 0.0
    %1061 = vmatmul.mubr.f32.gmra.mrb[0].mxu0 %v660
    %v1062 = vpop.f32.mrb[0].mxu0
    %v1063 = vadd.f32 0.0, %v1062
    %v1064 = vpop.f32.mrb[0].mxu0
    %1065 = vmatprep.mubr.f32.mxu0 0.0
    %1066 = vmatmul.mubr.f32.gmra.mrb[0].mxu0 %v661
    %v1067 = vpop.f32.mrb[0].mxu0
    %v1068 = vadd.f32 0.0, %v1067
    %v1069 = vpop.f32.mrb[0].mxu0
    %1070 = vmatprep.mubr.f32.mxu0 0.0
    %1071 = vmatmul.mubr.f32.gmra.mrb[0].mxu0 %v662
    %v1072 = vpop.f32.mrb[0].mxu0
    %v1073 = vadd.f32 0.0, %v1072
    %v1074 = vpop.f32.mrb[0].mxu0
    %1075 = vmatprep.mubr.f32.mxu0 0.0
    %1076 = vmatmul.mubr.f32.gmra.mrb[0].mxu0 %v663
    %v1077 = vpop.f32.mrb[0].mxu0
    %v1078 = vadd.f32 0.0, %v1077
    %v1079 = vpop.f32.mrb[0].mxu0
    %1080 = vmatprep.mubr.f32.mxu0 0.0
    %1081 = vmatmul.mubr.f32.gmra.mrb[0].mxu0 %v664
    %v1082 = vpop.f32.mrb[0].mxu0
    %v1083 = vadd.f32 0.0, %v1082
    %v1084 = vpop.f32.mrb[0].mxu0
    %1085 = vmatprep.mubr.f32.mxu0 0.0
    %1086 = vmatmul.mubr.f32.gmra.mrb[0].mxu0 %v665
    %v1087 = vpop.f32.mrb[0].mxu0
    %v1088 = vadd.f32 0.0, %v1087
    %v1089 = vpop.f32.mrb[0].mxu0
    %1090 = vdwg.mxu0
    %v1091 = vadd.f32 %v898, %v1013
    %v1092 = vadd.f32 %v899, %v1018
    %v1093 = vadd.f32 %v900, %v1023
    %v1094 = vadd.f32 %v901, %v1028
    %v1095 = vadd.f32 %v902, %v1033
    %v1096 = vadd.f32 %v903, %v1038
    %v1097 = vadd.f32 %v904, %v1043
    %v1098 = vadd.f32 %v905, %v1048
    %v1099 = vadd.f32 %v906, %v1053
    %v1100 = vadd.f32 %v907, %v1058
    %v1101 = vadd.f32 %v908, %v1063
    %v1102 = vadd.f32 %v909, %v1068
    %v1103 = vadd.f32 %v910, %v1073
    %v1104 = vadd.f32 %v911, %v1078
    %v1105 = vadd.f32 %v912, %v1083
    %v1106 = vadd.f32 %v913, %v1088
    %1107 = vst [vmem:[%s7 + $0x10] sm:$0xff] %v698
    %1108 = vst [vmem:[%s7 + $0x28] sm:$0xff] %v699
    %1109 = vst [vmem:[%s7 + $0x40] sm:$0xff] %v700
    %1110 = vst [vmem:[%s7 + $0x58] sm:$0xff] %v701
    %1111 = vst [vmem:[%s7 + $0x70] sm:$0xff] %v702
    %1112 = vst [vmem:[%s7 + $0x88] sm:$0xff] %v703
    %1113 = vst [vmem:[%s7 + $0xa0] sm:$0xff] %v704
    %1114 = vst [vmem:[%s7 + $0xb8] sm:$0xff] %v705
    %1115 = vst [vmem:[%s7 + $0xd0] sm:$0xff] %v706
    %1116 = vst [vmem:[%s7 + $0xe8] sm:$0xff] %v707
    %1117 = vst [vmem:[%s7 + $0x100] sm:$0xff] %v708
    %1118 = vst [vmem:[%s7 + $0x118] sm:$0xff] %v709
    %1119 = vst [vmem:[%s7 + $0x130] sm:$0xff] %v710
    %1120 = vst [vmem:[%s7 + $0x148] sm:$0xff] %v711
    %1121 = vst [vmem:[%s7 + $0x160] sm:$0xff] %v712
    %1122 = vst [vmem:[%s7 + $0x178] sm:$0xff] %v713
    %v1123 = vld [vmem:[%s5 + $0x100] sm:$0xff]
    %v1124 = vld [vmem:[%s5 + $0x108] sm:$0xff]
    %v1125 = vld [vmem:[%s5 + $0x110] sm:$0xff]
    %v1126 = vld [vmem:[%s5 + $0x118] sm:$0xff]
    %v1127 = vld [vmem:[%s5 + $0x120] sm:$0xff]
    %v1128 = vld [vmem:[%s5 + $0x128] sm:$0xff]
    %v1129 = vld [vmem:[%s5 + $0x130] sm:$0xff]
    %v1130 = vld [vmem:[%s5 + $0x138] sm:$0xff]
    %v1131 = vld [vmem:[%s5 + $0x140] sm:$0xff]
    %v1132 = vld [vmem:[%s5 + $0x148] sm:$0xff]
    %v1133 = vld [vmem:[%s5 + $0x150] sm:$0xff]
    %v1134 = vld [vmem:[%s5 + $0x158] sm:$0xff]
    %v1135 = vld [vmem:[%s5 + $0x160] sm:$0xff]
    %v1136 = vld [vmem:[%s5 + $0x168] sm:$0xff]
    %v1137 = vld [vmem:[%s5 + $0x170] sm:$0xff]
    %v1138 = vld [vmem:[%s5 + $0x178] sm:$0xff]
    %1139 = vmatprep.subr.mxu0 0.0
    %1140 = vmatpush1.msra.mxu0 %v1123
    %1141 = vmatprep.subr.mxu0 0.0
    %1142 = vmatpush1.msra.mxu0 %v1124
    %1143 = vmatprep.subr.mxu0 0.0
    %1144 = vmatpush1.msra.mxu0 %v1125
    %1145 = vmatprep.subr.mxu0 0.0
    %1146 = vmatpush1.msra.mxu0 %v1126
    %1147 = vmatprep.subr.mxu0 0.0
    %1148 = vmatpush1.msra.mxu0 %v1127
    %1149 = vmatprep.subr.mxu0 0.0
    %1150 = vmatpush1.msra.mxu0 %v1128
    %1151 = vmatprep.subr.mxu0 0.0
    %1152 = vmatpush1.msra.mxu0 %v1129
    %1153 = vmatprep.subr.mxu0 0.0
    %1154 = vmatpush1.msra.mxu0 %v1130
    %1155 = vmatprep.subr.mxu0 0.0
    %1156 = vmatpush1.msra.mxu0 %v1131
    %1157 = vmatprep.subr.mxu0 0.0
    %1158 = vmatpush1.msra.mxu0 %v1132
    %1159 = vmatprep.subr.mxu0 0.0
    %1160 = vmatpush1.msra.mxu0 %v1133
    %1161 = vmatprep.subr.mxu0 0.0
    %1162 = vmatpush1.msra.mxu0 %v1134
    %1163 = vmatprep.subr.mxu0 0.0
    %1164 = vmatpush1.msra.mxu0 %v1135
    %1165 = vmatprep.subr.mxu0 0.0
    %1166 = vmatpush1.msra.mxu0 %v1136
    %1167 = vmatprep.subr.mxu0 0.0
    %1168 = vmatpush1.msra.mxu0 %v1137
    %1169 = vmatprep.subr.mxu0 0.0
    %1170 = vmatpush1.msra.mxu0 %v1138
    %1171 = vmatprep.subr.mxu0 0.0
    %1172 = vmatpush1.msra.mxu0 0.0
    %1173 = vmatprep.subr.mxu0 0.0
    %1174 = vmatpush1.msra.mxu0 0.0
    %1175 = vmatprep.subr.mxu0 0.0
    %1176 = vmatpush1.msra.mxu0 0.0
    %1177 = vmatprep.subr.mxu0 0.0
    %1178 = vmatpush1.msra.mxu0 0.0
    %1179 = vmatprep.subr.mxu0 0.0
    %1180 = vmatpush1.msra.mxu0 0.0
    %1181 = vmatprep.subr.mxu0 0.0
    %1182 = vmatpush1.msra.mxu0 0.0
    %1183 = vmatprep.subr.mxu0 0.0
    %1184 = vmatpush1.msra.mxu0 0.0
    %1185 = vmatprep.subr.mxu0 0.0
    %1186 = vmatpush1.msra.mxu0 0.0
    %1187 = vmatprep.subr.mxu0 0.0
    %1188 = vmatpush1.msra.mxu0 0.0
    %1189 = vmatprep.subr.mxu0 0.0
    %1190 = vmatpush1.msra.mxu0 0.0
    %1191 = vmatprep.subr.mxu0 0.0
    %1192 = vmatpush1.msra.mxu0 0.0
    %1193 = vmatprep.subr.mxu0 0.0
    %1194 = vmatpush1.msra.mxu0 0.0
    %1195 = vmatprep.subr.mxu0 0.0
    %1196 = vmatpush1.msra.mxu0 0.0
    %1197 = vmatprep.subr.mxu0 0.0
    %1198 = vmatpush1.msra.mxu0 0.0
    %1199 = vmatprep.subr.mxu0 0.0
    %1200 = vmatpush1.msra.mxu0 0.0
    %1201 = vmatprep.subr.mxu0 0.0
    %1202 = vmatpush1.msra.mxu0 0.0
    %1203 = vmatprep.mubr.f32.mxu0 0.0
    %1204 = vmatmul.mubr.f32.gmra.mrb[0].mxu0 %v698
    %v1205 = vpop.f32.mrb[0].mxu0
    %v1206 = vadd.f32 0.0, %v1205
    %v1207 = vpop.f32.mrb[0].mxu0
    %1208 = vmatprep.mubr.f32.mxu0 0.0
    %1209 = vmatmul.mubr.f32.gmra.mrb[0].mxu0 %v699
    %v1210 = vpop.f32.mrb[0].mxu0
    %v1211 = vadd.f32 0.0, %v1210
    %v1212 = vpop.f32.mrb[0].mxu0
    %1213 = vmatprep.mubr.f32.mxu0 0.0
    %1214 = vmatmul.mubr.f32.gmra.mrb[0].mxu0 %v700
    %v1215 = vpop.f32.mrb[0].mxu0
    %v1216 = vadd.f32 0.0, %v1215
    %v1217 = vpop.f32.mrb[0].mxu0
    %1218 = vmatprep.mubr.f32.mxu0 0.0
    %1219 = vmatmul.mubr.f32.gmra.mrb[0].mxu0 %v701
    %v1220 = vpop.f32.mrb[0].mxu0
    %v1221 = vadd.f32 0.0, %v1220
    %v1222 = vpop.f32.mrb[0].mxu0
    %1223 = vmatprep.mubr.f32.mxu0 0.0
    %1224 = vmatmul.mubr.f32.gmra.mrb[0].mxu0 %v702
    %v1225 = vpop.f32.mrb[0].mxu0
    %v1226 = vadd.f32 0.0, %v1225
    %v1227 = vpop.f32.mrb[0].mxu0
    %1228 = vmatprep.mubr.f32.mxu0 0.0
    %1229 = vmatmul.mubr.f32.gmra.mrb[0].mxu0 %v703
    %v1230 = vpop.f32.mrb[0].mxu0
    %v1231 = vadd.f32 0.0, %v1230
    %v1232 = vpop.f32.mrb[0].mxu0
    %1233 = vmatprep.mubr.f32.mxu0 0.0
    %1234 = vmatmul.mubr.f32.gmra.mrb[0].mxu0 %v704
    %v1235 = vpop.f32.mrb[0].mxu0
    %v1236 = vadd.f32 0.0, %v1235
    %v1237 = vpop.f32.mrb[0].mxu0
    %1238 = vmatprep.mubr.f32.mxu0 0.0
    %1239 = vmatmul.mubr.f32.gmra.mrb[0].mxu0 %v705
    %v1240 = vpop.f32.mrb[0].mxu0
    %v1241 = vadd.f32 0.0, %v1240
    %v1242 = vpop.f32.mrb[0].mxu0
    %1243 = vmatprep.mubr.f32.mxu0 0.0
    %1244 = vmatmul.mubr.f32.gmra.mrb[0].mxu0 %v706
    %v1245 = vpop.f32.mrb[0].mxu0
    %v1246 = vadd.f32 0.0, %v1245
    %v1247 = vpop.f32.mrb[0].mxu0
    %1248 = vmatprep.mubr.f32.mxu0 0.0
    %1249 = vmatmul.mubr.f32.gmra.mrb[0].mxu0 %v707
    %v1250 = vpop.f32.mrb[0].mxu0
    %v1251 = vadd.f32 0.0, %v1250
    %v1252 = vpop.f32.mrb[0].mxu0
    %1253 = vmatprep.mubr.f32.mxu0 0.0
    %1254 = vmatmul.mubr.f32.gmra.mrb[0].mxu0 %v708
    %v1255 = vpop.f32.mrb[0].mxu0
    %v1256 = vadd.f32 0.0, %v1255
    %v1257 = vpop.f32.mrb[0].mxu0
    %1258 = vmatprep.mubr.f32.mxu0 0.0
    %1259 = vmatmul.mubr.f32.gmra.mrb[0].mxu0 %v709
    %v1260 = vpop.f32.mrb[0].mxu0
    %v1261 = vadd.f32 0.0, %v1260
    %v1262 = vpop.f32.mrb[0].mxu0
    %1263 = vmatprep.mubr.f32.mxu0 0.0
    %1264 = vmatmul.mubr.f32.gmra.mrb[0].mxu0 %v710
    %v1265 = vpop.f32.mrb[0].mxu0
    %v1266 = vadd.f32 0.0, %v1265
    %v1267 = vpop.f32.mrb[0].mxu0
    %1268 = vmatprep.mubr.f32.mxu0 0.0
    %1269 = vmatmul.mubr.f32.gmra.mrb[0].mxu0 %v711
    %v1270 = vpop.f32.mrb[0].mxu0
    %v1271 = vadd.f32 0.0, %v1270
    %v1272 = vpop.f32.mrb[0].mxu0
    %1273 = vmatprep.mubr.f32.mxu0 0.0
    %1274 = vmatmul.mubr.f32.gmra.mrb[0].mxu0 %v712
    %v1275 = vpop.f32.mrb[0].mxu0
    %v1276 = vadd.f32 0.0, %v1275
    %v1277 = vpop.f32.mrb[0].mxu0
    %1278 = vmatprep.mubr.f32.mxu0 0.0
    %1279 = vmatmul.mubr.f32.gmra.mrb[0].mxu0 %v713
    %v1280 = vpop.f32.mrb[0].mxu0
    %v1281 = vadd.f32 0.0, %v1280
    %v1282 = vpop.f32.mrb[0].mxu0
    %1283 = vdwg.mxu0
    %v1284 = vadd.f32 %v1091, %v1206
    %v1285 = vadd.f32 %v1092, %v1211
    %v1286 = vadd.f32 %v1093, %v1216
    %v1287 = vadd.f32 %v1094, %v1221
    %v1288 = vadd.f32 %v1095, %v1226
    %v1289 = vadd.f32 %v1096, %v1231
    %v1290 = vadd.f32 %v1097, %v1236
    %v1291 = vadd.f32 %v1098, %v1241
    %v1292 = vadd.f32 %v1099, %v1246
    %v1293 = vadd.f32 %v1100, %v1251
    %v1294 = vadd.f32 %v1101, %v1256
    %v1295 = vadd.f32 %v1102, %v1261
    %v1296 = vadd.f32 %v1103, %v1266
    %v1297 = vadd.f32 %v1104, %v1271
    %v1298 = vadd.f32 %v1105, %v1276
    %v1299 = vadd.f32 %v1106, %v1281
    %1300 = vst [vmem:[%s8] sm:$0xff] %v1284
    %1301 = vst [vmem:[%s8 + $0x8] sm:$0xff] %v1285
    %1302 = vst [vmem:[%s8 + $0x10] sm:$0xff] %v1286
    %1303 = vst [vmem:[%s8 + $0x18] sm:$0xff] %v1287
    %1304 = vst [vmem:[%s8 + $0x20] sm:$0xff] %v1288
    %1305 = vst [vmem:[%s8 + $0x28] sm:$0xff] %v1289
    %1306 = vst [vmem:[%s8 + $0x30] sm:$0xff] %v1290
    %1307 = vst [vmem:[%s8 + $0x38] sm:$0xff] %v1291
    %1308 = vst [vmem:[%s8 + $0x40] sm:$0xff] %v1292
    %1309 = vst [vmem:[%s8 + $0x48] sm:$0xff] %v1293
    %1310 = vst [vmem:[%s8 + $0x50] sm:$0xff] %v1294
    %1311 = vst [vmem:[%s8 + $0x58] sm:$0xff] %v1295
    %1312 = vst [vmem:[%s8 + $0x60] sm:$0xff] %v1296
    %1313 = vst [vmem:[%s8 + $0x68] sm:$0xff] %v1297
    %1314 = vst [vmem:[%s8 + $0x70] sm:$0xff] %v1298
    %1315 = vst [vmem:[%s8 + $0x78] sm:$0xff] %v1299
  $region37: #{auto_ad_forward.11} parent=0 // pred_fallthru
    _
  // Predicated region
  $region38: #{auto_ad_forward.11} parent=0 // pred_check
    _
  $region39: #{auto_ad_forward.11} parent=0 // pred_check_branch
    %1317 = sbr.rel (0) target = $region41
  $region40: #{auto_ad_forward.11} parent=0 // pred_region
    _
  $region41: #{auto_ad_forward.11} parent=0 // pred_fallthru
    _
  // Predicated region
  $region42: #{auto_ad_forward.11} parent=0 // pred_check
    _
  $region43: #{auto_ad_forward.11} parent=0 // pred_check_branch
    %1319 = sbr.rel (0) target = $region45
  $region44: #{auto_ad_forward.11} parent=0 // pred_region
    _
  $region45: #{auto_ad_forward.11} parent=0 // pred_fallthru
    _
  // Predicated region
  $region46: #{auto_ad_forward.11} parent=0 // pred_check
    _
  $region47: #{auto_ad_forward.11} parent=0 // pred_check_branch
    %1321 = sbr.rel (0) target = $region49
  $region48: #{auto_ad_forward.11} parent=0 // pred_region
    _
  $region49: #{auto_ad_forward.11} parent=0 // pred_fallthru
    _
  // Predicated region
  $region50: #{auto_ad_forward.11} parent=0 // pred_check
    _
  $region51: #{auto_ad_forward.11} parent=0 // pred_check_branch
    %1323 = sbr.rel (0) target = $region53
  $region52: #{auto_ad_forward.11} parent=0 // pred_region
    _
  $region53: #{auto_ad_forward.11} parent=0 // pred_fallthru
    _

// kernel: auto_ad_forward.12
$region0: #{auto_ad_forward.12}
  #allocation0 [shape = 'u32[]', space=smem, size = 0x4, offset = 0x4, fixed_abs, tag = 'smem constant byte address 0x4 - core index']
  #allocation1 [shape = 'u32[144,128]{1,0:T(1,128)}', space=vmem, size = 0x12000, scoped, tag = 'internal scratch']
  #allocation2 [shape = 'f32[1,1]{1,0:T(1,128)S(1)}', space=vmem, size = 0x200, scoped, tag = 'scoped memory for auto_ad_forward.12']
  %s0 = inlined_call_operand.vmem [shape: f32[128,128], index: 0, kind: input, shape index: {}]
  %s1 = inlined_call_operand.vmem [shape: f32[128,128], index: 1, kind: input, shape index: {}]
  %s2 = inlined_call_operand.vmem [shape: f32[1,128], index: 2, kind: input, shape index: {}]
  %s3 = inlined_call_operand.vmem [shape: f32[384,128], index: 3, kind: input, shape index: {}]
  %s4 = inlined_call_operand.vmem [shape: f32[1,128], index: 4, kind: input, shape index: {}]
  %s5 = inlined_call_operand.vmem [shape: f32[1,128], index: 5, kind: input, shape index: {}]
  %s6 = inlined_call_operand.<no memory space> [shape: f32[1,1], index: 6, kind: input, shape index: {}]
  %s7 = inlined_call_operand.vmem [shape: f32[128,1], index: 7, kind: input, shape index: {}]
  %s8 = inlined_call_operand.vmem [shape: f32[128,1], index: 8, kind: output, shape index: {}]
  %s9 = sld [smem:[#allocation0]]
  $region42: #{auto_ad_forward.12} parent=0
    _
  %s11 = ssub.s32 1, %s9
  %s12 = scalar_select 0, %s11, %s9
  %v13 = vstv %s6
  %14 = vst [vmem:[#allocation2] sm:$0x1] %v13
  // Predicated region
  $region2: #{auto_ad_forward.12} parent=0 // pred_check
    _
  $region3: #{auto_ad_forward.12} parent=0 // pred_check_branch
    %16 = sbr.rel (0) target = $region5
  $region4: #{auto_ad_forward.12} parent=0 // pred_region
    _
  $region5: #{auto_ad_forward.12} parent=0 // pred_fallthru
    _
  // Predicated region
  $region6: #{auto_ad_forward.12} parent=0 // pred_check
    _
  $region7: #{auto_ad_forward.12} parent=0 // pred_check_branch
    %18 = sbr.rel (0) target = $region9
  $region8: #{auto_ad_forward.12} parent=0 // pred_region
    _
  $region9: #{auto_ad_forward.12} parent=0 // pred_fallthru
    _
  // Predicated region
  $region10: #{auto_ad_forward.12} parent=0 // pred_check
    _
  $region11: #{auto_ad_forward.12} parent=0 // pred_check_branch
    %20 = sbr.rel (0) target = $region13
  $region12: #{auto_ad_forward.12} parent=0 // pred_region
    _
  $region13: #{auto_ad_forward.12} parent=0 // pred_fallthru
    _
  // Predicated region
  $region14: #{auto_ad_forward.12} parent=0 // pred_check
    _
  $region15: #{auto_ad_forward.12} parent=0 // pred_check_branch
    %22 = sbr.rel (0) target = $region17
  $region16: #{auto_ad_forward.12} parent=0 // pred_region
    _
  $region17: #{auto_ad_forward.12} parent=0 // pred_fallthru
    _
  // Predicated region
  $region18: #{auto_ad_forward.12} parent=0 // pred_check
    _
  $region19: #{auto_ad_forward.12} parent=0 // pred_check_branch
    %24 = sbr.rel (0) target = $region21
  $region20: #{auto_ad_forward.12} parent=0 // pred_region
    _
  $region21: #{auto_ad_forward.12} parent=0 // pred_fallthru
    _
  // Predicated region
  $region22: #{auto_ad_forward.12} parent=0 // pred_check
    _
  $region23: #{auto_ad_forward.12} parent=0 // pred_check_branch
    %26 = sbr.rel (0) target = $region25
  $region24: #{auto_ad_forward.12} parent=0 // pred_region
    _
  $region25: #{auto_ad_forward.12} parent=0 // pred_fallthru
    _
  // Predicated region
  $region26: #{auto_ad_forward.12} parent=0 // pred_check
    _
  $region27: #{auto_ad_forward.12} parent=0 // pred_check_branch
    %28 = sbr.rel (0) target = $region29
  $region28: #{auto_ad_forward.12} parent=0 // pred_region
    _
  $region29: #{auto_ad_forward.12} parent=0 // pred_fallthru
    _
  // Predicated region
  $region30: #{auto_ad_forward.12} parent=0 // pred_check
    _
  $region31: #{auto_ad_forward.12} parent=0 // pred_check_branch
    %30 = sbr.rel (0) target = $region33
  $region32: #{auto_ad_forward.12} parent=0 // pred_region
    _
  $region33: #{auto_ad_forward.12} parent=0 // pred_fallthru
    _
  %v31 = vld [vmem:[%s0] sm:$0xff]
  %v32 = vld [vmem:[%s0 + $0x8] sm:$0xff]
  %v33 = vld [vmem:[%s0 + $0x10] sm:$0xff]
  %v34 = vld [vmem:[%s0 + $0x18] sm:$0xff]
  %v35 = vld [vmem:[%s0 + $0x20] sm:$0xff]
  %v36 = vld [vmem:[%s0 + $0x28] sm:$0xff]
  %v37 = vld [vmem:[%s0 + $0x30] sm:$0xff]
  %v38 = vld [vmem:[%s0 + $0x38] sm:$0xff]
  %v39 = vld [vmem:[%s0 + $0x40] sm:$0xff]
  %v40 = vld [vmem:[%s0 + $0x48] sm:$0xff]
  %v41 = vld [vmem:[%s0 + $0x50] sm:$0xff]
  %v42 = vld [vmem:[%s0 + $0x58] sm:$0xff]
  %v43 = vld [vmem:[%s0 + $0x60] sm:$0xff]
  %v44 = vld [vmem:[%s0 + $0x68] sm:$0xff]
  %v45 = vld [vmem:[%s0 + $0x70] sm:$0xff]
  %v46 = vld [vmem:[%s0 + $0x78] sm:$0xff]
  %v47 = vld [vmem:[%s1] sm:$0xff]
  %v48 = vld [vmem:[%s1 + $0x8] sm:$0xff]
  %v49 = vld [vmem:[%s1 + $0x10] sm:$0xff]
  %v50 = vld [vmem:[%s1 + $0x18] sm:$0xff]
  %v51 = vld [vmem:[%s1 + $0x20] sm:$0xff]
  %v52 = vld [vmem:[%s1 + $0x28] sm:$0xff]
  %v53 = vld [vmem:[%s1 + $0x30] sm:$0xff]
  %v54 = vld [vmem:[%s1 + $0x38] sm:$0xff]
  %v55 = vld [vmem:[%s1 + $0x40] sm:$0xff]
  %v56 = vld [vmem:[%s1 + $0x48] sm:$0xff]
  %v57 = vld [vmem:[%s1 + $0x50] sm:$0xff]
  %v58 = vld [vmem:[%s1 + $0x58] sm:$0xff]
  %v59 = vld [vmem:[%s1 + $0x60] sm:$0xff]
  %v60 = vld [vmem:[%s1 + $0x68] sm:$0xff]
  %v61 = vld [vmem:[%s1 + $0x70] sm:$0xff]
  %v62 = vld [vmem:[%s1 + $0x78] sm:$0xff]
  %v63 = vld [vmem:[%s2] sm:$0x1]
  %v64 = vsub.f32 %v31, %v47
  %v65 = vsub.f32 %v32, %v48
  %v66 = vsub.f32 %v33, %v49
  %v67 = vsub.f32 %v34, %v50
  %v68 = vsub.f32 %v35, %v51
  %v69 = vsub.f32 %v36, %v52
  %v70 = vsub.f32 %v37, %v53
  %v71 = vsub.f32 %v38, %v54
  %v72 = vsub.f32 %v39, %v55
  %v73 = vsub.f32 %v40, %v56
  %v74 = vsub.f32 %v41, %v57
  %v75 = vsub.f32 %v42, %v58
  %v76 = vsub.f32 %v43, %v59
  %v77 = vsub.f32 %v44, %v60
  %v78 = vsub.f32 %v45, %v61
  %v79 = vsub.f32 %v46, %v62
  %v80 = vld [vmem:[%s3] sm:$0xff]
  %v81 = vld [vmem:[%s3 + $0x8] sm:$0xff]
  %v82 = vld [vmem:[%s3 + $0x10] sm:$0xff]
  %v83 = vld [vmem:[%s3 + $0x18] sm:$0xff]
  %v84 = vld [vmem:[%s3 + $0x20] sm:$0xff]
  %v85 = vld [vmem:[%s3 + $0x28] sm:$0xff]
  %v86 = vld [vmem:[%s3 + $0x30] sm:$0xff]
  %v87 = vld [vmem:[%s3 + $0x38] sm:$0xff]
  %v88 = vld [vmem:[%s3 + $0x40] sm:$0xff]
  %v89 = vld [vmem:[%s3 + $0x48] sm:$0xff]
  %v90 = vld [vmem:[%s3 + $0x50] sm:$0xff]
  %v91 = vld [vmem:[%s3 + $0x58] sm:$0xff]
  %v92 = vld [vmem:[%s3 + $0x60] sm:$0xff]
  %v93 = vld [vmem:[%s3 + $0x68] sm:$0xff]
  %v94 = vld [vmem:[%s3 + $0x70] sm:$0xff]
  %v95 = vld [vmem:[%s3 + $0x78] sm:$0xff]
  %v97 = vlaneseq
  %v98 = vshrl.u32 %v97, 7
  %v99 = vsub.s32 0, %v98
  %v100 = vrot.slane %v63, %v99
  %v102 = vsub.f32 %v31, %v100
  %v103 = vsub.f32 %v32, %v100
  %v104 = vsub.f32 %v33, %v100
  %v105 = vsub.f32 %v34, %v100
  %v106 = vsub.f32 %v35, %v100
  %v107 = vsub.f32 %v36, %v100
  %v108 = vsub.f32 %v37, %v100
  %v109 = vsub.f32 %v38, %v100
  %v110 = vsub.f32 %v39, %v100
  %v111 = vsub.f32 %v40, %v100
  %v112 = vsub.f32 %v41, %v100
  %v113 = vsub.f32 %v42, %v100
  %v114 = vsub.f32 %v43, %v100
  %v115 = vsub.f32 %v44, %v100
  %v116 = vsub.f32 %v45, %v100
  %v117 = vsub.f32 %v46, %v100
  %v118 = vld [vmem:[%s3 + $0x80] sm:$0xff]
  %v119 = vld [vmem:[%s3 + $0x88] sm:$0xff]
  %v120 = vld [vmem:[%s3 + $0x90] sm:$0xff]
  %v121 = vld [vmem:[%s3 + $0x98] sm:$0xff]
  %v122 = vld [vmem:[%s3 + $0xa0] sm:$0xff]
  %v123 = vld [vmem:[%s3 + $0xa8] sm:$0xff]
  %v124 = vld [vmem:[%s3 + $0xb0] sm:$0xff]
  %v125 = vld [vmem:[%s3 + $0xb8] sm:$0xff]
  %v126 = vld [vmem:[%s3 + $0xc0] sm:$0xff]
  %v127 = vld [vmem:[%s3 + $0xc8] sm:$0xff]
  %v128 = vld [vmem:[%s3 + $0xd0] sm:$0xff]
  %v129 = vld [vmem:[%s3 + $0xd8] sm:$0xff]
  %v130 = vld [vmem:[%s3 + $0xe0] sm:$0xff]
  %v131 = vld [vmem:[%s3 + $0xe8] sm:$0xff]
  %v132 = vld [vmem:[%s3 + $0xf0] sm:$0xff]
  %v133 = vld [vmem:[%s3 + $0xf8] sm:$0xff]
  %134 = vmatprep.subr.mxu0 0.0
  %135 = vmatpush1.msra.mxu0 %v118
  %136 = vmatprep.subr.mxu0 0.0
  %137 = vmatpush1.msra.mxu0 %v119
  %138 = vmatprep.subr.mxu0 0.0
  %139 = vmatpush1.msra.mxu0 %v120
  %140 = vmatprep.subr.mxu0 0.0
  %141 = vmatpush1.msra.mxu0 %v121
  %142 = vmatprep.subr.mxu0 0.0
  %143 = vmatpush1.msra.mxu0 %v122
  %144 = vmatprep.subr.mxu0 0.0
  %145 = vmatpush1.msra.mxu0 %v123
  %146 = vmatprep.subr.mxu0 0.0
  %147 = vmatpush1.msra.mxu0 %v124
  %148 = vmatprep.subr.mxu0 0.0
  %149 = vmatpush1.msra.mxu0 %v125
  %150 = vmatprep.subr.mxu0 0.0
  %151 = vmatpush1.msra.mxu0 %v126
  %152 = vmatprep.subr.mxu0 0.0
  %153 = vmatpush1.msra.mxu0 %v127
  %154 = vmatprep.subr.mxu0 0.0
  %155 = vmatpush1.msra.mxu0 %v128
  %156 = vmatprep.subr.mxu0 0.0
  %157 = vmatpush1.msra.mxu0 %v129
  %158 = vmatprep.subr.mxu0 0.0
  %159 = vmatpush1.msra.mxu0 %v130
  %160 = vmatprep.subr.mxu0 0.0
  %161 = vmatpush1.msra.mxu0 %v131
  %162 = vmatprep.subr.mxu0 0.0
  %163 = vmatpush1.msra.mxu0 %v132
  %164 = vmatprep.subr.mxu0 0.0
  %165 = vmatpush1.msra.mxu0 %v133
  %166 = vmatprep.subr.mxu0 0.0
  %167 = vmatpush1.msra.mxu0 0.0
  %168 = vmatprep.subr.mxu0 0.0
  %169 = vmatpush1.msra.mxu0 0.0
  %170 = vmatprep.subr.mxu0 0.0
  %171 = vmatpush1.msra.mxu0 0.0
  %172 = vmatprep.subr.mxu0 0.0
  %173 = vmatpush1.msra.mxu0 0.0
  %174 = vmatprep.subr.mxu0 0.0
  %175 = vmatpush1.msra.mxu0 0.0
  %176 = vmatprep.subr.mxu0 0.0
  %177 = vmatpush1.msra.mxu0 0.0
  %178 = vmatprep.subr.mxu0 0.0
  %179 = vmatpush1.msra.mxu0 0.0
  %180 = vmatprep.subr.mxu0 0.0
  %181 = vmatpush1.msra.mxu0 0.0
  %182 = vmatprep.subr.mxu0 0.0
  %183 = vmatpush1.msra.mxu0 0.0
  %184 = vmatprep.subr.mxu0 0.0
  %185 = vmatpush1.msra.mxu0 0.0
  %186 = vmatprep.subr.mxu0 0.0
  %187 = vmatpush1.msra.mxu0 0.0
  %188 = vmatprep.subr.mxu0 0.0
  %189 = vmatpush1.msra.mxu0 0.0
  %190 = vmatprep.subr.mxu0 0.0
  %191 = vmatpush1.msra.mxu0 0.0
  %192 = vmatprep.subr.mxu0 0.0
  %193 = vmatpush1.msra.mxu0 0.0
  %194 = vmatprep.subr.mxu0 0.0
  %195 = vmatpush1.msra.mxu0 0.0
  %196 = vmatprep.subr.mxu0 0.0
  %197 = vmatpush1.msra.mxu0 0.0
  %198 = vmatprep.mubr.f32.mxu0 0.0
  %199 = vmatmul.mubr.f32.gmra.mrb[0].mxu0 %v102
  %v200 = vpop.f32.mrb[0].mxu0
  %v201 = vadd.f32 0.0, %v200
  %v202 = vpop.f32.mrb[0].mxu0
  %203 = vmatprep.mubr.f32.mxu0 0.0
  %204 = vmatmul.mubr.f32.gmra.mrb[0].mxu0 %v103
  %v205 = vpop.f32.mrb[0].mxu0
  %v206 = vadd.f32 0.0, %v205
  %v207 = vpop.f32.mrb[0].mxu0
  %208 = vmatprep.mubr.f32.mxu0 0.0
  %209 = vmatmul.mubr.f32.gmra.mrb[0].mxu0 %v104
  %v210 = vpop.f32.mrb[0].mxu0
  %v211 = vadd.f32 0.0, %v210
  %v212 = vpop.f32.mrb[0].mxu0
  %213 = vmatprep.mubr.f32.mxu0 0.0
  %214 = vmatmul.mubr.f32.gmra.mrb[0].mxu0 %v105
  %v215 = vpop.f32.mrb[0].mxu0
  %v216 = vadd.f32 0.0, %v215
  %v217 = vpop.f32.mrb[0].mxu0
  %218 = vmatprep.mubr.f32.mxu0 0.0
  %219 = vmatmul.mubr.f32.gmra.mrb[0].mxu0 %v106
  %v220 = vpop.f32.mrb[0].mxu0
  %v221 = vadd.f32 0.0, %v220
  %v222 = vpop.f32.mrb[0].mxu0
  %223 = vmatprep.mubr.f32.mxu0 0.0
  %224 = vmatmul.mubr.f32.gmra.mrb[0].mxu0 %v107
  %v225 = vpop.f32.mrb[0].mxu0
  %v226 = vadd.f32 0.0, %v225
  %v227 = vpop.f32.mrb[0].mxu0
  %228 = vmatprep.mubr.f32.mxu0 0.0
  %229 = vmatmul.mubr.f32.gmra.mrb[0].mxu0 %v108
  %v230 = vpop.f32.mrb[0].mxu0
  %v231 = vadd.f32 0.0, %v230
  %v232 = vpop.f32.mrb[0].mxu0
  %233 = vmatprep.mubr.f32.mxu0 0.0
  %234 = vmatmul.mubr.f32.gmra.mrb[0].mxu0 %v109
  %v235 = vpop.f32.mrb[0].mxu0
  %v236 = vadd.f32 0.0, %v235
  %v237 = vpop.f32.mrb[0].mxu0
  %238 = vmatprep.mubr.f32.mxu0 0.0
  %239 = vmatmul.mubr.f32.gmra.mrb[0].mxu0 %v110
  %v240 = vpop.f32.mrb[0].mxu0
  %v241 = vadd.f32 0.0, %v240
  %v242 = vpop.f32.mrb[0].mxu0
  %243 = vmatprep.mubr.f32.mxu0 0.0
  %244 = vmatmul.mubr.f32.gmra.mrb[0].mxu0 %v111
  %v245 = vpop.f32.mrb[0].mxu0
  %v246 = vadd.f32 0.0, %v245
  %v247 = vpop.f32.mrb[0].mxu0
  %248 = vmatprep.mubr.f32.mxu0 0.0
  %249 = vmatmul.mubr.f32.gmra.mrb[0].mxu0 %v112
  %v250 = vpop.f32.mrb[0].mxu0
  %v251 = vadd.f32 0.0, %v250
  %v252 = vpop.f32.mrb[0].mxu0
  %253 = vmatprep.mubr.f32.mxu0 0.0
  %254 = vmatmul.mubr.f32.gmra.mrb[0].mxu0 %v113
  %v255 = vpop.f32.mrb[0].mxu0
  %v256 = vadd.f32 0.0, %v255
  %v257 = vpop.f32.mrb[0].mxu0
  %258 = vmatprep.mubr.f32.mxu0 0.0
  %259 = vmatmul.mubr.f32.gmra.mrb[0].mxu0 %v114
  %v260 = vpop.f32.mrb[0].mxu0
  %v261 = vadd.f32 0.0, %v260
  %v262 = vpop.f32.mrb[0].mxu0
  %263 = vmatprep.mubr.f32.mxu0 0.0
  %264 = vmatmul.mubr.f32.gmra.mrb[0].mxu0 %v115
  %v265 = vpop.f32.mrb[0].mxu0
  %v266 = vadd.f32 0.0, %v265
  %v267 = vpop.f32.mrb[0].mxu0
  %268 = vmatprep.mubr.f32.mxu0 0.0
  %269 = vmatmul.mubr.f32.gmra.mrb[0].mxu0 %v116
  %v270 = vpop.f32.mrb[0].mxu0
  %v271 = vadd.f32 0.0, %v270
  %v272 = vpop.f32.mrb[0].mxu0
  %273 = vmatprep.mubr.f32.mxu0 0.0
  %274 = vmatmul.mubr.f32.gmra.mrb[0].mxu0 %v117
  %v275 = vpop.f32.mrb[0].mxu0
  %v276 = vadd.f32 0.0, %v275
  %v277 = vpop.f32.mrb[0].mxu0
  %278 = vdwg.mxu0
  %279 = vmatprep.subr.mxu0 0.0
  %280 = vmatpush1.msra.mxu0 %v80
  %281 = vmatprep.subr.mxu0 0.0
  %282 = vmatpush1.msra.mxu0 %v81
  %283 = vmatprep.subr.mxu0 0.0
  %284 = vmatpush1.msra.mxu0 %v82
  %285 = vmatprep.subr.mxu0 0.0
  %286 = vmatpush1.msra.mxu0 %v83
  %287 = vmatprep.subr.mxu0 0.0
  %288 = vmatpush1.msra.mxu0 %v84
  %289 = vmatprep.subr.mxu0 0.0
  %290 = vmatpush1.msra.mxu0 %v85
  %291 = vmatprep.subr.mxu0 0.0
  %292 = vmatpush1.msra.mxu0 %v86
  %293 = vmatprep.subr.mxu0 0.0
  %294 = vmatpush1.msra.mxu0 %v87
  %295 = vmatprep.subr.mxu0 0.0
  %296 = vmatpush1.msra.mxu0 %v88
  %297 = vmatprep.subr.mxu0 0.0
  %298 = vmatpush1.msra.mxu0 %v89
  %299 = vmatprep.subr.mxu0 0.0
  %300 = vmatpush1.msra.mxu0 %v90
  %301 = vmatprep.subr.mxu0 0.0
  %302 = vmatpush1.msra.mxu0 %v91
  %303 = vmatprep.subr.mxu0 0.0
  %304 = vmatpush1.msra.mxu0 %v92
  %305 = vmatprep.subr.mxu0 0.0
  %306 = vmatpush1.msra.mxu0 %v93
  %307 = vmatprep.subr.mxu0 0.0
  %308 = vmatpush1.msra.mxu0 %v94
  %309 = vmatprep.subr.mxu0 0.0
  %310 = vmatpush1.msra.mxu0 %v95
  %311 = vmatprep.subr.mxu0 0.0
  %312 = vmatpush1.msra.mxu0 0.0
  %313 = vmatprep.subr.mxu0 0.0
  %314 = vmatpush1.msra.mxu0 0.0
  %315 = vmatprep.subr.mxu0 0.0
  %316 = vmatpush1.msra.mxu0 0.0
  %317 = vmatprep.subr.mxu0 0.0
  %318 = vmatpush1.msra.mxu0 0.0
  %319 = vmatprep.subr.mxu0 0.0
  %320 = vmatpush1.msra.mxu0 0.0
  %321 = vmatprep.subr.mxu0 0.0
  %322 = vmatpush1.msra.mxu0 0.0
  %323 = vmatprep.subr.mxu0 0.0
  %324 = vmatpush1.msra.mxu0 0.0
  %325 = vmatprep.subr.mxu0 0.0
  %326 = vmatpush1.msra.mxu0 0.0
  %327 = vmatprep.subr.mxu0 0.0
  %328 = vmatpush1.msra.mxu0 0.0
  %329 = vmatprep.subr.mxu0 0.0
  %330 = vmatpush1.msra.mxu0 0.0
  %331 = vmatprep.subr.mxu0 0.0
  %332 = vmatpush1.msra.mxu0 0.0
  %333 = vmatprep.subr.mxu0 0.0
  %334 = vmatpush1.msra.mxu0 0.0
  %335 = vmatprep.subr.mxu0 0.0
  %336 = vmatpush1.msra.mxu0 0.0
  %337 = vmatprep.subr.mxu0 0.0
  %338 = vmatpush1.msra.mxu0 0.0
  %339 = vmatprep.subr.mxu0 0.0
  %340 = vmatpush1.msra.mxu0 0.0
  %341 = vmatprep.subr.mxu0 0.0
  %342 = vmatpush1.msra.mxu0 0.0
  %343 = vmatprep.mubr.f32.mxu0 0.0
  %344 = vmatmul.mubr.f32.gmra.mrb[0].mxu0 %v64
  %v345 = vpop.f32.mrb[0].mxu0
  %v346 = vadd.f32 %v201, %v345
  %v347 = vpop.f32.mrb[0].mxu0
  %348 = vmatprep.mubr.f32.mxu0 0.0
  %349 = vmatmul.mubr.f32.gmra.mrb[0].mxu0 %v65
  %v350 = vpop.f32.mrb[0].mxu0
  %v351 = vadd.f32 %v206, %v350
  %v352 = vpop.f32.mrb[0].mxu0
  %353 = vmatprep.mubr.f32.mxu0 0.0
  %354 = vmatmul.mubr.f32.gmra.mrb[0].mxu0 %v66
  %v355 = vpop.f32.mrb[0].mxu0
  %v356 = vadd.f32 %v211, %v355
  %v357 = vpop.f32.mrb[0].mxu0
  %358 = vmatprep.mubr.f32.mxu0 0.0
  %359 = vmatmul.mubr.f32.gmra.mrb[0].mxu0 %v67
  %v360 = vpop.f32.mrb[0].mxu0
  %v361 = vadd.f32 %v216, %v360
  %v362 = vpop.f32.mrb[0].mxu0
  %363 = vmatprep.mubr.f32.mxu0 0.0
  %364 = vmatmul.mubr.f32.gmra.mrb[0].mxu0 %v68
  %v365 = vpop.f32.mrb[0].mxu0
  %v366 = vadd.f32 %v221, %v365
  %v367 = vpop.f32.mrb[0].mxu0
  %368 = vmatprep.mubr.f32.mxu0 0.0
  %369 = vmatmul.mubr.f32.gmra.mrb[0].mxu0 %v69
  %v370 = vpop.f32.mrb[0].mxu0
  %v371 = vadd.f32 %v226, %v370
  %v372 = vpop.f32.mrb[0].mxu0
  %373 = vmatprep.mubr.f32.mxu0 0.0
  %374 = vmatmul.mubr.f32.gmra.mrb[0].mxu0 %v70
  %v375 = vpop.f32.mrb[0].mxu0
  %v376 = vadd.f32 %v231, %v375
  %v377 = vpop.f32.mrb[0].mxu0
  %378 = vmatprep.mubr.f32.mxu0 0.0
  %379 = vmatmul.mubr.f32.gmra.mrb[0].mxu0 %v71
  %v380 = vpop.f32.mrb[0].mxu0
  %v381 = vadd.f32 %v236, %v380
  %v382 = vpop.f32.mrb[0].mxu0
  %383 = vmatprep.mubr.f32.mxu0 0.0
  %384 = vmatmul.mubr.f32.gmra.mrb[0].mxu0 %v72
  %v385 = vpop.f32.mrb[0].mxu0
  %v386 = vadd.f32 %v241, %v385
  %v387 = vpop.f32.mrb[0].mxu0
  %388 = vmatprep.mubr.f32.mxu0 0.0
  %389 = vmatmul.mubr.f32.gmra.mrb[0].mxu0 %v73
  %v390 = vpop.f32.mrb[0].mxu0
  %v391 = vadd.f32 %v246, %v390
  %v392 = vpop.f32.mrb[0].mxu0
  %393 = vmatprep.mubr.f32.mxu0 0.0
  %394 = vmatmul.mubr.f32.gmra.mrb[0].mxu0 %v74
  %v395 = vpop.f32.mrb[0].mxu0
  %v396 = vadd.f32 %v251, %v395
  %v397 = vpop.f32.mrb[0].mxu0
  %398 = vmatprep.mubr.f32.mxu0 0.0
  %399 = vmatmul.mubr.f32.gmra.mrb[0].mxu0 %v75
  %v400 = vpop.f32.mrb[0].mxu0
  %v401 = vadd.f32 %v256, %v400
  %v402 = vpop.f32.mrb[0].mxu0
  %403 = vmatprep.mubr.f32.mxu0 0.0
  %404 = vmatmul.mubr.f32.gmra.mrb[0].mxu0 %v76
  %v405 = vpop.f32.mrb[0].mxu0
  %v406 = vadd.f32 %v261, %v405
  %v407 = vpop.f32.mrb[0].mxu0
  %408 = vmatprep.mubr.f32.mxu0 0.0
  %409 = vmatmul.mubr.f32.gmra.mrb[0].mxu0 %v77
  %v410 = vpop.f32.mrb[0].mxu0
  %v411 = vadd.f32 %v266, %v410
  %v412 = vpop.f32.mrb[0].mxu0
  %413 = vmatprep.mubr.f32.mxu0 0.0
  %414 = vmatmul.mubr.f32.gmra.mrb[0].mxu0 %v78
  %v415 = vpop.f32.mrb[0].mxu0
  %v416 = vadd.f32 %v271, %v415
  %v417 = vpop.f32.mrb[0].mxu0
  %418 = vmatprep.mubr.f32.mxu0 0.0
  %419 = vmatmul.mubr.f32.gmra.mrb[0].mxu0 %v79
  %v420 = vpop.f32.mrb[0].mxu0
  %v421 = vadd.f32 %v276, %v420
  %v422 = vpop.f32.mrb[0].mxu0
  %423 = vdwg.mxu0
  %v424 = vsub.f32 %v47, %v100
  %v425 = vsub.f32 %v48, %v100
  %v426 = vsub.f32 %v49, %v100
  %v427 = vsub.f32 %v50, %v100
  %v428 = vsub.f32 %v51, %v100
  %v429 = vsub.f32 %v52, %v100
  %v430 = vsub.f32 %v53, %v100
  %v431 = vsub.f32 %v54, %v100
  %v432 = vsub.f32 %v55, %v100
  %v433 = vsub.f32 %v56, %v100
  %v434 = vsub.f32 %v57, %v100
  %v435 = vsub.f32 %v58, %v100
  %v436 = vsub.f32 %v59, %v100
  %v437 = vsub.f32 %v60, %v100
  %v438 = vsub.f32 %v61, %v100
  %v439 = vsub.f32 %v62, %v100
  %v440 = vld [vmem:[%s3 + $0x100] sm:$0xff]
  %v441 = vld [vmem:[%s3 + $0x108] sm:$0xff]
  %v442 = vld [vmem:[%s3 + $0x110] sm:$0xff]
  %v443 = vld [vmem:[%s3 + $0x118] sm:$0xff]
  %v444 = vld [vmem:[%s3 + $0x120] sm:$0xff]
  %v445 = vld [vmem:[%s3 + $0x128] sm:$0xff]
  %v446 = vld [vmem:[%s3 + $0x130] sm:$0xff]
  %v447 = vld [vmem:[%s3 + $0x138] sm:$0xff]
  %v448 = vld [vmem:[%s3 + $0x140] sm:$0xff]
  %v449 = vld [vmem:[%s3 + $0x148] sm:$0xff]
  %v450 = vld [vmem:[%s3 + $0x150] sm:$0xff]
  %v451 = vld [vmem:[%s3 + $0x158] sm:$0xff]
  %v452 = vld [vmem:[%s3 + $0x160] sm:$0xff]
  %v453 = vld [vmem:[%s3 + $0x168] sm:$0xff]
  %v454 = vld [vmem:[%s3 + $0x170] sm:$0xff]
  %v455 = vld [vmem:[%s3 + $0x178] sm:$0xff]
  %456 = vmatprep.subr.mxu0 0.0
  %457 = vmatpush1.msra.mxu0 %v440
  %458 = vmatprep.subr.mxu0 0.0
  %459 = vmatpush1.msra.mxu0 %v441
  %460 = vmatprep.subr.mxu0 0.0
  %461 = vmatpush1.msra.mxu0 %v442
  %462 = vmatprep.subr.mxu0 0.0
  %463 = vmatpush1.msra.mxu0 %v443
  %464 = vmatprep.subr.mxu0 0.0
  %465 = vmatpush1.msra.mxu0 %v444
  %466 = vmatprep.subr.mxu0 0.0
  %467 = vmatpush1.msra.mxu0 %v445
  %468 = vmatprep.subr.mxu0 0.0
  %469 = vmatpush1.msra.mxu0 %v446
  %470 = vmatprep.subr.mxu0 0.0
  %471 = vmatpush1.msra.mxu0 %v447
  %472 = vmatprep.subr.mxu0 0.0
  %473 = vmatpush1.msra.mxu0 %v448
  %474 = vmatprep.subr.mxu0 0.0
  %475 = vmatpush1.msra.mxu0 %v449
  %476 = vmatprep.subr.mxu0 0.0
  %477 = vmatpush1.msra.mxu0 %v450
  %478 = vmatprep.subr.mxu0 0.0
  %479 = vmatpush1.msra.mxu0 %v451
  %480 = vmatprep.subr.mxu0 0.0
  %481 = vmatpush1.msra.mxu0 %v452
  %482 = vmatprep.subr.mxu0 0.0
  %483 = vmatpush1.msra.mxu0 %v453
  %484 = vmatprep.subr.mxu0 0.0
  %485 = vmatpush1.msra.mxu0 %v454
  %486 = vmatprep.subr.mxu0 0.0
  %487 = vmatpush1.msra.mxu0 %v455
  %488 = vmatprep.subr.mxu0 0.0
  %489 = vmatpush1.msra.mxu0 0.0
  %490 = vmatprep.subr.mxu0 0.0
  %491 = vmatpush1.msra.mxu0 0.0
  %492 = vmatprep.subr.mxu0 0.0
  %493 = vmatpush1.msra.mxu0 0.0
  %494 = vmatprep.subr.mxu0 0.0
  %495 = vmatpush1.msra.mxu0 0.0
  %496 = vmatprep.subr.mxu0 0.0
  %497 = vmatpush1.msra.mxu0 0.0
  %498 = vmatprep.subr.mxu0 0.0
  %499 = vmatpush1.msra.mxu0 0.0
  %500 = vmatprep.subr.mxu0 0.0
  %501 = vmatpush1.msra.mxu0 0.0
  %502 = vmatprep.subr.mxu0 0.0
  %503 = vmatpush1.msra.mxu0 0.0
  %504 = vmatprep.subr.mxu0 0.0
  %505 = vmatpush1.msra.mxu0 0.0
  %506 = vmatprep.subr.mxu0 0.0
  %507 = vmatpush1.msra.mxu0 0.0
  %508 = vmatprep.subr.mxu0 0.0
  %509 = vmatpush1.msra.mxu0 0.0
  %510 = vmatprep.subr.mxu0 0.0
  %511 = vmatpush1.msra.mxu0 0.0
  %512 = vmatprep.subr.mxu0 0.0
  %513 = vmatpush1.msra.mxu0 0.0
  %514 = vmatprep.subr.mxu0 0.0
  %515 = vmatpush1.msra.mxu0 0.0
  %516 = vmatprep.subr.mxu0 0.0
  %517 = vmatpush1.msra.mxu0 0.0
  %518 = vmatprep.subr.mxu0 0.0
  %519 = vmatpush1.msra.mxu0 0.0
  %520 = vmatprep.mubr.f32.mxu0 0.0
  %521 = vmatmul.mubr.f32.gmra.mrb[0].mxu0 %v424
  %v522 = vpop.f32.mrb[0].mxu0
  %v523 = vadd.f32 0.0, %v522
  %v524 = vpop.f32.mrb[0].mxu0
  %525 = vmatprep.mubr.f32.mxu0 0.0
  %526 = vmatmul.mubr.f32.gmra.mrb[0].mxu0 %v425
  %v527 = vpop.f32.mrb[0].mxu0
  %v528 = vadd.f32 0.0, %v527
  %v529 = vpop.f32.mrb[0].mxu0
  %530 = vmatprep.mubr.f32.mxu0 0.0
  %531 = vmatmul.mubr.f32.gmra.mrb[0].mxu0 %v426
  %v532 = vpop.f32.mrb[0].mxu0
  %v533 = vadd.f32 0.0, %v532
  %v534 = vpop.f32.mrb[0].mxu0
  %535 = vmatprep.mubr.f32.mxu0 0.0
  %536 = vmatmul.mubr.f32.gmra.mrb[0].mxu0 %v427
  %v537 = vpop.f32.mrb[0].mxu0
  %v538 = vadd.f32 0.0, %v537
  %v539 = vpop.f32.mrb[0].mxu0
  %540 = vmatprep.mubr.f32.mxu0 0.0
  %541 = vmatmul.mubr.f32.gmra.mrb[0].mxu0 %v428
  %v542 = vpop.f32.mrb[0].mxu0
  %v543 = vadd.f32 0.0, %v542
  %v544 = vpop.f32.mrb[0].mxu0
  %545 = vmatprep.mubr.f32.mxu0 0.0
  %546 = vmatmul.mubr.f32.gmra.mrb[0].mxu0 %v429
  %v547 = vpop.f32.mrb[0].mxu0
  %v548 = vadd.f32 0.0, %v547
  %v549 = vpop.f32.mrb[0].mxu0
  %550 = vmatprep.mubr.f32.mxu0 0.0
  %551 = vmatmul.mubr.f32.gmra.mrb[0].mxu0 %v430
  %v552 = vpop.f32.mrb[0].mxu0
  %v553 = vadd.f32 0.0, %v552
  %v554 = vpop.f32.mrb[0].mxu0
  %555 = vmatprep.mubr.f32.mxu0 0.0
  %556 = vmatmul.mubr.f32.gmra.mrb[0].mxu0 %v431
  %v557 = vpop.f32.mrb[0].mxu0
  %v558 = vadd.f32 0.0, %v557
  %v559 = vpop.f32.mrb[0].mxu0
  %560 = vmatprep.mubr.f32.mxu0 0.0
  %561 = vmatmul.mubr.f32.gmra.mrb[0].mxu0 %v432
  %v562 = vpop.f32.mrb[0].mxu0
  %v563 = vadd.f32 0.0, %v562
  %v564 = vpop.f32.mrb[0].mxu0
  %565 = vmatprep.mubr.f32.mxu0 0.0
  %566 = vmatmul.mubr.f32.gmra.mrb[0].mxu0 %v433
  %v567 = vpop.f32.mrb[0].mxu0
  %v568 = vadd.f32 0.0, %v567
  %v569 = vpop.f32.mrb[0].mxu0
  %570 = vmatprep.mubr.f32.mxu0 0.0
  %571 = vmatmul.mubr.f32.gmra.mrb[0].mxu0 %v434
  %v572 = vpop.f32.mrb[0].mxu0
  %v573 = vadd.f32 0.0, %v572
  %v574 = vpop.f32.mrb[0].mxu0
  %575 = vmatprep.mubr.f32.mxu0 0.0
  %576 = vmatmul.mubr.f32.gmra.mrb[0].mxu0 %v435
  %v577 = vpop.f32.mrb[0].mxu0
  %v578 = vadd.f32 0.0, %v577
  %v579 = vpop.f32.mrb[0].mxu0
  %580 = vmatprep.mubr.f32.mxu0 0.0
  %581 = vmatmul.mubr.f32.gmra.mrb[0].mxu0 %v436
  %v582 = vpop.f32.mrb[0].mxu0
  %v583 = vadd.f32 0.0, %v582
  %v584 = vpop.f32.mrb[0].mxu0
  %585 = vmatprep.mubr.f32.mxu0 0.0
  %586 = vmatmul.mubr.f32.gmra.mrb[0].mxu0 %v437
  %v587 = vpop.f32.mrb[0].mxu0
  %v588 = vadd.f32 0.0, %v587
  %v589 = vpop.f32.mrb[0].mxu0
  %590 = vmatprep.mubr.f32.mxu0 0.0
  %591 = vmatmul.mubr.f32.gmra.mrb[0].mxu0 %v438
  %v592 = vpop.f32.mrb[0].mxu0
  %v593 = vadd.f32 0.0, %v592
  %v594 = vpop.f32.mrb[0].mxu0
  %595 = vmatprep.mubr.f32.mxu0 0.0
  %596 = vmatmul.mubr.f32.gmra.mrb[0].mxu0 %v439
  %v597 = vpop.f32.mrb[0].mxu0
  %v598 = vadd.f32 0.0, %v597
  %v599 = vpop.f32.mrb[0].mxu0
  %600 = vdwg.mxu0
  %v601 = vadd.f32 %v346, %v523
  %v602 = vadd.f32 %v351, %v528
  %v603 = vadd.f32 %v356, %v533
  %v604 = vadd.f32 %v361, %v538
  %v605 = vadd.f32 %v366, %v543
  %v606 = vadd.f32 %v371, %v548
  %v607 = vadd.f32 %v376, %v553
  %v608 = vadd.f32 %v381, %v558
  %v609 = vadd.f32 %v386, %v563
  %v610 = vadd.f32 %v391, %v568
  %v611 = vadd.f32 %v396, %v573
  %v612 = vadd.f32 %v401, %v578
  %v613 = vadd.f32 %v406, %v583
  %v614 = vadd.f32 %v411, %v588
  %v615 = vadd.f32 %v416, %v593
  %v616 = vadd.f32 %v421, %v598
  %v617 = vld [vmem:[%s4] sm:$0x1]
  %v619 = vlaneseq
  %v620 = vshrl.u32 %v619, 7
  %v621 = vsub.s32 0, %v620
  %v622 = vrot.slane %v617, %v621
  %v624 = vadd.f32 %v601, %v622
  %v625 = vadd.f32 %v602, %v622
  %v626 = vadd.f32 %v603, %v622
  %v627 = vadd.f32 %v604, %v622
  %v628 = vadd.f32 %v605, %v622
  %v629 = vadd.f32 %v606, %v622
  %v630 = vadd.f32 %v607, %v622
  %v631 = vadd.f32 %v608, %v622
  %v632 = vadd.f32 %v609, %v622
  %v633 = vadd.f32 %v610, %v622
  %v634 = vadd.f32 %v611, %v622
  %v635 = vadd.f32 %v612, %v622
  %v636 = vadd.f32 %v613, %v622
  %v637 = vadd.f32 %v614, %v622
  %v638 = vadd.f32 %v615, %v622
  %v639 = vadd.f32 %v616, %v622
  %vm640 = vcmp.ge.f32.partialorder %v624, 0.0
  %vm641 = vcmp.ge.f32.partialorder %v625, 0.0
  %vm642 = vcmp.ge.f32.partialorder %v626, 0.0
  %vm643 = vcmp.ge.f32.partialorder %v627, 0.0
  %vm644 = vcmp.ge.f32.partialorder %v628, 0.0
  %vm645 = vcmp.ge.f32.partialorder %v629, 0.0
  %vm646 = vcmp.ge.f32.partialorder %v630, 0.0
  %vm647 = vcmp.ge.f32.partialorder %v631, 0.0
  %vm648 = vcmp.ge.f32.partialorder %v632, 0.0
  %vm649 = vcmp.ge.f32.partialorder %v633, 0.0
  %vm650 = vcmp.ge.f32.partialorder %v634, 0.0
  %vm651 = vcmp.ge.f32.partialorder %v635, 0.0
  %vm652 = vcmp.ge.f32.partialorder %v636, 0.0
  %vm653 = vcmp.ge.f32.partialorder %v637, 0.0
  %vm654 = vcmp.ge.f32.partialorder %v638, 0.0
  %vm655 = vcmp.ge.f32.partialorder %v639, 0.0
  %v656 = vmul.f32 %v624, 0.01
  %v657 = vmul.f32 %v625, 0.01
  %v658 = vmul.f32 %v626, 0.01
  %v659 = vmul.f32 %v627, 0.01
  %v660 = vmul.f32 %v628, 0.01
  %v661 = vmul.f32 %v629, 0.01
  %v662 = vmul.f32 %v630, 0.01
  %v663 = vmul.f32 %v631, 0.01
  %v664 = vmul.f32 %v632, 0.01
  %v665 = vmul.f32 %v633, 0.01
  %v666 = vmul.f32 %v634, 0.01
  %v667 = vmul.f32 %v635, 0.01
  %v668 = vmul.f32 %v636, 0.01
  %v669 = vmul.f32 %v637, 0.01
  %v670 = vmul.f32 %v638, 0.01
  %v671 = vmul.f32 %v639, 0.01
  %v672 = vsel %vm640, %v624, %v656
  %v673 = vsel %vm641, %v625, %v657
  %v674 = vsel %vm642, %v626, %v658
  %v675 = vsel %vm643, %v627, %v659
  %v676 = vsel %vm644, %v628, %v660
  %v677 = vsel %vm645, %v629, %v661
  %v678 = vsel %vm646, %v630, %v662
  %v679 = vsel %vm647, %v631, %v663
  %v680 = vsel %vm648, %v632, %v664
  %v681 = vsel %vm649, %v633, %v665
  %v682 = vsel %vm650, %v634, %v666
  %v683 = vsel %vm651, %v635, %v667
  %v684 = vsel %vm652, %v636, %v668
  %v685 = vsel %vm653, %v637, %v669
  %v686 = vsel %vm654, %v638, %v670
  %v687 = vsel %vm655, %v639, %v671
  %v688 = vld [vmem:[%s5] sm:$0x1]
  %v690 = vlaneseq
  %v691 = vshrl.u32 %v690, 7
  %v692 = vsub.s32 0, %v691
  %v693 = vrot.slane %v688, %v692
  %v695 = vmul.f32 %v672, %v693
  %v696 = vmul.f32 %v673, %v693
  %v697 = vmul.f32 %v674, %v693
  %v698 = vmul.f32 %v675, %v693
  %v699 = vmul.f32 %v676, %v693
  %v700 = vmul.f32 %v677, %v693
  %v701 = vmul.f32 %v678, %v693
  %v702 = vmul.f32 %v679, %v693
  %v703 = vmul.f32 %v680, %v693
  %v704 = vmul.f32 %v681, %v693
  %v705 = vmul.f32 %v682, %v693
  %v706 = vmul.f32 %v683, %v693
  %v707 = vmul.f32 %v684, %v693
  %v708 = vmul.f32 %v685, %v693
  %v709 = vmul.f32 %v686, %v693
  %v710 = vmul.f32 %v687, %v693
  %711 = vadd.xlane.f32.xlu0 %v695
  %v712 = vpop.xlane.xlu0 %711
  %713 = vadd.xlane.f32.xlu0 %v696
  %v714 = vpop.xlane.xlu0 %713
  %715 = vadd.xlane.f32.xlu0 %v697
  %v716 = vpop.xlane.xlu0 %715
  %717 = vadd.xlane.f32.xlu0 %v698
  %v718 = vpop.xlane.xlu0 %717
  %719 = vadd.xlane.f32.xlu0 %v699
  %v720 = vpop.xlane.xlu0 %719
  %721 = vadd.xlane.f32.xlu0 %v700
  %v722 = vpop.xlane.xlu0 %721
  %723 = vadd.xlane.f32.xlu0 %v701
  %v724 = vpop.xlane.xlu0 %723
  %725 = vadd.xlane.f32.xlu0 %v702
  %v726 = vpop.xlane.xlu0 %725
  %727 = vadd.xlane.f32.xlu0 %v703
  %v728 = vpop.xlane.xlu0 %727
  %729 = vadd.xlane.f32.xlu0 %v704
  %v730 = vpop.xlane.xlu0 %729
  %731 = vadd.xlane.f32.xlu0 %v705
  %v732 = vpop.xlane.xlu0 %731
  %733 = vadd.xlane.f32.xlu0 %v706
  %v734 = vpop.xlane.xlu0 %733
  %735 = vadd.xlane.f32.xlu0 %v707
  %v736 = vpop.xlane.xlu0 %735
  %737 = vadd.xlane.f32.xlu0 %v708
  %v738 = vpop.xlane.xlu0 %737
  %739 = vadd.xlane.f32.xlu0 %v709
  %v740 = vpop.xlane.xlu0 %739
  %741 = vadd.xlane.f32.xlu0 %v710
  %v742 = vpop.xlane.xlu0 %741
  %v743 = vld [vmem:[#allocation2] sm:$0x1]
  %v745 = vlaneseq
  %v746 = vshrl.u32 %v745, 7
  %v747 = vsub.s32 0, %v746
  %v748 = vrot.slane %v743, %v747
  %v750 = vadd.f32 %v712, %v748
  %v751 = vadd.f32 %v714, %v748
  %v752 = vadd.f32 %v716, %v748
  %v753 = vadd.f32 %v718, %v748
  %v754 = vadd.f32 %v720, %v748
  %v755 = vadd.f32 %v722, %v748
  %v756 = vadd.f32 %v724, %v748
  %v757 = vadd.f32 %v726, %v748
  %v758 = vadd.f32 %v728, %v748
  %v759 = vadd.f32 %v730, %v748
  %v760 = vadd.f32 %v732, %v748
  %v761 = vadd.f32 %v734, %v748
  %v762 = vadd.f32 %v736, %v748
  %v763 = vadd.f32 %v738, %v748
  %v764 = vadd.f32 %v740, %v748
  %v765 = vadd.f32 %v742, %v748
  %v766 = vxor.u32 %v750, 2147483648
  %v767 = vxor.u32 %v751, 2147483648
  %v768 = vxor.u32 %v752, 2147483648
  %v769 = vxor.u32 %v753, 2147483648
  %v770 = vxor.u32 %v754, 2147483648
  %v771 = vxor.u32 %v755, 2147483648
  %v772 = vxor.u32 %v756, 2147483648
  %v773 = vxor.u32 %v757, 2147483648
  %v774 = vxor.u32 %v758, 2147483648
  %v775 = vxor.u32 %v759, 2147483648
  %v776 = vxor.u32 %v760, 2147483648
  %v777 = vxor.u32 %v761, 2147483648
  %v778 = vxor.u32 %v762, 2147483648
  %v779 = vxor.u32 %v763, 2147483648
  %v780 = vxor.u32 %v764, 2147483648
  %v781 = vxor.u32 %v765, 2147483648
  %v782 = vmul.f32 %v766, 1.442695
  %v783 = vpow.pop %v782
  %v784 = vmul.f32 %v767, 1.442695
  %v785 = vpow.pop %v784
  %v786 = vmul.f32 %v768, 1.442695
  %v787 = vpow.pop %v786
  %v788 = vmul.f32 %v769, 1.442695
  %v789 = vpow.pop %v788
  %v790 = vmul.f32 %v770, 1.442695
  %v791 = vpow.pop %v790
  %v792 = vmul.f32 %v771, 1.442695
  %v793 = vpow.pop %v792
  %v794 = vmul.f32 %v772, 1.442695
  %v795 = vpow.pop %v794
  %v796 = vmul.f32 %v773, 1.442695
  %v797 = vpow.pop %v796
  %v798 = vmul.f32 %v774, 1.442695
  %v799 = vpow.pop %v798
  %v800 = vmul.f32 %v775, 1.442695
  %v801 = vpow.pop %v800
  %v802 = vmul.f32 %v776, 1.442695
  %v803 = vpow.pop %v802
  %v804 = vmul.f32 %v777, 1.442695
  %v805 = vpow.pop %v804
  %v806 = vmul.f32 %v778, 1.442695
  %v807 = vpow.pop %v806
  %v808 = vmul.f32 %v779, 1.442695
  %v809 = vpow.pop %v808
  %v810 = vmul.f32 %v780, 1.442695
  %v811 = vpow.pop %v810
  %v812 = vmul.f32 %v781, 1.442695
  %v813 = vpow.pop %v812
  %v814 = vadd.f32 %v783, 1.0
  %v815 = vadd.f32 %v785, 1.0
  %v816 = vadd.f32 %v787, 1.0
  %v817 = vadd.f32 %v789, 1.0
  %v818 = vadd.f32 %v791, 1.0
  %v819 = vadd.f32 %v793, 1.0
  %v820 = vadd.f32 %v795, 1.0
  %v821 = vadd.f32 %v797, 1.0
  %v822 = vadd.f32 %v799, 1.0
  %v823 = vadd.f32 %v801, 1.0
  %v824 = vadd.f32 %v803, 1.0
  %v825 = vadd.f32 %v805, 1.0
  %v826 = vadd.f32 %v807, 1.0
  %v827 = vadd.f32 %v809, 1.0
  %v828 = vadd.f32 %v811, 1.0
  %v829 = vadd.f32 %v813, 1.0
  %v830 = vrcp.pop %v814
  %v831 = vmul.f32 1.0, %v830
  %v832 = vrcp.pop %v815
  %v833 = vmul.f32 1.0, %v832
  %v834 = vrcp.pop %v816
  %v835 = vmul.f32 1.0, %v834
  %v836 = vrcp.pop %v817
  %v837 = vmul.f32 1.0, %v836
  %v838 = vrcp.pop %v818
  %v839 = vmul.f32 1.0, %v838
  %v840 = vrcp.pop %v819
  %v841 = vmul.f32 1.0, %v840
  %v842 = vrcp.pop %v820
  %v843 = vmul.f32 1.0, %v842
  %v844 = vrcp.pop %v821
  %v845 = vmul.f32 1.0, %v844
  %v846 = vrcp.pop %v822
  %v847 = vmul.f32 1.0, %v846
  %v848 = vrcp.pop %v823
  %v849 = vmul.f32 1.0, %v848
  %v850 = vrcp.pop %v824
  %v851 = vmul.f32 1.0, %v850
  %v852 = vrcp.pop %v825
  %v853 = vmul.f32 1.0, %v852
  %v854 = vrcp.pop %v826
  %v855 = vmul.f32 1.0, %v854
  %v856 = vrcp.pop %v827
  %v857 = vmul.f32 1.0, %v856
  %v858 = vrcp.pop %v828
  %v859 = vmul.f32 1.0, %v858
  %v860 = vrcp.pop %v829
  %v861 = vmul.f32 1.0, %v860
  %v862 = vld [vmem:[%s7] sm:$0xff]
  %v863 = vld [vmem:[%s7 + $0x8] sm:$0xff]
  %v864 = vld [vmem:[%s7 + $0x10] sm:$0xff]
  %v865 = vld [vmem:[%s7 + $0x18] sm:$0xff]
  %v866 = vld [vmem:[%s7 + $0x20] sm:$0xff]
  %v867 = vld [vmem:[%s7 + $0x28] sm:$0xff]
  %v868 = vld [vmem:[%s7 + $0x30] sm:$0xff]
  %v869 = vld [vmem:[%s7 + $0x38] sm:$0xff]
  %v870 = vld [vmem:[%s7 + $0x40] sm:$0xff]
  %v871 = vld [vmem:[%s7 + $0x48] sm:$0xff]
  %v872 = vld [vmem:[%s7 + $0x50] sm:$0xff]
  %v873 = vld [vmem:[%s7 + $0x58] sm:$0xff]
  %v874 = vld [vmem:[%s7 + $0x60] sm:$0xff]
  %v875 = vld [vmem:[%s7 + $0x68] sm:$0xff]
  %v876 = vld [vmem:[%s7 + $0x70] sm:$0xff]
  %v877 = vld [vmem:[%s7 + $0x78] sm:$0xff]
  %v878 = vadd.f32 %v862, %v831
  %v879 = vadd.f32 %v863, %v833
  %v880 = vadd.f32 %v864, %v835
  %v881 = vadd.f32 %v865, %v837
  %v882 = vadd.f32 %v866, %v839
  %v883 = vadd.f32 %v867, %v841
  %v884 = vadd.f32 %v868, %v843
  %v885 = vadd.f32 %v869, %v845
  %v886 = vadd.f32 %v870, %v847
  %v887 = vadd.f32 %v871, %v849
  %v888 = vadd.f32 %v872, %v851
  %v889 = vadd.f32 %v873, %v853
  %v890 = vadd.f32 %v874, %v855
  %v891 = vadd.f32 %v875, %v857
  %v892 = vadd.f32 %v876, %v859
  %v893 = vadd.f32 %v877, %v861
  %v894 = vrcp.pop 0.1
  %v895 = vmul.f32 %v878, %v894
  %v896 = vmul.f32 %v879, %v894
  %v897 = vmul.f32 %v880, %v894
  %v898 = vmul.f32 %v881, %v894
  %v899 = vmul.f32 %v882, %v894
  %v900 = vmul.f32 %v883, %v894
  %v901 = vmul.f32 %v884, %v894
  %v902 = vmul.f32 %v885, %v894
  %v903 = vmul.f32 %v886, %v894
  %v904 = vmul.f32 %v887, %v894
  %v905 = vmul.f32 %v888, %v894
  %v906 = vmul.f32 %v889, %v894
  %v907 = vmul.f32 %v890, %v894
  %v908 = vmul.f32 %v891, %v894
  %v909 = vmul.f32 %v892, %v894
  %v910 = vmul.f32 %v893, %v894
  %v911 = vxor.u32 %v895, 2147483648
  %v912 = vxor.u32 %v896, 2147483648
  %v913 = vxor.u32 %v897, 2147483648
  %v914 = vxor.u32 %v898, 2147483648
  %v915 = vxor.u32 %v899, 2147483648
  %v916 = vxor.u32 %v900, 2147483648
  %v917 = vxor.u32 %v901, 2147483648
  %v918 = vxor.u32 %v902, 2147483648
  %v919 = vxor.u32 %v903, 2147483648
  %v920 = vxor.u32 %v904, 2147483648
  %v921 = vxor.u32 %v905, 2147483648
  %v922 = vxor.u32 %v906, 2147483648
  %v923 = vxor.u32 %v907, 2147483648
  %v924 = vxor.u32 %v908, 2147483648
  %v925 = vxor.u32 %v909, 2147483648
  %v926 = vxor.u32 %v910, 2147483648
  %v927 = vmul.f32 %v911, 1.442695
  %v928 = vpow.pop %v927
  %v929 = vmul.f32 %v912, 1.442695
  %v930 = vpow.pop %v929
  %v931 = vmul.f32 %v913, 1.442695
  %v932 = vpow.pop %v931
  %v933 = vmul.f32 %v914, 1.442695
  %v934 = vpow.pop %v933
  %v935 = vmul.f32 %v915, 1.442695
  %v936 = vpow.pop %v935
  %v937 = vmul.f32 %v916, 1.442695
  %v938 = vpow.pop %v937
  %v939 = vmul.f32 %v917, 1.442695
  %v940 = vpow.pop %v939
  %v941 = vmul.f32 %v918, 1.442695
  %v942 = vpow.pop %v941
  %v943 = vmul.f32 %v919, 1.442695
  %v944 = vpow.pop %v943
  %v945 = vmul.f32 %v920, 1.442695
  %v946 = vpow.pop %v945
  %v947 = vmul.f32 %v921, 1.442695
  %v948 = vpow.pop %v947
  %v949 = vmul.f32 %v922, 1.442695
  %v950 = vpow.pop %v949
  %v951 = vmul.f32 %v923, 1.442695
  %v952 = vpow.pop %v951
  %v953 = vmul.f32 %v924, 1.442695
  %v954 = vpow.pop %v953
  %v955 = vmul.f32 %v925, 1.442695
  %v956 = vpow.pop %v955
  %v957 = vmul.f32 %v926, 1.442695
  %v958 = vpow.pop %v957
  %v959 = vadd.f32 %v928, 1.0
  %v960 = vadd.f32 %v930, 1.0
  %v961 = vadd.f32 %v932, 1.0
  %v962 = vadd.f32 %v934, 1.0
  %v963 = vadd.f32 %v936, 1.0
  %v964 = vadd.f32 %v938, 1.0
  %v965 = vadd.f32 %v940, 1.0
  %v966 = vadd.f32 %v942, 1.0
  %v967 = vadd.f32 %v944, 1.0
  %v968 = vadd.f32 %v946, 1.0
  %v969 = vadd.f32 %v948, 1.0
  %v970 = vadd.f32 %v950, 1.0
  %v971 = vadd.f32 %v952, 1.0
  %v972 = vadd.f32 %v954, 1.0
  %v973 = vadd.f32 %v956, 1.0
  %v974 = vadd.f32 %v958, 1.0
  %v975 = vrcp.pop %v959
  %v976 = vmul.f32 1.0, %v975
  %v977 = vrcp.pop %v960
  %v978 = vmul.f32 1.0, %v977
  %v979 = vrcp.pop %v961
  %v980 = vmul.f32 1.0, %v979
  %v981 = vrcp.pop %v962
  %v982 = vmul.f32 1.0, %v981
  %v983 = vrcp.pop %v963
  %v984 = vmul.f32 1.0, %v983
  %v985 = vrcp.pop %v964
  %v986 = vmul.f32 1.0, %v985
  %v987 = vrcp.pop %v965
  %v988 = vmul.f32 1.0, %v987
  %v989 = vrcp.pop %v966
  %v990 = vmul.f32 1.0, %v989
  %v991 = vrcp.pop %v967
  %v992 = vmul.f32 1.0, %v991
  %v993 = vrcp.pop %v968
  %v994 = vmul.f32 1.0, %v993
  %v995 = vrcp.pop %v969
  %v996 = vmul.f32 1.0, %v995
  %v997 = vrcp.pop %v970
  %v998 = vmul.f32 1.0, %v997
  %v999 = vrcp.pop %v971
  %v1000 = vmul.f32 1.0, %v999
  %v1001 = vrcp.pop %v972
  %v1002 = vmul.f32 1.0, %v1001
  %v1003 = vrcp.pop %v973
  %v1004 = vmul.f32 1.0, %v1003
  %v1005 = vrcp.pop %v974
  %v1006 = vmul.f32 1.0, %v1005
  %vm1007 = vcmask 7168
  %1008 = vst.msk [vmem:[%s8] sm:$0xff] %vm1007, %v976
  %1009 = vst.msk [vmem:[%s8 + $0x8] sm:$0xff] %vm1007, %v978
  %1010 = vst.msk [vmem:[%s8 + $0x10] sm:$0xff] %vm1007, %v980
  %1011 = vst.msk [vmem:[%s8 + $0x18] sm:$0xff] %vm1007, %v982
  %1012 = vst.msk [vmem:[%s8 + $0x20] sm:$0xff] %vm1007, %v984
  %1013 = vst.msk [vmem:[%s8 + $0x28] sm:$0xff] %vm1007, %v986
  %1014 = vst.msk [vmem:[%s8 + $0x30] sm:$0xff] %vm1007, %v988
  %1015 = vst.msk [vmem:[%s8 + $0x38] sm:$0xff] %vm1007, %v990
  %1016 = vst.msk [vmem:[%s8 + $0x40] sm:$0xff] %vm1007, %v992
  %1017 = vst.msk [vmem:[%s8 + $0x48] sm:$0xff] %vm1007, %v994
  %1018 = vst.msk [vmem:[%s8 + $0x50] sm:$0xff] %vm1007, %v996
  %1019 = vst.msk [vmem:[%s8 + $0x58] sm:$0xff] %vm1007, %v998
  %1020 = vst.msk [vmem:[%s8 + $0x60] sm:$0xff] %vm1007, %v1000
  %1021 = vst.msk [vmem:[%s8 + $0x68] sm:$0xff] %vm1007, %v1002
  %1022 = vst.msk [vmem:[%s8 + $0x70] sm:$0xff] %vm1007, %v1004
  %1023 = vst.msk [vmem:[%s8 + $0x78] sm:$0xff] %vm1007, %v1006
  // Predicated region
  $region34: #{auto_ad_forward.12} parent=0 // pred_check
    _
  $region35: #{auto_ad_forward.12} parent=0 // pred_check_branch
    %1025 = sbr.rel (0) target = $region37
  $region36: #{auto_ad_forward.12} parent=0 // pred_region
    _
  $region37: #{auto_ad_forward.12} parent=0 // pred_fallthru
    _
  // Predicated region
  $region38: #{auto_ad_forward.12} parent=0 // pred_check
    _
  $region39: #{auto_ad_forward.12} parent=0 // pred_check_branch
    %1027 = sbr.rel (0) target = $region41
  $region40: #{auto_ad_forward.12} parent=0 // pred_region
    _
  $region41: #{auto_ad_forward.12} parent=0 // pred_fallthru
    _

// kernel: auto_ad_forward.15
$region0: #{auto_ad_forward.15}
  #allocation0 [shape = 'u32[]', space=smem, size = 0x4, offset = 0x4, fixed_abs, tag = 'smem constant byte address 0x4 - core index']
  #allocation1 [shape = 'u32[144,128]{1,0:T(1,128)}', space=vmem, size = 0x12000, scoped, tag = 'internal scratch']
  #allocation2 [shape = 'f32[128,128]{1,0:T(8,128)}', space=vmem, size = 0x10000, scoped, tag = 'scratch operand']
  %s0 = inlined_call_operand.vmem [shape: bf16[128,128], index: 0, kind: input, shape index: {}]
  %s1 = inlined_call_operand.vmem [shape: bf16[128,128], index: 1, kind: input, shape index: {}]
  %s2 = inlined_call_operand.vmem [shape: f32[128,1], index: 2, kind: input, shape index: {}]
  %s3 = inlined_call_operand.vmem [shape: f32[128,128], index: 3, kind: input, shape index: {}]
  %s4 = inlined_call_operand.vmem [shape: f32[128,128], index: 4, kind: input, shape index: {}]
  %s5 = inlined_call_operand.vmem [shape: f32[128,384], index: 5, kind: input, shape index: {}]
  %s6 = inlined_call_operand.vmem [shape: f32[768,128], index: 6, kind: input, shape index: {}]
  %s7 = inlined_call_operand.vmem [shape: f32[1,128], index: 7, kind: input, shape index: {}]
  %s8 = inlined_call_operand.vmem [shape: f32[128,128], index: 8, kind: input, shape index: {}]
  %s9 = inlined_call_operand.vmem [shape: f32[1,128], index: 9, kind: input, shape index: {}]
  %s10 = inlined_call_operand.vmem [shape: f32[128,128], index: 10, kind: output, shape index: {}]
  %s11 = sld [smem:[#allocation0]]
  $region58: #{auto_ad_forward.15} parent=0
    _
  %s13 = ssub.s32 1, %s11
  %s14 = scalar_select 0, %s13, %s11
  // Predicated region
  $region2: #{auto_ad_forward.15} parent=0 // pred_check
    _
  $region3: #{auto_ad_forward.15} parent=0 // pred_check_branch
    %16 = sbr.rel (0) target = $region5
  $region4: #{auto_ad_forward.15} parent=0 // pred_region
    _
  $region5: #{auto_ad_forward.15} parent=0 // pred_fallthru
    _
  // Predicated region
  $region6: #{auto_ad_forward.15} parent=0 // pred_check
    _
  $region7: #{auto_ad_forward.15} parent=0 // pred_check_branch
    %18 = sbr.rel (0) target = $region9
  $region8: #{auto_ad_forward.15} parent=0 // pred_region
    _
  $region9: #{auto_ad_forward.15} parent=0 // pred_fallthru
    _
  // Predicated region
  $region10: #{auto_ad_forward.15} parent=0 // pred_check
    _
  $region11: #{auto_ad_forward.15} parent=0 // pred_check_branch
    %20 = sbr.rel (0) target = $region13
  $region12: #{auto_ad_forward.15} parent=0 // pred_region
    _
  $region13: #{auto_ad_forward.15} parent=0 // pred_fallthru
    _
  // Predicated region
  $region14: #{auto_ad_forward.15} parent=0 // pred_check
    _
  $region15: #{auto_ad_forward.15} parent=0 // pred_check_branch
    %22 = sbr.rel (0) target = $region17
  $region16: #{auto_ad_forward.15} parent=0 // pred_region
    _
  $region17: #{auto_ad_forward.15} parent=0 // pred_fallthru
    _
  // Predicated region
  $region18: #{auto_ad_forward.15} parent=0 // pred_check
    _
  $region19: #{auto_ad_forward.15} parent=0 // pred_check_branch
    %24 = sbr.rel (0) target = $region21
  $region20: #{auto_ad_forward.15} parent=0 // pred_region
    _
  $region21: #{auto_ad_forward.15} parent=0 // pred_fallthru
    _
  // Predicated region
  $region22: #{auto_ad_forward.15} parent=0 // pred_check
    _
  $region23: #{auto_ad_forward.15} parent=0 // pred_check_branch
    %26 = sbr.rel (0) target = $region25
  $region24: #{auto_ad_forward.15} parent=0 // pred_region
    _
  $region25: #{auto_ad_forward.15} parent=0 // pred_fallthru
    _
  // Predicated region
  $region26: #{auto_ad_forward.15} parent=0 // pred_check
    _
  $region27: #{auto_ad_forward.15} parent=0 // pred_check_branch
    %28 = sbr.rel (0) target = $region29
  $region28: #{auto_ad_forward.15} parent=0 // pred_region
    _
  $region29: #{auto_ad_forward.15} parent=0 // pred_fallthru
    _
  // Predicated region
  $region30: #{auto_ad_forward.15} parent=0 // pred_check
    _
  $region31: #{auto_ad_forward.15} parent=0 // pred_check_branch
    %30 = sbr.rel (0) target = $region33
  $region32: #{auto_ad_forward.15} parent=0 // pred_region
    _
  $region33: #{auto_ad_forward.15} parent=0 // pred_fallthru
    _
  // Predicated region
  $region34: #{auto_ad_forward.15} parent=0 // pred_check
    _
  $region35: #{auto_ad_forward.15} parent=0 // pred_check_branch
    %32 = sbr.rel (0) target = $region37
  $region36: #{auto_ad_forward.15} parent=0 // pred_region
    _
  $region37: #{auto_ad_forward.15} parent=0 // pred_fallthru
    _
  // Predicated region
  $region38: #{auto_ad_forward.15} parent=0 // pred_check
    _
  $region39: #{auto_ad_forward.15} parent=0 // pred_check_branch
    %34 = sbr.rel (0) target = $region41
  $region40: #{auto_ad_forward.15} parent=0 // pred_region
    _
  $region41: #{auto_ad_forward.15} parent=0 // pred_fallthru
    _
  %p36 = scmp.eq.s32.totalorder 0, 0
  // Predicated region
  $region42: #{auto_ad_forward.15} parent=0 // pred_check
    %p37 = pneg %p36
  $region43: #{auto_ad_forward.15} parent=0 // pred_check_branch
    %39 = sbr.rel (%p37) target = $region45
  $region44: #{auto_ad_forward.15} parent=0 // pred_region
    %40 = vst [vmem:[#allocation2] sm:$0xff] 0.0
    %41 = vst [vmem:[#allocation2 + $0x8] sm:$0xff] 0.0
    %42 = vst [vmem:[#allocation2 + $0x10] sm:$0xff] 0.0
    %43 = vst [vmem:[#allocation2 + $0x18] sm:$0xff] 0.0
    %44 = vst [vmem:[#allocation2 + $0x20] sm:$0xff] 0.0
    %45 = vst [vmem:[#allocation2 + $0x28] sm:$0xff] 0.0
    %46 = vst [vmem:[#allocation2 + $0x30] sm:$0xff] 0.0
    %47 = vst [vmem:[#allocation2 + $0x38] sm:$0xff] 0.0
    %48 = vst [vmem:[#allocation2 + $0x40] sm:$0xff] 0.0
    %49 = vst [vmem:[#allocation2 + $0x48] sm:$0xff] 0.0
    %50 = vst [vmem:[#allocation2 + $0x50] sm:$0xff] 0.0
    %51 = vst [vmem:[#allocation2 + $0x58] sm:$0xff] 0.0
    %52 = vst [vmem:[#allocation2 + $0x60] sm:$0xff] 0.0
    %53 = vst [vmem:[#allocation2 + $0x68] sm:$0xff] 0.0
    %54 = vst [vmem:[#allocation2 + $0x70] sm:$0xff] 0.0
    %55 = vst [vmem:[#allocation2 + $0x78] sm:$0xff] 0.0
  $region45: #{auto_ad_forward.15} parent=0 // pred_fallthru
    _
  %s56 = smul.u32 0, 128
  %v57 = vld [vmem:[#allocation2] sm:$0xff]
  %v58 = vld [vmem:[#allocation2 + $0x8] sm:$0xff]
  %v59 = vld [vmem:[#allocation2 + $0x10] sm:$0xff]
  %v60 = vld [vmem:[#allocation2 + $0x18] sm:$0xff]
  %v61 = vld [vmem:[#allocation2 + $0x20] sm:$0xff]
  %v62 = vld [vmem:[#allocation2 + $0x28] sm:$0xff]
  %v63 = vld [vmem:[#allocation2 + $0x30] sm:$0xff]
  %v64 = vld [vmem:[#allocation2 + $0x38] sm:$0xff]
  %v65 = vld [vmem:[#allocation2 + $0x40] sm:$0xff]
  %v66 = vld [vmem:[#allocation2 + $0x48] sm:$0xff]
  %v67 = vld [vmem:[#allocation2 + $0x50] sm:$0xff]
  %v68 = vld [vmem:[#allocation2 + $0x58] sm:$0xff]
  %v69 = vld [vmem:[#allocation2 + $0x60] sm:$0xff]
  %v70 = vld [vmem:[#allocation2 + $0x68] sm:$0xff]
  %v71 = vld [vmem:[#allocation2 + $0x70] sm:$0xff]
  %v72 = vld [vmem:[#allocation2 + $0x78] sm:$0xff]
  %v73 = vld [vmem:[%s0] sm:$0xf]
  %v74 = vld [vmem:[%s0 + $0x4] sm:$0xf]
  %v75 = vld [vmem:[%s0 + $0x8] sm:$0xf]
  %v76 = vld [vmem:[%s0 + $0xc] sm:$0xf]
  %v77 = vld [vmem:[%s0 + $0x10] sm:$0xf]
  %v78 = vld [vmem:[%s0 + $0x14] sm:$0xf]
  %v79 = vld [vmem:[%s0 + $0x18] sm:$0xf]
  %v80 = vld [vmem:[%s0 + $0x1c] sm:$0xf]
  %v81 = vld [vmem:[%s0 + $0x20] sm:$0xf]
  %v82 = vld [vmem:[%s0 + $0x24] sm:$0xf]
  %v83 = vld [vmem:[%s0 + $0x28] sm:$0xf]
  %v84 = vld [vmem:[%s0 + $0x2c] sm:$0xf]
  %v85 = vld [vmem:[%s0 + $0x30] sm:$0xf]
  %v86 = vld [vmem:[%s0 + $0x34] sm:$0xf]
  %v87 = vld [vmem:[%s0 + $0x38] sm:$0xf]
  %v88 = vld [vmem:[%s0 + $0x3c] sm:$0xf]
  %s89 = sshra.s32 %s56, 3
  %s90 = sand.u32 %s56, 7
  %s91 = smul.addr %s89, 4
  %s92 = scalar_lea.vmem %s1, %s91
  %v93 = vld [vmem:[%s92] sm:$0xf]
  %v94 = vld [vmem:[%s92 + $0x4] sm:$0xf]
  %v95 = vld [vmem:[%s92 + $0x8] sm:$0xf]
  %v96 = vld [vmem:[%s92 + $0xc] sm:$0xf]
  %v97 = vld [vmem:[%s92 + $0x10] sm:$0xf]
  %v98 = vld [vmem:[%s92 + $0x14] sm:$0xf]
  %v99 = vld [vmem:[%s92 + $0x18] sm:$0xf]
  %v100 = vld [vmem:[%s92 + $0x1c] sm:$0xf]
  %v101 = vld [vmem:[%s92 + $0x20] sm:$0xf]
  %v102 = vld [vmem:[%s92 + $0x24] sm:$0xf]
  %v103 = vld [vmem:[%s92 + $0x28] sm:$0xf]
  %v104 = vld [vmem:[%s92 + $0x2c] sm:$0xf]
  %v105 = vld [vmem:[%s92 + $0x30] sm:$0xf]
  %v106 = vld [vmem:[%s92 + $0x34] sm:$0xf]
  %v107 = vld [vmem:[%s92 + $0x38] sm:$0xf]
  %v108 = vld [vmem:[%s92 + $0x3c] sm:$0xf]
  %v125 = vunpack.c.l.b16 %v73
  %v126 = vunpack.c.l.b16 %v74
  %v127 = vunpack.c.l.b16 %v75
  %v128 = vunpack.c.l.b16 %v76
  %v129 = vunpack.c.l.b16 %v77
  %v130 = vunpack.c.l.b16 %v78
  %v131 = vunpack.c.l.b16 %v79
  %v132 = vunpack.c.l.b16 %v80
  %v133 = vunpack.c.l.b16 %v81
  %v134 = vunpack.c.l.b16 %v82
  %v135 = vunpack.c.l.b16 %v83
  %v136 = vunpack.c.l.b16 %v84
  %v137 = vunpack.c.l.b16 %v85
  %v138 = vunpack.c.l.b16 %v86
  %v139 = vunpack.c.l.b16 %v87
  %v140 = vunpack.c.l.b16 %v88
  %v141 = vpack.c.b16 %v126, %v125
  %v142 = vpack.c.b16 %v128, %v127
  %v143 = vpack.c.b16 %v130, %v129
  %v144 = vpack.c.b16 %v132, %v131
  %v145 = vpack.c.b16 %v134, %v133
  %v146 = vpack.c.b16 %v136, %v135
  %v147 = vpack.c.b16 %v138, %v137
  %v148 = vpack.c.b16 %v140, %v139
  %v173 = vunpack.c.l.b16 %v93
  %v174 = vunpack.c.l.b16 %v94
  %v175 = vunpack.c.l.b16 %v95
  %v176 = vunpack.c.l.b16 %v96
  %v177 = vunpack.c.l.b16 %v97
  %v178 = vunpack.c.l.b16 %v98
  %v179 = vunpack.c.l.b16 %v99
  %v180 = vunpack.c.l.b16 %v100
  %v181 = vunpack.c.l.b16 %v101
  %v182 = vunpack.c.l.b16 %v102
  %v183 = vunpack.c.l.b16 %v103
  %v184 = vunpack.c.l.b16 %v104
  %v185 = vunpack.c.l.b16 %v105
  %v186 = vunpack.c.l.b16 %v106
  %v187 = vunpack.c.l.b16 %v107
  %v188 = vunpack.c.l.b16 %v108
  %v189 = vpack.c.b16 %v174, %v173
  %v190 = vpack.c.b16 %v176, %v175
  %v191 = vpack.c.b16 %v178, %v177
  %v192 = vpack.c.b16 %v180, %v179
  %v193 = vpack.c.b16 %v182, %v181
  %v194 = vpack.c.b16 %v184, %v183
  %v195 = vpack.c.b16 %v186, %v185
  %v196 = vpack.c.b16 %v188, %v187
  %205 = vmatprep.subr.bf16.mxu0 0
  %206 = vmatpush1.bf16.msra.mxu0 %v189
  %207 = vmatprep.subr.bf16.mxu0 0
  %208 = vmatpush1.bf16.msra.mxu0 %v190
  %209 = vmatprep.subr.bf16.mxu0 0
  %210 = vmatpush1.bf16.msra.mxu0 %v191
  %211 = vmatprep.subr.bf16.mxu0 0
  %212 = vmatpush1.bf16.msra.mxu0 %v192
  %213 = vmatprep.subr.bf16.mxu0 0
  %214 = vmatpush1.bf16.msra.mxu0 %v193
  %215 = vmatprep.subr.bf16.mxu0 0
  %216 = vmatpush1.bf16.msra.mxu0 %v194
  %217 = vmatprep.subr.bf16.mxu0 0
  %218 = vmatpush1.bf16.msra.mxu0 %v195
  %219 = vmatprep.subr.bf16.mxu0 0
  %220 = vmatpush1.bf16.msra.mxu0 %v196
  %221 = vmatprep.subr.bf16.mxu0 0
  %222 = vmatpush1.bf16.msra.mxu0 0
  %223 = vmatprep.subr.bf16.mxu0 0
  %224 = vmatpush1.bf16.msra.mxu0 0
  %225 = vmatprep.subr.bf16.mxu0 0
  %226 = vmatpush1.bf16.msra.mxu0 0
  %227 = vmatprep.subr.bf16.mxu0 0
  %228 = vmatpush1.bf16.msra.mxu0 0
  %229 = vmatprep.subr.bf16.mxu0 0
  %230 = vmatpush1.bf16.msra.mxu0 0
  %231 = vmatprep.subr.bf16.mxu0 0
  %232 = vmatpush1.bf16.msra.mxu0 0
  %233 = vmatprep.subr.bf16.mxu0 0
  %234 = vmatpush1.bf16.msra.mxu0 0
  %235 = vmatprep.subr.bf16.mxu0 0
  %236 = vmatpush1.bf16.msra.mxu0 0
  %237 = vmatprep.mubr.bf16.mxu0 0
  %238 = vmatmul.mubr.bf16.gmra.mrb[0].mxu0 %v141
  %v239 = vpop.f32.mrb[0].mxu0
  %v240 = vadd.f32 0.0, %v239
  %v241 = vpop.f32.mrb[0].mxu0
  %v242 = vpop.f32.mrb[0].mxu0
  %v243 = vadd.f32 0.0, %v242
  %v244 = vpop.f32.mrb[0].mxu0
  %245 = vmatprep.mubr.bf16.mxu0 0
  %246 = vmatmul.mubr.bf16.gmra.mrb[0].mxu0 %v142
  %v247 = vpop.f32.mrb[0].mxu0
  %v248 = vadd.f32 0.0, %v247
  %v249 = vpop.f32.mrb[0].mxu0
  %v250 = vpop.f32.mrb[0].mxu0
  %v251 = vadd.f32 0.0, %v250
  %v252 = vpop.f32.mrb[0].mxu0
  %253 = vmatprep.mubr.bf16.mxu0 0
  %254 = vmatmul.mubr.bf16.gmra.mrb[0].mxu0 %v143
  %v255 = vpop.f32.mrb[0].mxu0
  %v256 = vadd.f32 0.0, %v255
  %v257 = vpop.f32.mrb[0].mxu0
  %v258 = vpop.f32.mrb[0].mxu0
  %v259 = vadd.f32 0.0, %v258
  %v260 = vpop.f32.mrb[0].mxu0
  %261 = vmatprep.mubr.bf16.mxu0 0
  %262 = vmatmul.mubr.bf16.gmra.mrb[0].mxu0 %v144
  %v263 = vpop.f32.mrb[0].mxu0
  %v264 = vadd.f32 0.0, %v263
  %v265 = vpop.f32.mrb[0].mxu0
  %v266 = vpop.f32.mrb[0].mxu0
  %v267 = vadd.f32 0.0, %v266
  %v268 = vpop.f32.mrb[0].mxu0
  %269 = vmatprep.mubr.bf16.mxu0 0
  %270 = vmatmul.mubr.bf16.gmra.mrb[0].mxu0 %v145
  %v271 = vpop.f32.mrb[0].mxu0
  %v272 = vadd.f32 0.0, %v271
  %v273 = vpop.f32.mrb[0].mxu0
  %v274 = vpop.f32.mrb[0].mxu0
  %v275 = vadd.f32 0.0, %v274
  %v276 = vpop.f32.mrb[0].mxu0
  %277 = vmatprep.mubr.bf16.mxu0 0
  %278 = vmatmul.mubr.bf16.gmra.mrb[0].mxu0 %v146
  %v279 = vpop.f32.mrb[0].mxu0
  %v280 = vadd.f32 0.0, %v279
  %v281 = vpop.f32.mrb[0].mxu0
  %v282 = vpop.f32.mrb[0].mxu0
  %v283 = vadd.f32 0.0, %v282
  %v284 = vpop.f32.mrb[0].mxu0
  %285 = vmatprep.mubr.bf16.mxu0 0
  %286 = vmatmul.mubr.bf16.gmra.mrb[0].mxu0 %v147
  %v287 = vpop.f32.mrb[0].mxu0
  %v288 = vadd.f32 0.0, %v287
  %v289 = vpop.f32.mrb[0].mxu0
  %v290 = vpop.f32.mrb[0].mxu0
  %v291 = vadd.f32 0.0, %v290
  %v292 = vpop.f32.mrb[0].mxu0
  %293 = vmatprep.mubr.bf16.mxu0 0
  %294 = vmatmul.mubr.bf16.gmra.mrb[0].mxu0 %v148
  %v295 = vpop.f32.mrb[0].mxu0
  %v296 = vadd.f32 0.0, %v295
  %v297 = vpop.f32.mrb[0].mxu0
  %v298 = vpop.f32.mrb[0].mxu0
  %v299 = vadd.f32 0.0, %v298
  %v300 = vpop.f32.mrb[0].mxu0
  %301 = vdwg.mxu0
  %v302 = vadd.f32 %v57, %v240
  %v303 = vadd.f32 %v58, %v243
  %v304 = vadd.f32 %v59, %v248
  %v305 = vadd.f32 %v60, %v251
  %v306 = vadd.f32 %v61, %v256
  %v307 = vadd.f32 %v62, %v259
  %v308 = vadd.f32 %v63, %v264
  %v309 = vadd.f32 %v64, %v267
  %v310 = vadd.f32 %v65, %v272
  %v311 = vadd.f32 %v66, %v275
  %v312 = vadd.f32 %v67, %v280
  %v313 = vadd.f32 %v68, %v283
  %v314 = vadd.f32 %v69, %v288
  %v315 = vadd.f32 %v70, %v291
  %v316 = vadd.f32 %v71, %v296
  %v317 = vadd.f32 %v72, %v299
  %318 = vst [vmem:[#allocation2] sm:$0xff] %v302
  %319 = vst [vmem:[#allocation2 + $0x8] sm:$0xff] %v303
  %320 = vst [vmem:[#allocation2 + $0x10] sm:$0xff] %v304
  %321 = vst [vmem:[#allocation2 + $0x18] sm:$0xff] %v305
  %322 = vst [vmem:[#allocation2 + $0x20] sm:$0xff] %v306
  %323 = vst [vmem:[#allocation2 + $0x28] sm:$0xff] %v307
  %324 = vst [vmem:[#allocation2 + $0x30] sm:$0xff] %v308
  %325 = vst [vmem:[#allocation2 + $0x38] sm:$0xff] %v309
  %326 = vst [vmem:[#allocation2 + $0x40] sm:$0xff] %v310
  %327 = vst [vmem:[#allocation2 + $0x48] sm:$0xff] %v311
  %328 = vst [vmem:[#allocation2 + $0x50] sm:$0xff] %v312
  %329 = vst [vmem:[#allocation2 + $0x58] sm:$0xff] %v313
  %330 = vst [vmem:[#allocation2 + $0x60] sm:$0xff] %v314
  %331 = vst [vmem:[#allocation2 + $0x68] sm:$0xff] %v315
  %332 = vst [vmem:[#allocation2 + $0x70] sm:$0xff] %v316
  %333 = vst [vmem:[#allocation2 + $0x78] sm:$0xff] %v317
  // Predicated region
  $region46: #{auto_ad_forward.15} parent=0 // pred_check
    %p334 = pneg %p36
  $region47: #{auto_ad_forward.15} parent=0 // pred_check_branch
    %336 = sbr.rel (%p334) target = $region49
  $region48: #{auto_ad_forward.15} parent=0 // pred_region
    %v337 = vld [vmem:[%s4] sm:$0xff]
    %v338 = vld [vmem:[%s4 + $0x8] sm:$0xff]
    %v339 = vld [vmem:[%s4 + $0x10] sm:$0xff]
    %v340 = vld [vmem:[%s4 + $0x18] sm:$0xff]
    %v341 = vld [vmem:[%s4 + $0x20] sm:$0xff]
    %v342 = vld [vmem:[%s4 + $0x28] sm:$0xff]
    %v343 = vld [vmem:[%s4 + $0x30] sm:$0xff]
    %v344 = vld [vmem:[%s4 + $0x38] sm:$0xff]
    %v345 = vld [vmem:[%s4 + $0x40] sm:$0xff]
    %v346 = vld [vmem:[%s4 + $0x48] sm:$0xff]
    %v347 = vld [vmem:[%s4 + $0x50] sm:$0xff]
    %v348 = vld [vmem:[%s4 + $0x58] sm:$0xff]
    %v349 = vld [vmem:[%s4 + $0x60] sm:$0xff]
    %v350 = vld [vmem:[%s4 + $0x68] sm:$0xff]
    %v351 = vld [vmem:[%s4 + $0x70] sm:$0xff]
    %v352 = vld [vmem:[%s4 + $0x78] sm:$0xff]
    %v353 = vld [vmem:[#allocation2] sm:$0xff]
    %v354 = vld [vmem:[#allocation2 + $0x8] sm:$0xff]
    %v355 = vld [vmem:[#allocation2 + $0x10] sm:$0xff]
    %v356 = vld [vmem:[#allocation2 + $0x18] sm:$0xff]
    %v357 = vld [vmem:[#allocation2 + $0x20] sm:$0xff]
    %v358 = vld [vmem:[#allocation2 + $0x28] sm:$0xff]
    %v359 = vld [vmem:[#allocation2 + $0x30] sm:$0xff]
    %v360 = vld [vmem:[#allocation2 + $0x38] sm:$0xff]
    %v361 = vld [vmem:[#allocation2 + $0x40] sm:$0xff]
    %v362 = vld [vmem:[#allocation2 + $0x48] sm:$0xff]
    %v363 = vld [vmem:[#allocation2 + $0x50] sm:$0xff]
    %v364 = vld [vmem:[#allocation2 + $0x58] sm:$0xff]
    %v365 = vld [vmem:[#allocation2 + $0x60] sm:$0xff]
    %v366 = vld [vmem:[#allocation2 + $0x68] sm:$0xff]
    %v367 = vld [vmem:[#allocation2 + $0x70] sm:$0xff]
    %v368 = vld [vmem:[#allocation2 + $0x78] sm:$0xff]
    %v369 = vld [vmem:[%s2] sm:$0xff]
    %v370 = vld [vmem:[%s2 + $0x8] sm:$0xff]
    %v371 = vld [vmem:[%s2 + $0x10] sm:$0xff]
    %v372 = vld [vmem:[%s2 + $0x18] sm:$0xff]
    %v373 = vld [vmem:[%s2 + $0x20] sm:$0xff]
    %v374 = vld [vmem:[%s2 + $0x28] sm:$0xff]
    %v375 = vld [vmem:[%s2 + $0x30] sm:$0xff]
    %v376 = vld [vmem:[%s2 + $0x38] sm:$0xff]
    %v377 = vld [vmem:[%s2 + $0x40] sm:$0xff]
    %v378 = vld [vmem:[%s2 + $0x48] sm:$0xff]
    %v379 = vld [vmem:[%s2 + $0x50] sm:$0xff]
    %v380 = vld [vmem:[%s2 + $0x58] sm:$0xff]
    %v381 = vld [vmem:[%s2 + $0x60] sm:$0xff]
    %v382 = vld [vmem:[%s2 + $0x68] sm:$0xff]
    %v383 = vld [vmem:[%s2 + $0x70] sm:$0xff]
    %v384 = vld [vmem:[%s2 + $0x78] sm:$0xff]
    %386 = vset.pattern.permute.xlu0 0
    %387 = vperm.xlu0 %386, %v369
    %v388 = vpop.permute.xlu0 %387
    %391 = vset.pattern.permute.xlu0 0
    %392 = vperm.xlu0 %391, %v370
    %v393 = vpop.permute.xlu0 %392
    %396 = vset.pattern.permute.xlu0 0
    %397 = vperm.xlu0 %396, %v371
    %v398 = vpop.permute.xlu0 %397
    %401 = vset.pattern.permute.xlu0 0
    %402 = vperm.xlu0 %401, %v372
    %v403 = vpop.permute.xlu0 %402
    %406 = vset.pattern.permute.xlu0 0
    %407 = vperm.xlu0 %406, %v373
    %v408 = vpop.permute.xlu0 %407
    %411 = vset.pattern.permute.xlu0 0
    %412 = vperm.xlu0 %411, %v374
    %v413 = vpop.permute.xlu0 %412
    %416 = vset.pattern.permute.xlu0 0
    %417 = vperm.xlu0 %416, %v375
    %v418 = vpop.permute.xlu0 %417
    %421 = vset.pattern.permute.xlu0 0
    %422 = vperm.xlu0 %421, %v376
    %v423 = vpop.permute.xlu0 %422
    %426 = vset.pattern.permute.xlu0 0
    %427 = vperm.xlu0 %426, %v377
    %v428 = vpop.permute.xlu0 %427
    %431 = vset.pattern.permute.xlu0 0
    %432 = vperm.xlu0 %431, %v378
    %v433 = vpop.permute.xlu0 %432
    %436 = vset.pattern.permute.xlu0 0
    %437 = vperm.xlu0 %436, %v379
    %v438 = vpop.permute.xlu0 %437
    %441 = vset.pattern.permute.xlu0 0
    %442 = vperm.xlu0 %441, %v380
    %v443 = vpop.permute.xlu0 %442
    %446 = vset.pattern.permute.xlu0 0
    %447 = vperm.xlu0 %446, %v381
    %v448 = vpop.permute.xlu0 %447
    %451 = vset.pattern.permute.xlu0 0
    %452 = vperm.xlu0 %451, %v382
    %v453 = vpop.permute.xlu0 %452
    %456 = vset.pattern.permute.xlu0 0
    %457 = vperm.xlu0 %456, %v383
    %v458 = vpop.permute.xlu0 %457
    %461 = vset.pattern.permute.xlu0 0
    %462 = vperm.xlu0 %461, %v384
    %v463 = vpop.permute.xlu0 %462
    %v465 = vmul.f32 %v353, %v388
    %v466 = vmul.f32 %v354, %v393
    %v467 = vmul.f32 %v355, %v398
    %v468 = vmul.f32 %v356, %v403
    %v469 = vmul.f32 %v357, %v408
    %v470 = vmul.f32 %v358, %v413
    %v471 = vmul.f32 %v359, %v418
    %v472 = vmul.f32 %v360, %v423
    %v473 = vmul.f32 %v361, %v428
    %v474 = vmul.f32 %v362, %v433
    %v475 = vmul.f32 %v363, %v438
    %v476 = vmul.f32 %v364, %v443
    %v477 = vmul.f32 %v365, %v448
    %v478 = vmul.f32 %v366, %v453
    %v479 = vmul.f32 %v367, %v458
    %v480 = vmul.f32 %v368, %v463
    %v481 = vsub.f32 %v337, %v465
    %v482 = vsub.f32 %v338, %v466
    %v483 = vsub.f32 %v339, %v467
    %v484 = vsub.f32 %v340, %v468
    %v485 = vsub.f32 %v341, %v469
    %v486 = vsub.f32 %v342, %v470
    %v487 = vsub.f32 %v343, %v471
    %v488 = vsub.f32 %v344, %v472
    %v489 = vsub.f32 %v345, %v473
    %v490 = vsub.f32 %v346, %v474
    %v491 = vsub.f32 %v347, %v475
    %v492 = vsub.f32 %v348, %v476
    %v493 = vsub.f32 %v349, %v477
    %v494 = vsub.f32 %v350, %v478
    %v495 = vsub.f32 %v351, %v479
    %v496 = vsub.f32 %v352, %v480
    %v497 = vld [vmem:[%s3] sm:$0xff]
    %v498 = vld [vmem:[%s3 + $0x8] sm:$0xff]
    %v499 = vld [vmem:[%s3 + $0x10] sm:$0xff]
    %v500 = vld [vmem:[%s3 + $0x18] sm:$0xff]
    %v501 = vld [vmem:[%s3 + $0x20] sm:$0xff]
    %v502 = vld [vmem:[%s3 + $0x28] sm:$0xff]
    %v503 = vld [vmem:[%s3 + $0x30] sm:$0xff]
    %v504 = vld [vmem:[%s3 + $0x38] sm:$0xff]
    %v505 = vld [vmem:[%s3 + $0x40] sm:$0xff]
    %v506 = vld [vmem:[%s3 + $0x48] sm:$0xff]
    %v507 = vld [vmem:[%s3 + $0x50] sm:$0xff]
    %v508 = vld [vmem:[%s3 + $0x58] sm:$0xff]
    %v509 = vld [vmem:[%s3 + $0x60] sm:$0xff]
    %v510 = vld [vmem:[%s3 + $0x68] sm:$0xff]
    %v511 = vld [vmem:[%s3 + $0x70] sm:$0xff]
    %v512 = vld [vmem:[%s3 + $0x78] sm:$0xff]
    %v513 = vmul.f32 %v497, 3.0
    %v514 = vmul.f32 %v498, 3.0
    %v515 = vmul.f32 %v499, 3.0
    %v516 = vmul.f32 %v500, 3.0
    %v517 = vmul.f32 %v501, 3.0
    %v518 = vmul.f32 %v502, 3.0
    %v519 = vmul.f32 %v503, 3.0
    %v520 = vmul.f32 %v504, 3.0
    %v521 = vmul.f32 %v505, 3.0
    %v522 = vmul.f32 %v506, 3.0
    %v523 = vmul.f32 %v507, 3.0
    %v524 = vmul.f32 %v508, 3.0
    %v525 = vmul.f32 %v509, 3.0
    %v526 = vmul.f32 %v510, 3.0
    %v527 = vmul.f32 %v511, 3.0
    %v528 = vmul.f32 %v512, 3.0
    %v529 = vmul.f32 %v337, -3.0
    %v530 = vmul.f32 %v338, -3.0
    %v531 = vmul.f32 %v339, -3.0
    %v532 = vmul.f32 %v340, -3.0
    %v533 = vmul.f32 %v341, -3.0
    %v534 = vmul.f32 %v342, -3.0
    %v535 = vmul.f32 %v343, -3.0
    %v536 = vmul.f32 %v344, -3.0
    %v537 = vmul.f32 %v345, -3.0
    %v538 = vmul.f32 %v346, -3.0
    %v539 = vmul.f32 %v347, -3.0
    %v540 = vmul.f32 %v348, -3.0
    %v541 = vmul.f32 %v349, -3.0
    %v542 = vmul.f32 %v350, -3.0
    %v543 = vmul.f32 %v351, -3.0
    %v544 = vmul.f32 %v352, -3.0
    %v545 = vadd.f32 %v513, %v529
    %v546 = vadd.f32 %v514, %v530
    %v547 = vadd.f32 %v515, %v531
    %v548 = vadd.f32 %v516, %v532
    %v549 = vadd.f32 %v517, %v533
    %v550 = vadd.f32 %v518, %v534
    %v551 = vadd.f32 %v519, %v535
    %v552 = vadd.f32 %v520, %v536
    %v553 = vadd.f32 %v521, %v537
    %v554 = vadd.f32 %v522, %v538
    %v555 = vadd.f32 %v523, %v539
    %v556 = vadd.f32 %v524, %v540
    %v557 = vadd.f32 %v525, %v541
    %v558 = vadd.f32 %v526, %v542
    %v559 = vadd.f32 %v527, %v543
    %v560 = vadd.f32 %v528, %v544
    %v561 = vmul.f32 %v481, 0.75
    %v562 = vmul.f32 %v482, 0.75
    %v563 = vmul.f32 %v483, 0.75
    %v564 = vmul.f32 %v484, 0.75
    %v565 = vmul.f32 %v485, 0.75
    %v566 = vmul.f32 %v486, 0.75
    %v567 = vmul.f32 %v487, 0.75
    %v568 = vmul.f32 %v488, 0.75
    %v569 = vmul.f32 %v489, 0.75
    %v570 = vmul.f32 %v490, 0.75
    %v571 = vmul.f32 %v491, 0.75
    %v572 = vmul.f32 %v492, 0.75
    %v573 = vmul.f32 %v493, 0.75
    %v574 = vmul.f32 %v494, 0.75
    %v575 = vmul.f32 %v495, 0.75
    %v576 = vmul.f32 %v496, 0.75
    %v577 = vadd.f32 %v545, %v561
    %v578 = vadd.f32 %v546, %v562
    %v579 = vadd.f32 %v547, %v563
    %v580 = vadd.f32 %v548, %v564
    %v581 = vadd.f32 %v549, %v565
    %v582 = vadd.f32 %v550, %v566
    %v583 = vadd.f32 %v551, %v567
    %v584 = vadd.f32 %v552, %v568
    %v585 = vadd.f32 %v553, %v569
    %v586 = vadd.f32 %v554, %v570
    %v587 = vadd.f32 %v555, %v571
    %v588 = vadd.f32 %v556, %v572
    %v589 = vadd.f32 %v557, %v573
    %v590 = vadd.f32 %v558, %v574
    %v591 = vadd.f32 %v559, %v575
    %v592 = vadd.f32 %v560, %v576
    %v593 = vmul.f32 %v497, 0.0
    %v594 = vmul.f32 %v498, 0.0
    %v595 = vmul.f32 %v499, 0.0
    %v596 = vmul.f32 %v500, 0.0
    %v597 = vmul.f32 %v501, 0.0
    %v598 = vmul.f32 %v502, 0.0
    %v599 = vmul.f32 %v503, 0.0
    %v600 = vmul.f32 %v504, 0.0
    %v601 = vmul.f32 %v505, 0.0
    %v602 = vmul.f32 %v506, 0.0
    %v603 = vmul.f32 %v507, 0.0
    %v604 = vmul.f32 %v508, 0.0
    %v605 = vmul.f32 %v509, 0.0
    %v606 = vmul.f32 %v510, 0.0
    %v607 = vmul.f32 %v511, 0.0
    %v608 = vmul.f32 %v512, 0.0
    %v609 = vmul.f32 %v337, 3.0
    %v610 = vmul.f32 %v338, 3.0
    %v611 = vmul.f32 %v339, 3.0
    %v612 = vmul.f32 %v340, 3.0
    %v613 = vmul.f32 %v341, 3.0
    %v614 = vmul.f32 %v342, 3.0
    %v615 = vmul.f32 %v343, 3.0
    %v616 = vmul.f32 %v344, 3.0
    %v617 = vmul.f32 %v345, 3.0
    %v618 = vmul.f32 %v346, 3.0
    %v619 = vmul.f32 %v347, 3.0
    %v620 = vmul.f32 %v348, 3.0
    %v621 = vmul.f32 %v349, 3.0
    %v622 = vmul.f32 %v350, 3.0
    %v623 = vmul.f32 %v351, 3.0
    %v624 = vmul.f32 %v352, 3.0
    %v625 = vadd.f32 %v593, %v609
    %v626 = vadd.f32 %v594, %v610
    %v627 = vadd.f32 %v595, %v611
    %v628 = vadd.f32 %v596, %v612
    %v629 = vadd.f32 %v597, %v613
    %v630 = vadd.f32 %v598, %v614
    %v631 = vadd.f32 %v599, %v615
    %v632 = vadd.f32 %v600, %v616
    %v633 = vadd.f32 %v601, %v617
    %v634 = vadd.f32 %v602, %v618
    %v635 = vadd.f32 %v603, %v619
    %v636 = vadd.f32 %v604, %v620
    %v637 = vadd.f32 %v605, %v621
    %v638 = vadd.f32 %v606, %v622
    %v639 = vadd.f32 %v607, %v623
    %v640 = vadd.f32 %v608, %v624
    %v641 = vmul.f32 %v481, -1.5
    %v642 = vmul.f32 %v482, -1.5
    %v643 = vmul.f32 %v483, -1.5
    %v644 = vmul.f32 %v484, -1.5
    %v645 = vmul.f32 %v485, -1.5
    %v646 = vmul.f32 %v486, -1.5
    %v647 = vmul.f32 %v487, -1.5
    %v648 = vmul.f32 %v488, -1.5
    %v649 = vmul.f32 %v489, -1.5
    %v650 = vmul.f32 %v490, -1.5
    %v651 = vmul.f32 %v491, -1.5
    %v652 = vmul.f32 %v492, -1.5
    %v653 = vmul.f32 %v493, -1.5
    %v654 = vmul.f32 %v494, -1.5
    %v655 = vmul.f32 %v495, -1.5
    %v656 = vmul.f32 %v496, -1.5
    %v657 = vadd.f32 %v625, %v641
    %v658 = vadd.f32 %v626, %v642
    %v659 = vadd.f32 %v627, %v643
    %v660 = vadd.f32 %v628, %v644
    %v661 = vadd.f32 %v629, %v645
    %v662 = vadd.f32 %v630, %v646
    %v663 = vadd.f32 %v631, %v647
    %v664 = vadd.f32 %v632, %v648
    %v665 = vadd.f32 %v633, %v649
    %v666 = vadd.f32 %v634, %v650
    %v667 = vadd.f32 %v635, %v651
    %v668 = vadd.f32 %v636, %v652
    %v669 = vadd.f32 %v637, %v653
    %v670 = vadd.f32 %v638, %v654
    %v671 = vadd.f32 %v639, %v655
    %v672 = vadd.f32 %v640, %v656
    %v673 = vmul.f32 %v337, 0.0
    %v674 = vmul.f32 %v338, 0.0
    %v675 = vmul.f32 %v339, 0.0
    %v676 = vmul.f32 %v340, 0.0
    %v677 = vmul.f32 %v341, 0.0
    %v678 = vmul.f32 %v342, 0.0
    %v679 = vmul.f32 %v343, 0.0
    %v680 = vmul.f32 %v344, 0.0
    %v681 = vmul.f32 %v345, 0.0
    %v682 = vmul.f32 %v346, 0.0
    %v683 = vmul.f32 %v347, 0.0
    %v684 = vmul.f32 %v348, 0.0
    %v685 = vmul.f32 %v349, 0.0
    %v686 = vmul.f32 %v350, 0.0
    %v687 = vmul.f32 %v351, 0.0
    %v688 = vmul.f32 %v352, 0.0
    %v689 = vadd.f32 %v593, %v673
    %v690 = vadd.f32 %v594, %v674
    %v691 = vadd.f32 %v595, %v675
    %v692 = vadd.f32 %v596, %v676
    %v693 = vadd.f32 %v597, %v677
    %v694 = vadd.f32 %v598, %v678
    %v695 = vadd.f32 %v599, %v679
    %v696 = vadd.f32 %v600, %v680
    %v697 = vadd.f32 %v601, %v681
    %v698 = vadd.f32 %v602, %v682
    %v699 = vadd.f32 %v603, %v683
    %v700 = vadd.f32 %v604, %v684
    %v701 = vadd.f32 %v605, %v685
    %v702 = vadd.f32 %v606, %v686
    %v703 = vadd.f32 %v607, %v687
    %v704 = vadd.f32 %v608, %v688
    %v705 = vadd.f32 %v689, %v561
    %v706 = vadd.f32 %v690, %v562
    %v707 = vadd.f32 %v691, %v563
    %v708 = vadd.f32 %v692, %v564
    %v709 = vadd.f32 %v693, %v565
    %v710 = vadd.f32 %v694, %v566
    %v711 = vadd.f32 %v695, %v567
    %v712 = vadd.f32 %v696, %v568
    %v713 = vadd.f32 %v697, %v569
    %v714 = vadd.f32 %v698, %v570
    %v715 = vadd.f32 %v699, %v571
    %v716 = vadd.f32 %v700, %v572
    %v717 = vadd.f32 %v701, %v573
    %v718 = vadd.f32 %v702, %v574
    %v719 = vadd.f32 %v703, %v575
    %v720 = vadd.f32 %v704, %v576
    %v721 = vld [vmem:[%s5] sm:$0xff]
    %v722 = vld [vmem:[%s5 + $0x8] sm:$0xff]
    %v723 = vld [vmem:[%s5 + $0x10] sm:$0xff]
    %v724 = vld [vmem:[%s5 + $0x18] sm:$0xff]
    %v725 = vld [vmem:[%s5 + $0x20] sm:$0xff]
    %v726 = vld [vmem:[%s5 + $0x28] sm:$0xff]
    %v727 = vld [vmem:[%s5 + $0x30] sm:$0xff]
    %v728 = vld [vmem:[%s5 + $0x38] sm:$0xff]
    %v729 = vld [vmem:[%s5 + $0x40] sm:$0xff]
    %v730 = vld [vmem:[%s5 + $0x48] sm:$0xff]
    %v731 = vld [vmem:[%s5 + $0x50] sm:$0xff]
    %v732 = vld [vmem:[%s5 + $0x58] sm:$0xff]
    %v733 = vld [vmem:[%s5 + $0x60] sm:$0xff]
    %v734 = vld [vmem:[%s5 + $0x68] sm:$0xff]
    %v735 = vld [vmem:[%s5 + $0x70] sm:$0xff]
    %v736 = vld [vmem:[%s5 + $0x78] sm:$0xff]
    %v737 = vld [vmem:[%s5 + $0x80] sm:$0xff]
    %v738 = vld [vmem:[%s5 + $0x88] sm:$0xff]
    %v739 = vld [vmem:[%s5 + $0x90] sm:$0xff]
    %v740 = vld [vmem:[%s5 + $0x98] sm:$0xff]
    %v741 = vld [vmem:[%s5 + $0xa0] sm:$0xff]
    %v742 = vld [vmem:[%s5 + $0xa8] sm:$0xff]
    %v743 = vld [vmem:[%s5 + $0xb0] sm:$0xff]
    %v744 = vld [vmem:[%s5 + $0xb8] sm:$0xff]
    %v745 = vld [vmem:[%s5 + $0xc0] sm:$0xff]
    %v746 = vld [vmem:[%s5 + $0xc8] sm:$0xff]
    %v747 = vld [vmem:[%s5 + $0xd0] sm:$0xff]
    %v748 = vld [vmem:[%s5 + $0xd8] sm:$0xff]
    %v749 = vld [vmem:[%s5 + $0xe0] sm:$0xff]
    %v750 = vld [vmem:[%s5 + $0xe8] sm:$0xff]
    %v751 = vld [vmem:[%s5 + $0xf0] sm:$0xff]
    %v752 = vld [vmem:[%s5 + $0xf8] sm:$0xff]
    %v753 = vld [vmem:[%s5 + $0x100] sm:$0xff]
    %v754 = vld [vmem:[%s5 + $0x108] sm:$0xff]
    %v755 = vld [vmem:[%s5 + $0x110] sm:$0xff]
    %v756 = vld [vmem:[%s5 + $0x118] sm:$0xff]
    %v757 = vld [vmem:[%s5 + $0x120] sm:$0xff]
    %v758 = vld [vmem:[%s5 + $0x128] sm:$0xff]
    %v759 = vld [vmem:[%s5 + $0x130] sm:$0xff]
    %v760 = vld [vmem:[%s5 + $0x138] sm:$0xff]
    %v761 = vld [vmem:[%s5 + $0x140] sm:$0xff]
    %v762 = vld [vmem:[%s5 + $0x148] sm:$0xff]
    %v763 = vld [vmem:[%s5 + $0x150] sm:$0xff]
    %v764 = vld [vmem:[%s5 + $0x158] sm:$0xff]
    %v765 = vld [vmem:[%s5 + $0x160] sm:$0xff]
    %v766 = vld [vmem:[%s5 + $0x168] sm:$0xff]
    %v767 = vld [vmem:[%s5 + $0x170] sm:$0xff]
    %v768 = vld [vmem:[%s5 + $0x178] sm:$0xff]
    %v769 = vld [vmem:[%s6] sm:$0xff]
    %v770 = vld [vmem:[%s6 + $0x8] sm:$0xff]
    %v771 = vld [vmem:[%s6 + $0x10] sm:$0xff]
    %v772 = vld [vmem:[%s6 + $0x18] sm:$0xff]
    %v773 = vld [vmem:[%s6 + $0x20] sm:$0xff]
    %v774 = vld [vmem:[%s6 + $0x28] sm:$0xff]
    %v775 = vld [vmem:[%s6 + $0x30] sm:$0xff]
    %v776 = vld [vmem:[%s6 + $0x38] sm:$0xff]
    %v777 = vld [vmem:[%s6 + $0x40] sm:$0xff]
    %v778 = vld [vmem:[%s6 + $0x48] sm:$0xff]
    %v779 = vld [vmem:[%s6 + $0x50] sm:$0xff]
    %v780 = vld [vmem:[%s6 + $0x58] sm:$0xff]
    %v781 = vld [vmem:[%s6 + $0x60] sm:$0xff]
    %v782 = vld [vmem:[%s6 + $0x68] sm:$0xff]
    %v783 = vld [vmem:[%s6 + $0x70] sm:$0xff]
    %v784 = vld [vmem:[%s6 + $0x78] sm:$0xff]
    %v785 = vld [vmem:[%s6 + $0x80] sm:$0xff]
    %v786 = vld [vmem:[%s6 + $0x88] sm:$0xff]
    %v787 = vld [vmem:[%s6 + $0x90] sm:$0xff]
    %v788 = vld [vmem:[%s6 + $0x98] sm:$0xff]
    %v789 = vld [vmem:[%s6 + $0xa0] sm:$0xff]
    %v790 = vld [vmem:[%s6 + $0xa8] sm:$0xff]
    %v791 = vld [vmem:[%s6 + $0xb0] sm:$0xff]
    %v792 = vld [vmem:[%s6 + $0xb8] sm:$0xff]
    %v793 = vld [vmem:[%s6 + $0xc0] sm:$0xff]
    %v794 = vld [vmem:[%s6 + $0xc8] sm:$0xff]
    %v795 = vld [vmem:[%s6 + $0xd0] sm:$0xff]
    %v796 = vld [vmem:[%s6 + $0xd8] sm:$0xff]
    %v797 = vld [vmem:[%s6 + $0xe0] sm:$0xff]
    %v798 = vld [vmem:[%s6 + $0xe8] sm:$0xff]
    %v799 = vld [vmem:[%s6 + $0xf0] sm:$0xff]
    %v800 = vld [vmem:[%s6 + $0xf8] sm:$0xff]
    %v801 = vld [vmem:[%s6 + $0x100] sm:$0xff]
    %v802 = vld [vmem:[%s6 + $0x108] sm:$0xff]
    %v803 = vld [vmem:[%s6 + $0x110] sm:$0xff]
    %v804 = vld [vmem:[%s6 + $0x118] sm:$0xff]
    %v805 = vld [vmem:[%s6 + $0x120] sm:$0xff]
    %v806 = vld [vmem:[%s6 + $0x128] sm:$0xff]
    %v807 = vld [vmem:[%s6 + $0x130] sm:$0xff]
    %v808 = vld [vmem:[%s6 + $0x138] sm:$0xff]
    %v809 = vld [vmem:[%s6 + $0x140] sm:$0xff]
    %v810 = vld [vmem:[%s6 + $0x148] sm:$0xff]
    %v811 = vld [vmem:[%s6 + $0x150] sm:$0xff]
    %v812 = vld [vmem:[%s6 + $0x158] sm:$0xff]
    %v813 = vld [vmem:[%s6 + $0x160] sm:$0xff]
    %v814 = vld [vmem:[%s6 + $0x168] sm:$0xff]
    %v815 = vld [vmem:[%s6 + $0x170] sm:$0xff]
    %v816 = vld [vmem:[%s6 + $0x178] sm:$0xff]
    %v817 = vld [vmem:[%s7] sm:$0x1]
    %v819 = vlaneseq
    %v820 = vshrl.u32 %v819, 7
    %v821 = vsub.s32 0, %v820
    %v822 = vrot.slane %v817, %v821
    %824 = vmatprep.subr.mxu0 0.0
    %825 = vmatpush1.msra.mxu0 %v769
    %826 = vmatprep.subr.mxu0 0.0
    %827 = vmatpush1.msra.mxu0 %v770
    %828 = vmatprep.subr.mxu0 0.0
    %829 = vmatpush1.msra.mxu0 %v771
    %830 = vmatprep.subr.mxu0 0.0
    %831 = vmatpush1.msra.mxu0 %v772
    %832 = vmatprep.subr.mxu0 0.0
    %833 = vmatpush1.msra.mxu0 %v773
    %834 = vmatprep.subr.mxu0 0.0
    %835 = vmatpush1.msra.mxu0 %v774
    %836 = vmatprep.subr.mxu0 0.0
    %837 = vmatpush1.msra.mxu0 %v775
    %838 = vmatprep.subr.mxu0 0.0
    %839 = vmatpush1.msra.mxu0 %v776
    %840 = vmatprep.subr.mxu0 0.0
    %841 = vmatpush1.msra.mxu0 %v777
    %842 = vmatprep.subr.mxu0 0.0
    %843 = vmatpush1.msra.mxu0 %v778
    %844 = vmatprep.subr.mxu0 0.0
    %845 = vmatpush1.msra.mxu0 %v779
    %846 = vmatprep.subr.mxu0 0.0
    %847 = vmatpush1.msra.mxu0 %v780
    %848 = vmatprep.subr.mxu0 0.0
    %849 = vmatpush1.msra.mxu0 %v781
    %850 = vmatprep.subr.mxu0 0.0
    %851 = vmatpush1.msra.mxu0 %v782
    %852 = vmatprep.subr.mxu0 0.0
    %853 = vmatpush1.msra.mxu0 %v783
    %854 = vmatprep.subr.mxu0 0.0
    %855 = vmatpush1.msra.mxu0 %v784
    %856 = vmatprep.subr.mxu0 0.0
    %857 = vmatpush1.msra.mxu0 %v785
    %858 = vmatprep.subr.mxu0 0.0
    %859 = vmatpush1.msra.mxu0 %v786
    %860 = vmatprep.subr.mxu0 0.0
    %861 = vmatpush1.msra.mxu0 %v787
    %862 = vmatprep.subr.mxu0 0.0
    %863 = vmatpush1.msra.mxu0 %v788
    %864 = vmatprep.subr.mxu0 0.0
    %865 = vmatpush1.msra.mxu0 %v789
    %866 = vmatprep.subr.mxu0 0.0
    %867 = vmatpush1.msra.mxu0 %v790
    %868 = vmatprep.subr.mxu0 0.0
    %869 = vmatpush1.msra.mxu0 %v791
    %870 = vmatprep.subr.mxu0 0.0
    %871 = vmatpush1.msra.mxu0 %v792
    %872 = vmatprep.subr.mxu0 0.0
    %873 = vmatpush1.msra.mxu0 %v793
    %874 = vmatprep.subr.mxu0 0.0
    %875 = vmatpush1.msra.mxu0 %v794
    %876 = vmatprep.subr.mxu0 0.0
    %877 = vmatpush1.msra.mxu0 %v795
    %878 = vmatprep.subr.mxu0 0.0
    %879 = vmatpush1.msra.mxu0 %v796
    %880 = vmatprep.subr.mxu0 0.0
    %881 = vmatpush1.msra.mxu0 %v797
    %882 = vmatprep.subr.mxu0 0.0
    %883 = vmatpush1.msra.mxu0 %v798
    %884 = vmatprep.subr.mxu0 0.0
    %885 = vmatpush1.msra.mxu0 %v799
    %886 = vmatprep.subr.mxu0 0.0
    %887 = vmatpush1.msra.mxu0 %v800
    %888 = vmatprep.mubr.f32.mxu0 %v722
    %889 = vmatmul.mubr.f32.gmra.mrb[0].mxu0 %v721
    %v890 = vpop.f32.mrb[0].mxu0
    %v891 = vadd.f32 %v822, %v890
    %v892 = vpop.f32.mrb[0].mxu0
    %893 = vmatprep.mubr.f32.mxu0 %v725
    %894 = vmatmul.mubr.f32.gmra.mrb[0].mxu0 %v724
    %v895 = vpop.f32.mrb[0].mxu0
    %v896 = vadd.f32 %v822, %v895
    %v897 = vpop.f32.mrb[0].mxu0
    %898 = vmatprep.mubr.f32.mxu0 %v728
    %899 = vmatmul.mubr.f32.gmra.mrb[0].mxu0 %v727
    %v900 = vpop.f32.mrb[0].mxu0
    %v901 = vadd.f32 %v822, %v900
    %v902 = vpop.f32.mrb[0].mxu0
    %903 = vmatprep.mubr.f32.mxu0 %v731
    %904 = vmatmul.mubr.f32.gmra.mrb[0].mxu0 %v730
    %v905 = vpop.f32.mrb[0].mxu0
    %v906 = vadd.f32 %v822, %v905
    %v907 = vpop.f32.mrb[0].mxu0
    %908 = vmatprep.mubr.f32.mxu0 %v734
    %909 = vmatmul.mubr.f32.gmra.mrb[0].mxu0 %v733
    %v910 = vpop.f32.mrb[0].mxu0
    %v911 = vadd.f32 %v822, %v910
    %v912 = vpop.f32.mrb[0].mxu0
    %913 = vmatprep.mubr.f32.mxu0 %v737
    %914 = vmatmul.mubr.f32.gmra.mrb[0].mxu0 %v736
    %v915 = vpop.f32.mrb[0].mxu0
    %v916 = vadd.f32 %v822, %v915
    %v917 = vpop.f32.mrb[0].mxu0
    %918 = vmatprep.mubr.f32.mxu0 %v740
    %919 = vmatmul.mubr.f32.gmra.mrb[0].mxu0 %v739
    %v920 = vpop.f32.mrb[0].mxu0
    %v921 = vadd.f32 %v822, %v920
    %v922 = vpop.f32.mrb[0].mxu0
    %923 = vmatprep.mubr.f32.mxu0 %v743
    %924 = vmatmul.mubr.f32.gmra.mrb[0].mxu0 %v742
    %v925 = vpop.f32.mrb[0].mxu0
    %v926 = vadd.f32 %v822, %v925
    %v927 = vpop.f32.mrb[0].mxu0
    %928 = vmatprep.mubr.f32.mxu0 %v746
    %929 = vmatmul.mubr.f32.gmra.mrb[0].mxu0 %v745
    %v930 = vpop.f32.mrb[0].mxu0
    %v931 = vadd.f32 %v822, %v930
    %v932 = vpop.f32.mrb[0].mxu0
    %933 = vmatprep.mubr.f32.mxu0 %v749
    %934 = vmatmul.mubr.f32.gmra.mrb[0].mxu0 %v748
    %v935 = vpop.f32.mrb[0].mxu0
    %v936 = vadd.f32 %v822, %v935
    %v937 = vpop.f32.mrb[0].mxu0
    %938 = vmatprep.mubr.f32.mxu0 %v752
    %939 = vmatmul.mubr.f32.gmra.mrb[0].mxu0 %v751
    %v940 = vpop.f32.mrb[0].mxu0
    %v941 = vadd.f32 %v822, %v940
    %v942 = vpop.f32.mrb[0].mxu0
    %943 = vmatprep.mubr.f32.mxu0 %v755
    %944 = vmatmul.mubr.f32.gmra.mrb[0].mxu0 %v754
    %v945 = vpop.f32.mrb[0].mxu0
    %v946 = vadd.f32 %v822, %v945
    %v947 = vpop.f32.mrb[0].mxu0
    %948 = vmatprep.mubr.f32.mxu0 %v758
    %949 = vmatmul.mubr.f32.gmra.mrb[0].mxu0 %v757
    %v950 = vpop.f32.mrb[0].mxu0
    %v951 = vadd.f32 %v822, %v950
    %v952 = vpop.f32.mrb[0].mxu0
    %953 = vmatprep.mubr.f32.mxu0 %v761
    %954 = vmatmul.mubr.f32.gmra.mrb[0].mxu0 %v760
    %v955 = vpop.f32.mrb[0].mxu0
    %v956 = vadd.f32 %v822, %v955
    %v957 = vpop.f32.mrb[0].mxu0
    %958 = vmatprep.mubr.f32.mxu0 %v764
    %959 = vmatmul.mubr.f32.gmra.mrb[0].mxu0 %v763
    %v960 = vpop.f32.mrb[0].mxu0
    %v961 = vadd.f32 %v822, %v960
    %v962 = vpop.f32.mrb[0].mxu0
    %963 = vmatprep.mubr.f32.mxu0 %v767
    %964 = vmatmul.mubr.f32.gmra.mrb[0].mxu0 %v766
    %v965 = vpop.f32.mrb[0].mxu0
    %v966 = vadd.f32 %v822, %v965
    %v967 = vpop.f32.mrb[0].mxu0
    %968 = vdwg.mxu0
    %969 = vmatprep.subr.mxu0 0.0
    %970 = vmatpush1.msra.mxu0 %v801
    %971 = vmatprep.subr.mxu0 0.0
    %972 = vmatpush1.msra.mxu0 %v802
    %973 = vmatprep.subr.mxu0 0.0
    %974 = vmatpush1.msra.mxu0 %v803
    %975 = vmatprep.subr.mxu0 0.0
    %976 = vmatpush1.msra.mxu0 %v804
    %977 = vmatprep.subr.mxu0 0.0
    %978 = vmatpush1.msra.mxu0 %v805
    %979 = vmatprep.subr.mxu0 0.0
    %980 = vmatpush1.msra.mxu0 %v806
    %981 = vmatprep.subr.mxu0 0.0
    %982 = vmatpush1.msra.mxu0 %v807
    %983 = vmatprep.subr.mxu0 0.0
    %984 = vmatpush1.msra.mxu0 %v808
    %985 = vmatprep.subr.mxu0 0.0
    %986 = vmatpush1.msra.mxu0 %v809
    %987 = vmatprep.subr.mxu0 0.0
    %988 = vmatpush1.msra.mxu0 %v810
    %989 = vmatprep.subr.mxu0 0.0
    %990 = vmatpush1.msra.mxu0 %v811
    %991 = vmatprep.subr.mxu0 0.0
    %992 = vmatpush1.msra.mxu0 %v812
    %993 = vmatprep.subr.mxu0 0.0
    %994 = vmatpush1.msra.mxu0 %v813
    %995 = vmatprep.subr.mxu0 0.0
    %996 = vmatpush1.msra.mxu0 %v814
    %997 = vmatprep.subr.mxu0 0.0
    %998 = vmatpush1.msra.mxu0 %v815
    %999 = vmatprep.subr.mxu0 0.0
    %1000 = vmatpush1.msra.mxu0 %v816
    %1001 = vmatprep.subr.mxu0 0.0
    %1002 = vmatpush1.msra.mxu0 0.0
    %1003 = vmatprep.subr.mxu0 0.0
    %1004 = vmatpush1.msra.mxu0 0.0
    %1005 = vmatprep.subr.mxu0 0.0
    %1006 = vmatpush1.msra.mxu0 0.0
    %1007 = vmatprep.subr.mxu0 0.0
    %1008 = vmatpush1.msra.mxu0 0.0
    %1009 = vmatprep.subr.mxu0 0.0
    %1010 = vmatpush1.msra.mxu0 0.0
    %1011 = vmatprep.subr.mxu0 0.0
    %1012 = vmatpush1.msra.mxu0 0.0
    %1013 = vmatprep.subr.mxu0 0.0
    %1014 = vmatpush1.msra.mxu0 0.0
    %1015 = vmatprep.subr.mxu0 0.0
    %1016 = vmatpush1.msra.mxu0 0.0
    %1017 = vmatprep.subr.mxu0 0.0
    %1018 = vmatpush1.msra.mxu0 0.0
    %1019 = vmatprep.subr.mxu0 0.0
    %1020 = vmatpush1.msra.mxu0 0.0
    %1021 = vmatprep.subr.mxu0 0.0
    %1022 = vmatpush1.msra.mxu0 0.0
    %1023 = vmatprep.subr.mxu0 0.0
    %1024 = vmatpush1.msra.mxu0 0.0
    %1025 = vmatprep.subr.mxu0 0.0
    %1026 = vmatpush1.msra.mxu0 0.0
    %1027 = vmatprep.subr.mxu0 0.0
    %1028 = vmatpush1.msra.mxu0 0.0
    %1029 = vmatprep.subr.mxu0 0.0
    %1030 = vmatpush1.msra.mxu0 0.0
    %1031 = vmatprep.subr.mxu0 0.0
    %1032 = vmatpush1.msra.mxu0 0.0
    %1033 = vmatprep.mubr.f32.mxu0 0.0
    %1034 = vmatmul.mubr.f32.gmra.mrb[0].mxu0 %v723
    %v1035 = vpop.f32.mrb[0].mxu0
    %v1036 = vadd.f32 %v891, %v1035
    %v1037 = vpop.f32.mrb[0].mxu0
    %1038 = vmatprep.mubr.f32.mxu0 0.0
    %1039 = vmatmul.mubr.f32.gmra.mrb[0].mxu0 %v726
    %v1040 = vpop.f32.mrb[0].mxu0
    %v1041 = vadd.f32 %v896, %v1040
    %v1042 = vpop.f32.mrb[0].mxu0
    %1043 = vmatprep.mubr.f32.mxu0 0.0
    %1044 = vmatmul.mubr.f32.gmra.mrb[0].mxu0 %v729
    %v1045 = vpop.f32.mrb[0].mxu0
    %v1046 = vadd.f32 %v901, %v1045
    %v1047 = vpop.f32.mrb[0].mxu0
    %1048 = vmatprep.mubr.f32.mxu0 0.0
    %1049 = vmatmul.mubr.f32.gmra.mrb[0].mxu0 %v732
    %v1050 = vpop.f32.mrb[0].mxu0
    %v1051 = vadd.f32 %v906, %v1050
    %v1052 = vpop.f32.mrb[0].mxu0
    %1053 = vmatprep.mubr.f32.mxu0 0.0
    %1054 = vmatmul.mubr.f32.gmra.mrb[0].mxu0 %v735
    %v1055 = vpop.f32.mrb[0].mxu0
    %v1056 = vadd.f32 %v911, %v1055
    %v1057 = vpop.f32.mrb[0].mxu0
    %1058 = vmatprep.mubr.f32.mxu0 0.0
    %1059 = vmatmul.mubr.f32.gmra.mrb[0].mxu0 %v738
    %v1060 = vpop.f32.mrb[0].mxu0
    %v1061 = vadd.f32 %v916, %v1060
    %v1062 = vpop.f32.mrb[0].mxu0
    %1063 = vmatprep.mubr.f32.mxu0 0.0
    %1064 = vmatmul.mubr.f32.gmra.mrb[0].mxu0 %v741
    %v1065 = vpop.f32.mrb[0].mxu0
    %v1066 = vadd.f32 %v921, %v1065
    %v1067 = vpop.f32.mrb[0].mxu0
    %1068 = vmatprep.mubr.f32.mxu0 0.0
    %1069 = vmatmul.mubr.f32.gmra.mrb[0].mxu0 %v744
    %v1070 = vpop.f32.mrb[0].mxu0
    %v1071 = vadd.f32 %v926, %v1070
    %v1072 = vpop.f32.mrb[0].mxu0
    %1073 = vmatprep.mubr.f32.mxu0 0.0
    %1074 = vmatmul.mubr.f32.gmra.mrb[0].mxu0 %v747
    %v1075 = vpop.f32.mrb[0].mxu0
    %v1076 = vadd.f32 %v931, %v1075
    %v1077 = vpop.f32.mrb[0].mxu0
    %1078 = vmatprep.mubr.f32.mxu0 0.0
    %1079 = vmatmul.mubr.f32.gmra.mrb[0].mxu0 %v750
    %v1080 = vpop.f32.mrb[0].mxu0
    %v1081 = vadd.f32 %v936, %v1080
    %v1082 = vpop.f32.mrb[0].mxu0
    %1083 = vmatprep.mubr.f32.mxu0 0.0
    %1084 = vmatmul.mubr.f32.gmra.mrb[0].mxu0 %v753
    %v1085 = vpop.f32.mrb[0].mxu0
    %v1086 = vadd.f32 %v941, %v1085
    %v1087 = vpop.f32.mrb[0].mxu0
    %1088 = vmatprep.mubr.f32.mxu0 0.0
    %1089 = vmatmul.mubr.f32.gmra.mrb[0].mxu0 %v756
    %v1090 = vpop.f32.mrb[0].mxu0
    %v1091 = vadd.f32 %v946, %v1090
    %v1092 = vpop.f32.mrb[0].mxu0
    %1093 = vmatprep.mubr.f32.mxu0 0.0
    %1094 = vmatmul.mubr.f32.gmra.mrb[0].mxu0 %v759
    %v1095 = vpop.f32.mrb[0].mxu0
    %v1096 = vadd.f32 %v951, %v1095
    %v1097 = vpop.f32.mrb[0].mxu0
    %1098 = vmatprep.mubr.f32.mxu0 0.0
    %1099 = vmatmul.mubr.f32.gmra.mrb[0].mxu0 %v762
    %v1100 = vpop.f32.mrb[0].mxu0
    %v1101 = vadd.f32 %v956, %v1100
    %v1102 = vpop.f32.mrb[0].mxu0
    %1103 = vmatprep.mubr.f32.mxu0 0.0
    %1104 = vmatmul.mubr.f32.gmra.mrb[0].mxu0 %v765
    %v1105 = vpop.f32.mrb[0].mxu0
    %v1106 = vadd.f32 %v961, %v1105
    %v1107 = vpop.f32.mrb[0].mxu0
    %1108 = vmatprep.mubr.f32.mxu0 0.0
    %1109 = vmatmul.mubr.f32.gmra.mrb[0].mxu0 %v768
    %v1110 = vpop.f32.mrb[0].mxu0
    %v1111 = vadd.f32 %v966, %v1110
    %v1112 = vpop.f32.mrb[0].mxu0
    %1113 = vdwg.mxu0
    %v1114 = vld [vmem:[%s6 + $0x180] sm:$0xff]
    %v1115 = vld [vmem:[%s6 + $0x188] sm:$0xff]
    %v1116 = vld [vmem:[%s6 + $0x190] sm:$0xff]
    %v1117 = vld [vmem:[%s6 + $0x198] sm:$0xff]
    %v1118 = vld [vmem:[%s6 + $0x1a0] sm:$0xff]
    %v1119 = vld [vmem:[%s6 + $0x1a8] sm:$0xff]
    %v1120 = vld [vmem:[%s6 + $0x1b0] sm:$0xff]
    %v1121 = vld [vmem:[%s6 + $0x1b8] sm:$0xff]
    %v1122 = vld [vmem:[%s6 + $0x1c0] sm:$0xff]
    %v1123 = vld [vmem:[%s6 + $0x1c8] sm:$0xff]
    %v1124 = vld [vmem:[%s6 + $0x1d0] sm:$0xff]
    %v1125 = vld [vmem:[%s6 + $0x1d8] sm:$0xff]
    %v1126 = vld [vmem:[%s6 + $0x1e0] sm:$0xff]
    %v1127 = vld [vmem:[%s6 + $0x1e8] sm:$0xff]
    %v1128 = vld [vmem:[%s6 + $0x1f0] sm:$0xff]
    %v1129 = vld [vmem:[%s6 + $0x1f8] sm:$0xff]
    %1130 = vmatprep.subr.mxu0 0.0
    %1131 = vmatpush1.msra.mxu0 %v1114
    %1132 = vmatprep.subr.mxu0 0.0
    %1133 = vmatpush1.msra.mxu0 %v1115
    %1134 = vmatprep.subr.mxu0 0.0
    %1135 = vmatpush1.msra.mxu0 %v1116
    %1136 = vmatprep.subr.mxu0 0.0
    %1137 = vmatpush1.msra.mxu0 %v1117
    %1138 = vmatprep.subr.mxu0 0.0
    %1139 = vmatpush1.msra.mxu0 %v1118
    %1140 = vmatprep.subr.mxu0 0.0
    %1141 = vmatpush1.msra.mxu0 %v1119
    %1142 = vmatprep.subr.mxu0 0.0
    %1143 = vmatpush1.msra.mxu0 %v1120
    %1144 = vmatprep.subr.mxu0 0.0
    %1145 = vmatpush1.msra.mxu0 %v1121
    %1146 = vmatprep.subr.mxu0 0.0
    %1147 = vmatpush1.msra.mxu0 %v1122
    %1148 = vmatprep.subr.mxu0 0.0
    %1149 = vmatpush1.msra.mxu0 %v1123
    %1150 = vmatprep.subr.mxu0 0.0
    %1151 = vmatpush1.msra.mxu0 %v1124
    %1152 = vmatprep.subr.mxu0 0.0
    %1153 = vmatpush1.msra.mxu0 %v1125
    %1154 = vmatprep.subr.mxu0 0.0
    %1155 = vmatpush1.msra.mxu0 %v1126
    %1156 = vmatprep.subr.mxu0 0.0
    %1157 = vmatpush1.msra.mxu0 %v1127
    %1158 = vmatprep.subr.mxu0 0.0
    %1159 = vmatpush1.msra.mxu0 %v1128
    %1160 = vmatprep.subr.mxu0 0.0
    %1161 = vmatpush1.msra.mxu0 %v1129
    %1162 = vmatprep.subr.mxu0 0.0
    %1163 = vmatpush1.msra.mxu0 0.0
    %1164 = vmatprep.subr.mxu0 0.0
    %1165 = vmatpush1.msra.mxu0 0.0
    %1166 = vmatprep.subr.mxu0 0.0
    %1167 = vmatpush1.msra.mxu0 0.0
    %1168 = vmatprep.subr.mxu0 0.0
    %1169 = vmatpush1.msra.mxu0 0.0
    %1170 = vmatprep.subr.mxu0 0.0
    %1171 = vmatpush1.msra.mxu0 0.0
    %1172 = vmatprep.subr.mxu0 0.0
    %1173 = vmatpush1.msra.mxu0 0.0
    %1174 = vmatprep.subr.mxu0 0.0
    %1175 = vmatpush1.msra.mxu0 0.0
    %1176 = vmatprep.subr.mxu0 0.0
    %1177 = vmatpush1.msra.mxu0 0.0
    %1178 = vmatprep.subr.mxu0 0.0
    %1179 = vmatpush1.msra.mxu0 0.0
    %1180 = vmatprep.subr.mxu0 0.0
    %1181 = vmatpush1.msra.mxu0 0.0
    %1182 = vmatprep.subr.mxu0 0.0
    %1183 = vmatpush1.msra.mxu0 0.0
    %1184 = vmatprep.subr.mxu0 0.0
    %1185 = vmatpush1.msra.mxu0 0.0
    %1186 = vmatprep.subr.mxu0 0.0
    %1187 = vmatpush1.msra.mxu0 0.0
    %1188 = vmatprep.subr.mxu0 0.0
    %1189 = vmatpush1.msra.mxu0 0.0
    %1190 = vmatprep.subr.mxu0 0.0
    %1191 = vmatpush1.msra.mxu0 0.0
    %1192 = vmatprep.subr.mxu0 0.0
    %1193 = vmatpush1.msra.mxu0 0.0
    %1194 = vmatprep.mubr.f32.mxu0 0.0
    %1195 = vmatmul.mubr.f32.gmra.mrb[0].mxu0 %v577
    %v1196 = vpop.f32.mrb[0].mxu0
    %v1197 = vadd.f32 0.0, %v1196
    %v1198 = vpop.f32.mrb[0].mxu0
    %1199 = vmatprep.mubr.f32.mxu0 0.0
    %1200 = vmatmul.mubr.f32.gmra.mrb[0].mxu0 %v578
    %v1201 = vpop.f32.mrb[0].mxu0
    %v1202 = vadd.f32 0.0, %v1201
    %v1203 = vpop.f32.mrb[0].mxu0
    %1204 = vmatprep.mubr.f32.mxu0 0.0
    %1205 = vmatmul.mubr.f32.gmra.mrb[0].mxu0 %v579
    %v1206 = vpop.f32.mrb[0].mxu0
    %v1207 = vadd.f32 0.0, %v1206
    %v1208 = vpop.f32.mrb[0].mxu0
    %1209 = vmatprep.mubr.f32.mxu0 0.0
    %1210 = vmatmul.mubr.f32.gmra.mrb[0].mxu0 %v580
    %v1211 = vpop.f32.mrb[0].mxu0
    %v1212 = vadd.f32 0.0, %v1211
    %v1213 = vpop.f32.mrb[0].mxu0
    %1214 = vmatprep.mubr.f32.mxu0 0.0
    %1215 = vmatmul.mubr.f32.gmra.mrb[0].mxu0 %v581
    %v1216 = vpop.f32.mrb[0].mxu0
    %v1217 = vadd.f32 0.0, %v1216
    %v1218 = vpop.f32.mrb[0].mxu0
    %1219 = vmatprep.mubr.f32.mxu0 0.0
    %1220 = vmatmul.mubr.f32.gmra.mrb[0].mxu0 %v582
    %v1221 = vpop.f32.mrb[0].mxu0
    %v1222 = vadd.f32 0.0, %v1221
    %v1223 = vpop.f32.mrb[0].mxu0
    %1224 = vmatprep.mubr.f32.mxu0 0.0
    %1225 = vmatmul.mubr.f32.gmra.mrb[0].mxu0 %v583
    %v1226 = vpop.f32.mrb[0].mxu0
    %v1227 = vadd.f32 0.0, %v1226
    %v1228 = vpop.f32.mrb[0].mxu0
    %1229 = vmatprep.mubr.f32.mxu0 0.0
    %1230 = vmatmul.mubr.f32.gmra.mrb[0].mxu0 %v584
    %v1231 = vpop.f32.mrb[0].mxu0
    %v1232 = vadd.f32 0.0, %v1231
    %v1233 = vpop.f32.mrb[0].mxu0
    %1234 = vmatprep.mubr.f32.mxu0 0.0
    %1235 = vmatmul.mubr.f32.gmra.mrb[0].mxu0 %v585
    %v1236 = vpop.f32.mrb[0].mxu0
    %v1237 = vadd.f32 0.0, %v1236
    %v1238 = vpop.f32.mrb[0].mxu0
    %1239 = vmatprep.mubr.f32.mxu0 0.0
    %1240 = vmatmul.mubr.f32.gmra.mrb[0].mxu0 %v586
    %v1241 = vpop.f32.mrb[0].mxu0
    %v1242 = vadd.f32 0.0, %v1241
    %v1243 = vpop.f32.mrb[0].mxu0
    %1244 = vmatprep.mubr.f32.mxu0 0.0
    %1245 = vmatmul.mubr.f32.gmra.mrb[0].mxu0 %v587
    %v1246 = vpop.f32.mrb[0].mxu0
    %v1247 = vadd.f32 0.0, %v1246
    %v1248 = vpop.f32.mrb[0].mxu0
    %1249 = vmatprep.mubr.f32.mxu0 0.0
    %1250 = vmatmul.mubr.f32.gmra.mrb[0].mxu0 %v588
    %v1251 = vpop.f32.mrb[0].mxu0
    %v1252 = vadd.f32 0.0, %v1251
    %v1253 = vpop.f32.mrb[0].mxu0
    %1254 = vmatprep.mubr.f32.mxu0 0.0
    %1255 = vmatmul.mubr.f32.gmra.mrb[0].mxu0 %v589
    %v1256 = vpop.f32.mrb[0].mxu0
    %v1257 = vadd.f32 0.0, %v1256
    %v1258 = vpop.f32.mrb[0].mxu0
    %1259 = vmatprep.mubr.f32.mxu0 0.0
    %1260 = vmatmul.mubr.f32.gmra.mrb[0].mxu0 %v590
    %v1261 = vpop.f32.mrb[0].mxu0
    %v1262 = vadd.f32 0.0, %v1261
    %v1263 = vpop.f32.mrb[0].mxu0
    %1264 = vmatprep.mubr.f32.mxu0 0.0
    %1265 = vmatmul.mubr.f32.gmra.mrb[0].mxu0 %v591
    %v1266 = vpop.f32.mrb[0].mxu0
    %v1267 = vadd.f32 0.0, %v1266
    %v1268 = vpop.f32.mrb[0].mxu0
    %1269 = vmatprep.mubr.f32.mxu0 0.0
    %1270 = vmatmul.mubr.f32.gmra.mrb[0].mxu0 %v592
    %v1271 = vpop.f32.mrb[0].mxu0
    %v1272 = vadd.f32 0.0, %v1271
    %v1273 = vpop.f32.mrb[0].mxu0
    %1274 = vdwg.mxu0
    %v1275 = vadd.f32 %v1036, %v1197
    %v1276 = vadd.f32 %v1041, %v1202
    %v1277 = vadd.f32 %v1046, %v1207
    %v1278 = vadd.f32 %v1051, %v1212
    %v1279 = vadd.f32 %v1056, %v1217
    %v1280 = vadd.f32 %v1061, %v1222
    %v1281 = vadd.f32 %v1066, %v1227
    %v1282 = vadd.f32 %v1071, %v1232
    %v1283 = vadd.f32 %v1076, %v1237
    %v1284 = vadd.f32 %v1081, %v1242
    %v1285 = vadd.f32 %v1086, %v1247
    %v1286 = vadd.f32 %v1091, %v1252
    %v1287 = vadd.f32 %v1096, %v1257
    %v1288 = vadd.f32 %v1101, %v1262
    %v1289 = vadd.f32 %v1106, %v1267
    %v1290 = vadd.f32 %v1111, %v1272
    %v1291 = vld [vmem:[%s6 + $0x200] sm:$0xff]
    %v1292 = vld [vmem:[%s6 + $0x208] sm:$0xff]
    %v1293 = vld [vmem:[%s6 + $0x210] sm:$0xff]
    %v1294 = vld [vmem:[%s6 + $0x218] sm:$0xff]
    %v1295 = vld [vmem:[%s6 + $0x220] sm:$0xff]
    %v1296 = vld [vmem:[%s6 + $0x228] sm:$0xff]
    %v1297 = vld [vmem:[%s6 + $0x230] sm:$0xff]
    %v1298 = vld [vmem:[%s6 + $0x238] sm:$0xff]
    %v1299 = vld [vmem:[%s6 + $0x240] sm:$0xff]
    %v1300 = vld [vmem:[%s6 + $0x248] sm:$0xff]
    %v1301 = vld [vmem:[%s6 + $0x250] sm:$0xff]
    %v1302 = vld [vmem:[%s6 + $0x258] sm:$0xff]
    %v1303 = vld [vmem:[%s6 + $0x260] sm:$0xff]
    %v1304 = vld [vmem:[%s6 + $0x268] sm:$0xff]
    %v1305 = vld [vmem:[%s6 + $0x270] sm:$0xff]
    %v1306 = vld [vmem:[%s6 + $0x278] sm:$0xff]
    %1307 = vmatprep.subr.mxu0 0.0
    %1308 = vmatpush1.msra.mxu0 %v1291
    %1309 = vmatprep.subr.mxu0 0.0
    %1310 = vmatpush1.msra.mxu0 %v1292
    %1311 = vmatprep.subr.mxu0 0.0
    %1312 = vmatpush1.msra.mxu0 %v1293
    %1313 = vmatprep.subr.mxu0 0.0
    %1314 = vmatpush1.msra.mxu0 %v1294
    %1315 = vmatprep.subr.mxu0 0.0
    %1316 = vmatpush1.msra.mxu0 %v1295
    %1317 = vmatprep.subr.mxu0 0.0
    %1318 = vmatpush1.msra.mxu0 %v1296
    %1319 = vmatprep.subr.mxu0 0.0
    %1320 = vmatpush1.msra.mxu0 %v1297
    %1321 = vmatprep.subr.mxu0 0.0
    %1322 = vmatpush1.msra.mxu0 %v1298
    %1323 = vmatprep.subr.mxu0 0.0
    %1324 = vmatpush1.msra.mxu0 %v1299
    %1325 = vmatprep.subr.mxu0 0.0
    %1326 = vmatpush1.msra.mxu0 %v1300
    %1327 = vmatprep.subr.mxu0 0.0
    %1328 = vmatpush1.msra.mxu0 %v1301
    %1329 = vmatprep.subr.mxu0 0.0
    %1330 = vmatpush1.msra.mxu0 %v1302
    %1331 = vmatprep.subr.mxu0 0.0
    %1332 = vmatpush1.msra.mxu0 %v1303
    %1333 = vmatprep.subr.mxu0 0.0
    %1334 = vmatpush1.msra.mxu0 %v1304
    %1335 = vmatprep.subr.mxu0 0.0
    %1336 = vmatpush1.msra.mxu0 %v1305
    %1337 = vmatprep.subr.mxu0 0.0
    %1338 = vmatpush1.msra.mxu0 %v1306
    %1339 = vmatprep.subr.mxu0 0.0
    %1340 = vmatpush1.msra.mxu0 0.0
    %1341 = vmatprep.subr.mxu0 0.0
    %1342 = vmatpush1.msra.mxu0 0.0
    %1343 = vmatprep.subr.mxu0 0.0
    %1344 = vmatpush1.msra.mxu0 0.0
    %1345 = vmatprep.subr.mxu0 0.0
    %1346 = vmatpush1.msra.mxu0 0.0
    %1347 = vmatprep.subr.mxu0 0.0
    %1348 = vmatpush1.msra.mxu0 0.0
    %1349 = vmatprep.subr.mxu0 0.0
    %1350 = vmatpush1.msra.mxu0 0.0
    %1351 = vmatprep.subr.mxu0 0.0
    %1352 = vmatpush1.msra.mxu0 0.0
    %1353 = vmatprep.subr.mxu0 0.0
    %1354 = vmatpush1.msra.mxu0 0.0
    %1355 = vmatprep.subr.mxu0 0.0
    %1356 = vmatpush1.msra.mxu0 0.0
    %1357 = vmatprep.subr.mxu0 0.0
    %1358 = vmatpush1.msra.mxu0 0.0
    %1359 = vmatprep.subr.mxu0 0.0
    %1360 = vmatpush1.msra.mxu0 0.0
    %1361 = vmatprep.subr.mxu0 0.0
    %1362 = vmatpush1.msra.mxu0 0.0
    %1363 = vmatprep.subr.mxu0 0.0
    %1364 = vmatpush1.msra.mxu0 0.0
    %1365 = vmatprep.subr.mxu0 0.0
    %1366 = vmatpush1.msra.mxu0 0.0
    %1367 = vmatprep.subr.mxu0 0.0
    %1368 = vmatpush1.msra.mxu0 0.0
    %1369 = vmatprep.subr.mxu0 0.0
    %1370 = vmatpush1.msra.mxu0 0.0
    %1371 = vmatprep.mubr.f32.mxu0 0.0
    %1372 = vmatmul.mubr.f32.gmra.mrb[0].mxu0 %v657
    %v1373 = vpop.f32.mrb[0].mxu0
    %v1374 = vadd.f32 0.0, %v1373
    %v1375 = vpop.f32.mrb[0].mxu0
    %1376 = vmatprep.mubr.f32.mxu0 0.0
    %1377 = vmatmul.mubr.f32.gmra.mrb[0].mxu0 %v658
    %v1378 = vpop.f32.mrb[0].mxu0
    %v1379 = vadd.f32 0.0, %v1378
    %v1380 = vpop.f32.mrb[0].mxu0
    %1381 = vmatprep.mubr.f32.mxu0 0.0
    %1382 = vmatmul.mubr.f32.gmra.mrb[0].mxu0 %v659
    %v1383 = vpop.f32.mrb[0].mxu0
    %v1384 = vadd.f32 0.0, %v1383
    %v1385 = vpop.f32.mrb[0].mxu0
    %1386 = vmatprep.mubr.f32.mxu0 0.0
    %1387 = vmatmul.mubr.f32.gmra.mrb[0].mxu0 %v660
    %v1388 = vpop.f32.mrb[0].mxu0
    %v1389 = vadd.f32 0.0, %v1388
    %v1390 = vpop.f32.mrb[0].mxu0
    %1391 = vmatprep.mubr.f32.mxu0 0.0
    %1392 = vmatmul.mubr.f32.gmra.mrb[0].mxu0 %v661
    %v1393 = vpop.f32.mrb[0].mxu0
    %v1394 = vadd.f32 0.0, %v1393
    %v1395 = vpop.f32.mrb[0].mxu0
    %1396 = vmatprep.mubr.f32.mxu0 0.0
    %1397 = vmatmul.mubr.f32.gmra.mrb[0].mxu0 %v662
    %v1398 = vpop.f32.mrb[0].mxu0
    %v1399 = vadd.f32 0.0, %v1398
    %v1400 = vpop.f32.mrb[0].mxu0
    %1401 = vmatprep.mubr.f32.mxu0 0.0
    %1402 = vmatmul.mubr.f32.gmra.mrb[0].mxu0 %v663
    %v1403 = vpop.f32.mrb[0].mxu0
    %v1404 = vadd.f32 0.0, %v1403
    %v1405 = vpop.f32.mrb[0].mxu0
    %1406 = vmatprep.mubr.f32.mxu0 0.0
    %1407 = vmatmul.mubr.f32.gmra.mrb[0].mxu0 %v664
    %v1408 = vpop.f32.mrb[0].mxu0
    %v1409 = vadd.f32 0.0, %v1408
    %v1410 = vpop.f32.mrb[0].mxu0
    %1411 = vmatprep.mubr.f32.mxu0 0.0
    %1412 = vmatmul.mubr.f32.gmra.mrb[0].mxu0 %v665
    %v1413 = vpop.f32.mrb[0].mxu0
    %v1414 = vadd.f32 0.0, %v1413
    %v1415 = vpop.f32.mrb[0].mxu0
    %1416 = vmatprep.mubr.f32.mxu0 0.0
    %1417 = vmatmul.mubr.f32.gmra.mrb[0].mxu0 %v666
    %v1418 = vpop.f32.mrb[0].mxu0
    %v1419 = vadd.f32 0.0, %v1418
    %v1420 = vpop.f32.mrb[0].mxu0
    %1421 = vmatprep.mubr.f32.mxu0 0.0
    %1422 = vmatmul.mubr.f32.gmra.mrb[0].mxu0 %v667
    %v1423 = vpop.f32.mrb[0].mxu0
    %v1424 = vadd.f32 0.0, %v1423
    %v1425 = vpop.f32.mrb[0].mxu0
    %1426 = vmatprep.mubr.f32.mxu0 0.0
    %1427 = vmatmul.mubr.f32.gmra.mrb[0].mxu0 %v668
    %v1428 = vpop.f32.mrb[0].mxu0
    %v1429 = vadd.f32 0.0, %v1428
    %v1430 = vpop.f32.mrb[0].mxu0
    %1431 = vmatprep.mubr.f32.mxu0 0.0
    %1432 = vmatmul.mubr.f32.gmra.mrb[0].mxu0 %v669
    %v1433 = vpop.f32.mrb[0].mxu0
    %v1434 = vadd.f32 0.0, %v1433
    %v1435 = vpop.f32.mrb[0].mxu0
    %1436 = vmatprep.mubr.f32.mxu0 0.0
    %1437 = vmatmul.mubr.f32.gmra.mrb[0].mxu0 %v670
    %v1438 = vpop.f32.mrb[0].mxu0
    %v1439 = vadd.f32 0.0, %v1438
    %v1440 = vpop.f32.mrb[0].mxu0
    %1441 = vmatprep.mubr.f32.mxu0 0.0
    %1442 = vmatmul.mubr.f32.gmra.mrb[0].mxu0 %v671
    %v1443 = vpop.f32.mrb[0].mxu0
    %v1444 = vadd.f32 0.0, %v1443
    %v1445 = vpop.f32.mrb[0].mxu0
    %1446 = vmatprep.mubr.f32.mxu0 0.0
    %1447 = vmatmul.mubr.f32.gmra.mrb[0].mxu0 %v672
    %v1448 = vpop.f32.mrb[0].mxu0
    %v1449 = vadd.f32 0.0, %v1448
    %v1450 = vpop.f32.mrb[0].mxu0
    %1451 = vdwg.mxu0
    %v1452 = vadd.f32 %v1275, %v1374
    %v1453 = vadd.f32 %v1276, %v1379
    %v1454 = vadd.f32 %v1277, %v1384
    %v1455 = vadd.f32 %v1278, %v1389
    %v1456 = vadd.f32 %v1279, %v1394
    %v1457 = vadd.f32 %v1280, %v1399
    %v1458 = vadd.f32 %v1281, %v1404
    %v1459 = vadd.f32 %v1282, %v1409
    %v1460 = vadd.f32 %v1283, %v1414
    %v1461 = vadd.f32 %v1284, %v1419
    %v1462 = vadd.f32 %v1285, %v1424
    %v1463 = vadd.f32 %v1286, %v1429
    %v1464 = vadd.f32 %v1287, %v1434
    %v1465 = vadd.f32 %v1288, %v1439
    %v1466 = vadd.f32 %v1289, %v1444
    %v1467 = vadd.f32 %v1290, %v1449
    %v1468 = vld [vmem:[%s6 + $0x280] sm:$0xff]
    %v1469 = vld [vmem:[%s6 + $0x288] sm:$0xff]
    %v1470 = vld [vmem:[%s6 + $0x290] sm:$0xff]
    %v1471 = vld [vmem:[%s6 + $0x298] sm:$0xff]
    %v1472 = vld [vmem:[%s6 + $0x2a0] sm:$0xff]
    %v1473 = vld [vmem:[%s6 + $0x2a8] sm:$0xff]
    %v1474 = vld [vmem:[%s6 + $0x2b0] sm:$0xff]
    %v1475 = vld [vmem:[%s6 + $0x2b8] sm:$0xff]
    %v1476 = vld [vmem:[%s6 + $0x2c0] sm:$0xff]
    %v1477 = vld [vmem:[%s6 + $0x2c8] sm:$0xff]
    %v1478 = vld [vmem:[%s6 + $0x2d0] sm:$0xff]
    %v1479 = vld [vmem:[%s6 + $0x2d8] sm:$0xff]
    %v1480 = vld [vmem:[%s6 + $0x2e0] sm:$0xff]
    %v1481 = vld [vmem:[%s6 + $0x2e8] sm:$0xff]
    %v1482 = vld [vmem:[%s6 + $0x2f0] sm:$0xff]
    %v1483 = vld [vmem:[%s6 + $0x2f8] sm:$0xff]
    %1484 = vmatprep.subr.mxu0 0.0
    %1485 = vmatpush1.msra.mxu0 %v1468
    %1486 = vmatprep.subr.mxu0 0.0
    %1487 = vmatpush1.msra.mxu0 %v1469
    %1488 = vmatprep.subr.mxu0 0.0
    %1489 = vmatpush1.msra.mxu0 %v1470
    %1490 = vmatprep.subr.mxu0 0.0
    %1491 = vmatpush1.msra.mxu0 %v1471
    %1492 = vmatprep.subr.mxu0 0.0
    %1493 = vmatpush1.msra.mxu0 %v1472
    %1494 = vmatprep.subr.mxu0 0.0
    %1495 = vmatpush1.msra.mxu0 %v1473
    %1496 = vmatprep.subr.mxu0 0.0
    %1497 = vmatpush1.msra.mxu0 %v1474
    %1498 = vmatprep.subr.mxu0 0.0
    %1499 = vmatpush1.msra.mxu0 %v1475
    %1500 = vmatprep.subr.mxu0 0.0
    %1501 = vmatpush1.msra.mxu0 %v1476
    %1502 = vmatprep.subr.mxu0 0.0
    %1503 = vmatpush1.msra.mxu0 %v1477
    %1504 = vmatprep.subr.mxu0 0.0
    %1505 = vmatpush1.msra.mxu0 %v1478
    %1506 = vmatprep.subr.mxu0 0.0
    %1507 = vmatpush1.msra.mxu0 %v1479
    %1508 = vmatprep.subr.mxu0 0.0
    %1509 = vmatpush1.msra.mxu0 %v1480
    %1510 = vmatprep.subr.mxu0 0.0
    %1511 = vmatpush1.msra.mxu0 %v1481
    %1512 = vmatprep.subr.mxu0 0.0
    %1513 = vmatpush1.msra.mxu0 %v1482
    %1514 = vmatprep.subr.mxu0 0.0
    %1515 = vmatpush1.msra.mxu0 %v1483
    %1516 = vmatprep.subr.mxu0 0.0
    %1517 = vmatpush1.msra.mxu0 0.0
    %1518 = vmatprep.subr.mxu0 0.0
    %1519 = vmatpush1.msra.mxu0 0.0
    %1520 = vmatprep.subr.mxu0 0.0
    %1521 = vmatpush1.msra.mxu0 0.0
    %1522 = vmatprep.subr.mxu0 0.0
    %1523 = vmatpush1.msra.mxu0 0.0
    %1524 = vmatprep.subr.mxu0 0.0
    %1525 = vmatpush1.msra.mxu0 0.0
    %1526 = vmatprep.subr.mxu0 0.0
    %1527 = vmatpush1.msra.mxu0 0.0
    %1528 = vmatprep.subr.mxu0 0.0
    %1529 = vmatpush1.msra.mxu0 0.0
    %1530 = vmatprep.subr.mxu0 0.0
    %1531 = vmatpush1.msra.mxu0 0.0
    %1532 = vmatprep.subr.mxu0 0.0
    %1533 = vmatpush1.msra.mxu0 0.0
    %1534 = vmatprep.subr.mxu0 0.0
    %1535 = vmatpush1.msra.mxu0 0.0
    %1536 = vmatprep.subr.mxu0 0.0
    %1537 = vmatpush1.msra.mxu0 0.0
    %1538 = vmatprep.subr.mxu0 0.0
    %1539 = vmatpush1.msra.mxu0 0.0
    %1540 = vmatprep.subr.mxu0 0.0
    %1541 = vmatpush1.msra.mxu0 0.0
    %1542 = vmatprep.subr.mxu0 0.0
    %1543 = vmatpush1.msra.mxu0 0.0
    %1544 = vmatprep.subr.mxu0 0.0
    %1545 = vmatpush1.msra.mxu0 0.0
    %1546 = vmatprep.subr.mxu0 0.0
    %1547 = vmatpush1.msra.mxu0 0.0
    %1548 = vmatprep.mubr.f32.mxu0 0.0
    %1549 = vmatmul.mubr.f32.gmra.mrb[0].mxu0 %v705
    %v1550 = vpop.f32.mrb[0].mxu0
    %v1551 = vadd.f32 0.0, %v1550
    %v1552 = vpop.f32.mrb[0].mxu0
    %1553 = vmatprep.mubr.f32.mxu0 0.0
    %1554 = vmatmul.mubr.f32.gmra.mrb[0].mxu0 %v706
    %v1555 = vpop.f32.mrb[0].mxu0
    %v1556 = vadd.f32 0.0, %v1555
    %v1557 = vpop.f32.mrb[0].mxu0
    %1558 = vmatprep.mubr.f32.mxu0 0.0
    %1559 = vmatmul.mubr.f32.gmra.mrb[0].mxu0 %v707
    %v1560 = vpop.f32.mrb[0].mxu0
    %v1561 = vadd.f32 0.0, %v1560
    %v1562 = vpop.f32.mrb[0].mxu0
    %1563 = vmatprep.mubr.f32.mxu0 0.0
    %1564 = vmatmul.mubr.f32.gmra.mrb[0].mxu0 %v708
    %v1565 = vpop.f32.mrb[0].mxu0
    %v1566 = vadd.f32 0.0, %v1565
    %v1567 = vpop.f32.mrb[0].mxu0
    %1568 = vmatprep.mubr.f32.mxu0 0.0
    %1569 = vmatmul.mubr.f32.gmra.mrb[0].mxu0 %v709
    %v1570 = vpop.f32.mrb[0].mxu0
    %v1571 = vadd.f32 0.0, %v1570
    %v1572 = vpop.f32.mrb[0].mxu0
    %1573 = vmatprep.mubr.f32.mxu0 0.0
    %1574 = vmatmul.mubr.f32.gmra.mrb[0].mxu0 %v710
    %v1575 = vpop.f32.mrb[0].mxu0
    %v1576 = vadd.f32 0.0, %v1575
    %v1577 = vpop.f32.mrb[0].mxu0
    %1578 = vmatprep.mubr.f32.mxu0 0.0
    %1579 = vmatmul.mubr.f32.gmra.mrb[0].mxu0 %v711
    %v1580 = vpop.f32.mrb[0].mxu0
    %v1581 = vadd.f32 0.0, %v1580
    %v1582 = vpop.f32.mrb[0].mxu0
    %1583 = vmatprep.mubr.f32.mxu0 0.0
    %1584 = vmatmul.mubr.f32.gmra.mrb[0].mxu0 %v712
    %v1585 = vpop.f32.mrb[0].mxu0
    %v1586 = vadd.f32 0.0, %v1585
    %v1587 = vpop.f32.mrb[0].mxu0
    %1588 = vmatprep.mubr.f32.mxu0 0.0
    %1589 = vmatmul.mubr.f32.gmra.mrb[0].mxu0 %v713
    %v1590 = vpop.f32.mrb[0].mxu0
    %v1591 = vadd.f32 0.0, %v1590
    %v1592 = vpop.f32.mrb[0].mxu0
    %1593 = vmatprep.mubr.f32.mxu0 0.0
    %1594 = vmatmul.mubr.f32.gmra.mrb[0].mxu0 %v714
    %v1595 = vpop.f32.mrb[0].mxu0
    %v1596 = vadd.f32 0.0, %v1595
    %v1597 = vpop.f32.mrb[0].mxu0
    %1598 = vmatprep.mubr.f32.mxu0 0.0
    %1599 = vmatmul.mubr.f32.gmra.mrb[0].mxu0 %v715
    %v1600 = vpop.f32.mrb[0].mxu0
    %v1601 = vadd.f32 0.0, %v1600
    %v1602 = vpop.f32.mrb[0].mxu0
    %1603 = vmatprep.mubr.f32.mxu0 0.0
    %1604 = vmatmul.mubr.f32.gmra.mrb[0].mxu0 %v716
    %v1605 = vpop.f32.mrb[0].mxu0
    %v1606 = vadd.f32 0.0, %v1605
    %v1607 = vpop.f32.mrb[0].mxu0
    %1608 = vmatprep.mubr.f32.mxu0 0.0
    %1609 = vmatmul.mubr.f32.gmra.mrb[0].mxu0 %v717
    %v1610 = vpop.f32.mrb[0].mxu0
    %v1611 = vadd.f32 0.0, %v1610
    %v1612 = vpop.f32.mrb[0].mxu0
    %1613 = vmatprep.mubr.f32.mxu0 0.0
    %1614 = vmatmul.mubr.f32.gmra.mrb[0].mxu0 %v718
    %v1615 = vpop.f32.mrb[0].mxu0
    %v1616 = vadd.f32 0.0, %v1615
    %v1617 = vpop.f32.mrb[0].mxu0
    %1618 = vmatprep.mubr.f32.mxu0 0.0
    %1619 = vmatmul.mubr.f32.gmra.mrb[0].mxu0 %v719
    %v1620 = vpop.f32.mrb[0].mxu0
    %v1621 = vadd.f32 0.0, %v1620
    %v1622 = vpop.f32.mrb[0].mxu0
    %1623 = vmatprep.mubr.f32.mxu0 0.0
    %1624 = vmatmul.mubr.f32.gmra.mrb[0].mxu0 %v720
    %v1625 = vpop.f32.mrb[0].mxu0
    %v1626 = vadd.f32 0.0, %v1625
    %v1627 = vpop.f32.mrb[0].mxu0
    %1628 = vdwg.mxu0
    %v1629 = vadd.f32 %v1452, %v1551
    %v1630 = vadd.f32 %v1453, %v1556
    %v1631 = vadd.f32 %v1454, %v1561
    %v1632 = vadd.f32 %v1455, %v1566
    %v1633 = vadd.f32 %v1456, %v1571
    %v1634 = vadd.f32 %v1457, %v1576
    %v1635 = vadd.f32 %v1458, %v1581
    %v1636 = vadd.f32 %v1459, %v1586
    %v1637 = vadd.f32 %v1460, %v1591
    %v1638 = vadd.f32 %v1461, %v1596
    %v1639 = vadd.f32 %v1462, %v1601
    %v1640 = vadd.f32 %v1463, %v1606
    %v1641 = vadd.f32 %v1464, %v1611
    %v1642 = vadd.f32 %v1465, %v1616
    %v1643 = vadd.f32 %v1466, %v1621
    %v1644 = vadd.f32 %v1467, %v1626
    %v1645 = vmax.f32 %v1629, 0.0
    %v1646 = vmax.f32 %v1630, 0.0
    %v1647 = vmax.f32 %v1631, 0.0
    %v1648 = vmax.f32 %v1632, 0.0
    %v1649 = vmax.f32 %v1633, 0.0
    %v1650 = vmax.f32 %v1634, 0.0
    %v1651 = vmax.f32 %v1635, 0.0
    %v1652 = vmax.f32 %v1636, 0.0
    %v1653 = vmax.f32 %v1637, 0.0
    %v1654 = vmax.f32 %v1638, 0.0
    %v1655 = vmax.f32 %v1639, 0.0
    %v1656 = vmax.f32 %v1640, 0.0
    %v1657 = vmax.f32 %v1641, 0.0
    %v1658 = vmax.f32 %v1642, 0.0
    %v1659 = vmax.f32 %v1643, 0.0
    %v1660 = vmax.f32 %v1644, 0.0
    %v1661 = vld [vmem:[%s8] sm:$0xff]
    %v1662 = vld [vmem:[%s8 + $0x8] sm:$0xff]
    %v1663 = vld [vmem:[%s8 + $0x10] sm:$0xff]
    %v1664 = vld [vmem:[%s8 + $0x18] sm:$0xff]
    %v1665 = vld [vmem:[%s8 + $0x20] sm:$0xff]
    %v1666 = vld [vmem:[%s8 + $0x28] sm:$0xff]
    %v1667 = vld [vmem:[%s8 + $0x30] sm:$0xff]
    %v1668 = vld [vmem:[%s8 + $0x38] sm:$0xff]
    %v1669 = vld [vmem:[%s8 + $0x40] sm:$0xff]
    %v1670 = vld [vmem:[%s8 + $0x48] sm:$0xff]
    %v1671 = vld [vmem:[%s8 + $0x50] sm:$0xff]
    %v1672 = vld [vmem:[%s8 + $0x58] sm:$0xff]
    %v1673 = vld [vmem:[%s8 + $0x60] sm:$0xff]
    %v1674 = vld [vmem:[%s8 + $0x68] sm:$0xff]
    %v1675 = vld [vmem:[%s8 + $0x70] sm:$0xff]
    %v1676 = vld [vmem:[%s8 + $0x78] sm:$0xff]
    %v1677 = vld [vmem:[%s9] sm:$0x1]
    %v1679 = vlaneseq
    %v1680 = vshrl.u32 %v1679, 7
    %v1681 = vsub.s32 0, %v1680
    %v1682 = vrot.slane %v1677, %v1681
    %1684 = vmatprep.subr.mxu0 0.0
    %1685 = vmatpush1.msra.mxu0 %v1661
    %1686 = vmatprep.subr.mxu0 0.0
    %1687 = vmatpush1.msra.mxu0 %v1662
    %1688 = vmatprep.subr.mxu0 0.0
    %1689 = vmatpush1.msra.mxu0 %v1663
    %1690 = vmatprep.subr.mxu0 0.0
    %1691 = vmatpush1.msra.mxu0 %v1664
    %1692 = vmatprep.subr.mxu0 0.0
    %1693 = vmatpush1.msra.mxu0 %v1665
    %1694 = vmatprep.subr.mxu0 0.0
    %1695 = vmatpush1.msra.mxu0 %v1666
    %1696 = vmatprep.subr.mxu0 0.0
    %1697 = vmatpush1.msra.mxu0 %v1667
    %1698 = vmatprep.subr.mxu0 0.0
    %1699 = vmatpush1.msra.mxu0 %v1668
    %1700 = vmatprep.subr.mxu0 0.0
    %1701 = vmatpush1.msra.mxu0 %v1669
    %1702 = vmatprep.subr.mxu0 0.0
    %1703 = vmatpush1.msra.mxu0 %v1670
    %1704 = vmatprep.subr.mxu0 0.0
    %1705 = vmatpush1.msra.mxu0 %v1671
    %1706 = vmatprep.subr.mxu0 0.0
    %1707 = vmatpush1.msra.mxu0 %v1672
    %1708 = vmatprep.subr.mxu0 0.0
    %1709 = vmatpush1.msra.mxu0 %v1673
    %1710 = vmatprep.subr.mxu0 0.0
    %1711 = vmatpush1.msra.mxu0 %v1674
    %1712 = vmatprep.subr.mxu0 0.0
    %1713 = vmatpush1.msra.mxu0 %v1675
    %1714 = vmatprep.subr.mxu0 0.0
    %1715 = vmatpush1.msra.mxu0 %v1676
    %1716 = vmatprep.subr.mxu0 0.0
    %1717 = vmatpush1.msra.mxu0 0.0
    %1718 = vmatprep.subr.mxu0 0.0
    %1719 = vmatpush1.msra.mxu0 0.0
    %1720 = vmatprep.subr.mxu0 0.0
    %1721 = vmatpush1.msra.mxu0 0.0
    %1722 = vmatprep.subr.mxu0 0.0
    %1723 = vmatpush1.msra.mxu0 0.0
    %1724 = vmatprep.subr.mxu0 0.0
    %1725 = vmatpush1.msra.mxu0 0.0
    %1726 = vmatprep.subr.mxu0 0.0
    %1727 = vmatpush1.msra.mxu0 0.0
    %1728 = vmatprep.subr.mxu0 0.0
    %1729 = vmatpush1.msra.mxu0 0.0
    %1730 = vmatprep.subr.mxu0 0.0
    %1731 = vmatpush1.msra.mxu0 0.0
    %1732 = vmatprep.subr.mxu0 0.0
    %1733 = vmatpush1.msra.mxu0 0.0
    %1734 = vmatprep.subr.mxu0 0.0
    %1735 = vmatpush1.msra.mxu0 0.0
    %1736 = vmatprep.subr.mxu0 0.0
    %1737 = vmatpush1.msra.mxu0 0.0
    %1738 = vmatprep.subr.mxu0 0.0
    %1739 = vmatpush1.msra.mxu0 0.0
    %1740 = vmatprep.subr.mxu0 0.0
    %1741 = vmatpush1.msra.mxu0 0.0
    %1742 = vmatprep.subr.mxu0 0.0
    %1743 = vmatpush1.msra.mxu0 0.0
    %1744 = vmatprep.subr.mxu0 0.0
    %1745 = vmatpush1.msra.mxu0 0.0
    %1746 = vmatprep.subr.mxu0 0.0
    %1747 = vmatpush1.msra.mxu0 0.0
    %1748 = vmatprep.mubr.f32.mxu0 0.0
    %1749 = vmatmul.mubr.f32.gmra.mrb[0].mxu0 %v1645
    %v1750 = vpop.f32.mrb[0].mxu0
    %v1751 = vadd.f32 %v1682, %v1750
    %v1752 = vpop.f32.mrb[0].mxu0
    %1753 = vmatprep.mubr.f32.mxu0 0.0
    %1754 = vmatmul.mubr.f32.gmra.mrb[0].mxu0 %v1646
    %v1755 = vpop.f32.mrb[0].mxu0
    %v1756 = vadd.f32 %v1682, %v1755
    %v1757 = vpop.f32.mrb[0].mxu0
    %1758 = vmatprep.mubr.f32.mxu0 0.0
    %1759 = vmatmul.mubr.f32.gmra.mrb[0].mxu0 %v1647
    %v1760 = vpop.f32.mrb[0].mxu0
    %v1761 = vadd.f32 %v1682, %v1760
    %v1762 = vpop.f32.mrb[0].mxu0
    %1763 = vmatprep.mubr.f32.mxu0 0.0
    %1764 = vmatmul.mubr.f32.gmra.mrb[0].mxu0 %v1648
    %v1765 = vpop.f32.mrb[0].mxu0
    %v1766 = vadd.f32 %v1682, %v1765
    %v1767 = vpop.f32.mrb[0].mxu0
    %1768 = vmatprep.mubr.f32.mxu0 0.0
    %1769 = vmatmul.mubr.f32.gmra.mrb[0].mxu0 %v1649
    %v1770 = vpop.f32.mrb[0].mxu0
    %v1771 = vadd.f32 %v1682, %v1770
    %v1772 = vpop.f32.mrb[0].mxu0
    %1773 = vmatprep.mubr.f32.mxu0 0.0
    %1774 = vmatmul.mubr.f32.gmra.mrb[0].mxu0 %v1650
    %v1775 = vpop.f32.mrb[0].mxu0
    %v1776 = vadd.f32 %v1682, %v1775
    %v1777 = vpop.f32.mrb[0].mxu0
    %1778 = vmatprep.mubr.f32.mxu0 0.0
    %1779 = vmatmul.mubr.f32.gmra.mrb[0].mxu0 %v1651
    %v1780 = vpop.f32.mrb[0].mxu0
    %v1781 = vadd.f32 %v1682, %v1780
    %v1782 = vpop.f32.mrb[0].mxu0
    %1783 = vmatprep.mubr.f32.mxu0 0.0
    %1784 = vmatmul.mubr.f32.gmra.mrb[0].mxu0 %v1652
    %v1785 = vpop.f32.mrb[0].mxu0
    %v1786 = vadd.f32 %v1682, %v1785
    %v1787 = vpop.f32.mrb[0].mxu0
    %1788 = vmatprep.mubr.f32.mxu0 0.0
    %1789 = vmatmul.mubr.f32.gmra.mrb[0].mxu0 %v1653
    %v1790 = vpop.f32.mrb[0].mxu0
    %v1791 = vadd.f32 %v1682, %v1790
    %v1792 = vpop.f32.mrb[0].mxu0
    %1793 = vmatprep.mubr.f32.mxu0 0.0
    %1794 = vmatmul.mubr.f32.gmra.mrb[0].mxu0 %v1654
    %v1795 = vpop.f32.mrb[0].mxu0
    %v1796 = vadd.f32 %v1682, %v1795
    %v1797 = vpop.f32.mrb[0].mxu0
    %1798 = vmatprep.mubr.f32.mxu0 0.0
    %1799 = vmatmul.mubr.f32.gmra.mrb[0].mxu0 %v1655
    %v1800 = vpop.f32.mrb[0].mxu0
    %v1801 = vadd.f32 %v1682, %v1800
    %v1802 = vpop.f32.mrb[0].mxu0
    %1803 = vmatprep.mubr.f32.mxu0 0.0
    %1804 = vmatmul.mubr.f32.gmra.mrb[0].mxu0 %v1656
    %v1805 = vpop.f32.mrb[0].mxu0
    %v1806 = vadd.f32 %v1682, %v1805
    %v1807 = vpop.f32.mrb[0].mxu0
    %1808 = vmatprep.mubr.f32.mxu0 0.0
    %1809 = vmatmul.mubr.f32.gmra.mrb[0].mxu0 %v1657
    %v1810 = vpop.f32.mrb[0].mxu0
    %v1811 = vadd.f32 %v1682, %v1810
    %v1812 = vpop.f32.mrb[0].mxu0
    %1813 = vmatprep.mubr.f32.mxu0 0.0
    %1814 = vmatmul.mubr.f32.gmra.mrb[0].mxu0 %v1658
    %v1815 = vpop.f32.mrb[0].mxu0
    %v1816 = vadd.f32 %v1682, %v1815
    %v1817 = vpop.f32.mrb[0].mxu0
    %1818 = vmatprep.mubr.f32.mxu0 0.0
    %1819 = vmatmul.mubr.f32.gmra.mrb[0].mxu0 %v1659
    %v1820 = vpop.f32.mrb[0].mxu0
    %v1821 = vadd.f32 %v1682, %v1820
    %v1822 = vpop.f32.mrb[0].mxu0
    %1823 = vmatprep.mubr.f32.mxu0 0.0
    %1824 = vmatmul.mubr.f32.gmra.mrb[0].mxu0 %v1660
    %v1825 = vpop.f32.mrb[0].mxu0
    %v1826 = vadd.f32 %v1682, %v1825
    %v1827 = vpop.f32.mrb[0].mxu0
    %1828 = vdwg.mxu0
    %1829 = vst [vmem:[%s10] sm:$0xff] %v1751
    %1830 = vst [vmem:[%s10 + $0x8] sm:$0xff] %v1756
    %1831 = vst [vmem:[%s10 + $0x10] sm:$0xff] %v1761
    %1832 = vst [vmem:[%s10 + $0x18] sm:$0xff] %v1766
    %1833 = vst [vmem:[%s10 + $0x20] sm:$0xff] %v1771
    %1834 = vst [vmem:[%s10 + $0x28] sm:$0xff] %v1776
    %1835 = vst [vmem:[%s10 + $0x30] sm:$0xff] %v1781
    %1836 = vst [vmem:[%s10 + $0x38] sm:$0xff] %v1786
    %1837 = vst [vmem:[%s10 + $0x40] sm:$0xff] %v1791
    %1838 = vst [vmem:[%s10 + $0x48] sm:$0xff] %v1796
    %1839 = vst [vmem:[%s10 + $0x50] sm:$0xff] %v1801
    %1840 = vst [vmem:[%s10 + $0x58] sm:$0xff] %v1806
    %1841 = vst [vmem:[%s10 + $0x60] sm:$0xff] %v1811
    %1842 = vst [vmem:[%s10 + $0x68] sm:$0xff] %v1816
    %1843 = vst [vmem:[%s10 + $0x70] sm:$0xff] %v1821
    %1844 = vst [vmem:[%s10 + $0x78] sm:$0xff] %v1826
  $region49: #{auto_ad_forward.15} parent=0 // pred_fallthru
    _
  // Predicated region
  $region50: #{auto_ad_forward.15} parent=0 // pred_check
    _
  $region51: #{auto_ad_forward.15} parent=0 // pred_check_branch
    %1846 = sbr.rel (0) target = $region53
  $region52: #{auto_ad_forward.15} parent=0 // pred_region
    _
  $region53: #{auto_ad_forward.15} parent=0 // pred_fallthru
    _
  // Predicated region
  $region54: #{auto_ad_forward.15} parent=0 // pred_check
    _
  $region55: #{auto_ad_forward.15} parent=0 // pred_check_branch
    %1848 = sbr.rel (0) target = $region57
  $region56: #{auto_ad_forward.15} parent=0 // pred_region
    _
  $region57: #{auto_ad_forward.15} parent=0 // pred_fallthru
    _

</llo_original>
